<compile_context>
chip_gen: v7x
topology: tpu7x:2x2x1
jax: 0.10.0
libtpu: 0.0.40
codegen_flags: <defaults>
</compile_context>

<pallas_src>
import numpy as np
import jax
import jax.numpy as jnp
from jax import lax
from jax.experimental import pallas as pl
from jax.experimental.pallas import tpu as pltpu

EPS = 1e-5


# ------------------------------ fused kernel --------------------------------

def fused_kernel(x_ref, t1_ref, t2_ref, t3_ref, t4_ref,
                 sh1_ref, sh2_ref, sc2_ref, tb2_ref, sh3_ref, sh4_ref,
                 wfc_ref, bfc_ref, o_ref):
    """Whole network for one sample: 4 convs (Toeplitz matmuls) + folded BN
    affines + ReLUs + FC, everything resident in VMEM."""

    def conv3x(x, t_ref):
        # VALID conv along H realized as one matmul per kernel row.
        kh_total = t_ref.shape[0]
        hout = x.shape[0] - kh_total + 1
        acc = jnp.dot(x[0:hout, :], t_ref[0],
                      preferred_element_type=jnp.float32)
        for kh in range(1, kh_total):
            acc = acc + jnp.dot(x[kh:kh + hout, :], t_ref[kh],
                                preferred_element_type=jnp.float32)
        return acc

    x = x_ref[0]                                            # (24, 240)

    # L1: conv1 -> bn1 -> relu   (bn1 scale folded into T1 columns)
    a = jnp.maximum(conv3x(x, t1_ref) + sh1_ref[...], 0.0)  # (22, 512)
    # L2: conv2 -> relu -> bn2
    a = jnp.maximum(conv3x(a, t2_ref) + sh2_ref[...], 0.0)
    a = a * sc2_ref[...] + tb2_ref[...]                     # (20, 384)
    # L3: conv3 (+ bias)
    a = conv3x(a, t3_ref) + sh3_ref[...]                    # (18, 384)
    # L4: conv4 -> bn3(x)+bn4(x)  ((s3+s4) folded into T4 columns)
    a = conv3x(a, t4_ref) + sh4_ref[...]                    # (16, 384)

    # FC over the torch NCHW-flatten order, realized with a row-permuted
    # weight wfc_ref of shape (Hout, Wout*Cout_pad, 10): out = sum_h a[h]@W[h]
    out = bfc_ref[...]                                      # (1, 10)
    for h in range(wfc_ref.shape[0]):
        out = out + jnp.dot(a[h:h + 1, :], wfc_ref[h],
                            preferred_element_type=jnp.float32)
    o_ref[0] = out.astype(o_ref.dtype)


@jax.jit
def pallas_forward(x_nchw, prep):
    n = x_nchw.shape[0]
    # NCHW -> per-sample (H, W*C) slabs (channels fastest / lane dim).
    x = jnp.transpose(x_nchw, (0, 2, 3, 1)).reshape(n, 24, 240)

    out = pl.pallas_call(
        fused_kernel,
        out_shape=jax.ShapeDtypeStruct((n, 1, 10), jnp.float32),
        grid=(n,),
        in_specs=[
            pl.BlockSpec((1, 24, 240), lambda i: (i, 0, 0)),     # x
            pl.BlockSpec((3, 240, 512), lambda i: (0, 0, 0)),    # T1
            pl.BlockSpec((3, 512, 384), lambda i: (0, 0, 0)),    # T2
            pl.BlockSpec((3, 384, 384), lambda i: (0, 0, 0)),    # T3
            pl.BlockSpec((3, 384, 384), lambda i: (0, 0, 0)),    # T4
            pl.BlockSpec((1, 512), lambda i: (0, 0)),            # sh1
            pl.BlockSpec((1, 384), lambda i: (0, 0)),            # sh2
            pl.BlockSpec((1, 384), lambda i: (0, 0)),            # sc2
            pl.BlockSpec((1, 384), lambda i: (0, 0)),            # tb2
            pl.BlockSpec((1, 384), lambda i: (0, 0)),            # sh3
            pl.BlockSpec((1, 384), lambda i: (0, 0)),            # sh4
            pl.BlockSpec((16, 384, 10), lambda i: (0, 0, 0)),    # Wfc (perm)
            pl.BlockSpec((1, 10), lambda i: (0, 0)),             # bfc
        ],
        out_specs=pl.BlockSpec((1, 1, 10), lambda i: (i, 0, 0)),
        compiler_params=pltpu.CompilerParams(
            dimension_semantics=("parallel",),
            vmem_limit_bytes=48 * 1024 * 1024),
    )(x, prep["T1"], prep["T2"], prep["T3"], prep["T4"],
      prep["sh1"], prep["sh2"], prep["sc2"], prep["tb2"],
      prep["sh3"], prep["sh4"], prep["Wfc"], prep["bfc"])
    return out.reshape(n, 10)


# --------------------- one-time parameter preprocessing ---------------------

def prepare_inference_params(p):
    """Host-side, run once: BN folding, Toeplitz expansion with lane padding,
    affine tiling, FC weight permutation.  Keeps pallas_forward jit-able."""
    f = lambda a: np.asarray(a, np.float32)

    def fold(stats):
        g, b, m, v = (f(s) for s in stats)
        s = g / np.sqrt(v + EPS)
        return s, b - m * s

    s1, t1 = fold(p["bn1"])
    s2, t2 = fold(p["bn2"])
    s3, t3 = fold(p["bn3"])
    s4, t4 = fold(p["bn4"])

    def toeplitz(w, win, k_pad, n_pad):
        # (KH, KW, Cin, Cout) -> (KH, k_pad, n_pad): one matmul per kernel row
        # over the flattened (W, C) axis realizes the VALID conv.  Rows beyond
        # Win*Cin and cols beyond Wout*Cout stay zero (lane padding).
        kh_t, kw_t, cin, cout = w.shape
        wout = win - kw_t + 1
        t = np.zeros((kh_t, k_pad, n_pad), np.float32)
        for kh in range(kh_t):
            for kw in range(kw_t):
                for wo in range(wout):
                    r0 = (wo + kw) * cin
                    c0 = wo * cout
                    t[kh, r0:r0 + cin, c0:c0 + cout] = w[kh, kw]
        return t

    def tile_pad(vec, wout, n_pad):
        # (Cout,) -> (1, n_pad) in w*Cout + c order (channels fastest).
        v = np.zeros((1, n_pad), np.float32)
        v[0, :wout * vec.shape[0]] = np.tile(vec, wout)
        return v

    P = {}
    # L1: 24x24x10 -> 22x22x20.  Fold bn1 scale into the weight columns.
    P["T1"] = toeplitz(f(p["w1"]) * s1[None, None, None, :], 24, 240, 512)
    P["sh1"] = tile_pad(s1 * f(p["b1"]) + t1, 22, 512)
    # L2: 22x22x20 -> 20x20x15.  Bias pre-ReLU, bn2 applied post-ReLU.
    P["T2"] = toeplitz(f(p["w2"]), 22, 512, 384)
    P["sh2"] = tile_pad(f(p["b2"]), 20, 384)
    P["sc2"] = tile_pad(s2, 20, 384)
    P["tb2"] = tile_pad(t2, 20, 384)
    # L3: 20x20x15 -> 18x18x20.  Plain conv + bias.
    P["T3"] = toeplitz(f(p["w3"]), 20, 384, 384)
    P["sh3"] = tile_pad(f(p["b3"]), 18, 384)
    # L4: 18x18x20 -> 16x16x20.  bn3(x)+bn4(x) = (s3+s4)x + (t3+t4), with the
    # scale folded into the weight columns and the bias folded into the shift.
    s34 = s3 + s4
    P["T4"] = toeplitz(f(p["w4"]) * s34[None, None, None, :], 18, 384, 384)
    P["sh4"] = tile_pad(s34 * f(p["b4"]) + t3 + t4, 16, 384)
    # FC: permute rows from torch NCHW view(N,-1) order (c*256 + h*16 + w)
    # into the kernel's (h, w*20+c) activation layout; pad K 320 -> 384.
    wfc = f(p["wfc"])                               # (5120, 10)
    wp = np.zeros((16, 384, 10), np.float32)
    wp[:, :320, :] = (wfc.reshape(20, 16, 16, 10)   # (c, h, w, o)
                      .transpose(1, 2, 0, 3)        # (h, w, c, o)
                      .reshape(16, 320, 10))
    P["Wfc"] = wp
    P["bfc"] = f(p["bfc"]).reshape(1, 10)
    return {k: jnp.asarray(v) for k, v in P.items()}


# ------------------------------- params / ref --------------------------------

def init_params(key):
    keys = iter(jax.random.split(key, 32))

    def conv_init(cin, cout):
        w = jax.random.normal(next(keys), (3, 3, cin, cout), jnp.float32)
        w = w / np.sqrt(9.0 * cin)
        b = 0.1 * jax.random.normal(next(keys), (cout,), jnp.float32)
        return w, b

    def bn_init(c):
        gamma = 1.0 + 0.1 * jax.random.normal(next(keys), (c,), jnp.float32)
        beta = 0.1 * jax.random.normal(next(keys), (c,), jnp.float32)
        mean = 0.1 * jax.random.normal(next(keys), (c,), jnp.float32)
        var = jax.random.uniform(next(keys), (c,), jnp.float32,
                                 minval=0.5, maxval=1.5)
        return gamma, beta, mean, var

    p = {}
    p["w1"], p["b1"] = conv_init(10, 20)
    p["w2"], p["b2"] = conv_init(20, 15)
    p["w3"], p["b3"] = conv_init(15, 20)
    p["w4"], p["b4"] = conv_init(20, 20)
    p["bn1"] = bn_init(20)
    p["bn2"] = bn_init(15)
    p["bn3"] = bn_init(20)
    p["bn4"] = bn_init(20)
    p["wfc"] = jax.random.normal(next(keys), (5120, 10), jnp.float32) / np.sqrt(5120.0)
    p["bfc"] = 0.1 * jax.random.normal(next(keys), (10,), jnp.float32)
    return p


def reference_forward(x, p):
    def conv(x, w, b):
        w_oihw = jnp.transpose(w, (3, 2, 0, 1))
        y = lax.conv_general_dilated(
            x, w_oihw, window_strides=(1, 1), padding="VALID",
            dimension_numbers=("NCHW", "OIHW", "NCHW"))
        return y + b[None, :, None, None]

    def bn(x, stats):
        gamma, beta, mean, var = stats
        inv = gamma / jnp.sqrt(var + EPS)
        return (x - mean[None, :, None, None]) * inv[None, :, None, None] \
            + beta[None, :, None, None]

    x = conv(x, p["w1"], p["b1"])
    x = bn(x, p["bn1"])
    x = jnp.maximum(x, 0.0)
    x = conv(x, p["w2"], p["b2"])
    x = jnp.maximum(x, 0.0)
    x = bn(x, p["bn2"])
    x = conv(x, p["w3"], p["b3"])
    x = conv(x, p["w4"], p["b4"])
    x = bn(x, p["bn3"]) + bn(x, p["bn4"])
    x = x.reshape(x.shape[0], -1)
    return x @ p["wfc"] + p["bfc"]


if __name__ == "__main__":
    root = jax.random.PRNGKey(0)
    kx, kp = jax.random.split(root)
    # Input must be (N, 10, 24, 24): four VALID 3x3 convs -> 16x16 spatial,
    # 20 * 16 * 16 = 5120 = fc1 in_features.
    x = jax.random.normal(kx, (2, 10, 24, 24), jnp.float32)
    params = init_params(kp)
    prep = prepare_inference_params(params)     # one-time preprocessing

    out = pallas_forward(x, prep)
    out = jax.block_until_ready(out)
    assert out.shape == (2, 10)

    ref = reference_forward(x, params)
    # Tolerance accounts for default-precision (bf16-pass) f32 MXU matmuls.
    np.testing.assert_allclose(np.asarray(out), np.asarray(ref),
                               rtol=2e-2, atol=2e-2)
    print("KERNEL_OK")
</pallas_src>

<mosaic_0001>
module attributes {stable_mosaic.version = 11 : i64} {
  func.func @fused_kernel(%arg0: i32, %arg1: memref<1x24x240xf32, #tpu.memory_space<vmem>>, %arg2: memref<3x240x512xf32, #tpu.memory_space<vmem>>, %arg3: memref<3x512x384xf32, #tpu.memory_space<vmem>>, %arg4: memref<3x384x384xf32, #tpu.memory_space<vmem>>, %arg5: memref<3x384x384xf32, #tpu.memory_space<vmem>>, %arg6: memref<1x512xf32, #tpu.memory_space<vmem>>, %arg7: memref<1x384xf32, #tpu.memory_space<vmem>>, %arg8: memref<1x384xf32, #tpu.memory_space<vmem>>, %arg9: memref<1x384xf32, #tpu.memory_space<vmem>>, %arg10: memref<1x384xf32, #tpu.memory_space<vmem>>, %arg11: memref<1x384xf32, #tpu.memory_space<vmem>>, %arg12: memref<16x384x10xf32, #tpu.memory_space<vmem>>, %arg13: memref<1x10xf32, #tpu.memory_space<vmem>>, %arg14: memref<1x1x10xf32, #tpu.memory_space<vmem>>) attributes {dimension_semantics = [#tpu.dimension_semantics<parallel>], iteration_bounds = array<i64: 2>, scalar_prefetch = 0 : i64, scratch_operands = 0 : i64, tpu.core_type = #tpu.core_type<tc>, window_params = [{transform_indices = @transform_0, window_bounds = array<i64: 1, 24, 240>}, {pipeline_mode = #tpu.pipeline_mode<synchronous>, transform_indices = @transform_1, window_bounds = array<i64: 3, 240, 512>}, {pipeline_mode = #tpu.pipeline_mode<synchronous>, transform_indices = @transform_2, window_bounds = array<i64: 3, 512, 384>}, {pipeline_mode = #tpu.pipeline_mode<synchronous>, transform_indices = @transform_3, window_bounds = array<i64: 3, 384, 384>}, {pipeline_mode = #tpu.pipeline_mode<synchronous>, transform_indices = @transform_4, window_bounds = array<i64: 3, 384, 384>}, {pipeline_mode = #tpu.pipeline_mode<synchronous>, transform_indices = @transform_5, window_bounds = array<i64: 1, 512>}, {pipeline_mode = #tpu.pipeline_mode<synchronous>, transform_indices = @transform_6, window_bounds = array<i64: 1, 384>}, {pipeline_mode = #tpu.pipeline_mode<synchronous>, transform_indices = @transform_7, window_bounds = array<i64: 1, 384>}, {pipeline_mode = #tpu.pipeline_mode<synchronous>, transform_indices = @transform_8, window_bounds = array<i64: 1, 384>}, {pipeline_mode = #tpu.pipeline_mode<synchronous>, transform_indices = @transform_9, window_bounds = array<i64: 1, 384>}, {pipeline_mode = #tpu.pipeline_mode<synchronous>, transform_indices = @transform_10, window_bounds = array<i64: 1, 384>}, {pipeline_mode = #tpu.pipeline_mode<synchronous>, transform_indices = @transform_11, window_bounds = array<i64: 16, 384, 10>}, {pipeline_mode = #tpu.pipeline_mode<synchronous>, transform_indices = @transform_12, window_bounds = array<i64: 1, 10>}, {transform_indices = @transform_13, window_bounds = array<i64: 1, 1, 10>}]} {
    %c0 = arith.constant 0 : index
    %c0_0 = arith.constant 0 : index
    %c0_1 = arith.constant 0 : index
    %0 = vector.load %arg1[%c0, %c0_0, %c0_1] : memref<1x24x240xf32, #tpu.memory_space<vmem>>, vector<1x24x240xf32>
    %1 = vector.shape_cast %0 : vector<1x24x240xf32> to vector<24x240xf32>
    %2 = vector.extract_strided_slice %1 {offsets = [0, 0], sizes = [22, 240], strides = [1, 1]} : vector<24x240xf32> to vector<22x240xf32>
    %c0_2 = arith.constant 0 : index
    %c0_3 = arith.constant 0 : index
    %c0_4 = arith.constant 0 : index
    %3 = vector.load %arg2[%c0_2, %c0_3, %c0_4] : memref<3x240x512xf32, #tpu.memory_space<vmem>>, vector<1x240x512xf32>
    %4 = vector.shape_cast %3 : vector<1x240x512xf32> to vector<240x512xf32>
    %cst = arith.constant dense<0.000000e+00> : vector<22x512xf32>
    %5 = tpu.matmul %2, %4, %cst {dimension_numbers = #tpu.dot_dimension_numbers<[1], [0], [0], [1], [0, 0, 1, 1], [], []>} : vector<22x240xf32>, vector<240x512xf32>, vector<22x512xf32> -> vector<22x512xf32>
    %6 = vector.extract_strided_slice %1 {offsets = [1, 0], sizes = [22, 240], strides = [1, 1]} : vector<24x240xf32> to vector<22x240xf32>
    %c1 = arith.constant 1 : index
    %c0_5 = arith.constant 0 : index
    %c0_6 = arith.constant 0 : index
    %7 = vector.load %arg2[%c1, %c0_5, %c0_6] : memref<3x240x512xf32, #tpu.memory_space<vmem>>, vector<1x240x512xf32>
    %8 = vector.shape_cast %7 : vector<1x240x512xf32> to vector<240x512xf32>
    %cst_7 = arith.constant dense<0.000000e+00> : vector<22x512xf32>
    %9 = tpu.matmul %6, %8, %cst_7 {dimension_numbers = #tpu.dot_dimension_numbers<[1], [0], [0], [1], [0, 0, 1, 1], [], []>} : vector<22x240xf32>, vector<240x512xf32>, vector<22x512xf32> -> vector<22x512xf32>
    %10 = arith.addf %5, %9 : vector<22x512xf32>
    %11 = vector.extract_strided_slice %1 {offsets = [2, 0], sizes = [22, 240], strides = [1, 1]} : vector<24x240xf32> to vector<22x240xf32>
    %c2 = arith.constant 2 : index
    %c0_8 = arith.constant 0 : index
    %c0_9 = arith.constant 0 : index
    %12 = vector.load %arg2[%c2, %c0_8, %c0_9] : memref<3x240x512xf32, #tpu.memory_space<vmem>>, vector<1x240x512xf32>
    %13 = vector.shape_cast %12 : vector<1x240x512xf32> to vector<240x512xf32>
    %cst_10 = arith.constant dense<0.000000e+00> : vector<22x512xf32>
    %14 = tpu.matmul %11, %13, %cst_10 {dimension_numbers = #tpu.dot_dimension_numbers<[1], [0], [0], [1], [0, 0, 1, 1], [], []>} : vector<22x240xf32>, vector<240x512xf32>, vector<22x512xf32> -> vector<22x512xf32>
    %15 = arith.addf %10, %14 : vector<22x512xf32>
    %c0_11 = arith.constant 0 : index
    %c0_12 = arith.constant 0 : index
    %16 = vector.load %arg6[%c0_11, %c0_12] : memref<1x512xf32, #tpu.memory_space<vmem>>, vector<1x512xf32>
    %17 = vector.broadcast %16 : vector<1x512xf32> to vector<22x512xf32>
    %18 = arith.addf %15, %17 : vector<22x512xf32>
    %cst_13 = arith.constant 0.000000e+00 : f32
    %19 = vector.broadcast %cst_13 : f32 to vector<22x512xf32>
    %20 = arith.maximumf %18, %19 : vector<22x512xf32>
    %21 = vector.extract_strided_slice %20 {offsets = [0, 0], sizes = [20, 512], strides = [1, 1]} : vector<22x512xf32> to vector<20x512xf32>
    %c0_14 = arith.constant 0 : index
    %c0_15 = arith.constant 0 : index
    %c0_16 = arith.constant 0 : index
    %22 = vector.load %arg3[%c0_14, %c0_15, %c0_16] : memref<3x512x384xf32, #tpu.memory_space<vmem>>, vector<1x512x384xf32>
    %23 = vector.shape_cast %22 : vector<1x512x384xf32> to vector<512x384xf32>
    %cst_17 = arith.constant dense<0.000000e+00> : vector<20x384xf32>
    %24 = tpu.matmul %21, %23, %cst_17 {dimension_numbers = #tpu.dot_dimension_numbers<[1], [0], [0], [1], [0, 0, 1, 1], [], []>} : vector<20x512xf32>, vector<512x384xf32>, vector<20x384xf32> -> vector<20x384xf32>
    %25 = vector.extract_strided_slice %20 {offsets = [1, 0], sizes = [20, 512], strides = [1, 1]} : vector<22x512xf32> to vector<20x512xf32>
    %c1_18 = arith.constant 1 : index
    %c0_19 = arith.constant 0 : index
    %c0_20 = arith.constant 0 : index
    %26 = vector.load %arg3[%c1_18, %c0_19, %c0_20] : memref<3x512x384xf32, #tpu.memory_space<vmem>>, vector<1x512x384xf32>
    %27 = vector.shape_cast %26 : vector<1x512x384xf32> to vector<512x384xf32>
    %cst_21 = arith.constant dense<0.000000e+00> : vector<20x384xf32>
    %28 = tpu.matmul %25, %27, %cst_21 {dimension_numbers = #tpu.dot_dimension_numbers<[1], [0], [0], [1], [0, 0, 1, 1], [], []>} : vector<20x512xf32>, vector<512x384xf32>, vector<20x384xf32> -> vector<20x384xf32>
    %29 = arith.addf %24, %28 : vector<20x384xf32>
    %30 = vector.extract_strided_slice %20 {offsets = [2, 0], sizes = [20, 512], strides = [1, 1]} : vector<22x512xf32> to vector<20x512xf32>
    %c2_22 = arith.constant 2 : index
    %c0_23 = arith.constant 0 : index
    %c0_24 = arith.constant 0 : index
    %31 = vector.load %arg3[%c2_22, %c0_23, %c0_24] : memref<3x512x384xf32, #tpu.memory_space<vmem>>, vector<1x512x384xf32>
    %32 = vector.shape_cast %31 : vector<1x512x384xf32> to vector<512x384xf32>
    %cst_25 = arith.constant dense<0.000000e+00> : vector<20x384xf32>
    %33 = tpu.matmul %30, %32, %cst_25 {dimension_numbers = #tpu.dot_dimension_numbers<[1], [0], [0], [1], [0, 0, 1, 1], [], []>} : vector<20x512xf32>, vector<512x384xf32>, vector<20x384xf32> -> vector<20x384xf32>
    %34 = arith.addf %29, %33 : vector<20x384xf32>
    %c0_26 = arith.constant 0 : index
    %c0_27 = arith.constant 0 : index
    %35 = vector.load %arg7[%c0_26, %c0_27] : memref<1x384xf32, #tpu.memory_space<vmem>>, vector<1x384xf32>
    %36 = vector.broadcast %35 : vector<1x384xf32> to vector<20x384xf32>
    %37 = arith.addf %34, %36 : vector<20x384xf32>
    %cst_28 = arith.constant 0.000000e+00 : f32
    %38 = vector.broadcast %cst_28 : f32 to vector<20x384xf32>
    %39 = arith.maximumf %37, %38 : vector<20x384xf32>
    %c0_29 = arith.constant 0 : index
    %c0_30 = arith.constant 0 : index
    %40 = vector.load %arg8[%c0_29, %c0_30] : memref<1x384xf32, #tpu.memory_space<vmem>>, vector<1x384xf32>
    %41 = vector.broadcast %40 : vector<1x384xf32> to vector<20x384xf32>
    %42 = arith.mulf %39, %41 : vector<20x384xf32>
    %c0_31 = arith.constant 0 : index
    %c0_32 = arith.constant 0 : index
    %43 = vector.load %arg9[%c0_31, %c0_32] : memref<1x384xf32, #tpu.memory_space<vmem>>, vector<1x384xf32>
    %44 = vector.broadcast %43 : vector<1x384xf32> to vector<20x384xf32>
    %45 = arith.addf %42, %44 : vector<20x384xf32>
    %46 = vector.extract_strided_slice %45 {offsets = [0, 0], sizes = [18, 384], strides = [1, 1]} : vector<20x384xf32> to vector<18x384xf32>
    %c0_33 = arith.constant 0 : index
    %c0_34 = arith.constant 0 : index
    %c0_35 = arith.constant 0 : index
    %47 = vector.load %arg4[%c0_33, %c0_34, %c0_35] : memref<3x384x384xf32, #tpu.memory_space<vmem>>, vector<1x384x384xf32>
    %48 = vector.shape_cast %47 : vector<1x384x384xf32> to vector<384x384xf32>
    %cst_36 = arith.constant dense<0.000000e+00> : vector<18x384xf32>
    %49 = tpu.matmul %46, %48, %cst_36 {dimension_numbers = #tpu.dot_dimension_numbers<[1], [0], [0], [1], [0, 0, 1, 1], [], []>} : vector<18x384xf32>, vector<384x384xf32>, vector<18x384xf32> -> vector<18x384xf32>
    %50 = vector.extract_strided_slice %45 {offsets = [1, 0], sizes = [18, 384], strides = [1, 1]} : vector<20x384xf32> to vector<18x384xf32>
    %c1_37 = arith.constant 1 : index
    %c0_38 = arith.constant 0 : index
    %c0_39 = arith.constant 0 : index
    %51 = vector.load %arg4[%c1_37, %c0_38, %c0_39] : memref<3x384x384xf32, #tpu.memory_space<vmem>>, vector<1x384x384xf32>
    %52 = vector.shape_cast %51 : vector<1x384x384xf32> to vector<384x384xf32>
    %cst_40 = arith.constant dense<0.000000e+00> : vector<18x384xf32>
    %53 = tpu.matmul %50, %52, %cst_40 {dimension_numbers = #tpu.dot_dimension_numbers<[1], [0], [0], [1], [0, 0, 1, 1], [], []>} : vector<18x384xf32>, vector<384x384xf32>, vector<18x384xf32> -> vector<18x384xf32>
    %54 = arith.addf %49, %53 : vector<18x384xf32>
    %55 = vector.extract_strided_slice %45 {offsets = [2, 0], sizes = [18, 384], strides = [1, 1]} : vector<20x384xf32> to vector<18x384xf32>
    %c2_41 = arith.constant 2 : index
    %c0_42 = arith.constant 0 : index
    %c0_43 = arith.constant 0 : index
    %56 = vector.load %arg4[%c2_41, %c0_42, %c0_43] : memref<3x384x384xf32, #tpu.memory_space<vmem>>, vector<1x384x384xf32>
    %57 = vector.shape_cast %56 : vector<1x384x384xf32> to vector<384x384xf32>
    %cst_44 = arith.constant dense<0.000000e+00> : vector<18x384xf32>
    %58 = tpu.matmul %55, %57, %cst_44 {dimension_numbers = #tpu.dot_dimension_numbers<[1], [0], [0], [1], [0, 0, 1, 1], [], []>} : vector<18x384xf32>, vector<384x384xf32>, vector<18x384xf32> -> vector<18x384xf32>
    %59 = arith.addf %54, %58 : vector<18x384xf32>
    %c0_45 = arith.constant 0 : index
    %c0_46 = arith.constant 0 : index
    %60 = vector.load %arg10[%c0_45, %c0_46] : memref<1x384xf32, #tpu.memory_space<vmem>>, vector<1x384xf32>
    %61 = vector.broadcast %60 : vector<1x384xf32> to vector<18x384xf32>
    %62 = arith.addf %59, %61 : vector<18x384xf32>
    %63 = vector.extract_strided_slice %62 {offsets = [0, 0], sizes = [16, 384], strides = [1, 1]} : vector<18x384xf32> to vector<16x384xf32>
    %c0_47 = arith.constant 0 : index
    %c0_48 = arith.constant 0 : index
    %c0_49 = arith.constant 0 : index
    %64 = vector.load %arg5[%c0_47, %c0_48, %c0_49] : memref<3x384x384xf32, #tpu.memory_space<vmem>>, vector<1x384x384xf32>
    %65 = vector.shape_cast %64 : vector<1x384x384xf32> to vector<384x384xf32>
    %cst_50 = arith.constant dense<0.000000e+00> : vector<16x384xf32>
    %66 = tpu.matmul %63, %65, %cst_50 {dimension_numbers = #tpu.dot_dimension_numbers<[1], [0], [0], [1], [0, 0, 1, 1], [], []>} : vector<16x384xf32>, vector<384x384xf32>, vector<16x384xf32> -> vector<16x384xf32>
    %67 = vector.extract_strided_slice %62 {offsets = [1, 0], sizes = [16, 384], strides = [1, 1]} : vector<18x384xf32> to vector<16x384xf32>
    %c1_51 = arith.constant 1 : index
    %c0_52 = arith.constant 0 : index
    %c0_53 = arith.constant 0 : index
    %68 = vector.load %arg5[%c1_51, %c0_52, %c0_53] : memref<3x384x384xf32, #tpu.memory_space<vmem>>, vector<1x384x384xf32>
    %69 = vector.shape_cast %68 : vector<1x384x384xf32> to vector<384x384xf32>
    %cst_54 = arith.constant dense<0.000000e+00> : vector<16x384xf32>
    %70 = tpu.matmul %67, %69, %cst_54 {dimension_numbers = #tpu.dot_dimension_numbers<[1], [0], [0], [1], [0, 0, 1, 1], [], []>} : vector<16x384xf32>, vector<384x384xf32>, vector<16x384xf32> -> vector<16x384xf32>
    %71 = arith.addf %66, %70 : vector<16x384xf32>
    %72 = vector.extract_strided_slice %62 {offsets = [2, 0], sizes = [16, 384], strides = [1, 1]} : vector<18x384xf32> to vector<16x384xf32>
    %c2_55 = arith.constant 2 : index
    %c0_56 = arith.constant 0 : index
    %c0_57 = arith.constant 0 : index
    %73 = vector.load %arg5[%c2_55, %c0_56, %c0_57] : memref<3x384x384xf32, #tpu.memory_space<vmem>>, vector<1x384x384xf32>
    %74 = vector.shape_cast %73 : vector<1x384x384xf32> to vector<384x384xf32>
    %cst_58 = arith.constant dense<0.000000e+00> : vector<16x384xf32>
    %75 = tpu.matmul %72, %74, %cst_58 {dimension_numbers = #tpu.dot_dimension_numbers<[1], [0], [0], [1], [0, 0, 1, 1], [], []>} : vector<16x384xf32>, vector<384x384xf32>, vector<16x384xf32> -> vector<16x384xf32>
    %76 = arith.addf %71, %75 : vector<16x384xf32>
    %c0_59 = arith.constant 0 : index
    %c0_60 = arith.constant 0 : index
    %77 = vector.load %arg11[%c0_59, %c0_60] : memref<1x384xf32, #tpu.memory_space<vmem>>, vector<1x384xf32>
    %78 = vector.broadcast %77 : vector<1x384xf32> to vector<16x384xf32>
    %79 = arith.addf %76, %78 : vector<16x384xf32>
    %c0_61 = arith.constant 0 : index
    %c0_62 = arith.constant 0 : index
    %80 = vector.load %arg13[%c0_61, %c0_62] : memref<1x10xf32, #tpu.memory_space<vmem>>, vector<1x10xf32>
    %81 = vector.extract_strided_slice %79 {offsets = [0, 0], sizes = [1, 384], strides = [1, 1]} : vector<16x384xf32> to vector<1x384xf32>
    %c0_63 = arith.constant 0 : index
    %c0_64 = arith.constant 0 : index
    %c0_65 = arith.constant 0 : index
    %82 = vector.load %arg12[%c0_63, %c0_64, %c0_65] : memref<16x384x10xf32, #tpu.memory_space<vmem>>, vector<1x384x10xf32>
    %83 = vector.shape_cast %82 : vector<1x384x10xf32> to vector<384x10xf32>
    %cst_66 = arith.constant dense<0.000000e+00> : vector<1x10xf32>
    %84 = tpu.matmul %81, %83, %cst_66 {dimension_numbers = #tpu.dot_dimension_numbers<[1], [0], [0], [1], [0, 0, 1, 1], [], []>} : vector<1x384xf32>, vector<384x10xf32>, vector<1x10xf32> -> vector<1x10xf32>
    %85 = arith.addf %80, %84 : vector<1x10xf32>
    %86 = vector.extract_strided_slice %79 {offsets = [1, 0], sizes = [1, 384], strides = [1, 1]} : vector<16x384xf32> to vector<1x384xf32>
    %c1_67 = arith.constant 1 : index
    %c0_68 = arith.constant 0 : index
    %c0_69 = arith.constant 0 : index
    %87 = vector.load %arg12[%c1_67, %c0_68, %c0_69] : memref<16x384x10xf32, #tpu.memory_space<vmem>>, vector<1x384x10xf32>
    %88 = vector.shape_cast %87 : vector<1x384x10xf32> to vector<384x10xf32>
    %cst_70 = arith.constant dense<0.000000e+00> : vector<1x10xf32>
    %89 = tpu.matmul %86, %88, %cst_70 {dimension_numbers = #tpu.dot_dimension_numbers<[1], [0], [0], [1], [0, 0, 1, 1], [], []>} : vector<1x384xf32>, vector<384x10xf32>, vector<1x10xf32> -> vector<1x10xf32>
    %90 = arith.addf %85, %89 : vector<1x10xf32>
    %91 = vector.extract_strided_slice %79 {offsets = [2, 0], sizes = [1, 384], strides = [1, 1]} : vector<16x384xf32> to vector<1x384xf32>
    %c2_71 = arith.constant 2 : index
    %c0_72 = arith.constant 0 : index
    %c0_73 = arith.constant 0 : index
    %92 = vector.load %arg12[%c2_71, %c0_72, %c0_73] : memref<16x384x10xf32, #tpu.memory_space<vmem>>, vector<1x384x10xf32>
    %93 = vector.shape_cast %92 : vector<1x384x10xf32> to vector<384x10xf32>
    %cst_74 = arith.constant dense<0.000000e+00> : vector<1x10xf32>
    %94 = tpu.matmul %91, %93, %cst_74 {dimension_numbers = #tpu.dot_dimension_numbers<[1], [0], [0], [1], [0, 0, 1, 1], [], []>} : vector<1x384xf32>, vector<384x10xf32>, vector<1x10xf32> -> vector<1x10xf32>
    %95 = arith.addf %90, %94 : vector<1x10xf32>
    %96 = vector.extract_strided_slice %79 {offsets = [3, 0], sizes = [1, 384], strides = [1, 1]} : vector<16x384xf32> to vector<1x384xf32>
    %c3 = arith.constant 3 : index
    %c0_75 = arith.constant 0 : index
    %c0_76 = arith.constant 0 : index
    %97 = vector.load %arg12[%c3, %c0_75, %c0_76] : memref<16x384x10xf32, #tpu.memory_space<vmem>>, vector<1x384x10xf32>
    %98 = vector.shape_cast %97 : vector<1x384x10xf32> to vector<384x10xf32>
    %cst_77 = arith.constant dense<0.000000e+00> : vector<1x10xf32>
    %99 = tpu.matmul %96, %98, %cst_77 {dimension_numbers = #tpu.dot_dimension_numbers<[1], [0], [0], [1], [0, 0, 1, 1], [], []>} : vector<1x384xf32>, vector<384x10xf32>, vector<1x10xf32> -> vector<1x10xf32>
    %100 = arith.addf %95, %99 : vector<1x10xf32>
    %101 = vector.extract_strided_slice %79 {offsets = [4, 0], sizes = [1, 384], strides = [1, 1]} : vector<16x384xf32> to vector<1x384xf32>
    %c4 = arith.constant 4 : index
    %c0_78 = arith.constant 0 : index
    %c0_79 = arith.constant 0 : index
    %102 = vector.load %arg12[%c4, %c0_78, %c0_79] : memref<16x384x10xf32, #tpu.memory_space<vmem>>, vector<1x384x10xf32>
    %103 = vector.shape_cast %102 : vector<1x384x10xf32> to vector<384x10xf32>
    %cst_80 = arith.constant dense<0.000000e+00> : vector<1x10xf32>
    %104 = tpu.matmul %101, %103, %cst_80 {dimension_numbers = #tpu.dot_dimension_numbers<[1], [0], [0], [1], [0, 0, 1, 1], [], []>} : vector<1x384xf32>, vector<384x10xf32>, vector<1x10xf32> -> vector<1x10xf32>
    %105 = arith.addf %100, %104 : vector<1x10xf32>
    %106 = vector.extract_strided_slice %79 {offsets = [5, 0], sizes = [1, 384], strides = [1, 1]} : vector<16x384xf32> to vector<1x384xf32>
    %c5 = arith.constant 5 : index
    %c0_81 = arith.constant 0 : index
    %c0_82 = arith.constant 0 : index
    %107 = vector.load %arg12[%c5, %c0_81, %c0_82] : memref<16x384x10xf32, #tpu.memory_space<vmem>>, vector<1x384x10xf32>
    %108 = vector.shape_cast %107 : vector<1x384x10xf32> to vector<384x10xf32>
    %cst_83 = arith.constant dense<0.000000e+00> : vector<1x10xf32>
    %109 = tpu.matmul %106, %108, %cst_83 {dimension_numbers = #tpu.dot_dimension_numbers<[1], [0], [0], [1], [0, 0, 1, 1], [], []>} : vector<1x384xf32>, vector<384x10xf32>, vector<1x10xf32> -> vector<1x10xf32>
    %110 = arith.addf %105, %109 : vector<1x10xf32>
    %111 = vector.extract_strided_slice %79 {offsets = [6, 0], sizes = [1, 384], strides = [1, 1]} : vector<16x384xf32> to vector<1x384xf32>
    %c6 = arith.constant 6 : index
    %c0_84 = arith.constant 0 : index
    %c0_85 = arith.constant 0 : index
    %112 = vector.load %arg12[%c6, %c0_84, %c0_85] : memref<16x384x10xf32, #tpu.memory_space<vmem>>, vector<1x384x10xf32>
    %113 = vector.shape_cast %112 : vector<1x384x10xf32> to vector<384x10xf32>
    %cst_86 = arith.constant dense<0.000000e+00> : vector<1x10xf32>
    %114 = tpu.matmul %111, %113, %cst_86 {dimension_numbers = #tpu.dot_dimension_numbers<[1], [0], [0], [1], [0, 0, 1, 1], [], []>} : vector<1x384xf32>, vector<384x10xf32>, vector<1x10xf32> -> vector<1x10xf32>
    %115 = arith.addf %110, %114 : vector<1x10xf32>
    %116 = vector.extract_strided_slice %79 {offsets = [7, 0], sizes = [1, 384], strides = [1, 1]} : vector<16x384xf32> to vector<1x384xf32>
    %c7 = arith.constant 7 : index
    %c0_87 = arith.constant 0 : index
    %c0_88 = arith.constant 0 : index
    %117 = vector.load %arg12[%c7, %c0_87, %c0_88] : memref<16x384x10xf32, #tpu.memory_space<vmem>>, vector<1x384x10xf32>
    %118 = vector.shape_cast %117 : vector<1x384x10xf32> to vector<384x10xf32>
    %cst_89 = arith.constant dense<0.000000e+00> : vector<1x10xf32>
    %119 = tpu.matmul %116, %118, %cst_89 {dimension_numbers = #tpu.dot_dimension_numbers<[1], [0], [0], [1], [0, 0, 1, 1], [], []>} : vector<1x384xf32>, vector<384x10xf32>, vector<1x10xf32> -> vector<1x10xf32>
    %120 = arith.addf %115, %119 : vector<1x10xf32>
    %121 = vector.extract_strided_slice %79 {offsets = [8, 0], sizes = [1, 384], strides = [1, 1]} : vector<16x384xf32> to vector<1x384xf32>
    %c8 = arith.constant 8 : index
    %c0_90 = arith.constant 0 : index
    %c0_91 = arith.constant 0 : index
    %122 = vector.load %arg12[%c8, %c0_90, %c0_91] : memref<16x384x10xf32, #tpu.memory_space<vmem>>, vector<1x384x10xf32>
    %123 = vector.shape_cast %122 : vector<1x384x10xf32> to vector<384x10xf32>
    %cst_92 = arith.constant dense<0.000000e+00> : vector<1x10xf32>
    %124 = tpu.matmul %121, %123, %cst_92 {dimension_numbers = #tpu.dot_dimension_numbers<[1], [0], [0], [1], [0, 0, 1, 1], [], []>} : vector<1x384xf32>, vector<384x10xf32>, vector<1x10xf32> -> vector<1x10xf32>
    %125 = arith.addf %120, %124 : vector<1x10xf32>
    %126 = vector.extract_strided_slice %79 {offsets = [9, 0], sizes = [1, 384], strides = [1, 1]} : vector<16x384xf32> to vector<1x384xf32>
    %c9 = arith.constant 9 : index
    %c0_93 = arith.constant 0 : index
    %c0_94 = arith.constant 0 : index
    %127 = vector.load %arg12[%c9, %c0_93, %c0_94] : memref<16x384x10xf32, #tpu.memory_space<vmem>>, vector<1x384x10xf32>
    %128 = vector.shape_cast %127 : vector<1x384x10xf32> to vector<384x10xf32>
    %cst_95 = arith.constant dense<0.000000e+00> : vector<1x10xf32>
    %129 = tpu.matmul %126, %128, %cst_95 {dimension_numbers = #tpu.dot_dimension_numbers<[1], [0], [0], [1], [0, 0, 1, 1], [], []>} : vector<1x384xf32>, vector<384x10xf32>, vector<1x10xf32> -> vector<1x10xf32>
    %130 = arith.addf %125, %129 : vector<1x10xf32>
    %131 = vector.extract_strided_slice %79 {offsets = [10, 0], sizes = [1, 384], strides = [1, 1]} : vector<16x384xf32> to vector<1x384xf32>
    %c10 = arith.constant 10 : index
    %c0_96 = arith.constant 0 : index
    %c0_97 = arith.constant 0 : index
    %132 = vector.load %arg12[%c10, %c0_96, %c0_97] : memref<16x384x10xf32, #tpu.memory_space<vmem>>, vector<1x384x10xf32>
    %133 = vector.shape_cast %132 : vector<1x384x10xf32> to vector<384x10xf32>
    %cst_98 = arith.constant dense<0.000000e+00> : vector<1x10xf32>
    %134 = tpu.matmul %131, %133, %cst_98 {dimension_numbers = #tpu.dot_dimension_numbers<[1], [0], [0], [1], [0, 0, 1, 1], [], []>} : vector<1x384xf32>, vector<384x10xf32>, vector<1x10xf32> -> vector<1x10xf32>
    %135 = arith.addf %130, %134 : vector<1x10xf32>
    %136 = vector.extract_strided_slice %79 {offsets = [11, 0], sizes = [1, 384], strides = [1, 1]} : vector<16x384xf32> to vector<1x384xf32>
    %c11 = arith.constant 11 : index
    %c0_99 = arith.constant 0 : index
    %c0_100 = arith.constant 0 : index
    %137 = vector.load %arg12[%c11, %c0_99, %c0_100] : memref<16x384x10xf32, #tpu.memory_space<vmem>>, vector<1x384x10xf32>
    %138 = vector.shape_cast %137 : vector<1x384x10xf32> to vector<384x10xf32>
    %cst_101 = arith.constant dense<0.000000e+00> : vector<1x10xf32>
    %139 = tpu.matmul %136, %138, %cst_101 {dimension_numbers = #tpu.dot_dimension_numbers<[1], [0], [0], [1], [0, 0, 1, 1], [], []>} : vector<1x384xf32>, vector<384x10xf32>, vector<1x10xf32> -> vector<1x10xf32>
    %140 = arith.addf %135, %139 : vector<1x10xf32>
    %141 = vector.extract_strided_slice %79 {offsets = [12, 0], sizes = [1, 384], strides = [1, 1]} : vector<16x384xf32> to vector<1x384xf32>
    %c12 = arith.constant 12 : index
    %c0_102 = arith.constant 0 : index
    %c0_103 = arith.constant 0 : index
    %142 = vector.load %arg12[%c12, %c0_102, %c0_103] : memref<16x384x10xf32, #tpu.memory_space<vmem>>, vector<1x384x10xf32>
    %143 = vector.shape_cast %142 : vector<1x384x10xf32> to vector<384x10xf32>
    %cst_104 = arith.constant dense<0.000000e+00> : vector<1x10xf32>
    %144 = tpu.matmul %141, %143, %cst_104 {dimension_numbers = #tpu.dot_dimension_numbers<[1], [0], [0], [1], [0, 0, 1, 1], [], []>} : vector<1x384xf32>, vector<384x10xf32>, vector<1x10xf32> -> vector<1x10xf32>
    %145 = arith.addf %140, %144 : vector<1x10xf32>
    %146 = vector.extract_strided_slice %79 {offsets = [13, 0], sizes = [1, 384], strides = [1, 1]} : vector<16x384xf32> to vector<1x384xf32>
    %c13 = arith.constant 13 : index
    %c0_105 = arith.constant 0 : index
    %c0_106 = arith.constant 0 : index
    %147 = vector.load %arg12[%c13, %c0_105, %c0_106] : memref<16x384x10xf32, #tpu.memory_space<vmem>>, vector<1x384x10xf32>
    %148 = vector.shape_cast %147 : vector<1x384x10xf32> to vector<384x10xf32>
    %cst_107 = arith.constant dense<0.000000e+00> : vector<1x10xf32>
    %149 = tpu.matmul %146, %148, %cst_107 {dimension_numbers = #tpu.dot_dimension_numbers<[1], [0], [0], [1], [0, 0, 1, 1], [], []>} : vector<1x384xf32>, vector<384x10xf32>, vector<1x10xf32> -> vector<1x10xf32>
    %150 = arith.addf %145, %149 : vector<1x10xf32>
    %151 = vector.extract_strided_slice %79 {offsets = [14, 0], sizes = [1, 384], strides = [1, 1]} : vector<16x384xf32> to vector<1x384xf32>
    %c14 = arith.constant 14 : index
    %c0_108 = arith.constant 0 : index
    %c0_109 = arith.constant 0 : index
    %152 = vector.load %arg12[%c14, %c0_108, %c0_109] : memref<16x384x10xf32, #tpu.memory_space<vmem>>, vector<1x384x10xf32>
    %153 = vector.shape_cast %152 : vector<1x384x10xf32> to vector<384x10xf32>
    %cst_110 = arith.constant dense<0.000000e+00> : vector<1x10xf32>
    %154 = tpu.matmul %151, %153, %cst_110 {dimension_numbers = #tpu.dot_dimension_numbers<[1], [0], [0], [1], [0, 0, 1, 1], [], []>} : vector<1x384xf32>, vector<384x10xf32>, vector<1x10xf32> -> vector<1x10xf32>
    %155 = arith.addf %150, %154 : vector<1x10xf32>
    %156 = vector.extract_strided_slice %79 {offsets = [15, 0], sizes = [1, 384], strides = [1, 1]} : vector<16x384xf32> to vector<1x384xf32>
    %c15 = arith.constant 15 : index
    %c0_111 = arith.constant 0 : index
    %c0_112 = arith.constant 0 : index
    %157 = vector.load %arg12[%c15, %c0_111, %c0_112] : memref<16x384x10xf32, #tpu.memory_space<vmem>>, vector<1x384x10xf32>
    %158 = vector.shape_cast %157 : vector<1x384x10xf32> to vector<384x10xf32>
    %cst_113 = arith.constant dense<0.000000e+00> : vector<1x10xf32>
    %159 = tpu.matmul %156, %158, %cst_113 {dimension_numbers = #tpu.dot_dimension_numbers<[1], [0], [0], [1], [0, 0, 1, 1], [], []>} : vector<1x384xf32>, vector<384x10xf32>, vector<1x10xf32> -> vector<1x10xf32>
    %160 = arith.addf %155, %159 : vector<1x10xf32>
    %c0_114 = arith.constant 0 : index
    %c0_115 = arith.constant 0 : index
    %c0_116 = arith.constant 0 : index
    %161 = vector.load %arg14[%c0_114, %c0_115, %c0_116] : memref<1x1x10xf32, #tpu.memory_space<vmem>>, vector<1x1x10xf32>
    %162 = vector.shape_cast %161 : vector<1x1x10xf32> to vector<1x10xf32>
    %163 = vector.shape_cast %160 : vector<1x10xf32> to vector<1x1x10xf32>
    tpu.vector_store %arg14[%c0_114, %c0_115, %c0_116], %163 {strides = array<i32>} : memref<1x1x10xf32, #tpu.memory_space<vmem>>, vector<1x1x10xf32>,
    return
  }
  func.func @transform_0(%arg0: i32) -> (i32, i32, i32) {
    %c0_i32 = arith.constant 0 : i32
    %c0_i32_0 = arith.constant 0 : i32
    %c0_i32_1 = arith.constant 0 : i32
    return %arg0, %c0_i32, %c0_i32_0 : i32, i32, i32
  }
  func.func @transform_1(%arg0: i32) -> (i32, i32, i32) {
    %c0_i32 = arith.constant 0 : i32
    %c0_i32_0 = arith.constant 0 : i32
    %c0_i32_1 = arith.constant 0 : i32
    %c0_i32_2 = arith.constant 0 : i32
    return %c0_i32, %c0_i32_0, %c0_i32_1 : i32, i32, i32
  }
  func.func @transform_2(%arg0: i32) -> (i32, i32, i32) {
    %c0_i32 = arith.constant 0 : i32
    %c0_i32_0 = arith.constant 0 : i32
    %c0_i32_1 = arith.constant 0 : i32
    %c0_i32_2 = arith.constant 0 : i32
    return %c0_i32, %c0_i32_0, %c0_i32_1 : i32, i32, i32
  }
  func.func @transform_3(%arg0: i32) -> (i32, i32, i32) {
    %c0_i32 = arith.constant 0 : i32
    %c0_i32_0 = arith.constant 0 : i32
    %c0_i32_1 = arith.constant 0 : i32
    %c0_i32_2 = arith.constant 0 : i32
    return %c0_i32, %c0_i32_0, %c0_i32_1 : i32, i32, i32
  }
  func.func @transform_4(%arg0: i32) -> (i32, i32, i32) {
    %c0_i32 = arith.constant 0 : i32
    %c0_i32_0 = arith.constant 0 : i32
    %c0_i32_1 = arith.constant 0 : i32
    %c0_i32_2 = arith.constant 0 : i32
    return %c0_i32, %c0_i32_0, %c0_i32_1 : i32, i32, i32
  }
  func.func @transform_5(%arg0: i32) -> (i32, i32) {
    %c0_i32 = arith.constant 0 : i32
    %c0_i32_0 = arith.constant 0 : i32
    %c0_i32_1 = arith.constant 0 : i32
    return %c0_i32, %c0_i32_0 : i32, i32
  }
  func.func @transform_6(%arg0: i32) -> (i32, i32) {
    %c0_i32 = arith.constant 0 : i32
    %c0_i32_0 = arith.constant 0 : i32
    %c0_i32_1 = arith.constant 0 : i32
    return %c0_i32, %c0_i32_0 : i32, i32
  }
  func.func @transform_7(%arg0: i32) -> (i32, i32) {
    %c0_i32 = arith.constant 0 : i32
    %c0_i32_0 = arith.constant 0 : i32
    %c0_i32_1 = arith.constant 0 : i32
    return %c0_i32, %c0_i32_0 : i32, i32
  }
  func.func @transform_8(%arg0: i32) -> (i32, i32) {
    %c0_i32 = arith.constant 0 : i32
    %c0_i32_0 = arith.constant 0 : i32
    %c0_i32_1 = arith.constant 0 : i32
    return %c0_i32, %c0_i32_0 : i32, i32
  }
  func.func @transform_9(%arg0: i32) -> (i32, i32) {
    %c0_i32 = arith.constant 0 : i32
    %c0_i32_0 = arith.constant 0 : i32
    %c0_i32_1 = arith.constant 0 : i32
    return %c0_i32, %c0_i32_0 : i32, i32
  }
  func.func @transform_10(%arg0: i32) -> (i32, i32) {
    %c0_i32 = arith.constant 0 : i32
    %c0_i32_0 = arith.constant 0 : i32
    %c0_i32_1 = arith.constant 0 : i32
    return %c0_i32, %c0_i32_0 : i32, i32
  }
  func.func @transform_11(%arg0: i32) -> (i32, i32, i32) {
    %c0_i32 = arith.constant 0 : i32
    %c0_i32_0 = arith.constant 0 : i32
    %c0_i32_1 = arith.constant 0 : i32
    %c0_i32_2 = arith.constant 0 : i32
    return %c0_i32, %c0_i32_0, %c0_i32_1 : i32, i32, i32
  }
  func.func @transform_12(%arg0: i32) -> (i32, i32) {
    %c0_i32 = arith.constant 0 : i32
    %c0_i32_0 = arith.constant 0 : i32
    %c0_i32_1 = arith.constant 0 : i32
    return %c0_i32, %c0_i32_0 : i32, i32
  }
  func.func @transform_13(%arg0: i32) -> (i32, i32, i32) {
    %c0_i32 = arith.constant 0 : i32
    %c0_i32_0 = arith.constant 0 : i32
    %c0_i32_1 = arith.constant 0 : i32
    return %arg0, %c0_i32, %c0_i32_0 : i32, i32, i32
  }
}

</mosaic_0001>

<llo_original>
// kernel: pallas_forward.1
$region0: #{pallas_forward.1}
  #allocation0 [shape = 'u32[]', space=smem, size = 0x4, offset = 0x4, fixed_abs, tag = 'smem constant byte address 0x4 - core index']
  #allocation1 [shape = 'u32[144,128]{1,0:T(1,128)}', space=vmem, size = 0x12000, scoped, tag = 'internal scratch']
  %s0 = inlined_call_operand.vmem [shape: f32[2,24,240], index: 0, kind: input, shape index: {}]
  %s1 = inlined_call_operand.hbm [shape: f32[3,240,512], index: 1, kind: input, shape index: {}]
  %s2 = inlined_call_operand.vmem [shape: f32[3,512,384], index: 2, kind: input, shape index: {}]
  %s3 = inlined_call_operand.vmem [shape: f32[3,384,384], index: 3, kind: input, shape index: {}]
  %s4 = inlined_call_operand.hbm [shape: f32[3,384,384], index: 4, kind: input, shape index: {}]
  %s5 = inlined_call_operand.vmem [shape: f32[1,512], index: 5, kind: input, shape index: {}]
  %s6 = inlined_call_operand.vmem [shape: f32[1,384], index: 6, kind: input, shape index: {}]
  %s7 = inlined_call_operand.vmem [shape: f32[1,384], index: 7, kind: input, shape index: {}]
  %s8 = inlined_call_operand.vmem [shape: f32[1,384], index: 8, kind: input, shape index: {}]
  %s9 = inlined_call_operand.vmem [shape: f32[1,384], index: 9, kind: input, shape index: {}]
  %s10 = inlined_call_operand.vmem [shape: f32[1,384], index: 10, kind: input, shape index: {}]
  %s11 = inlined_call_operand.vmem [shape: f32[16,384,10], index: 11, kind: input, shape index: {}]
  %s12 = inlined_call_operand.vmem [shape: f32[1,10], index: 12, kind: input, shape index: {}]
  %s13 = inlined_call_operand.hbm [shape: f32[2,1,10], index: 13, kind: output, shape index: {}]
  %s14 = sld [smem:[#allocation0]]
  $region93: #{pallas_forward.1} parent=0
    _
  %s16 = ssub.s32 1, %s14
  %s17 = scalar_select 0, %s16, %s14
  $region1: #{pallas_forward.1} parent=0
    #allocation2 [shape = 'u8[1474560]{0}', space=vmem, size = 0x168000, scoped, tag = 'input window, operand 1, single buffered']
    #allocation3 [shape = 's32[2]{0}', space=sflag, size = 0x8, scoped, tag = 'scoped memory for pallas_forward.1']
    #allocation4 [shape = 's32[2]{0}', space=sflag, size = 0x8, scoped, tag = 'scoped memory for pallas_forward.1']
    #allocation5 [shape = 'u8[1769472]{0}', space=vmem, size = 0x1b0000, scoped, tag = 'input window, operand 4, single buffered']
    #allocation6 [shape = 's32[1]{0}', space=sflag, size = 0x4, scoped, tag = 'scoped memory for pallas_forward.1']
    #allocation7 [shape = 'u8[1024]{0}', space=vmem, size = 0x400, scoped, tag = 'output window, operand 0']
    %18 = vsyncpa [#allocation3], 0
    %19 = vsyncpa [#allocation6], 0
    %20 = vsyncpa [#allocation4], 0
    %s21 = scalar_lea.sflag [#allocation4], 1
    %22 = vsyncpa %s21, 0
    loop: start=0, step=1, limit=4
    $region2: #{pallas_forward.1} parent=1 // loop_pre_header
      _
    $region3: #{pallas_forward.1} parent=1 // loop_header
      %s24 = sphi 0, %s28
      %p25 = scmp.ge.s32.totalorder %s24, 4
      %s34 = sphi 0, %s36
      %s37 = sphi 0, %s34
      %s38 = sphi 0, %s37
      %s54 = sphi 0, %s38
      %s58 = sphi 0, %s58
      %s60 = sphi 0, %s58
      %s61 = sphi 0, %s60
      %s75 = sphi 0, %s61
      %s79 = sphi 0, %s79
      %s81 = sphi 0, %s79
      %s82 = sphi 0, %s81
      %s96 = sphi 0, %s82
      %s100 = sphi 0, %s100
      %s102 = sphi 0, %s100
      %s103 = sphi 0, %s102
      %s117 = sphi 0, %s103
      %s121 = sphi 0, %s121
      %s123 = sphi 0, %s121
      %s124 = sphi 0, %s123
      %s138 = sphi 0, %s124
      %s142 = sphi 0, %s142
      %s144 = sphi 0, %s142
      %s145 = sphi 0, %s144
      %s159 = sphi 0, %s145
      %s163 = sphi 0, %s163
      %s165 = sphi 0, %s163
      %s166 = sphi 0, %s165
      %s180 = sphi 0, %s166
      %s184 = sphi 0, %s184
      %s186 = sphi 0, %s184
      %s187 = sphi 0, %s186
      %s201 = sphi 0, %s187
      %s205 = sphi 0, %s205
      %s207 = sphi 0, %s205
      %s208 = sphi 0, %s207
      %s222 = sphi 0, %s208
      %s226 = sphi 0, %s226
      %s228 = sphi 0, %s226
      %s229 = sphi 0, %s228
      %s243 = sphi 0, %s229
      %s247 = sphi 0, %s247
      %s249 = sphi 0, %s247
      %s250 = sphi 0, %s249
      %s264 = sphi 0, %s250
      %s268 = sphi 0, %s268
      %s270 = sphi 0, %s268
      %s271 = sphi 0, %s270
      %s285 = sphi 0, %s271
      %s289 = sphi 0, %s289
      %s291 = sphi 0, %s289
      %s292 = sphi 0, %s291
      %s306 = sphi 0, %s292
      %s312 = sphi 0, %s314
      %s315 = sphi 0, %s312
      %s316 = sphi 0, %s315
      %s332 = sphi 0, %s316
    $region4: #{pallas_forward.1} parent=1 // loop_header_branch
      %27 = sbr.rel (%p25) target = $region8
    $region5: #{pallas_forward.1} parent=1 // loop_body
      %s29 = ssub.s32 %s24, 1
      %s30 = ssub.s32 %s24, 2
      %s31 = sadd.s32 %s24, 1
      %s32 = ssub.s32 %s24, %s31
      %p33 = scmp.eq.s32.totalorder %s32, 0
      %s35 = sadd.s32 %s34, 1
      %s36 = scalar_select %p33, %s34, %s35
      %p39 = pneg %p33
      %p40 = scmp.eq.s32.totalorder %s24, 1
      %p41 = por %p39, %p40
      %p42 = scmp.ne.s32.totalorder %s34, %s37
      %p43 = scmp.eq.s32.totalorder %s24, 0
      %p44 = por %p42, %p43
      %p45 = scmp.ne.s32.totalorder %s34, %s37
      %p46 = scmp.eq.s32.totalorder %s29, 1
      %p47 = por %p45, %p46
      %p48 = scmp.ne.s32.totalorder %s37, %s38
      %p49 = scmp.eq.s32.totalorder %s29, 0
      %p50 = por %p48, %p49
      %p51 = scmp.ne.s32.totalorder %s37, %s38
      %p52 = scmp.eq.s32.totalorder %s30, 1
      %p53 = por %p51, %p52
      %p55 = scmp.ne.s32.totalorder %s38, %s54
      %p56 = scmp.eq.s32.totalorder %s30, 0
      %p57 = por %p55, %p56
      %s59 = sadd.s32 %s58, 1
      %p62 = scmp.eq.s32.totalorder %s24, 1
      %p63 = scmp.ne.s32.totalorder %s58, %s60
      %p64 = scmp.eq.s32.totalorder %s24, 0
      %p65 = por %p63, %p64
      %p66 = scmp.ne.s32.totalorder %s58, %s60
      %p67 = scmp.eq.s32.totalorder %s29, 1
      %p68 = por %p66, %p67
      %p69 = scmp.ne.s32.totalorder %s60, %s61
      %p70 = scmp.eq.s32.totalorder %s29, 0
      %p71 = por %p69, %p70
      %p72 = scmp.ne.s32.totalorder %s60, %s61
      %p73 = scmp.eq.s32.totalorder %s30, 1
      %p74 = por %p72, %p73
      %p76 = scmp.ne.s32.totalorder %s61, %s75
      %p77 = scmp.eq.s32.totalorder %s30, 0
      %p78 = por %p76, %p77
      %s80 = sadd.s32 %s79, 1
      %p83 = scmp.eq.s32.totalorder %s24, 1
      %p84 = scmp.ne.s32.totalorder %s79, %s81
      %p85 = scmp.eq.s32.totalorder %s24, 0
      %p86 = por %p84, %p85
      %p87 = scmp.ne.s32.totalorder %s79, %s81
      %p88 = scmp.eq.s32.totalorder %s29, 1
      %p89 = por %p87, %p88
      %p90 = scmp.ne.s32.totalorder %s81, %s82
      %p91 = scmp.eq.s32.totalorder %s29, 0
      %p92 = por %p90, %p91
      %p93 = scmp.ne.s32.totalorder %s81, %s82
      %p94 = scmp.eq.s32.totalorder %s30, 1
      %p95 = por %p93, %p94
      %p97 = scmp.ne.s32.totalorder %s82, %s96
      %p98 = scmp.eq.s32.totalorder %s30, 0
      %p99 = por %p97, %p98
      %s101 = sadd.s32 %s100, 1
      %p104 = scmp.eq.s32.totalorder %s24, 1
      %p105 = scmp.ne.s32.totalorder %s100, %s102
      %p106 = scmp.eq.s32.totalorder %s24, 0
      %p107 = por %p105, %p106
      %p108 = scmp.ne.s32.totalorder %s100, %s102
      %p109 = scmp.eq.s32.totalorder %s29, 1
      %p110 = por %p108, %p109
      %p111 = scmp.ne.s32.totalorder %s102, %s103
      %p112 = scmp.eq.s32.totalorder %s29, 0
      %p113 = por %p111, %p112
      %p114 = scmp.ne.s32.totalorder %s102, %s103
      %p115 = scmp.eq.s32.totalorder %s30, 1
      %p116 = por %p114, %p115
      %p118 = scmp.ne.s32.totalorder %s103, %s117
      %p119 = scmp.eq.s32.totalorder %s30, 0
      %p120 = por %p118, %p119
      %s122 = sadd.s32 %s121, 1
      %p125 = scmp.eq.s32.totalorder %s24, 1
      %p126 = scmp.ne.s32.totalorder %s121, %s123
      %p127 = scmp.eq.s32.totalorder %s24, 0
      %p128 = por %p126, %p127
      %p129 = scmp.ne.s32.totalorder %s121, %s123
      %p130 = scmp.eq.s32.totalorder %s29, 1
      %p131 = por %p129, %p130
      %p132 = scmp.ne.s32.totalorder %s123, %s124
      %p133 = scmp.eq.s32.totalorder %s29, 0
      %p134 = por %p132, %p133
      %p135 = scmp.ne.s32.totalorder %s123, %s124
      %p136 = scmp.eq.s32.totalorder %s30, 1
      %p137 = por %p135, %p136
      %p139 = scmp.ne.s32.totalorder %s124, %s138
      %p140 = scmp.eq.s32.totalorder %s30, 0
      %p141 = por %p139, %p140
      %s143 = sadd.s32 %s142, 1
      %p146 = scmp.eq.s32.totalorder %s24, 1
      %p147 = scmp.ne.s32.totalorder %s142, %s144
      %p148 = scmp.eq.s32.totalorder %s24, 0
      %p149 = por %p147, %p148
      %p150 = scmp.ne.s32.totalorder %s142, %s144
      %p151 = scmp.eq.s32.totalorder %s29, 1
      %p152 = por %p150, %p151
      %p153 = scmp.ne.s32.totalorder %s144, %s145
      %p154 = scmp.eq.s32.totalorder %s29, 0
      %p155 = por %p153, %p154
      %p156 = scmp.ne.s32.totalorder %s144, %s145
      %p157 = scmp.eq.s32.totalorder %s30, 1
      %p158 = por %p156, %p157
      %p160 = scmp.ne.s32.totalorder %s145, %s159
      %p161 = scmp.eq.s32.totalorder %s30, 0
      %p162 = por %p160, %p161
      %s164 = sadd.s32 %s163, 1
      %p167 = scmp.eq.s32.totalorder %s24, 1
      %p168 = scmp.ne.s32.totalorder %s163, %s165
      %p169 = scmp.eq.s32.totalorder %s24, 0
      %p170 = por %p168, %p169
      %p171 = scmp.ne.s32.totalorder %s163, %s165
      %p172 = scmp.eq.s32.totalorder %s29, 1
      %p173 = por %p171, %p172
      %p174 = scmp.ne.s32.totalorder %s165, %s166
      %p175 = scmp.eq.s32.totalorder %s29, 0
      %p176 = por %p174, %p175
      %p177 = scmp.ne.s32.totalorder %s165, %s166
      %p178 = scmp.eq.s32.totalorder %s30, 1
      %p179 = por %p177, %p178
      %p181 = scmp.ne.s32.totalorder %s166, %s180
      %p182 = scmp.eq.s32.totalorder %s30, 0
      %p183 = por %p181, %p182
      %s185 = sadd.s32 %s184, 1
      %p188 = scmp.eq.s32.totalorder %s24, 1
      %p189 = scmp.ne.s32.totalorder %s184, %s186
      %p190 = scmp.eq.s32.totalorder %s24, 0
      %p191 = por %p189, %p190
      %p192 = scmp.ne.s32.totalorder %s184, %s186
      %p193 = scmp.eq.s32.totalorder %s29, 1
      %p194 = por %p192, %p193
      %p195 = scmp.ne.s32.totalorder %s186, %s187
      %p196 = scmp.eq.s32.totalorder %s29, 0
      %p197 = por %p195, %p196
      %p198 = scmp.ne.s32.totalorder %s186, %s187
      %p199 = scmp.eq.s32.totalorder %s30, 1
      %p200 = por %p198, %p199
      %p202 = scmp.ne.s32.totalorder %s187, %s201
      %p203 = scmp.eq.s32.totalorder %s30, 0
      %p204 = por %p202, %p203
      %s206 = sadd.s32 %s205, 1
      %p209 = scmp.eq.s32.totalorder %s24, 1
      %p210 = scmp.ne.s32.totalorder %s205, %s207
      %p211 = scmp.eq.s32.totalorder %s24, 0
      %p212 = por %p210, %p211
      %p213 = scmp.ne.s32.totalorder %s205, %s207
      %p214 = scmp.eq.s32.totalorder %s29, 1
      %p215 = por %p213, %p214
      %p216 = scmp.ne.s32.totalorder %s207, %s208
      %p217 = scmp.eq.s32.totalorder %s29, 0
      %p218 = por %p216, %p217
      %p219 = scmp.ne.s32.totalorder %s207, %s208
      %p220 = scmp.eq.s32.totalorder %s30, 1
      %p221 = por %p219, %p220
      %p223 = scmp.ne.s32.totalorder %s208, %s222
      %p224 = scmp.eq.s32.totalorder %s30, 0
      %p225 = por %p223, %p224
      %s227 = sadd.s32 %s226, 1
      %p230 = scmp.eq.s32.totalorder %s24, 1
      %p231 = scmp.ne.s32.totalorder %s226, %s228
      %p232 = scmp.eq.s32.totalorder %s24, 0
      %p233 = por %p231, %p232
      %p234 = scmp.ne.s32.totalorder %s226, %s228
      %p235 = scmp.eq.s32.totalorder %s29, 1
      %p236 = por %p234, %p235
      %p237 = scmp.ne.s32.totalorder %s228, %s229
      %p238 = scmp.eq.s32.totalorder %s29, 0
      %p239 = por %p237, %p238
      %p240 = scmp.ne.s32.totalorder %s228, %s229
      %p241 = scmp.eq.s32.totalorder %s30, 1
      %p242 = por %p240, %p241
      %p244 = scmp.ne.s32.totalorder %s229, %s243
      %p245 = scmp.eq.s32.totalorder %s30, 0
      %p246 = por %p244, %p245
      %s248 = sadd.s32 %s247, 1
      %p251 = scmp.eq.s32.totalorder %s24, 1
      %p252 = scmp.ne.s32.totalorder %s247, %s249
      %p253 = scmp.eq.s32.totalorder %s24, 0
      %p254 = por %p252, %p253
      %p255 = scmp.ne.s32.totalorder %s247, %s249
      %p256 = scmp.eq.s32.totalorder %s29, 1
      %p257 = por %p255, %p256
      %p258 = scmp.ne.s32.totalorder %s249, %s250
      %p259 = scmp.eq.s32.totalorder %s29, 0
      %p260 = por %p258, %p259
      %p261 = scmp.ne.s32.totalorder %s249, %s250
      %p262 = scmp.eq.s32.totalorder %s30, 1
      %p263 = por %p261, %p262
      %p265 = scmp.ne.s32.totalorder %s250, %s264
      %p266 = scmp.eq.s32.totalorder %s30, 0
      %p267 = por %p265, %p266
      %s269 = sadd.s32 %s268, 1
      %p272 = scmp.eq.s32.totalorder %s24, 1
      %p273 = scmp.ne.s32.totalorder %s268, %s270
      %p274 = scmp.eq.s32.totalorder %s24, 0
      %p275 = por %p273, %p274
      %p276 = scmp.ne.s32.totalorder %s268, %s270
      %p277 = scmp.eq.s32.totalorder %s29, 1
      %p278 = por %p276, %p277
      %p279 = scmp.ne.s32.totalorder %s270, %s271
      %p280 = scmp.eq.s32.totalorder %s29, 0
      %p281 = por %p279, %p280
      %p282 = scmp.ne.s32.totalorder %s270, %s271
      %p283 = scmp.eq.s32.totalorder %s30, 1
      %p284 = por %p282, %p283
      %p286 = scmp.ne.s32.totalorder %s271, %s285
      %p287 = scmp.eq.s32.totalorder %s30, 0
      %p288 = por %p286, %p287
      %s290 = sadd.s32 %s289, 1
      %p293 = scmp.eq.s32.totalorder %s24, 1
      %p294 = scmp.ne.s32.totalorder %s289, %s291
      %p295 = scmp.eq.s32.totalorder %s24, 0
      %p296 = por %p294, %p295
      %p297 = scmp.ne.s32.totalorder %s289, %s291
      %p298 = scmp.eq.s32.totalorder %s29, 1
      %p299 = por %p297, %p298
      %p300 = scmp.ne.s32.totalorder %s291, %s292
      %p301 = scmp.eq.s32.totalorder %s29, 0
      %p302 = por %p300, %p301
      %p303 = scmp.ne.s32.totalorder %s291, %s292
      %p304 = scmp.eq.s32.totalorder %s30, 1
      %p305 = por %p303, %p304
      %p307 = scmp.ne.s32.totalorder %s292, %s306
      %p308 = scmp.eq.s32.totalorder %s30, 0
      %p309 = por %p307, %p308
      %s310 = ssub.s32 %s24, %s31
      %p311 = scmp.eq.s32.totalorder %s310, 0
      %s313 = sadd.s32 %s312, 1
      %s314 = scalar_select %p311, %s312, %s313
      %p317 = pneg %p311
      %p318 = scmp.eq.s32.totalorder %s24, 1
      %p319 = por %p317, %p318
      %p320 = scmp.ne.s32.totalorder %s312, %s315
      %p321 = scmp.eq.s32.totalorder %s24, 0
      %p322 = por %p320, %p321
      %p323 = scmp.ne.s32.totalorder %s312, %s315
      %p324 = scmp.eq.s32.totalorder %s29, 1
      %p325 = por %p323, %p324
      %p326 = scmp.ne.s32.totalorder %s315, %s316
      %p327 = scmp.eq.s32.totalorder %s29, 0
      %p328 = por %p326, %p327
      %p329 = scmp.ne.s32.totalorder %s315, %s316
      %p330 = scmp.eq.s32.totalorder %s30, 1
      %p331 = por %p329, %p330
      %p333 = scmp.ne.s32.totalorder %s316, %s332
      %p334 = scmp.eq.s32.totalorder %s30, 0
      %p335 = por %p333, %p334
      %p336 = scmp.le.s32.totalorder 1, %s24
      %p337 = scmp.lt.s32.totalorder %s24, 3
      %p338 = pnand %p336, %p337
      %p339 = pneg %p338
      // Predicated region
      $region9: #{pallas_forward.1} parent=5 // pred_check
        _
      $region10: #{pallas_forward.1} parent=5 // pred_check_branch
        %341 = sbr.rel (%p338) target = $region12
      $region11: #{pallas_forward.1} parent=5 // pred_region
        %s342 = ssub.s32 %s24, 1
        // Predicated region
        $region13: #{pallas_forward.1} parent=11 // pred_check
          %p343 = pneg %p71
        $region14: #{pallas_forward.1} parent=11 // pred_check_branch
          %345 = sbr.rel (%p343) target = $region16
        $region15: #{pallas_forward.1} parent=11 // pred_region
          %s347 = ssub.s32 46080, 46080
          %348 = vsyncadd [#allocation3], %s347
          %s349 = sshll.u32 [#allocation2], 4
          %s350 = int_to_ptr.vmem [resolvable:$true] %s349
          %355 = dma.hbm_to_vmem [thread:$0]  %s1, 46080, %s350, [#allocation3], 512, 512, 32
        $region16: #{pallas_forward.1} parent=11 // pred_fallthru
          _
        // Predicated region
        $region17: #{pallas_forward.1} parent=11 // pred_check
          %p356 = pneg %p92
        $region18: #{pallas_forward.1} parent=11 // pred_check_branch
          %358 = sbr.rel (%p356) target = $region20
        $region19: #{pallas_forward.1} parent=11 // pred_region
          _
        $region20: #{pallas_forward.1} parent=11 // pred_fallthru
          _
        // Predicated region
        $region21: #{pallas_forward.1} parent=11 // pred_check
          %p359 = pneg %p113
        $region22: #{pallas_forward.1} parent=11 // pred_check_branch
          %361 = sbr.rel (%p359) target = $region24
        $region23: #{pallas_forward.1} parent=11 // pred_region
          _
        $region24: #{pallas_forward.1} parent=11 // pred_fallthru
          _
        // Predicated region
        $region25: #{pallas_forward.1} parent=11 // pred_check
          %p362 = pneg %p134
        $region26: #{pallas_forward.1} parent=11 // pred_check_branch
          %364 = sbr.rel (%p362) target = $region28
        $region27: #{pallas_forward.1} parent=11 // pred_region
          %s366 = ssub.s32 55296, 55296
          %367 = vsyncadd [#allocation6], %s366
          %s368 = sshll.u32 [#allocation5], 4
          %s369 = int_to_ptr.vmem [resolvable:$true] %s368
          %374 = dma.hbm_to_vmem [thread:$0]  %s4, 55296, %s369, [#allocation6], 384, 384, 24
        $region28: #{pallas_forward.1} parent=11 // pred_fallthru
          _
        // Predicated region
        $region29: #{pallas_forward.1} parent=11 // pred_check
          %p375 = pneg %p155
        $region30: #{pallas_forward.1} parent=11 // pred_check_branch
          %377 = sbr.rel (%p375) target = $region32
        $region31: #{pallas_forward.1} parent=11 // pred_region
          _
        $region32: #{pallas_forward.1} parent=11 // pred_fallthru
          _
        // Predicated region
        $region33: #{pallas_forward.1} parent=11 // pred_check
          %p378 = pneg %p176
        $region34: #{pallas_forward.1} parent=11 // pred_check_branch
          %380 = sbr.rel (%p378) target = $region36
        $region35: #{pallas_forward.1} parent=11 // pred_region
          _
        $region36: #{pallas_forward.1} parent=11 // pred_fallthru
          _
        // Predicated region
        $region37: #{pallas_forward.1} parent=11 // pred_check
          %p381 = pneg %p197
        $region38: #{pallas_forward.1} parent=11 // pred_check_branch
          %383 = sbr.rel (%p381) target = $region40
        $region39: #{pallas_forward.1} parent=11 // pred_region
          _
        $region40: #{pallas_forward.1} parent=11 // pred_fallthru
          _
        // Predicated region
        $region41: #{pallas_forward.1} parent=11 // pred_check
          %p384 = pneg %p218
        $region42: #{pallas_forward.1} parent=11 // pred_check_branch
          %386 = sbr.rel (%p384) target = $region44
        $region43: #{pallas_forward.1} parent=11 // pred_region
          _
        $region44: #{pallas_forward.1} parent=11 // pred_fallthru
          _
        // Predicated region
        $region45: #{pallas_forward.1} parent=11 // pred_check
          %p387 = pneg %p239
        $region46: #{pallas_forward.1} parent=11 // pred_check_branch
          %389 = sbr.rel (%p387) target = $region48
        $region47: #{pallas_forward.1} parent=11 // pred_region
          _
        $region48: #{pallas_forward.1} parent=11 // pred_fallthru
          _
        // Predicated region
        $region49: #{pallas_forward.1} parent=11 // pred_check
          %p390 = pneg %p260
        $region50: #{pallas_forward.1} parent=11 // pred_check_branch
          %392 = sbr.rel (%p390) target = $region52
        $region51: #{pallas_forward.1} parent=11 // pred_region
          _
        $region52: #{pallas_forward.1} parent=11 // pred_fallthru
          _
        // Predicated region
        $region53: #{pallas_forward.1} parent=11 // pred_check
          %p393 = pneg %p281
        $region54: #{pallas_forward.1} parent=11 // pred_check_branch
          %395 = sbr.rel (%p393) target = $region56
        $region55: #{pallas_forward.1} parent=11 // pred_region
          _
        $region56: #{pallas_forward.1} parent=11 // pred_fallthru
          _
        // Predicated region
        $region57: #{pallas_forward.1} parent=11 // pred_check
          %p396 = pneg %p302
        $region58: #{pallas_forward.1} parent=11 // pred_check_branch
          %398 = sbr.rel (%p396) target = $region60
        $region59: #{pallas_forward.1} parent=11 // pred_region
          _
        $region60: #{pallas_forward.1} parent=11 // pred_fallthru
          _
      $region12: #{pallas_forward.1} parent=5 // pred_fallthru
        _
      %p399 = scmp.lt.s32.totalorder %s24, 2
      // Predicated region
      $region61: #{pallas_forward.1} parent=5 // pred_check
        %p400 = pneg %p399
      $region62: #{pallas_forward.1} parent=5 // pred_check_branch
        %402 = sbr.rel (%p400) target = $region64
      $region63: #{pallas_forward.1} parent=5 // pred_region
        // Predicated region
        $region65: #{pallas_forward.1} parent=63 // pred_check
          %p403 = pneg %p44
        $region66: #{pallas_forward.1} parent=63 // pred_check_branch
          %405 = sbr.rel (%p403) target = $region68
        $region67: #{pallas_forward.1} parent=63 // pred_region
          %p406 = scmp.lt.s32.totalorder %s24, 1
          %s407 = scalar_select %p406, %s24, 1
          %s408 = smul.addr %s407, 6
          %s409 = smul.addr %s408, 8
          %s410 = scalar_lea.vmem %s0, %s409
        $region68: #{pallas_forward.1} parent=63 // pred_fallthru
          _
      $region64: #{pallas_forward.1} parent=5 // pred_fallthru
        _
      %p411 = scmp.le.s32.totalorder 1, %s24
      %p412 = scmp.lt.s32.totalorder %s24, 3
      %p413 = pnand %p411, %p412
      %p414 = pneg %p413
      // Predicated region
      $region69: #{pallas_forward.1} parent=5 // pred_check
        _
      $region70: #{pallas_forward.1} parent=5 // pred_check_branch
        %416 = sbr.rel (%p413) target = $region72
      $region71: #{pallas_forward.1} parent=5 // pred_region
        %s417 = ssub.s32 %s24, 1
        // Predicated region
        $region73: #{pallas_forward.1} parent=71 // pred_check
          %p418 = pneg %p71
        $region74: #{pallas_forward.1} parent=71 // pred_check_branch
          %420 = sbr.rel (%p418) target = $region76
        $region75: #{pallas_forward.1} parent=71 // pred_region
          %421 = dma.done [#allocation3], 46080
        $region76: #{pallas_forward.1} parent=71 // pred_fallthru
          _
        // Predicated region
        $region77: #{pallas_forward.1} parent=71 // pred_check
          %p422 = pneg %p134
        $region78: #{pallas_forward.1} parent=71 // pred_check_branch
          %424 = sbr.rel (%p422) target = $region80
        $region79: #{pallas_forward.1} parent=71 // pred_region
          %425 = dma.done [#allocation6], 55296
        $region80: #{pallas_forward.1} parent=71 // pred_fallthru
          _
        %p426 = scmp.lt.s32.totalorder %s29, 1
        %s427 = scalar_select %p426, %s29, 1
        %s428 = smul.addr %s427, 6
        %s429 = smul.addr %s428, 8
        %s430 = scalar_lea.vmem %s0, %s429
        %p431 = pneg %p50
        %p432 = pneg %p47
        %p433 = pneg %p71
        %p434 = pneg %p68
        %p435 = pneg %p92
        %p436 = pneg %p89
        %p437 = pneg %p113
        %p438 = pneg %p110
        %p439 = pneg %p134
        %p440 = pneg %p131
        %p441 = pneg %p155
        %p442 = pneg %p152
        %p443 = pneg %p176
        %p444 = pneg %p173
        %p445 = pneg %p197
        %p446 = pneg %p194
        %p447 = pneg %p218
        %p448 = pneg %p215
        %p449 = pneg %p239
        %p450 = pneg %p236
        %p451 = pneg %p260
        %p452 = pneg %p257
        %p453 = pneg %p281
        %p454 = pneg %p278
        %p455 = pneg %p302
        %p456 = pneg %p299
        %p457 = pneg %p328
        %p458 = pneg %p325
        %s459 = sand.u32 %s315, 1
        %s460 = scalar_lea.sflag [#allocation4], %s459
        %s461 = sand.u32 %s315, 1
        %s462 = scalar_lea.vmem [#allocation7], %s461
        %p463 = scmp.lt.s32.totalorder %s29, 1
        %s464 = scalar_select %p463, %s29, 1
        %s465 = smul.addr %s464, 6
        %s466 = smul.addr %s465, 8
        %s467 = scalar_lea.vmem %s0, %s466
        %v468 = vld [vmem:[%s467] sm:$0xff]
        %v469 = vld [vmem:[%s467 + $0x8] sm:$0xff]
        %v470 = vld [vmem:[%s467 + $0x10] sm:$0xff]
        %v471 = vld [vmem:[%s467 + $0x18] sm:$0xff]
        %v472 = vld [vmem:[%s467 + $0x20] sm:$0xff]
        %v473 = vld [vmem:[%s467 + $0x28] sm:$0xff]
        %v474 = vld [vmem:[#allocation2] sm:$0xff]
        %v475 = vld [vmem:[#allocation2 + $0x8] sm:$0xff]
        %v476 = vld [vmem:[#allocation2 + $0x10] sm:$0xff]
        %v477 = vld [vmem:[#allocation2 + $0x18] sm:$0xff]
        %v478 = vld [vmem:[#allocation2 + $0x20] sm:$0xff]
        %v479 = vld [vmem:[#allocation2 + $0x28] sm:$0xff]
        %v480 = vld [vmem:[#allocation2 + $0x30] sm:$0xff]
        %v481 = vld [vmem:[#allocation2 + $0x38] sm:$0xff]
        %v482 = vld [vmem:[#allocation2 + $0x40] sm:$0xff]
        %v483 = vld [vmem:[#allocation2 + $0x48] sm:$0xff]
        %v484 = vld [vmem:[#allocation2 + $0x50] sm:$0xff]
        %v485 = vld [vmem:[#allocation2 + $0x58] sm:$0xff]
        %v486 = vld [vmem:[#allocation2 + $0x60] sm:$0xff]
        %v487 = vld [vmem:[#allocation2 + $0x68] sm:$0xff]
        %v488 = vld [vmem:[#allocation2 + $0x70] sm:$0xff]
        %v489 = vld [vmem:[#allocation2 + $0x78] sm:$0xff]
        %v490 = vld [vmem:[#allocation2 + $0x80] sm:$0xff]
        %v491 = vld [vmem:[#allocation2 + $0x88] sm:$0xff]
        %v492 = vld [vmem:[#allocation2 + $0x90] sm:$0xff]
        %v493 = vld [vmem:[#allocation2 + $0x98] sm:$0xff]
        %v494 = vld [vmem:[#allocation2 + $0xa0] sm:$0xff]
        %v495 = vld [vmem:[#allocation2 + $0xa8] sm:$0xff]
        %v496 = vld [vmem:[#allocation2 + $0xb0] sm:$0xff]
        %v497 = vld [vmem:[#allocation2 + $0xb8] sm:$0xff]
        %v498 = vld [vmem:[#allocation2 + $0xc0] sm:$0xff]
        %v499 = vld [vmem:[#allocation2 + $0xc8] sm:$0xff]
        %v500 = vld [vmem:[#allocation2 + $0xd0] sm:$0xff]
        %v501 = vld [vmem:[#allocation2 + $0xd8] sm:$0xff]
        %v502 = vld [vmem:[#allocation2 + $0xe0] sm:$0xff]
        %v503 = vld [vmem:[#allocation2 + $0xe8] sm:$0xff]
        %v504 = vld [vmem:[#allocation2 + $0xf0] sm:$0xff]
        %v505 = vld [vmem:[#allocation2 + $0xf8] sm:$0xff]
        %v506 = vld [vmem:[#allocation2 + $0x100] sm:$0xff]
        %v507 = vld [vmem:[#allocation2 + $0x108] sm:$0xff]
        %v508 = vld [vmem:[#allocation2 + $0x110] sm:$0xff]
        %v509 = vld [vmem:[#allocation2 + $0x118] sm:$0xff]
        %v510 = vld [vmem:[#allocation2 + $0x120] sm:$0xff]
        %v511 = vld [vmem:[#allocation2 + $0x128] sm:$0xff]
        %v512 = vld [vmem:[#allocation2 + $0x130] sm:$0xff]
        %v513 = vld [vmem:[#allocation2 + $0x138] sm:$0xff]
        %v514 = vld [vmem:[#allocation2 + $0x140] sm:$0xff]
        %v515 = vld [vmem:[#allocation2 + $0x148] sm:$0xff]
        %v516 = vld [vmem:[#allocation2 + $0x150] sm:$0xff]
        %v517 = vld [vmem:[#allocation2 + $0x158] sm:$0xff]
        %v518 = vld [vmem:[#allocation2 + $0x160] sm:$0xff]
        %v519 = vld [vmem:[#allocation2 + $0x168] sm:$0xff]
        %v520 = vld [vmem:[#allocation2 + $0x170] sm:$0xff]
        %v521 = vld [vmem:[#allocation2 + $0x178] sm:$0xff]
        %v522 = vld [vmem:[#allocation2 + $0x180] sm:$0xff]
        %v523 = vld [vmem:[#allocation2 + $0x188] sm:$0xff]
        %v524 = vld [vmem:[#allocation2 + $0x190] sm:$0xff]
        %v525 = vld [vmem:[#allocation2 + $0x198] sm:$0xff]
        %v526 = vld [vmem:[#allocation2 + $0x1a0] sm:$0xff]
        %v527 = vld [vmem:[#allocation2 + $0x1a8] sm:$0xff]
        %v528 = vld [vmem:[#allocation2 + $0x1b0] sm:$0xff]
        %v529 = vld [vmem:[#allocation2 + $0x1b8] sm:$0xff]
        %v530 = vld [vmem:[#allocation2 + $0x1c0] sm:$0xff]
        %v531 = vld [vmem:[#allocation2 + $0x1c8] sm:$0xff]
        %v532 = vld [vmem:[#allocation2 + $0x1d0] sm:$0xff]
        %v533 = vld [vmem:[#allocation2 + $0x1d8] sm:$0xff]
        %v534 = vld [vmem:[#allocation2 + $0x1e0] sm:$0xff]
        %v535 = vld [vmem:[#allocation2 + $0x1e8] sm:$0xff]
        %v536 = vld [vmem:[#allocation2 + $0x1f0] sm:$0xff]
        %v537 = vld [vmem:[#allocation2 + $0x1f8] sm:$0xff]
        %v538 = vld [vmem:[#allocation2 + $0x200] sm:$0xff]
        %v539 = vld [vmem:[#allocation2 + $0x208] sm:$0xff]
        %v540 = vld [vmem:[#allocation2 + $0x210] sm:$0xff]
        %v541 = vld [vmem:[#allocation2 + $0x218] sm:$0xff]
        %v542 = vld [vmem:[#allocation2 + $0x220] sm:$0xff]
        %v543 = vld [vmem:[#allocation2 + $0x228] sm:$0xff]
        %v544 = vld [vmem:[#allocation2 + $0x230] sm:$0xff]
        %v545 = vld [vmem:[#allocation2 + $0x238] sm:$0xff]
        %v546 = vld [vmem:[#allocation2 + $0x240] sm:$0xff]
        %v547 = vld [vmem:[#allocation2 + $0x248] sm:$0xff]
        %v548 = vld [vmem:[#allocation2 + $0x250] sm:$0xff]
        %v549 = vld [vmem:[#allocation2 + $0x258] sm:$0xff]
        %v550 = vld [vmem:[#allocation2 + $0x260] sm:$0xff]
        %v551 = vld [vmem:[#allocation2 + $0x268] sm:$0xff]
        %v552 = vld [vmem:[#allocation2 + $0x270] sm:$0xff]
        %v553 = vld [vmem:[#allocation2 + $0x278] sm:$0xff]
        %v554 = vld [vmem:[#allocation2 + $0x280] sm:$0xff]
        %v555 = vld [vmem:[#allocation2 + $0x288] sm:$0xff]
        %v556 = vld [vmem:[#allocation2 + $0x290] sm:$0xff]
        %v557 = vld [vmem:[#allocation2 + $0x298] sm:$0xff]
        %v558 = vld [vmem:[#allocation2 + $0x2a0] sm:$0xff]
        %v559 = vld [vmem:[#allocation2 + $0x2a8] sm:$0xff]
        %v560 = vld [vmem:[#allocation2 + $0x2b0] sm:$0xff]
        %v561 = vld [vmem:[#allocation2 + $0x2b8] sm:$0xff]
        %v562 = vld [vmem:[#allocation2 + $0x2c0] sm:$0xff]
        %v563 = vld [vmem:[#allocation2 + $0x2c8] sm:$0xff]
        %v564 = vld [vmem:[#allocation2 + $0x2d0] sm:$0xff]
        %v565 = vld [vmem:[#allocation2 + $0x2d8] sm:$0xff]
        %v566 = vld [vmem:[#allocation2 + $0x2e0] sm:$0xff]
        %v567 = vld [vmem:[#allocation2 + $0x2e8] sm:$0xff]
        %v568 = vld [vmem:[#allocation2 + $0x2f0] sm:$0xff]
        %v569 = vld [vmem:[#allocation2 + $0x2f8] sm:$0xff]
        %v570 = vld [vmem:[#allocation2 + $0x300] sm:$0xff]
        %v571 = vld [vmem:[#allocation2 + $0x308] sm:$0xff]
        %v572 = vld [vmem:[#allocation2 + $0x310] sm:$0xff]
        %v573 = vld [vmem:[#allocation2 + $0x318] sm:$0xff]
        %v574 = vld [vmem:[#allocation2 + $0x320] sm:$0xff]
        %v575 = vld [vmem:[#allocation2 + $0x328] sm:$0xff]
        %v576 = vld [vmem:[#allocation2 + $0x330] sm:$0xff]
        %v577 = vld [vmem:[#allocation2 + $0x338] sm:$0xff]
        %v578 = vld [vmem:[#allocation2 + $0x340] sm:$0xff]
        %v579 = vld [vmem:[#allocation2 + $0x348] sm:$0xff]
        %v580 = vld [vmem:[#allocation2 + $0x350] sm:$0xff]
        %v581 = vld [vmem:[#allocation2 + $0x358] sm:$0xff]
        %v582 = vld [vmem:[#allocation2 + $0x360] sm:$0xff]
        %v583 = vld [vmem:[#allocation2 + $0x368] sm:$0xff]
        %v584 = vld [vmem:[#allocation2 + $0x370] sm:$0xff]
        %v585 = vld [vmem:[#allocation2 + $0x378] sm:$0xff]
        %v586 = vld [vmem:[#allocation2 + $0x380] sm:$0xff]
        %v587 = vld [vmem:[#allocation2 + $0x388] sm:$0xff]
        %v588 = vld [vmem:[#allocation2 + $0x390] sm:$0xff]
        %v589 = vld [vmem:[#allocation2 + $0x398] sm:$0xff]
        %v590 = vld [vmem:[#allocation2 + $0x3a0] sm:$0xff]
        %v591 = vld [vmem:[#allocation2 + $0x3a8] sm:$0xff]
        %v592 = vld [vmem:[#allocation2 + $0x3b0] sm:$0xff]
        %v593 = vld [vmem:[#allocation2 + $0x3b8] sm:$0xff]
        %s594 = scalar_lea.vmem [#allocation2], 960
        %v595 = vld [vmem:[%s594] sm:$0xff]
        %v596 = vld [vmem:[%s594 + $0x8] sm:$0xff]
        %v597 = vld [vmem:[%s594 + $0x10] sm:$0xff]
        %v598 = vld [vmem:[%s594 + $0x18] sm:$0xff]
        %v599 = vld [vmem:[%s594 + $0x20] sm:$0xff]
        %v600 = vld [vmem:[%s594 + $0x28] sm:$0xff]
        %v601 = vld [vmem:[%s594 + $0x30] sm:$0xff]
        %v602 = vld [vmem:[%s594 + $0x38] sm:$0xff]
        %v603 = vld [vmem:[%s594 + $0x40] sm:$0xff]
        %v604 = vld [vmem:[%s594 + $0x48] sm:$0xff]
        %v605 = vld [vmem:[%s594 + $0x50] sm:$0xff]
        %v606 = vld [vmem:[%s594 + $0x58] sm:$0xff]
        %v607 = vld [vmem:[%s594 + $0x60] sm:$0xff]
        %v608 = vld [vmem:[%s594 + $0x68] sm:$0xff]
        %v609 = vld [vmem:[%s594 + $0x70] sm:$0xff]
        %v610 = vld [vmem:[%s594 + $0x78] sm:$0xff]
        %v611 = vld [vmem:[%s594 + $0x80] sm:$0xff]
        %v612 = vld [vmem:[%s594 + $0x88] sm:$0xff]
        %v613 = vld [vmem:[%s594 + $0x90] sm:$0xff]
        %v614 = vld [vmem:[%s594 + $0x98] sm:$0xff]
        %v615 = vld [vmem:[%s594 + $0xa0] sm:$0xff]
        %v616 = vld [vmem:[%s594 + $0xa8] sm:$0xff]
        %v617 = vld [vmem:[%s594 + $0xb0] sm:$0xff]
        %v618 = vld [vmem:[%s594 + $0xb8] sm:$0xff]
        %v619 = vld [vmem:[%s594 + $0xc0] sm:$0xff]
        %v620 = vld [vmem:[%s594 + $0xc8] sm:$0xff]
        %v621 = vld [vmem:[%s594 + $0xd0] sm:$0xff]
        %v622 = vld [vmem:[%s594 + $0xd8] sm:$0xff]
        %v623 = vld [vmem:[%s594 + $0xe0] sm:$0xff]
        %v624 = vld [vmem:[%s594 + $0xe8] sm:$0xff]
        %v625 = vld [vmem:[%s594 + $0xf0] sm:$0xff]
        %v626 = vld [vmem:[%s594 + $0xf8] sm:$0xff]
        %v627 = vld [vmem:[%s594 + $0x100] sm:$0xff]
        %v628 = vld [vmem:[%s594 + $0x108] sm:$0xff]
        %v629 = vld [vmem:[%s594 + $0x110] sm:$0xff]
        %v630 = vld [vmem:[%s594 + $0x118] sm:$0xff]
        %v631 = vld [vmem:[%s594 + $0x120] sm:$0xff]
        %v632 = vld [vmem:[%s594 + $0x128] sm:$0xff]
        %v633 = vld [vmem:[%s594 + $0x130] sm:$0xff]
        %v634 = vld [vmem:[%s594 + $0x138] sm:$0xff]
        %v635 = vld [vmem:[%s594 + $0x140] sm:$0xff]
        %v636 = vld [vmem:[%s594 + $0x148] sm:$0xff]
        %v637 = vld [vmem:[%s594 + $0x150] sm:$0xff]
        %v638 = vld [vmem:[%s594 + $0x158] sm:$0xff]
        %v639 = vld [vmem:[%s594 + $0x160] sm:$0xff]
        %v640 = vld [vmem:[%s594 + $0x168] sm:$0xff]
        %v641 = vld [vmem:[%s594 + $0x170] sm:$0xff]
        %v642 = vld [vmem:[%s594 + $0x178] sm:$0xff]
        %v643 = vld [vmem:[%s594 + $0x180] sm:$0xff]
        %v644 = vld [vmem:[%s594 + $0x188] sm:$0xff]
        %v645 = vld [vmem:[%s594 + $0x190] sm:$0xff]
        %v646 = vld [vmem:[%s594 + $0x198] sm:$0xff]
        %v647 = vld [vmem:[%s594 + $0x1a0] sm:$0xff]
        %v648 = vld [vmem:[%s594 + $0x1a8] sm:$0xff]
        %v649 = vld [vmem:[%s594 + $0x1b0] sm:$0xff]
        %v650 = vld [vmem:[%s594 + $0x1b8] sm:$0xff]
        %v651 = vld [vmem:[%s594 + $0x1c0] sm:$0xff]
        %v652 = vld [vmem:[%s594 + $0x1c8] sm:$0xff]
        %v653 = vld [vmem:[%s594 + $0x1d0] sm:$0xff]
        %v654 = vld [vmem:[%s594 + $0x1d8] sm:$0xff]
        %v655 = vld [vmem:[%s594 + $0x1e0] sm:$0xff]
        %v656 = vld [vmem:[%s594 + $0x1e8] sm:$0xff]
        %v657 = vld [vmem:[%s594 + $0x1f0] sm:$0xff]
        %v658 = vld [vmem:[%s594 + $0x1f8] sm:$0xff]
        %v659 = vld [vmem:[%s594 + $0x200] sm:$0xff]
        %v660 = vld [vmem:[%s594 + $0x208] sm:$0xff]
        %v661 = vld [vmem:[%s594 + $0x210] sm:$0xff]
        %v662 = vld [vmem:[%s594 + $0x218] sm:$0xff]
        %v663 = vld [vmem:[%s594 + $0x220] sm:$0xff]
        %v664 = vld [vmem:[%s594 + $0x228] sm:$0xff]
        %v665 = vld [vmem:[%s594 + $0x230] sm:$0xff]
        %v666 = vld [vmem:[%s594 + $0x238] sm:$0xff]
        %v667 = vld [vmem:[%s594 + $0x240] sm:$0xff]
        %v668 = vld [vmem:[%s594 + $0x248] sm:$0xff]
        %v669 = vld [vmem:[%s594 + $0x250] sm:$0xff]
        %v670 = vld [vmem:[%s594 + $0x258] sm:$0xff]
        %v671 = vld [vmem:[%s594 + $0x260] sm:$0xff]
        %v672 = vld [vmem:[%s594 + $0x268] sm:$0xff]
        %v673 = vld [vmem:[%s594 + $0x270] sm:$0xff]
        %v674 = vld [vmem:[%s594 + $0x278] sm:$0xff]
        %v675 = vld [vmem:[%s594 + $0x280] sm:$0xff]
        %v676 = vld [vmem:[%s594 + $0x288] sm:$0xff]
        %v677 = vld [vmem:[%s594 + $0x290] sm:$0xff]
        %v678 = vld [vmem:[%s594 + $0x298] sm:$0xff]
        %v679 = vld [vmem:[%s594 + $0x2a0] sm:$0xff]
        %v680 = vld [vmem:[%s594 + $0x2a8] sm:$0xff]
        %v681 = vld [vmem:[%s594 + $0x2b0] sm:$0xff]
        %v682 = vld [vmem:[%s594 + $0x2b8] sm:$0xff]
        %v683 = vld [vmem:[%s594 + $0x2c0] sm:$0xff]
        %v684 = vld [vmem:[%s594 + $0x2c8] sm:$0xff]
        %v685 = vld [vmem:[%s594 + $0x2d0] sm:$0xff]
        %v686 = vld [vmem:[%s594 + $0x2d8] sm:$0xff]
        %v687 = vld [vmem:[%s594 + $0x2e0] sm:$0xff]
        %v688 = vld [vmem:[%s594 + $0x2e8] sm:$0xff]
        %v689 = vld [vmem:[%s594 + $0x2f0] sm:$0xff]
        %v690 = vld [vmem:[%s594 + $0x2f8] sm:$0xff]
        %v691 = vld [vmem:[%s594 + $0x300] sm:$0xff]
        %v692 = vld [vmem:[%s594 + $0x308] sm:$0xff]
        %v693 = vld [vmem:[%s594 + $0x310] sm:$0xff]
        %v694 = vld [vmem:[%s594 + $0x318] sm:$0xff]
        %v695 = vld [vmem:[%s594 + $0x320] sm:$0xff]
        %v696 = vld [vmem:[%s594 + $0x328] sm:$0xff]
        %v697 = vld [vmem:[%s594 + $0x330] sm:$0xff]
        %v698 = vld [vmem:[%s594 + $0x338] sm:$0xff]
        %v699 = vld [vmem:[%s594 + $0x340] sm:$0xff]
        %v700 = vld [vmem:[%s594 + $0x348] sm:$0xff]
        %v701 = vld [vmem:[%s594 + $0x350] sm:$0xff]
        %v702 = vld [vmem:[%s594 + $0x358] sm:$0xff]
        %v703 = vld [vmem:[%s594 + $0x360] sm:$0xff]
        %v704 = vld [vmem:[%s594 + $0x368] sm:$0xff]
        %v705 = vld [vmem:[%s594 + $0x370] sm:$0xff]
        %v706 = vld [vmem:[%s594 + $0x378] sm:$0xff]
        %v707 = vld [vmem:[%s594 + $0x380] sm:$0xff]
        %v708 = vld [vmem:[%s594 + $0x388] sm:$0xff]
        %v709 = vld [vmem:[%s594 + $0x390] sm:$0xff]
        %v710 = vld [vmem:[%s594 + $0x398] sm:$0xff]
        %v711 = vld [vmem:[%s594 + $0x3a0] sm:$0xff]
        %v712 = vld [vmem:[%s594 + $0x3a8] sm:$0xff]
        %v713 = vld [vmem:[%s594 + $0x3b0] sm:$0xff]
        %v714 = vld [vmem:[%s594 + $0x3b8] sm:$0xff]
        %vm721 = vcmask 1046528
        %v722 = vrot.slane %v468, 1
        %v723 = vrot.slane %v470, 1
        %v724 = vsel %vm721, %v722, %v723
        %v725 = vrot.slane %v469, 1
        %v726 = vrot.slane %v471, 1
        %v727 = vsel %vm721, %v725, %v726
        %v728 = vrot.slane %v472, 1
        %v729 = vsel %vm721, %v723, %v728
        %v730 = vrot.slane %v473, 1
        %v731 = vsel %vm721, %v726, %v730
        %vm735 = vcmask 916480
        %v736 = vsel %vm735, %v727, 0
        %v738 = vsel %vm735, %v731, 0
        %v740 = vsel %vm735, %v730, 0
        %742 = vmatprep.subr.mxu0 %v596
        %743 = vmatpush1.msra.mxu0 %v595
        %744 = vmatprep.subr.mxu0 %v600
        %745 = vmatpush1.msra.mxu0 %v599
        %746 = vmatprep.subr.mxu0 %v604
        %747 = vmatpush1.msra.mxu0 %v603
        %748 = vmatprep.subr.mxu0 %v608
        %749 = vmatpush1.msra.mxu0 %v607
        %750 = vmatprep.subr.mxu0 %v612
        %751 = vmatpush1.msra.mxu0 %v611
        %752 = vmatprep.subr.mxu0 %v616
        %753 = vmatpush1.msra.mxu0 %v615
        %754 = vmatprep.subr.mxu0 %v620
        %755 = vmatpush1.msra.mxu0 %v619
        %756 = vmatprep.subr.mxu0 %v624
        %757 = vmatpush1.msra.mxu0 %v623
        %758 = vmatprep.subr.mxu0 %v628
        %759 = vmatpush1.msra.mxu0 %v627
        %760 = vmatprep.subr.mxu0 %v632
        %761 = vmatpush1.msra.mxu0 %v631
        %762 = vmatprep.subr.mxu0 %v636
        %763 = vmatpush1.msra.mxu0 %v635
        %764 = vmatprep.subr.mxu0 %v640
        %765 = vmatpush1.msra.mxu0 %v639
        %766 = vmatprep.subr.mxu0 %v644
        %767 = vmatpush1.msra.mxu0 %v643
        %768 = vmatprep.subr.mxu0 %v648
        %769 = vmatpush1.msra.mxu0 %v647
        %770 = vmatprep.subr.mxu0 %v652
        %771 = vmatpush1.msra.mxu0 %v651
        %772 = vmatprep.subr.mxu0 %v656
        %773 = vmatpush1.msra.mxu0 %v655
        %774 = vmatprep.subr.mxu0 %v660
        %775 = vmatpush1.msra.mxu0 %v659
        %776 = vmatprep.subr.mxu0 %v664
        %777 = vmatpush1.msra.mxu0 %v663
        %778 = vmatprep.subr.mxu0 %v668
        %779 = vmatpush1.msra.mxu0 %v667
        %780 = vmatprep.subr.mxu0 %v672
        %781 = vmatpush1.msra.mxu0 %v671
        %782 = vmatprep.subr.mxu0 %v676
        %783 = vmatpush1.msra.mxu0 %v675
        %784 = vmatprep.subr.mxu0 %v680
        %785 = vmatpush1.msra.mxu0 %v679
        %786 = vmatprep.subr.mxu0 %v684
        %787 = vmatpush1.msra.mxu0 %v683
        %788 = vmatprep.subr.mxu0 %v688
        %789 = vmatpush1.msra.mxu0 %v687
        %790 = vmatprep.subr.mxu0 %v692
        %791 = vmatpush1.msra.mxu0 %v691
        %792 = vmatprep.subr.mxu0 %v696
        %793 = vmatpush1.msra.mxu0 %v695
        %794 = vmatprep.subr.mxu0 %v700
        %795 = vmatpush1.msra.mxu0 %v699
        %796 = vmatprep.subr.mxu0 %v704
        %797 = vmatpush1.msra.mxu0 %v703
        %798 = vmatprep.subr.mxu0 %v708
        %799 = vmatpush1.msra.mxu0 %v707
        %800 = vmatprep.subr.mxu0 %v712
        %801 = vmatpush1.msra.mxu0 %v711
        %802 = vmatprep.subr.mxu0 0.0
        %803 = vmatpush1.msra.mxu0 0.0
        %804 = vmatprep.subr.mxu0 0.0
        %805 = vmatpush1.msra.mxu0 0.0
        %806 = vmatprep.mubr.f32.mxu0 %v736
        %807 = vmatmul.mubr.f32.gmra.mrb[0].mxu0 %v724
        %v808 = vpop.f32.mrb[0].mxu0
        %v809 = vadd.f32 0.0, %v808
        %v810 = vpop.f32.mrb[0].mxu0
        %v811 = vadd.f32 0.0, %v810
        %812 = vmatprep.mubr.f32.mxu0 %v738
        %813 = vmatmul.mubr.f32.gmra.mrb[0].mxu0 %v729
        %v814 = vpop.f32.mrb[0].mxu0
        %v815 = vadd.f32 0.0, %v814
        %v816 = vpop.f32.mrb[0].mxu0
        %v817 = vadd.f32 0.0, %v816
        %818 = vmatprep.mubr.f32.mxu0 %v740
        %819 = vmatmul.mubr.f32.gmra.mrb[0].mxu0 %v728
        %v820 = vpop.f32.mrb[0].mxu0
        %v821 = vadd.f32 0.0, %v820
        %v822 = vpop.f32.mrb[0].mxu0
        %v823 = vadd.f32 0.0, %v822
        %824 = vdwg.mxu0
        %825 = vmatprep.subr.mxu0 %v598
        %826 = vmatpush1.msra.mxu0 %v597
        %827 = vmatprep.subr.mxu0 %v602
        %828 = vmatpush1.msra.mxu0 %v601
        %829 = vmatprep.subr.mxu0 %v606
        %830 = vmatpush1.msra.mxu0 %v605
        %831 = vmatprep.subr.mxu0 %v610
        %832 = vmatpush1.msra.mxu0 %v609
        %833 = vmatprep.subr.mxu0 %v614
        %834 = vmatpush1.msra.mxu0 %v613
        %835 = vmatprep.subr.mxu0 %v618
        %836 = vmatpush1.msra.mxu0 %v617
        %837 = vmatprep.subr.mxu0 %v622
        %838 = vmatpush1.msra.mxu0 %v621
        %839 = vmatprep.subr.mxu0 %v626
        %840 = vmatpush1.msra.mxu0 %v625
        %841 = vmatprep.subr.mxu0 %v630
        %842 = vmatpush1.msra.mxu0 %v629
        %843 = vmatprep.subr.mxu0 %v634
        %844 = vmatpush1.msra.mxu0 %v633
        %845 = vmatprep.subr.mxu0 %v638
        %846 = vmatpush1.msra.mxu0 %v637
        %847 = vmatprep.subr.mxu0 %v642
        %848 = vmatpush1.msra.mxu0 %v641
        %849 = vmatprep.subr.mxu0 %v646
        %850 = vmatpush1.msra.mxu0 %v645
        %851 = vmatprep.subr.mxu0 %v650
        %852 = vmatpush1.msra.mxu0 %v649
        %853 = vmatprep.subr.mxu0 %v654
        %854 = vmatpush1.msra.mxu0 %v653
        %855 = vmatprep.subr.mxu0 %v658
        %856 = vmatpush1.msra.mxu0 %v657
        %857 = vmatprep.subr.mxu0 %v662
        %858 = vmatpush1.msra.mxu0 %v661
        %859 = vmatprep.subr.mxu0 %v666
        %860 = vmatpush1.msra.mxu0 %v665
        %861 = vmatprep.subr.mxu0 %v670
        %862 = vmatpush1.msra.mxu0 %v669
        %863 = vmatprep.subr.mxu0 %v674
        %864 = vmatpush1.msra.mxu0 %v673
        %865 = vmatprep.subr.mxu0 %v678
        %866 = vmatpush1.msra.mxu0 %v677
        %867 = vmatprep.subr.mxu0 %v682
        %868 = vmatpush1.msra.mxu0 %v681
        %869 = vmatprep.subr.mxu0 %v686
        %870 = vmatpush1.msra.mxu0 %v685
        %871 = vmatprep.subr.mxu0 %v690
        %872 = vmatpush1.msra.mxu0 %v689
        %873 = vmatprep.subr.mxu0 %v694
        %874 = vmatpush1.msra.mxu0 %v693
        %875 = vmatprep.subr.mxu0 %v698
        %876 = vmatpush1.msra.mxu0 %v697
        %877 = vmatprep.subr.mxu0 %v702
        %878 = vmatpush1.msra.mxu0 %v701
        %879 = vmatprep.subr.mxu0 %v706
        %880 = vmatpush1.msra.mxu0 %v705
        %881 = vmatprep.subr.mxu0 %v710
        %882 = vmatpush1.msra.mxu0 %v709
        %883 = vmatprep.subr.mxu0 %v714
        %884 = vmatpush1.msra.mxu0 %v713
        %885 = vmatprep.subr.mxu0 0.0
        %886 = vmatpush1.msra.mxu0 0.0
        %887 = vmatprep.subr.mxu0 0.0
        %888 = vmatpush1.msra.mxu0 0.0
        %889 = vmatprep.mubr.f32.mxu0 %v736
        %890 = vmatmul.mubr.f32.gmra.mrb[0].mxu0 %v724
        %v891 = vpop.f32.mrb[0].mxu0
        %v892 = vadd.f32 0.0, %v891
        %v893 = vpop.f32.mrb[0].mxu0
        %v894 = vadd.f32 0.0, %v893
        %895 = vmatprep.mubr.f32.mxu0 %v738
        %896 = vmatmul.mubr.f32.gmra.mrb[0].mxu0 %v729
        %v897 = vpop.f32.mrb[0].mxu0
        %v898 = vadd.f32 0.0, %v897
        %v899 = vpop.f32.mrb[0].mxu0
        %v900 = vadd.f32 0.0, %v899
        %901 = vmatprep.mubr.f32.mxu0 %v740
        %902 = vmatmul.mubr.f32.gmra.mrb[0].mxu0 %v728
        %v903 = vpop.f32.mrb[0].mxu0
        %v904 = vadd.f32 0.0, %v903
        %v905 = vpop.f32.mrb[0].mxu0
        %v906 = vadd.f32 0.0, %v905
        %907 = vdwg.mxu0
        %v908 = vsel %vm735, %v469, 0
        %v910 = vsel %vm735, %v471, 0
        %v912 = vsel %vm735, %v473, 0
        %914 = vmatprep.subr.mxu0 %v475
        %915 = vmatpush1.msra.mxu0 %v474
        %916 = vmatprep.subr.mxu0 %v479
        %917 = vmatpush1.msra.mxu0 %v478
        %918 = vmatprep.subr.mxu0 %v483
        %919 = vmatpush1.msra.mxu0 %v482
        %920 = vmatprep.subr.mxu0 %v487
        %921 = vmatpush1.msra.mxu0 %v486
        %922 = vmatprep.subr.mxu0 %v491
        %923 = vmatpush1.msra.mxu0 %v490
        %924 = vmatprep.subr.mxu0 %v495
        %925 = vmatpush1.msra.mxu0 %v494
        %926 = vmatprep.subr.mxu0 %v499
        %927 = vmatpush1.msra.mxu0 %v498
        %928 = vmatprep.subr.mxu0 %v503
        %929 = vmatpush1.msra.mxu0 %v502
        %930 = vmatprep.subr.mxu0 %v507
        %931 = vmatpush1.msra.mxu0 %v506
        %932 = vmatprep.subr.mxu0 %v511
        %933 = vmatpush1.msra.mxu0 %v510
        %934 = vmatprep.subr.mxu0 %v515
        %935 = vmatpush1.msra.mxu0 %v514
        %936 = vmatprep.subr.mxu0 %v519
        %937 = vmatpush1.msra.mxu0 %v518
        %938 = vmatprep.subr.mxu0 %v523
        %939 = vmatpush1.msra.mxu0 %v522
        %940 = vmatprep.subr.mxu0 %v527
        %941 = vmatpush1.msra.mxu0 %v526
        %942 = vmatprep.subr.mxu0 %v531
        %943 = vmatpush1.msra.mxu0 %v530
        %944 = vmatprep.subr.mxu0 %v535
        %945 = vmatpush1.msra.mxu0 %v534
        %946 = vmatprep.subr.mxu0 %v539
        %947 = vmatpush1.msra.mxu0 %v538
        %948 = vmatprep.subr.mxu0 %v543
        %949 = vmatpush1.msra.mxu0 %v542
        %950 = vmatprep.subr.mxu0 %v547
        %951 = vmatpush1.msra.mxu0 %v546
        %952 = vmatprep.subr.mxu0 %v551
        %953 = vmatpush1.msra.mxu0 %v550
        %954 = vmatprep.subr.mxu0 %v555
        %955 = vmatpush1.msra.mxu0 %v554
        %956 = vmatprep.subr.mxu0 %v559
        %957 = vmatpush1.msra.mxu0 %v558
        %958 = vmatprep.subr.mxu0 %v563
        %959 = vmatpush1.msra.mxu0 %v562
        %960 = vmatprep.subr.mxu0 %v567
        %961 = vmatpush1.msra.mxu0 %v566
        %962 = vmatprep.subr.mxu0 %v571
        %963 = vmatpush1.msra.mxu0 %v570
        %964 = vmatprep.subr.mxu0 %v575
        %965 = vmatpush1.msra.mxu0 %v574
        %966 = vmatprep.subr.mxu0 %v579
        %967 = vmatpush1.msra.mxu0 %v578
        %968 = vmatprep.subr.mxu0 %v583
        %969 = vmatpush1.msra.mxu0 %v582
        %970 = vmatprep.subr.mxu0 %v587
        %971 = vmatpush1.msra.mxu0 %v586
        %972 = vmatprep.subr.mxu0 %v591
        %973 = vmatpush1.msra.mxu0 %v590
        %974 = vmatprep.subr.mxu0 0.0
        %975 = vmatpush1.msra.mxu0 0.0
        %976 = vmatprep.subr.mxu0 0.0
        %977 = vmatpush1.msra.mxu0 0.0
        %978 = vmatprep.mubr.f32.mxu0 %v908
        %979 = vmatmul.mubr.f32.gmra.mrb[0].mxu0 %v468
        %v980 = vpop.f32.mrb[0].mxu0
        %v981 = vadd.f32 %v809, %v980
        %v982 = vpop.f32.mrb[0].mxu0
        %v983 = vadd.f32 %v811, %v982
        %984 = vmatprep.mubr.f32.mxu0 %v910
        %985 = vmatmul.mubr.f32.gmra.mrb[0].mxu0 %v470
        %v986 = vpop.f32.mrb[0].mxu0
        %v987 = vadd.f32 %v815, %v986
        %v988 = vpop.f32.mrb[0].mxu0
        %v989 = vadd.f32 %v817, %v988
        %990 = vmatprep.mubr.f32.mxu0 %v912
        %991 = vmatmul.mubr.f32.gmra.mrb[0].mxu0 %v472
        %v992 = vpop.f32.mrb[0].mxu0
        %v993 = vadd.f32 %v821, %v992
        %v994 = vpop.f32.mrb[0].mxu0
        %v995 = vadd.f32 %v823, %v994
        %996 = vdwg.mxu0
        %997 = vmatprep.subr.mxu0 %v477
        %998 = vmatpush1.msra.mxu0 %v476
        %999 = vmatprep.subr.mxu0 %v481
        %1000 = vmatpush1.msra.mxu0 %v480
        %1001 = vmatprep.subr.mxu0 %v485
        %1002 = vmatpush1.msra.mxu0 %v484
        %1003 = vmatprep.subr.mxu0 %v489
        %1004 = vmatpush1.msra.mxu0 %v488
        %1005 = vmatprep.subr.mxu0 %v493
        %1006 = vmatpush1.msra.mxu0 %v492
        %1007 = vmatprep.subr.mxu0 %v497
        %1008 = vmatpush1.msra.mxu0 %v496
        %1009 = vmatprep.subr.mxu0 %v501
        %1010 = vmatpush1.msra.mxu0 %v500
        %1011 = vmatprep.subr.mxu0 %v505
        %1012 = vmatpush1.msra.mxu0 %v504
        %1013 = vmatprep.subr.mxu0 %v509
        %1014 = vmatpush1.msra.mxu0 %v508
        %1015 = vmatprep.subr.mxu0 %v513
        %1016 = vmatpush1.msra.mxu0 %v512
        %1017 = vmatprep.subr.mxu0 %v517
        %1018 = vmatpush1.msra.mxu0 %v516
        %1019 = vmatprep.subr.mxu0 %v521
        %1020 = vmatpush1.msra.mxu0 %v520
        %1021 = vmatprep.subr.mxu0 %v525
        %1022 = vmatpush1.msra.mxu0 %v524
        %1023 = vmatprep.subr.mxu0 %v529
        %1024 = vmatpush1.msra.mxu0 %v528
        %1025 = vmatprep.subr.mxu0 %v533
        %1026 = vmatpush1.msra.mxu0 %v532
        %1027 = vmatprep.subr.mxu0 %v537
        %1028 = vmatpush1.msra.mxu0 %v536
        %1029 = vmatprep.subr.mxu0 %v541
        %1030 = vmatpush1.msra.mxu0 %v540
        %1031 = vmatprep.subr.mxu0 %v545
        %1032 = vmatpush1.msra.mxu0 %v544
        %1033 = vmatprep.subr.mxu0 %v549
        %1034 = vmatpush1.msra.mxu0 %v548
        %1035 = vmatprep.subr.mxu0 %v553
        %1036 = vmatpush1.msra.mxu0 %v552
        %1037 = vmatprep.subr.mxu0 %v557
        %1038 = vmatpush1.msra.mxu0 %v556
        %1039 = vmatprep.subr.mxu0 %v561
        %1040 = vmatpush1.msra.mxu0 %v560
        %1041 = vmatprep.subr.mxu0 %v565
        %1042 = vmatpush1.msra.mxu0 %v564
        %1043 = vmatprep.subr.mxu0 %v569
        %1044 = vmatpush1.msra.mxu0 %v568
        %1045 = vmatprep.subr.mxu0 %v573
        %1046 = vmatpush1.msra.mxu0 %v572
        %1047 = vmatprep.subr.mxu0 %v577
        %1048 = vmatpush1.msra.mxu0 %v576
        %1049 = vmatprep.subr.mxu0 %v581
        %1050 = vmatpush1.msra.mxu0 %v580
        %1051 = vmatprep.subr.mxu0 %v585
        %1052 = vmatpush1.msra.mxu0 %v584
        %1053 = vmatprep.subr.mxu0 %v589
        %1054 = vmatpush1.msra.mxu0 %v588
        %1055 = vmatprep.subr.mxu0 %v593
        %1056 = vmatpush1.msra.mxu0 %v592
        %1057 = vmatprep.subr.mxu0 0.0
        %1058 = vmatpush1.msra.mxu0 0.0
        %1059 = vmatprep.subr.mxu0 0.0
        %1060 = vmatpush1.msra.mxu0 0.0
        %1061 = vmatprep.mubr.f32.mxu0 %v908
        %1062 = vmatmul.mubr.f32.gmra.mrb[0].mxu0 %v468
        %v1063 = vpop.f32.mrb[0].mxu0
        %v1064 = vadd.f32 %v892, %v1063
        %v1065 = vpop.f32.mrb[0].mxu0
        %v1066 = vadd.f32 %v894, %v1065
        %1067 = vmatprep.mubr.f32.mxu0 %v910
        %1068 = vmatmul.mubr.f32.gmra.mrb[0].mxu0 %v470
        %v1069 = vpop.f32.mrb[0].mxu0
        %v1070 = vadd.f32 %v898, %v1069
        %v1071 = vpop.f32.mrb[0].mxu0
        %v1072 = vadd.f32 %v900, %v1071
        %1073 = vmatprep.mubr.f32.mxu0 %v912
        %1074 = vmatmul.mubr.f32.gmra.mrb[0].mxu0 %v472
        %v1075 = vpop.f32.mrb[0].mxu0
        %v1076 = vadd.f32 %v904, %v1075
        %v1077 = vpop.f32.mrb[0].mxu0
        %v1078 = vadd.f32 %v906, %v1077
        %1079 = vdwg.mxu0
        %s1080 = scalar_lea.vmem [#allocation2], 1920
        %v1081 = vld [vmem:[%s1080] sm:$0xff]
        %v1082 = vld [vmem:[%s1080 + $0x8] sm:$0xff]
        %v1083 = vld [vmem:[%s1080 + $0x10] sm:$0xff]
        %v1084 = vld [vmem:[%s1080 + $0x18] sm:$0xff]
        %v1085 = vld [vmem:[%s1080 + $0x20] sm:$0xff]
        %v1086 = vld [vmem:[%s1080 + $0x28] sm:$0xff]
        %v1087 = vld [vmem:[%s1080 + $0x30] sm:$0xff]
        %v1088 = vld [vmem:[%s1080 + $0x38] sm:$0xff]
        %v1089 = vld [vmem:[%s1080 + $0x40] sm:$0xff]
        %v1090 = vld [vmem:[%s1080 + $0x48] sm:$0xff]
        %v1091 = vld [vmem:[%s1080 + $0x50] sm:$0xff]
        %v1092 = vld [vmem:[%s1080 + $0x58] sm:$0xff]
        %v1093 = vld [vmem:[%s1080 + $0x60] sm:$0xff]
        %v1094 = vld [vmem:[%s1080 + $0x68] sm:$0xff]
        %v1095 = vld [vmem:[%s1080 + $0x70] sm:$0xff]
        %v1096 = vld [vmem:[%s1080 + $0x78] sm:$0xff]
        %v1097 = vld [vmem:[%s1080 + $0x80] sm:$0xff]
        %v1098 = vld [vmem:[%s1080 + $0x88] sm:$0xff]
        %v1099 = vld [vmem:[%s1080 + $0x90] sm:$0xff]
        %v1100 = vld [vmem:[%s1080 + $0x98] sm:$0xff]
        %v1101 = vld [vmem:[%s1080 + $0xa0] sm:$0xff]
        %v1102 = vld [vmem:[%s1080 + $0xa8] sm:$0xff]
        %v1103 = vld [vmem:[%s1080 + $0xb0] sm:$0xff]
        %v1104 = vld [vmem:[%s1080 + $0xb8] sm:$0xff]
        %v1105 = vld [vmem:[%s1080 + $0xc0] sm:$0xff]
        %v1106 = vld [vmem:[%s1080 + $0xc8] sm:$0xff]
        %v1107 = vld [vmem:[%s1080 + $0xd0] sm:$0xff]
        %v1108 = vld [vmem:[%s1080 + $0xd8] sm:$0xff]
        %v1109 = vld [vmem:[%s1080 + $0xe0] sm:$0xff]
        %v1110 = vld [vmem:[%s1080 + $0xe8] sm:$0xff]
        %v1111 = vld [vmem:[%s1080 + $0xf0] sm:$0xff]
        %v1112 = vld [vmem:[%s1080 + $0xf8] sm:$0xff]
        %v1113 = vld [vmem:[%s1080 + $0x100] sm:$0xff]
        %v1114 = vld [vmem:[%s1080 + $0x108] sm:$0xff]
        %v1115 = vld [vmem:[%s1080 + $0x110] sm:$0xff]
        %v1116 = vld [vmem:[%s1080 + $0x118] sm:$0xff]
        %v1117 = vld [vmem:[%s1080 + $0x120] sm:$0xff]
        %v1118 = vld [vmem:[%s1080 + $0x128] sm:$0xff]
        %v1119 = vld [vmem:[%s1080 + $0x130] sm:$0xff]
        %v1120 = vld [vmem:[%s1080 + $0x138] sm:$0xff]
        %v1121 = vld [vmem:[%s1080 + $0x140] sm:$0xff]
        %v1122 = vld [vmem:[%s1080 + $0x148] sm:$0xff]
        %v1123 = vld [vmem:[%s1080 + $0x150] sm:$0xff]
        %v1124 = vld [vmem:[%s1080 + $0x158] sm:$0xff]
        %v1125 = vld [vmem:[%s1080 + $0x160] sm:$0xff]
        %v1126 = vld [vmem:[%s1080 + $0x168] sm:$0xff]
        %v1127 = vld [vmem:[%s1080 + $0x170] sm:$0xff]
        %v1128 = vld [vmem:[%s1080 + $0x178] sm:$0xff]
        %v1129 = vld [vmem:[%s1080 + $0x180] sm:$0xff]
        %v1130 = vld [vmem:[%s1080 + $0x188] sm:$0xff]
        %v1131 = vld [vmem:[%s1080 + $0x190] sm:$0xff]
        %v1132 = vld [vmem:[%s1080 + $0x198] sm:$0xff]
        %v1133 = vld [vmem:[%s1080 + $0x1a0] sm:$0xff]
        %v1134 = vld [vmem:[%s1080 + $0x1a8] sm:$0xff]
        %v1135 = vld [vmem:[%s1080 + $0x1b0] sm:$0xff]
        %v1136 = vld [vmem:[%s1080 + $0x1b8] sm:$0xff]
        %v1137 = vld [vmem:[%s1080 + $0x1c0] sm:$0xff]
        %v1138 = vld [vmem:[%s1080 + $0x1c8] sm:$0xff]
        %v1139 = vld [vmem:[%s1080 + $0x1d0] sm:$0xff]
        %v1140 = vld [vmem:[%s1080 + $0x1d8] sm:$0xff]
        %v1141 = vld [vmem:[%s1080 + $0x1e0] sm:$0xff]
        %v1142 = vld [vmem:[%s1080 + $0x1e8] sm:$0xff]
        %v1143 = vld [vmem:[%s1080 + $0x1f0] sm:$0xff]
        %v1144 = vld [vmem:[%s1080 + $0x1f8] sm:$0xff]
        %v1145 = vld [vmem:[%s1080 + $0x200] sm:$0xff]
        %v1146 = vld [vmem:[%s1080 + $0x208] sm:$0xff]
        %v1147 = vld [vmem:[%s1080 + $0x210] sm:$0xff]
        %v1148 = vld [vmem:[%s1080 + $0x218] sm:$0xff]
        %v1149 = vld [vmem:[%s1080 + $0x220] sm:$0xff]
        %v1150 = vld [vmem:[%s1080 + $0x228] sm:$0xff]
        %v1151 = vld [vmem:[%s1080 + $0x230] sm:$0xff]
        %v1152 = vld [vmem:[%s1080 + $0x238] sm:$0xff]
        %v1153 = vld [vmem:[%s1080 + $0x240] sm:$0xff]
        %v1154 = vld [vmem:[%s1080 + $0x248] sm:$0xff]
        %v1155 = vld [vmem:[%s1080 + $0x250] sm:$0xff]
        %v1156 = vld [vmem:[%s1080 + $0x258] sm:$0xff]
        %v1157 = vld [vmem:[%s1080 + $0x260] sm:$0xff]
        %v1158 = vld [vmem:[%s1080 + $0x268] sm:$0xff]
        %v1159 = vld [vmem:[%s1080 + $0x270] sm:$0xff]
        %v1160 = vld [vmem:[%s1080 + $0x278] sm:$0xff]
        %v1161 = vld [vmem:[%s1080 + $0x280] sm:$0xff]
        %v1162 = vld [vmem:[%s1080 + $0x288] sm:$0xff]
        %v1163 = vld [vmem:[%s1080 + $0x290] sm:$0xff]
        %v1164 = vld [vmem:[%s1080 + $0x298] sm:$0xff]
        %v1165 = vld [vmem:[%s1080 + $0x2a0] sm:$0xff]
        %v1166 = vld [vmem:[%s1080 + $0x2a8] sm:$0xff]
        %v1167 = vld [vmem:[%s1080 + $0x2b0] sm:$0xff]
        %v1168 = vld [vmem:[%s1080 + $0x2b8] sm:$0xff]
        %v1169 = vld [vmem:[%s1080 + $0x2c0] sm:$0xff]
        %v1170 = vld [vmem:[%s1080 + $0x2c8] sm:$0xff]
        %v1171 = vld [vmem:[%s1080 + $0x2d0] sm:$0xff]
        %v1172 = vld [vmem:[%s1080 + $0x2d8] sm:$0xff]
        %v1173 = vld [vmem:[%s1080 + $0x2e0] sm:$0xff]
        %v1174 = vld [vmem:[%s1080 + $0x2e8] sm:$0xff]
        %v1175 = vld [vmem:[%s1080 + $0x2f0] sm:$0xff]
        %v1176 = vld [vmem:[%s1080 + $0x2f8] sm:$0xff]
        %v1177 = vld [vmem:[%s1080 + $0x300] sm:$0xff]
        %v1178 = vld [vmem:[%s1080 + $0x308] sm:$0xff]
        %v1179 = vld [vmem:[%s1080 + $0x310] sm:$0xff]
        %v1180 = vld [vmem:[%s1080 + $0x318] sm:$0xff]
        %v1181 = vld [vmem:[%s1080 + $0x320] sm:$0xff]
        %v1182 = vld [vmem:[%s1080 + $0x328] sm:$0xff]
        %v1183 = vld [vmem:[%s1080 + $0x330] sm:$0xff]
        %v1184 = vld [vmem:[%s1080 + $0x338] sm:$0xff]
        %v1185 = vld [vmem:[%s1080 + $0x340] sm:$0xff]
        %v1186 = vld [vmem:[%s1080 + $0x348] sm:$0xff]
        %v1187 = vld [vmem:[%s1080 + $0x350] sm:$0xff]
        %v1188 = vld [vmem:[%s1080 + $0x358] sm:$0xff]
        %v1189 = vld [vmem:[%s1080 + $0x360] sm:$0xff]
        %v1190 = vld [vmem:[%s1080 + $0x368] sm:$0xff]
        %v1191 = vld [vmem:[%s1080 + $0x370] sm:$0xff]
        %v1192 = vld [vmem:[%s1080 + $0x378] sm:$0xff]
        %v1193 = vld [vmem:[%s1080 + $0x380] sm:$0xff]
        %v1194 = vld [vmem:[%s1080 + $0x388] sm:$0xff]
        %v1195 = vld [vmem:[%s1080 + $0x390] sm:$0xff]
        %v1196 = vld [vmem:[%s1080 + $0x398] sm:$0xff]
        %v1197 = vld [vmem:[%s1080 + $0x3a0] sm:$0xff]
        %v1198 = vld [vmem:[%s1080 + $0x3a8] sm:$0xff]
        %v1199 = vld [vmem:[%s1080 + $0x3b0] sm:$0xff]
        %v1200 = vld [vmem:[%s1080 + $0x3b8] sm:$0xff]
        %vm1201 = vcmask 1045504
        %v1202 = vrot.slane %v468, 2
        %v1203 = vrot.slane %v470, 2
        %v1204 = vsel %vm1201, %v1202, %v1203
        %v1205 = vrot.slane %v469, 2
        %v1206 = vrot.slane %v471, 2
        %v1207 = vsel %vm1201, %v1205, %v1206
        %v1208 = vrot.slane %v472, 2
        %v1209 = vsel %vm1201, %v1203, %v1208
        %v1210 = vrot.slane %v473, 2
        %v1211 = vsel %vm1201, %v1206, %v1210
        %v1215 = vsel %vm735, %v1207, 0
        %v1217 = vsel %vm735, %v1211, 0
        %v1219 = vsel %vm735, %v1210, 0
        %1221 = vmatprep.subr.mxu0 %v1082
        %1222 = vmatpush1.msra.mxu0 %v1081
        %1223 = vmatprep.subr.mxu0 %v1086
        %1224 = vmatpush1.msra.mxu0 %v1085
        %1225 = vmatprep.subr.mxu0 %v1090
        %1226 = vmatpush1.msra.mxu0 %v1089
        %1227 = vmatprep.subr.mxu0 %v1094
        %1228 = vmatpush1.msra.mxu0 %v1093
        %1229 = vmatprep.subr.mxu0 %v1098
        %1230 = vmatpush1.msra.mxu0 %v1097
        %1231 = vmatprep.subr.mxu0 %v1102
        %1232 = vmatpush1.msra.mxu0 %v1101
        %1233 = vmatprep.subr.mxu0 %v1106
        %1234 = vmatpush1.msra.mxu0 %v1105
        %1235 = vmatprep.subr.mxu0 %v1110
        %1236 = vmatpush1.msra.mxu0 %v1109
        %1237 = vmatprep.subr.mxu0 %v1114
        %1238 = vmatpush1.msra.mxu0 %v1113
        %1239 = vmatprep.subr.mxu0 %v1118
        %1240 = vmatpush1.msra.mxu0 %v1117
        %1241 = vmatprep.subr.mxu0 %v1122
        %1242 = vmatpush1.msra.mxu0 %v1121
        %1243 = vmatprep.subr.mxu0 %v1126
        %1244 = vmatpush1.msra.mxu0 %v1125
        %1245 = vmatprep.subr.mxu0 %v1130
        %1246 = vmatpush1.msra.mxu0 %v1129
        %1247 = vmatprep.subr.mxu0 %v1134
        %1248 = vmatpush1.msra.mxu0 %v1133
        %1249 = vmatprep.subr.mxu0 %v1138
        %1250 = vmatpush1.msra.mxu0 %v1137
        %1251 = vmatprep.subr.mxu0 %v1142
        %1252 = vmatpush1.msra.mxu0 %v1141
        %1253 = vmatprep.subr.mxu0 %v1146
        %1254 = vmatpush1.msra.mxu0 %v1145
        %1255 = vmatprep.subr.mxu0 %v1150
        %1256 = vmatpush1.msra.mxu0 %v1149
        %1257 = vmatprep.subr.mxu0 %v1154
        %1258 = vmatpush1.msra.mxu0 %v1153
        %1259 = vmatprep.subr.mxu0 %v1158
        %1260 = vmatpush1.msra.mxu0 %v1157
        %1261 = vmatprep.subr.mxu0 %v1162
        %1262 = vmatpush1.msra.mxu0 %v1161
        %1263 = vmatprep.subr.mxu0 %v1166
        %1264 = vmatpush1.msra.mxu0 %v1165
        %1265 = vmatprep.subr.mxu0 %v1170
        %1266 = vmatpush1.msra.mxu0 %v1169
        %1267 = vmatprep.subr.mxu0 %v1174
        %1268 = vmatpush1.msra.mxu0 %v1173
        %1269 = vmatprep.subr.mxu0 %v1178
        %1270 = vmatpush1.msra.mxu0 %v1177
        %1271 = vmatprep.subr.mxu0 %v1182
        %1272 = vmatpush1.msra.mxu0 %v1181
        %1273 = vmatprep.subr.mxu0 %v1186
        %1274 = vmatpush1.msra.mxu0 %v1185
        %1275 = vmatprep.subr.mxu0 %v1190
        %1276 = vmatpush1.msra.mxu0 %v1189
        %1277 = vmatprep.subr.mxu0 %v1194
        %1278 = vmatpush1.msra.mxu0 %v1193
        %1279 = vmatprep.subr.mxu0 %v1198
        %1280 = vmatpush1.msra.mxu0 %v1197
        %1281 = vmatprep.subr.mxu0 0.0
        %1282 = vmatpush1.msra.mxu0 0.0
        %1283 = vmatprep.subr.mxu0 0.0
        %1284 = vmatpush1.msra.mxu0 0.0
        %1285 = vmatprep.mubr.f32.mxu0 %v1215
        %1286 = vmatmul.mubr.f32.gmra.mrb[0].mxu0 %v1204
        %v1287 = vpop.f32.mrb[0].mxu0
        %v1288 = vadd.f32 0.0, %v1287
        %v1289 = vpop.f32.mrb[0].mxu0
        %v1290 = vadd.f32 0.0, %v1289
        %1291 = vmatprep.mubr.f32.mxu0 %v1217
        %1292 = vmatmul.mubr.f32.gmra.mrb[0].mxu0 %v1209
        %v1293 = vpop.f32.mrb[0].mxu0
        %v1294 = vadd.f32 0.0, %v1293
        %v1295 = vpop.f32.mrb[0].mxu0
        %v1296 = vadd.f32 0.0, %v1295
        %1297 = vmatprep.mubr.f32.mxu0 %v1219
        %1298 = vmatmul.mubr.f32.gmra.mrb[0].mxu0 %v1208
        %v1299 = vpop.f32.mrb[0].mxu0
        %v1300 = vadd.f32 0.0, %v1299
        %v1301 = vpop.f32.mrb[0].mxu0
        %v1302 = vadd.f32 0.0, %v1301
        %1303 = vdwg.mxu0
        %1304 = vmatprep.subr.mxu0 %v1084
        %1305 = vmatpush1.msra.mxu0 %v1083
        %1306 = vmatprep.subr.mxu0 %v1088
        %1307 = vmatpush1.msra.mxu0 %v1087
        %1308 = vmatprep.subr.mxu0 %v1092
        %1309 = vmatpush1.msra.mxu0 %v1091
        %1310 = vmatprep.subr.mxu0 %v1096
        %1311 = vmatpush1.msra.mxu0 %v1095
        %1312 = vmatprep.subr.mxu0 %v1100
        %1313 = vmatpush1.msra.mxu0 %v1099
        %1314 = vmatprep.subr.mxu0 %v1104
        %1315 = vmatpush1.msra.mxu0 %v1103
        %1316 = vmatprep.subr.mxu0 %v1108
        %1317 = vmatpush1.msra.mxu0 %v1107
        %1318 = vmatprep.subr.mxu0 %v1112
        %1319 = vmatpush1.msra.mxu0 %v1111
        %1320 = vmatprep.subr.mxu0 %v1116
        %1321 = vmatpush1.msra.mxu0 %v1115
        %1322 = vmatprep.subr.mxu0 %v1120
        %1323 = vmatpush1.msra.mxu0 %v1119
        %1324 = vmatprep.subr.mxu0 %v1124
        %1325 = vmatpush1.msra.mxu0 %v1123
        %1326 = vmatprep.subr.mxu0 %v1128
        %1327 = vmatpush1.msra.mxu0 %v1127
        %1328 = vmatprep.subr.mxu0 %v1132
        %1329 = vmatpush1.msra.mxu0 %v1131
        %1330 = vmatprep.subr.mxu0 %v1136
        %1331 = vmatpush1.msra.mxu0 %v1135
        %1332 = vmatprep.subr.mxu0 %v1140
        %1333 = vmatpush1.msra.mxu0 %v1139
        %1334 = vmatprep.subr.mxu0 %v1144
        %1335 = vmatpush1.msra.mxu0 %v1143
        %1336 = vmatprep.subr.mxu0 %v1148
        %1337 = vmatpush1.msra.mxu0 %v1147
        %1338 = vmatprep.subr.mxu0 %v1152
        %1339 = vmatpush1.msra.mxu0 %v1151
        %1340 = vmatprep.subr.mxu0 %v1156
        %1341 = vmatpush1.msra.mxu0 %v1155
        %1342 = vmatprep.subr.mxu0 %v1160
        %1343 = vmatpush1.msra.mxu0 %v1159
        %1344 = vmatprep.subr.mxu0 %v1164
        %1345 = vmatpush1.msra.mxu0 %v1163
        %1346 = vmatprep.subr.mxu0 %v1168
        %1347 = vmatpush1.msra.mxu0 %v1167
        %1348 = vmatprep.subr.mxu0 %v1172
        %1349 = vmatpush1.msra.mxu0 %v1171
        %1350 = vmatprep.subr.mxu0 %v1176
        %1351 = vmatpush1.msra.mxu0 %v1175
        %1352 = vmatprep.subr.mxu0 %v1180
        %1353 = vmatpush1.msra.mxu0 %v1179
        %1354 = vmatprep.subr.mxu0 %v1184
        %1355 = vmatpush1.msra.mxu0 %v1183
        %1356 = vmatprep.subr.mxu0 %v1188
        %1357 = vmatpush1.msra.mxu0 %v1187
        %1358 = vmatprep.subr.mxu0 %v1192
        %1359 = vmatpush1.msra.mxu0 %v1191
        %1360 = vmatprep.subr.mxu0 %v1196
        %1361 = vmatpush1.msra.mxu0 %v1195
        %1362 = vmatprep.subr.mxu0 %v1200
        %1363 = vmatpush1.msra.mxu0 %v1199
        %1364 = vmatprep.subr.mxu0 0.0
        %1365 = vmatpush1.msra.mxu0 0.0
        %1366 = vmatprep.subr.mxu0 0.0
        %1367 = vmatpush1.msra.mxu0 0.0
        %1368 = vmatprep.mubr.f32.mxu0 %v1215
        %1369 = vmatmul.mubr.f32.gmra.mrb[0].mxu0 %v1204
        %v1370 = vpop.f32.mrb[0].mxu0
        %v1371 = vadd.f32 0.0, %v1370
        %v1372 = vpop.f32.mrb[0].mxu0
        %v1373 = vadd.f32 0.0, %v1372
        %1374 = vmatprep.mubr.f32.mxu0 %v1217
        %1375 = vmatmul.mubr.f32.gmra.mrb[0].mxu0 %v1209
        %v1376 = vpop.f32.mrb[0].mxu0
        %v1377 = vadd.f32 0.0, %v1376
        %v1378 = vpop.f32.mrb[0].mxu0
        %v1379 = vadd.f32 0.0, %v1378
        %1380 = vmatprep.mubr.f32.mxu0 %v1219
        %1381 = vmatmul.mubr.f32.gmra.mrb[0].mxu0 %v1208
        %v1382 = vpop.f32.mrb[0].mxu0
        %v1383 = vadd.f32 0.0, %v1382
        %v1384 = vpop.f32.mrb[0].mxu0
        %v1385 = vadd.f32 0.0, %v1384
        %1386 = vdwg.mxu0
        %v1387 = vadd.f32 %v981, %v1288
        %v1388 = vadd.f32 %v983, %v1290
        %v1389 = vadd.f32 %v1064, %v1371
        %v1390 = vadd.f32 %v1066, %v1373
        %v1391 = vadd.f32 %v987, %v1294
        %v1392 = vadd.f32 %v989, %v1296
        %v1393 = vadd.f32 %v1070, %v1377
        %v1394 = vadd.f32 %v1072, %v1379
        %v1395 = vadd.f32 %v993, %v1300
        %v1396 = vadd.f32 %v995, %v1302
        %v1397 = vadd.f32 %v1076, %v1383
        %v1398 = vadd.f32 %v1078, %v1385
        %v1399 = vld [vmem:[%s5] sm:$0xf]
        %v1401 = vlaneseq
        %v1402 = vshrl.u32 %v1401, 7
        %v1403 = vsub.s32 0, %v1402
        %v1404 = vrot.slane %v1399, %v1403
        %v1405 = vlaneseq
        %v1406 = vshrl.u32 %v1405, 7
        %v1407 = vsub.s32 1, %v1406
        %v1408 = vrot.slane %v1399, %v1407
        %v1409 = vlaneseq
        %v1410 = vshrl.u32 %v1409, 7
        %v1411 = vsub.s32 2, %v1410
        %v1412 = vrot.slane %v1399, %v1411
        %v1413 = vlaneseq
        %v1414 = vshrl.u32 %v1413, 7
        %v1415 = vsub.s32 3, %v1414
        %v1416 = vrot.slane %v1399, %v1415
        %v1421 = vadd.f32 %v1387, %v1404
        %v1422 = vadd.f32 %v1388, %v1408
        %v1423 = vadd.f32 %v1389, %v1412
        %v1424 = vadd.f32 %v1390, %v1416
        %v1425 = vadd.f32 %v1391, %v1404
        %v1426 = vadd.f32 %v1392, %v1408
        %v1427 = vadd.f32 %v1393, %v1412
        %v1428 = vadd.f32 %v1394, %v1416
        %v1429 = vadd.f32 %v1395, %v1404
        %v1430 = vadd.f32 %v1396, %v1408
        %v1431 = vadd.f32 %v1397, %v1412
        %v1432 = vadd.f32 %v1398, %v1416
        %v1433 = vmax.f32 %v1421, 0.0
        %v1434 = vmax.f32 %v1422, 0.0
        %v1435 = vmax.f32 %v1423, 0.0
        %v1436 = vmax.f32 %v1424, 0.0
        %v1437 = vmax.f32 %v1425, 0.0
        %v1438 = vmax.f32 %v1426, 0.0
        %v1439 = vmax.f32 %v1427, 0.0
        %v1440 = vmax.f32 %v1428, 0.0
        %v1441 = vmax.f32 %v1429, 0.0
        %v1442 = vmax.f32 %v1430, 0.0
        %v1443 = vmax.f32 %v1431, 0.0
        %v1444 = vmax.f32 %v1432, 0.0
        %v1445 = vld [vmem:[%s2] sm:$0xff]
        %v1446 = vld [vmem:[%s2 + $0x8] sm:$0xff]
        %v1447 = vld [vmem:[%s2 + $0x10] sm:$0xff]
        %v1448 = vld [vmem:[%s2 + $0x18] sm:$0xff]
        %v1449 = vld [vmem:[%s2 + $0x20] sm:$0xff]
        %v1450 = vld [vmem:[%s2 + $0x28] sm:$0xff]
        %v1451 = vld [vmem:[%s2 + $0x30] sm:$0xff]
        %v1452 = vld [vmem:[%s2 + $0x38] sm:$0xff]
        %v1453 = vld [vmem:[%s2 + $0x40] sm:$0xff]
        %v1454 = vld [vmem:[%s2 + $0x48] sm:$0xff]
        %v1455 = vld [vmem:[%s2 + $0x50] sm:$0xff]
        %v1456 = vld [vmem:[%s2 + $0x58] sm:$0xff]
        %v1457 = vld [vmem:[%s2 + $0x60] sm:$0xff]
        %v1458 = vld [vmem:[%s2 + $0x68] sm:$0xff]
        %v1459 = vld [vmem:[%s2 + $0x70] sm:$0xff]
        %v1460 = vld [vmem:[%s2 + $0x78] sm:$0xff]
        %v1461 = vld [vmem:[%s2 + $0x80] sm:$0xff]
        %v1462 = vld [vmem:[%s2 + $0x88] sm:$0xff]
        %v1463 = vld [vmem:[%s2 + $0x90] sm:$0xff]
        %v1464 = vld [vmem:[%s2 + $0x98] sm:$0xff]
        %v1465 = vld [vmem:[%s2 + $0xa0] sm:$0xff]
        %v1466 = vld [vmem:[%s2 + $0xa8] sm:$0xff]
        %v1467 = vld [vmem:[%s2 + $0xb0] sm:$0xff]
        %v1468 = vld [vmem:[%s2 + $0xb8] sm:$0xff]
        %v1469 = vld [vmem:[%s2 + $0xc0] sm:$0xff]
        %v1470 = vld [vmem:[%s2 + $0xc8] sm:$0xff]
        %v1471 = vld [vmem:[%s2 + $0xd0] sm:$0xff]
        %v1472 = vld [vmem:[%s2 + $0xd8] sm:$0xff]
        %v1473 = vld [vmem:[%s2 + $0xe0] sm:$0xff]
        %v1474 = vld [vmem:[%s2 + $0xe8] sm:$0xff]
        %v1475 = vld [vmem:[%s2 + $0xf0] sm:$0xff]
        %v1476 = vld [vmem:[%s2 + $0xf8] sm:$0xff]
        %v1477 = vld [vmem:[%s2 + $0x100] sm:$0xff]
        %v1478 = vld [vmem:[%s2 + $0x108] sm:$0xff]
        %v1479 = vld [vmem:[%s2 + $0x110] sm:$0xff]
        %v1480 = vld [vmem:[%s2 + $0x118] sm:$0xff]
        %v1481 = vld [vmem:[%s2 + $0x120] sm:$0xff]
        %v1482 = vld [vmem:[%s2 + $0x128] sm:$0xff]
        %v1483 = vld [vmem:[%s2 + $0x130] sm:$0xff]
        %v1484 = vld [vmem:[%s2 + $0x138] sm:$0xff]
        %v1485 = vld [vmem:[%s2 + $0x140] sm:$0xff]
        %v1486 = vld [vmem:[%s2 + $0x148] sm:$0xff]
        %v1487 = vld [vmem:[%s2 + $0x150] sm:$0xff]
        %v1488 = vld [vmem:[%s2 + $0x158] sm:$0xff]
        %v1489 = vld [vmem:[%s2 + $0x160] sm:$0xff]
        %v1490 = vld [vmem:[%s2 + $0x168] sm:$0xff]
        %v1491 = vld [vmem:[%s2 + $0x170] sm:$0xff]
        %v1492 = vld [vmem:[%s2 + $0x178] sm:$0xff]
        %v1493 = vld [vmem:[%s2 + $0x180] sm:$0xff]
        %v1494 = vld [vmem:[%s2 + $0x188] sm:$0xff]
        %v1495 = vld [vmem:[%s2 + $0x190] sm:$0xff]
        %v1496 = vld [vmem:[%s2 + $0x198] sm:$0xff]
        %v1497 = vld [vmem:[%s2 + $0x1a0] sm:$0xff]
        %v1498 = vld [vmem:[%s2 + $0x1a8] sm:$0xff]
        %v1499 = vld [vmem:[%s2 + $0x1b0] sm:$0xff]
        %v1500 = vld [vmem:[%s2 + $0x1b8] sm:$0xff]
        %v1501 = vld [vmem:[%s2 + $0x1c0] sm:$0xff]
        %v1502 = vld [vmem:[%s2 + $0x1c8] sm:$0xff]
        %v1503 = vld [vmem:[%s2 + $0x1d0] sm:$0xff]
        %v1504 = vld [vmem:[%s2 + $0x1d8] sm:$0xff]
        %v1505 = vld [vmem:[%s2 + $0x1e0] sm:$0xff]
        %v1506 = vld [vmem:[%s2 + $0x1e8] sm:$0xff]
        %v1507 = vld [vmem:[%s2 + $0x1f0] sm:$0xff]
        %v1508 = vld [vmem:[%s2 + $0x1f8] sm:$0xff]
        %v1509 = vld [vmem:[%s2 + $0x200] sm:$0xff]
        %v1510 = vld [vmem:[%s2 + $0x208] sm:$0xff]
        %v1511 = vld [vmem:[%s2 + $0x210] sm:$0xff]
        %v1512 = vld [vmem:[%s2 + $0x218] sm:$0xff]
        %v1513 = vld [vmem:[%s2 + $0x220] sm:$0xff]
        %v1514 = vld [vmem:[%s2 + $0x228] sm:$0xff]
        %v1515 = vld [vmem:[%s2 + $0x230] sm:$0xff]
        %v1516 = vld [vmem:[%s2 + $0x238] sm:$0xff]
        %v1517 = vld [vmem:[%s2 + $0x240] sm:$0xff]
        %v1518 = vld [vmem:[%s2 + $0x248] sm:$0xff]
        %v1519 = vld [vmem:[%s2 + $0x250] sm:$0xff]
        %v1520 = vld [vmem:[%s2 + $0x258] sm:$0xff]
        %v1521 = vld [vmem:[%s2 + $0x260] sm:$0xff]
        %v1522 = vld [vmem:[%s2 + $0x268] sm:$0xff]
        %v1523 = vld [vmem:[%s2 + $0x270] sm:$0xff]
        %v1524 = vld [vmem:[%s2 + $0x278] sm:$0xff]
        %v1525 = vld [vmem:[%s2 + $0x280] sm:$0xff]
        %v1526 = vld [vmem:[%s2 + $0x288] sm:$0xff]
        %v1527 = vld [vmem:[%s2 + $0x290] sm:$0xff]
        %v1528 = vld [vmem:[%s2 + $0x298] sm:$0xff]
        %v1529 = vld [vmem:[%s2 + $0x2a0] sm:$0xff]
        %v1530 = vld [vmem:[%s2 + $0x2a8] sm:$0xff]
        %v1531 = vld [vmem:[%s2 + $0x2b0] sm:$0xff]
        %v1532 = vld [vmem:[%s2 + $0x2b8] sm:$0xff]
        %v1533 = vld [vmem:[%s2 + $0x2c0] sm:$0xff]
        %v1534 = vld [vmem:[%s2 + $0x2c8] sm:$0xff]
        %v1535 = vld [vmem:[%s2 + $0x2d0] sm:$0xff]
        %v1536 = vld [vmem:[%s2 + $0x2d8] sm:$0xff]
        %v1537 = vld [vmem:[%s2 + $0x2e0] sm:$0xff]
        %v1538 = vld [vmem:[%s2 + $0x2e8] sm:$0xff]
        %v1539 = vld [vmem:[%s2 + $0x2f0] sm:$0xff]
        %v1540 = vld [vmem:[%s2 + $0x2f8] sm:$0xff]
        %v1541 = vld [vmem:[%s2 + $0x300] sm:$0xff]
        %v1542 = vld [vmem:[%s2 + $0x308] sm:$0xff]
        %v1543 = vld [vmem:[%s2 + $0x310] sm:$0xff]
        %v1544 = vld [vmem:[%s2 + $0x318] sm:$0xff]
        %v1545 = vld [vmem:[%s2 + $0x320] sm:$0xff]
        %v1546 = vld [vmem:[%s2 + $0x328] sm:$0xff]
        %v1547 = vld [vmem:[%s2 + $0x330] sm:$0xff]
        %v1548 = vld [vmem:[%s2 + $0x338] sm:$0xff]
        %v1549 = vld [vmem:[%s2 + $0x340] sm:$0xff]
        %v1550 = vld [vmem:[%s2 + $0x348] sm:$0xff]
        %v1551 = vld [vmem:[%s2 + $0x350] sm:$0xff]
        %v1552 = vld [vmem:[%s2 + $0x358] sm:$0xff]
        %v1553 = vld [vmem:[%s2 + $0x360] sm:$0xff]
        %v1554 = vld [vmem:[%s2 + $0x368] sm:$0xff]
        %v1555 = vld [vmem:[%s2 + $0x370] sm:$0xff]
        %v1556 = vld [vmem:[%s2 + $0x378] sm:$0xff]
        %v1557 = vld [vmem:[%s2 + $0x380] sm:$0xff]
        %v1558 = vld [vmem:[%s2 + $0x388] sm:$0xff]
        %v1559 = vld [vmem:[%s2 + $0x390] sm:$0xff]
        %v1560 = vld [vmem:[%s2 + $0x398] sm:$0xff]
        %v1561 = vld [vmem:[%s2 + $0x3a0] sm:$0xff]
        %v1562 = vld [vmem:[%s2 + $0x3a8] sm:$0xff]
        %v1563 = vld [vmem:[%s2 + $0x3b0] sm:$0xff]
        %v1564 = vld [vmem:[%s2 + $0x3b8] sm:$0xff]
        %v1565 = vld [vmem:[%s2 + $0x3c0] sm:$0xff]
        %v1566 = vld [vmem:[%s2 + $0x3c8] sm:$0xff]
        %v1567 = vld [vmem:[%s2 + $0x3d0] sm:$0xff]
        %v1568 = vld [vmem:[%s2 + $0x3d8] sm:$0xff]
        %v1569 = vld [vmem:[%s2 + $0x3e0] sm:$0xff]
        %v1570 = vld [vmem:[%s2 + $0x3e8] sm:$0xff]
        %v1571 = vld [vmem:[%s2 + $0x3f0] sm:$0xff]
        %v1572 = vld [vmem:[%s2 + $0x3f8] sm:$0xff]
        %v1573 = vld [vmem:[%s2 + $0x400] sm:$0xff]
        %v1574 = vld [vmem:[%s2 + $0x408] sm:$0xff]
        %v1575 = vld [vmem:[%s2 + $0x410] sm:$0xff]
        %v1576 = vld [vmem:[%s2 + $0x418] sm:$0xff]
        %v1577 = vld [vmem:[%s2 + $0x420] sm:$0xff]
        %v1578 = vld [vmem:[%s2 + $0x428] sm:$0xff]
        %v1579 = vld [vmem:[%s2 + $0x430] sm:$0xff]
        %v1580 = vld [vmem:[%s2 + $0x438] sm:$0xff]
        %v1581 = vld [vmem:[%s2 + $0x440] sm:$0xff]
        %v1582 = vld [vmem:[%s2 + $0x448] sm:$0xff]
        %v1583 = vld [vmem:[%s2 + $0x450] sm:$0xff]
        %v1584 = vld [vmem:[%s2 + $0x458] sm:$0xff]
        %v1585 = vld [vmem:[%s2 + $0x460] sm:$0xff]
        %v1586 = vld [vmem:[%s2 + $0x468] sm:$0xff]
        %v1587 = vld [vmem:[%s2 + $0x470] sm:$0xff]
        %v1588 = vld [vmem:[%s2 + $0x478] sm:$0xff]
        %v1589 = vld [vmem:[%s2 + $0x480] sm:$0xff]
        %v1590 = vld [vmem:[%s2 + $0x488] sm:$0xff]
        %v1591 = vld [vmem:[%s2 + $0x490] sm:$0xff]
        %v1592 = vld [vmem:[%s2 + $0x498] sm:$0xff]
        %v1593 = vld [vmem:[%s2 + $0x4a0] sm:$0xff]
        %v1594 = vld [vmem:[%s2 + $0x4a8] sm:$0xff]
        %v1595 = vld [vmem:[%s2 + $0x4b0] sm:$0xff]
        %v1596 = vld [vmem:[%s2 + $0x4b8] sm:$0xff]
        %v1597 = vld [vmem:[%s2 + $0x4c0] sm:$0xff]
        %v1598 = vld [vmem:[%s2 + $0x4c8] sm:$0xff]
        %v1599 = vld [vmem:[%s2 + $0x4d0] sm:$0xff]
        %v1600 = vld [vmem:[%s2 + $0x4d8] sm:$0xff]
        %v1601 = vld [vmem:[%s2 + $0x4e0] sm:$0xff]
        %v1602 = vld [vmem:[%s2 + $0x4e8] sm:$0xff]
        %v1603 = vld [vmem:[%s2 + $0x4f0] sm:$0xff]
        %v1604 = vld [vmem:[%s2 + $0x4f8] sm:$0xff]
        %v1605 = vld [vmem:[%s2 + $0x500] sm:$0xff]
        %v1606 = vld [vmem:[%s2 + $0x508] sm:$0xff]
        %v1607 = vld [vmem:[%s2 + $0x510] sm:$0xff]
        %v1608 = vld [vmem:[%s2 + $0x518] sm:$0xff]
        %v1609 = vld [vmem:[%s2 + $0x520] sm:$0xff]
        %v1610 = vld [vmem:[%s2 + $0x528] sm:$0xff]
        %v1611 = vld [vmem:[%s2 + $0x530] sm:$0xff]
        %v1612 = vld [vmem:[%s2 + $0x538] sm:$0xff]
        %v1613 = vld [vmem:[%s2 + $0x540] sm:$0xff]
        %v1614 = vld [vmem:[%s2 + $0x548] sm:$0xff]
        %v1615 = vld [vmem:[%s2 + $0x550] sm:$0xff]
        %v1616 = vld [vmem:[%s2 + $0x558] sm:$0xff]
        %v1617 = vld [vmem:[%s2 + $0x560] sm:$0xff]
        %v1618 = vld [vmem:[%s2 + $0x568] sm:$0xff]
        %v1619 = vld [vmem:[%s2 + $0x570] sm:$0xff]
        %v1620 = vld [vmem:[%s2 + $0x578] sm:$0xff]
        %v1621 = vld [vmem:[%s2 + $0x580] sm:$0xff]
        %v1622 = vld [vmem:[%s2 + $0x588] sm:$0xff]
        %v1623 = vld [vmem:[%s2 + $0x590] sm:$0xff]
        %v1624 = vld [vmem:[%s2 + $0x598] sm:$0xff]
        %v1625 = vld [vmem:[%s2 + $0x5a0] sm:$0xff]
        %v1626 = vld [vmem:[%s2 + $0x5a8] sm:$0xff]
        %v1627 = vld [vmem:[%s2 + $0x5b0] sm:$0xff]
        %v1628 = vld [vmem:[%s2 + $0x5b8] sm:$0xff]
        %v1629 = vld [vmem:[%s2 + $0x5c0] sm:$0xff]
        %v1630 = vld [vmem:[%s2 + $0x5c8] sm:$0xff]
        %v1631 = vld [vmem:[%s2 + $0x5d0] sm:$0xff]
        %v1632 = vld [vmem:[%s2 + $0x5d8] sm:$0xff]
        %v1633 = vld [vmem:[%s2 + $0x5e0] sm:$0xff]
        %v1634 = vld [vmem:[%s2 + $0x5e8] sm:$0xff]
        %v1635 = vld [vmem:[%s2 + $0x5f0] sm:$0xff]
        %v1636 = vld [vmem:[%s2 + $0x5f8] sm:$0xff]
        %s1637 = scalar_lea.vmem %s2, 1536
        %v1638 = vld [vmem:[%s1637] sm:$0xff]
        %v1639 = vld [vmem:[%s1637 + $0x8] sm:$0xff]
        %v1640 = vld [vmem:[%s1637 + $0x10] sm:$0xff]
        %v1641 = vld [vmem:[%s1637 + $0x18] sm:$0xff]
        %v1642 = vld [vmem:[%s1637 + $0x20] sm:$0xff]
        %v1643 = vld [vmem:[%s1637 + $0x28] sm:$0xff]
        %v1644 = vld [vmem:[%s1637 + $0x30] sm:$0xff]
        %v1645 = vld [vmem:[%s1637 + $0x38] sm:$0xff]
        %v1646 = vld [vmem:[%s1637 + $0x40] sm:$0xff]
        %v1647 = vld [vmem:[%s1637 + $0x48] sm:$0xff]
        %v1648 = vld [vmem:[%s1637 + $0x50] sm:$0xff]
        %v1649 = vld [vmem:[%s1637 + $0x58] sm:$0xff]
        %v1650 = vld [vmem:[%s1637 + $0x60] sm:$0xff]
        %v1651 = vld [vmem:[%s1637 + $0x68] sm:$0xff]
        %v1652 = vld [vmem:[%s1637 + $0x70] sm:$0xff]
        %v1653 = vld [vmem:[%s1637 + $0x78] sm:$0xff]
        %v1654 = vld [vmem:[%s1637 + $0x80] sm:$0xff]
        %v1655 = vld [vmem:[%s1637 + $0x88] sm:$0xff]
        %v1656 = vld [vmem:[%s1637 + $0x90] sm:$0xff]
        %v1657 = vld [vmem:[%s1637 + $0x98] sm:$0xff]
        %v1658 = vld [vmem:[%s1637 + $0xa0] sm:$0xff]
        %v1659 = vld [vmem:[%s1637 + $0xa8] sm:$0xff]
        %v1660 = vld [vmem:[%s1637 + $0xb0] sm:$0xff]
        %v1661 = vld [vmem:[%s1637 + $0xb8] sm:$0xff]
        %v1662 = vld [vmem:[%s1637 + $0xc0] sm:$0xff]
        %v1663 = vld [vmem:[%s1637 + $0xc8] sm:$0xff]
        %v1664 = vld [vmem:[%s1637 + $0xd0] sm:$0xff]
        %v1665 = vld [vmem:[%s1637 + $0xd8] sm:$0xff]
        %v1666 = vld [vmem:[%s1637 + $0xe0] sm:$0xff]
        %v1667 = vld [vmem:[%s1637 + $0xe8] sm:$0xff]
        %v1668 = vld [vmem:[%s1637 + $0xf0] sm:$0xff]
        %v1669 = vld [vmem:[%s1637 + $0xf8] sm:$0xff]
        %v1670 = vld [vmem:[%s1637 + $0x100] sm:$0xff]
        %v1671 = vld [vmem:[%s1637 + $0x108] sm:$0xff]
        %v1672 = vld [vmem:[%s1637 + $0x110] sm:$0xff]
        %v1673 = vld [vmem:[%s1637 + $0x118] sm:$0xff]
        %v1674 = vld [vmem:[%s1637 + $0x120] sm:$0xff]
        %v1675 = vld [vmem:[%s1637 + $0x128] sm:$0xff]
        %v1676 = vld [vmem:[%s1637 + $0x130] sm:$0xff]
        %v1677 = vld [vmem:[%s1637 + $0x138] sm:$0xff]
        %v1678 = vld [vmem:[%s1637 + $0x140] sm:$0xff]
        %v1679 = vld [vmem:[%s1637 + $0x148] sm:$0xff]
        %v1680 = vld [vmem:[%s1637 + $0x150] sm:$0xff]
        %v1681 = vld [vmem:[%s1637 + $0x158] sm:$0xff]
        %v1682 = vld [vmem:[%s1637 + $0x160] sm:$0xff]
        %v1683 = vld [vmem:[%s1637 + $0x168] sm:$0xff]
        %v1684 = vld [vmem:[%s1637 + $0x170] sm:$0xff]
        %v1685 = vld [vmem:[%s1637 + $0x178] sm:$0xff]
        %v1686 = vld [vmem:[%s1637 + $0x180] sm:$0xff]
        %v1687 = vld [vmem:[%s1637 + $0x188] sm:$0xff]
        %v1688 = vld [vmem:[%s1637 + $0x190] sm:$0xff]
        %v1689 = vld [vmem:[%s1637 + $0x198] sm:$0xff]
        %v1690 = vld [vmem:[%s1637 + $0x1a0] sm:$0xff]
        %v1691 = vld [vmem:[%s1637 + $0x1a8] sm:$0xff]
        %v1692 = vld [vmem:[%s1637 + $0x1b0] sm:$0xff]
        %v1693 = vld [vmem:[%s1637 + $0x1b8] sm:$0xff]
        %v1694 = vld [vmem:[%s1637 + $0x1c0] sm:$0xff]
        %v1695 = vld [vmem:[%s1637 + $0x1c8] sm:$0xff]
        %v1696 = vld [vmem:[%s1637 + $0x1d0] sm:$0xff]
        %v1697 = vld [vmem:[%s1637 + $0x1d8] sm:$0xff]
        %v1698 = vld [vmem:[%s1637 + $0x1e0] sm:$0xff]
        %v1699 = vld [vmem:[%s1637 + $0x1e8] sm:$0xff]
        %v1700 = vld [vmem:[%s1637 + $0x1f0] sm:$0xff]
        %v1701 = vld [vmem:[%s1637 + $0x1f8] sm:$0xff]
        %v1702 = vld [vmem:[%s1637 + $0x200] sm:$0xff]
        %v1703 = vld [vmem:[%s1637 + $0x208] sm:$0xff]
        %v1704 = vld [vmem:[%s1637 + $0x210] sm:$0xff]
        %v1705 = vld [vmem:[%s1637 + $0x218] sm:$0xff]
        %v1706 = vld [vmem:[%s1637 + $0x220] sm:$0xff]
        %v1707 = vld [vmem:[%s1637 + $0x228] sm:$0xff]
        %v1708 = vld [vmem:[%s1637 + $0x230] sm:$0xff]
        %v1709 = vld [vmem:[%s1637 + $0x238] sm:$0xff]
        %v1710 = vld [vmem:[%s1637 + $0x240] sm:$0xff]
        %v1711 = vld [vmem:[%s1637 + $0x248] sm:$0xff]
        %v1712 = vld [vmem:[%s1637 + $0x250] sm:$0xff]
        %v1713 = vld [vmem:[%s1637 + $0x258] sm:$0xff]
        %v1714 = vld [vmem:[%s1637 + $0x260] sm:$0xff]
        %v1715 = vld [vmem:[%s1637 + $0x268] sm:$0xff]
        %v1716 = vld [vmem:[%s1637 + $0x270] sm:$0xff]
        %v1717 = vld [vmem:[%s1637 + $0x278] sm:$0xff]
        %v1718 = vld [vmem:[%s1637 + $0x280] sm:$0xff]
        %v1719 = vld [vmem:[%s1637 + $0x288] sm:$0xff]
        %v1720 = vld [vmem:[%s1637 + $0x290] sm:$0xff]
        %v1721 = vld [vmem:[%s1637 + $0x298] sm:$0xff]
        %v1722 = vld [vmem:[%s1637 + $0x2a0] sm:$0xff]
        %v1723 = vld [vmem:[%s1637 + $0x2a8] sm:$0xff]
        %v1724 = vld [vmem:[%s1637 + $0x2b0] sm:$0xff]
        %v1725 = vld [vmem:[%s1637 + $0x2b8] sm:$0xff]
        %v1726 = vld [vmem:[%s1637 + $0x2c0] sm:$0xff]
        %v1727 = vld [vmem:[%s1637 + $0x2c8] sm:$0xff]
        %v1728 = vld [vmem:[%s1637 + $0x2d0] sm:$0xff]
        %v1729 = vld [vmem:[%s1637 + $0x2d8] sm:$0xff]
        %v1730 = vld [vmem:[%s1637 + $0x2e0] sm:$0xff]
        %v1731 = vld [vmem:[%s1637 + $0x2e8] sm:$0xff]
        %v1732 = vld [vmem:[%s1637 + $0x2f0] sm:$0xff]
        %v1733 = vld [vmem:[%s1637 + $0x2f8] sm:$0xff]
        %v1734 = vld [vmem:[%s1637 + $0x300] sm:$0xff]
        %v1735 = vld [vmem:[%s1637 + $0x308] sm:$0xff]
        %v1736 = vld [vmem:[%s1637 + $0x310] sm:$0xff]
        %v1737 = vld [vmem:[%s1637 + $0x318] sm:$0xff]
        %v1738 = vld [vmem:[%s1637 + $0x320] sm:$0xff]
        %v1739 = vld [vmem:[%s1637 + $0x328] sm:$0xff]
        %v1740 = vld [vmem:[%s1637 + $0x330] sm:$0xff]
        %v1741 = vld [vmem:[%s1637 + $0x338] sm:$0xff]
        %v1742 = vld [vmem:[%s1637 + $0x340] sm:$0xff]
        %v1743 = vld [vmem:[%s1637 + $0x348] sm:$0xff]
        %v1744 = vld [vmem:[%s1637 + $0x350] sm:$0xff]
        %v1745 = vld [vmem:[%s1637 + $0x358] sm:$0xff]
        %v1746 = vld [vmem:[%s1637 + $0x360] sm:$0xff]
        %v1747 = vld [vmem:[%s1637 + $0x368] sm:$0xff]
        %v1748 = vld [vmem:[%s1637 + $0x370] sm:$0xff]
        %v1749 = vld [vmem:[%s1637 + $0x378] sm:$0xff]
        %v1750 = vld [vmem:[%s1637 + $0x380] sm:$0xff]
        %v1751 = vld [vmem:[%s1637 + $0x388] sm:$0xff]
        %v1752 = vld [vmem:[%s1637 + $0x390] sm:$0xff]
        %v1753 = vld [vmem:[%s1637 + $0x398] sm:$0xff]
        %v1754 = vld [vmem:[%s1637 + $0x3a0] sm:$0xff]
        %v1755 = vld [vmem:[%s1637 + $0x3a8] sm:$0xff]
        %v1756 = vld [vmem:[%s1637 + $0x3b0] sm:$0xff]
        %v1757 = vld [vmem:[%s1637 + $0x3b8] sm:$0xff]
        %v1758 = vld [vmem:[%s1637 + $0x3c0] sm:$0xff]
        %v1759 = vld [vmem:[%s1637 + $0x3c8] sm:$0xff]
        %v1760 = vld [vmem:[%s1637 + $0x3d0] sm:$0xff]
        %v1761 = vld [vmem:[%s1637 + $0x3d8] sm:$0xff]
        %v1762 = vld [vmem:[%s1637 + $0x3e0] sm:$0xff]
        %v1763 = vld [vmem:[%s1637 + $0x3e8] sm:$0xff]
        %v1764 = vld [vmem:[%s1637 + $0x3f0] sm:$0xff]
        %v1765 = vld [vmem:[%s1637 + $0x3f8] sm:$0xff]
        %v1766 = vld [vmem:[%s1637 + $0x400] sm:$0xff]
        %v1767 = vld [vmem:[%s1637 + $0x408] sm:$0xff]
        %v1768 = vld [vmem:[%s1637 + $0x410] sm:$0xff]
        %v1769 = vld [vmem:[%s1637 + $0x418] sm:$0xff]
        %v1770 = vld [vmem:[%s1637 + $0x420] sm:$0xff]
        %v1771 = vld [vmem:[%s1637 + $0x428] sm:$0xff]
        %v1772 = vld [vmem:[%s1637 + $0x430] sm:$0xff]
        %v1773 = vld [vmem:[%s1637 + $0x438] sm:$0xff]
        %v1774 = vld [vmem:[%s1637 + $0x440] sm:$0xff]
        %v1775 = vld [vmem:[%s1637 + $0x448] sm:$0xff]
        %v1776 = vld [vmem:[%s1637 + $0x450] sm:$0xff]
        %v1777 = vld [vmem:[%s1637 + $0x458] sm:$0xff]
        %v1778 = vld [vmem:[%s1637 + $0x460] sm:$0xff]
        %v1779 = vld [vmem:[%s1637 + $0x468] sm:$0xff]
        %v1780 = vld [vmem:[%s1637 + $0x470] sm:$0xff]
        %v1781 = vld [vmem:[%s1637 + $0x478] sm:$0xff]
        %v1782 = vld [vmem:[%s1637 + $0x480] sm:$0xff]
        %v1783 = vld [vmem:[%s1637 + $0x488] sm:$0xff]
        %v1784 = vld [vmem:[%s1637 + $0x490] sm:$0xff]
        %v1785 = vld [vmem:[%s1637 + $0x498] sm:$0xff]
        %v1786 = vld [vmem:[%s1637 + $0x4a0] sm:$0xff]
        %v1787 = vld [vmem:[%s1637 + $0x4a8] sm:$0xff]
        %v1788 = vld [vmem:[%s1637 + $0x4b0] sm:$0xff]
        %v1789 = vld [vmem:[%s1637 + $0x4b8] sm:$0xff]
        %v1790 = vld [vmem:[%s1637 + $0x4c0] sm:$0xff]
        %v1791 = vld [vmem:[%s1637 + $0x4c8] sm:$0xff]
        %v1792 = vld [vmem:[%s1637 + $0x4d0] sm:$0xff]
        %v1793 = vld [vmem:[%s1637 + $0x4d8] sm:$0xff]
        %v1794 = vld [vmem:[%s1637 + $0x4e0] sm:$0xff]
        %v1795 = vld [vmem:[%s1637 + $0x4e8] sm:$0xff]
        %v1796 = vld [vmem:[%s1637 + $0x4f0] sm:$0xff]
        %v1797 = vld [vmem:[%s1637 + $0x4f8] sm:$0xff]
        %v1798 = vld [vmem:[%s1637 + $0x500] sm:$0xff]
        %v1799 = vld [vmem:[%s1637 + $0x508] sm:$0xff]
        %v1800 = vld [vmem:[%s1637 + $0x510] sm:$0xff]
        %v1801 = vld [vmem:[%s1637 + $0x518] sm:$0xff]
        %v1802 = vld [vmem:[%s1637 + $0x520] sm:$0xff]
        %v1803 = vld [vmem:[%s1637 + $0x528] sm:$0xff]
        %v1804 = vld [vmem:[%s1637 + $0x530] sm:$0xff]
        %v1805 = vld [vmem:[%s1637 + $0x538] sm:$0xff]
        %v1806 = vld [vmem:[%s1637 + $0x540] sm:$0xff]
        %v1807 = vld [vmem:[%s1637 + $0x548] sm:$0xff]
        %v1808 = vld [vmem:[%s1637 + $0x550] sm:$0xff]
        %v1809 = vld [vmem:[%s1637 + $0x558] sm:$0xff]
        %v1810 = vld [vmem:[%s1637 + $0x560] sm:$0xff]
        %v1811 = vld [vmem:[%s1637 + $0x568] sm:$0xff]
        %v1812 = vld [vmem:[%s1637 + $0x570] sm:$0xff]
        %v1813 = vld [vmem:[%s1637 + $0x578] sm:$0xff]
        %v1814 = vld [vmem:[%s1637 + $0x580] sm:$0xff]
        %v1815 = vld [vmem:[%s1637 + $0x588] sm:$0xff]
        %v1816 = vld [vmem:[%s1637 + $0x590] sm:$0xff]
        %v1817 = vld [vmem:[%s1637 + $0x598] sm:$0xff]
        %v1818 = vld [vmem:[%s1637 + $0x5a0] sm:$0xff]
        %v1819 = vld [vmem:[%s1637 + $0x5a8] sm:$0xff]
        %v1820 = vld [vmem:[%s1637 + $0x5b0] sm:$0xff]
        %v1821 = vld [vmem:[%s1637 + $0x5b8] sm:$0xff]
        %v1822 = vld [vmem:[%s1637 + $0x5c0] sm:$0xff]
        %v1823 = vld [vmem:[%s1637 + $0x5c8] sm:$0xff]
        %v1824 = vld [vmem:[%s1637 + $0x5d0] sm:$0xff]
        %v1825 = vld [vmem:[%s1637 + $0x5d8] sm:$0xff]
        %v1826 = vld [vmem:[%s1637 + $0x5e0] sm:$0xff]
        %v1827 = vld [vmem:[%s1637 + $0x5e8] sm:$0xff]
        %v1828 = vld [vmem:[%s1637 + $0x5f0] sm:$0xff]
        %v1829 = vld [vmem:[%s1637 + $0x5f8] sm:$0xff]
        %v1842 = vrot.slane %v1433, 1
        %v1843 = vrot.slane %v1437, 1
        %v1844 = vsel %vm721, %v1842, %v1843
        %v1845 = vrot.slane %v1434, 1
        %v1846 = vrot.slane %v1438, 1
        %v1847 = vsel %vm721, %v1845, %v1846
        %v1848 = vrot.slane %v1435, 1
        %v1849 = vrot.slane %v1439, 1
        %v1850 = vsel %vm721, %v1848, %v1849
        %v1851 = vrot.slane %v1436, 1
        %v1852 = vrot.slane %v1440, 1
        %v1853 = vsel %vm721, %v1851, %v1852
        %v1854 = vrot.slane %v1441, 1
        %v1855 = vsel %vm721, %v1843, %v1854
        %v1856 = vrot.slane %v1442, 1
        %v1857 = vsel %vm721, %v1846, %v1856
        %v1858 = vrot.slane %v1443, 1
        %v1859 = vsel %vm721, %v1849, %v1858
        %v1860 = vrot.slane %v1444, 1
        %v1861 = vsel %vm721, %v1852, %v1860
        %1874 = vmatprep.subr.mxu0 %v1639
        %1875 = vmatpush1.msra.mxu0 %v1638
        %1876 = vmatprep.subr.mxu0 %v1642
        %1877 = vmatpush1.msra.mxu0 %v1641
        %1878 = vmatprep.subr.mxu0 %v1645
        %1879 = vmatpush1.msra.mxu0 %v1644
        %1880 = vmatprep.subr.mxu0 %v1648
        %1881 = vmatpush1.msra.mxu0 %v1647
        %1882 = vmatprep.subr.mxu0 %v1651
        %1883 = vmatpush1.msra.mxu0 %v1650
        %1884 = vmatprep.subr.mxu0 %v1654
        %1885 = vmatpush1.msra.mxu0 %v1653
        %1886 = vmatprep.subr.mxu0 %v1657
        %1887 = vmatpush1.msra.mxu0 %v1656
        %1888 = vmatprep.subr.mxu0 %v1660
        %1889 = vmatpush1.msra.mxu0 %v1659
        %1890 = vmatprep.subr.mxu0 %v1663
        %1891 = vmatpush1.msra.mxu0 %v1662
        %1892 = vmatprep.subr.mxu0 %v1666
        %1893 = vmatpush1.msra.mxu0 %v1665
        %1894 = vmatprep.subr.mxu0 %v1669
        %1895 = vmatpush1.msra.mxu0 %v1668
        %1896 = vmatprep.subr.mxu0 %v1672
        %1897 = vmatpush1.msra.mxu0 %v1671
        %1898 = vmatprep.subr.mxu0 %v1675
        %1899 = vmatpush1.msra.mxu0 %v1674
        %1900 = vmatprep.subr.mxu0 %v1678
        %1901 = vmatpush1.msra.mxu0 %v1677
        %1902 = vmatprep.subr.mxu0 %v1681
        %1903 = vmatpush1.msra.mxu0 %v1680
        %1904 = vmatprep.subr.mxu0 %v1684
        %1905 = vmatpush1.msra.mxu0 %v1683
        %1906 = vmatprep.subr.mxu0 %v1687
        %1907 = vmatpush1.msra.mxu0 %v1686
        %1908 = vmatprep.subr.mxu0 %v1690
        %1909 = vmatpush1.msra.mxu0 %v1689
        %1910 = vmatprep.subr.mxu0 %v1693
        %1911 = vmatpush1.msra.mxu0 %v1692
        %1912 = vmatprep.subr.mxu0 %v1696
        %1913 = vmatpush1.msra.mxu0 %v1695
        %1914 = vmatprep.subr.mxu0 %v1699
        %1915 = vmatpush1.msra.mxu0 %v1698
        %1916 = vmatprep.subr.mxu0 %v1702
        %1917 = vmatpush1.msra.mxu0 %v1701
        %1918 = vmatprep.subr.mxu0 %v1705
        %1919 = vmatpush1.msra.mxu0 %v1704
        %1920 = vmatprep.subr.mxu0 %v1708
        %1921 = vmatpush1.msra.mxu0 %v1707
        %1922 = vmatprep.subr.mxu0 %v1711
        %1923 = vmatpush1.msra.mxu0 %v1710
        %1924 = vmatprep.subr.mxu0 %v1714
        %1925 = vmatpush1.msra.mxu0 %v1713
        %1926 = vmatprep.subr.mxu0 %v1717
        %1927 = vmatpush1.msra.mxu0 %v1716
        %1928 = vmatprep.subr.mxu0 %v1720
        %1929 = vmatpush1.msra.mxu0 %v1719
        %1930 = vmatprep.subr.mxu0 %v1723
        %1931 = vmatpush1.msra.mxu0 %v1722
        %1932 = vmatprep.subr.mxu0 %v1726
        %1933 = vmatpush1.msra.mxu0 %v1725
        %1934 = vmatprep.subr.mxu0 %v1729
        %1935 = vmatpush1.msra.mxu0 %v1728
        %1936 = vmatprep.subr.mxu0 %v1732
        %1937 = vmatpush1.msra.mxu0 %v1731
        %1938 = vmatprep.mubr.f32.mxu0 %v1847
        %1939 = vmatmul.mubr.f32.gmra.mrb[0].mxu0 %v1844
        %v1940 = vpop.f32.mrb[0].mxu0
        %v1941 = vadd.f32 0.0, %v1940
        %v1942 = vpop.f32.mrb[0].mxu0
        %v1943 = vadd.f32 0.0, %v1942
        %1944 = vmatprep.mubr.f32.mxu0 %v1857
        %1945 = vmatmul.mubr.f32.gmra.mrb[0].mxu0 %v1855
        %v1946 = vpop.f32.mrb[0].mxu0
        %v1947 = vadd.f32 0.0, %v1946
        %v1948 = vpop.f32.mrb[0].mxu0
        %v1949 = vadd.f32 0.0, %v1948
        %1950 = vmatprep.mubr.f32.mxu0 %v1856
        %1951 = vmatmul.mubr.f32.gmra.mrb[0].mxu0 %v1854
        %v1952 = vpop.f32.mrb[0].mxu0
        %v1953 = vadd.f32 0.0, %v1952
        %v1954 = vpop.f32.mrb[0].mxu0
        %v1955 = vadd.f32 0.0, %v1954
        %1956 = vdwg.mxu0
        %1957 = vmatprep.subr.mxu0 %v1735
        %1958 = vmatpush1.msra.mxu0 %v1734
        %1959 = vmatprep.subr.mxu0 %v1738
        %1960 = vmatpush1.msra.mxu0 %v1737
        %1961 = vmatprep.subr.mxu0 %v1741
        %1962 = vmatpush1.msra.mxu0 %v1740
        %1963 = vmatprep.subr.mxu0 %v1744
        %1964 = vmatpush1.msra.mxu0 %v1743
        %1965 = vmatprep.subr.mxu0 %v1747
        %1966 = vmatpush1.msra.mxu0 %v1746
        %1967 = vmatprep.subr.mxu0 %v1750
        %1968 = vmatpush1.msra.mxu0 %v1749
        %1969 = vmatprep.subr.mxu0 %v1753
        %1970 = vmatpush1.msra.mxu0 %v1752
        %1971 = vmatprep.subr.mxu0 %v1756
        %1972 = vmatpush1.msra.mxu0 %v1755
        %1973 = vmatprep.subr.mxu0 %v1759
        %1974 = vmatpush1.msra.mxu0 %v1758
        %1975 = vmatprep.subr.mxu0 %v1762
        %1976 = vmatpush1.msra.mxu0 %v1761
        %1977 = vmatprep.subr.mxu0 %v1765
        %1978 = vmatpush1.msra.mxu0 %v1764
        %1979 = vmatprep.subr.mxu0 %v1768
        %1980 = vmatpush1.msra.mxu0 %v1767
        %1981 = vmatprep.subr.mxu0 %v1771
        %1982 = vmatpush1.msra.mxu0 %v1770
        %1983 = vmatprep.subr.mxu0 %v1774
        %1984 = vmatpush1.msra.mxu0 %v1773
        %1985 = vmatprep.subr.mxu0 %v1777
        %1986 = vmatpush1.msra.mxu0 %v1776
        %1987 = vmatprep.subr.mxu0 %v1780
        %1988 = vmatpush1.msra.mxu0 %v1779
        %1989 = vmatprep.subr.mxu0 %v1783
        %1990 = vmatpush1.msra.mxu0 %v1782
        %1991 = vmatprep.subr.mxu0 %v1786
        %1992 = vmatpush1.msra.mxu0 %v1785
        %1993 = vmatprep.subr.mxu0 %v1789
        %1994 = vmatpush1.msra.mxu0 %v1788
        %1995 = vmatprep.subr.mxu0 %v1792
        %1996 = vmatpush1.msra.mxu0 %v1791
        %1997 = vmatprep.subr.mxu0 %v1795
        %1998 = vmatpush1.msra.mxu0 %v1794
        %1999 = vmatprep.subr.mxu0 %v1798
        %2000 = vmatpush1.msra.mxu0 %v1797
        %2001 = vmatprep.subr.mxu0 %v1801
        %2002 = vmatpush1.msra.mxu0 %v1800
        %2003 = vmatprep.subr.mxu0 %v1804
        %2004 = vmatpush1.msra.mxu0 %v1803
        %2005 = vmatprep.subr.mxu0 %v1807
        %2006 = vmatpush1.msra.mxu0 %v1806
        %2007 = vmatprep.subr.mxu0 %v1810
        %2008 = vmatpush1.msra.mxu0 %v1809
        %2009 = vmatprep.subr.mxu0 %v1813
        %2010 = vmatpush1.msra.mxu0 %v1812
        %2011 = vmatprep.subr.mxu0 %v1816
        %2012 = vmatpush1.msra.mxu0 %v1815
        %2013 = vmatprep.subr.mxu0 %v1819
        %2014 = vmatpush1.msra.mxu0 %v1818
        %2015 = vmatprep.subr.mxu0 %v1822
        %2016 = vmatpush1.msra.mxu0 %v1821
        %2017 = vmatprep.subr.mxu0 %v1825
        %2018 = vmatpush1.msra.mxu0 %v1824
        %2019 = vmatprep.subr.mxu0 %v1828
        %2020 = vmatpush1.msra.mxu0 %v1827
        %2021 = vmatprep.mubr.f32.mxu0 %v1853
        %2022 = vmatmul.mubr.f32.gmra.mrb[0].mxu0 %v1850
        %v2023 = vpop.f32.mrb[0].mxu0
        %v2024 = vadd.f32 %v1941, %v2023
        %v2025 = vpop.f32.mrb[0].mxu0
        %v2026 = vadd.f32 %v1943, %v2025
        %2027 = vmatprep.mubr.f32.mxu0 %v1861
        %2028 = vmatmul.mubr.f32.gmra.mrb[0].mxu0 %v1859
        %v2029 = vpop.f32.mrb[0].mxu0
        %v2030 = vadd.f32 %v1947, %v2029
        %v2031 = vpop.f32.mrb[0].mxu0
        %v2032 = vadd.f32 %v1949, %v2031
        %2033 = vmatprep.mubr.f32.mxu0 %v1860
        %2034 = vmatmul.mubr.f32.gmra.mrb[0].mxu0 %v1858
        %v2035 = vpop.f32.mrb[0].mxu0
        %v2036 = vadd.f32 %v1953, %v2035
        %v2037 = vpop.f32.mrb[0].mxu0
        %v2038 = vadd.f32 %v1955, %v2037
        %2039 = vdwg.mxu0
        %2040 = vmatprep.subr.mxu0 0.0
        %2041 = vmatpush1.msra.mxu0 %v1640
        %2042 = vmatprep.subr.mxu0 0.0
        %2043 = vmatpush1.msra.mxu0 %v1643
        %2044 = vmatprep.subr.mxu0 0.0
        %2045 = vmatpush1.msra.mxu0 %v1646
        %2046 = vmatprep.subr.mxu0 0.0
        %2047 = vmatpush1.msra.mxu0 %v1649
        %2048 = vmatprep.subr.mxu0 0.0
        %2049 = vmatpush1.msra.mxu0 %v1652
        %2050 = vmatprep.subr.mxu0 0.0
        %2051 = vmatpush1.msra.mxu0 %v1655
        %2052 = vmatprep.subr.mxu0 0.0
        %2053 = vmatpush1.msra.mxu0 %v1658
        %2054 = vmatprep.subr.mxu0 0.0
        %2055 = vmatpush1.msra.mxu0 %v1661
        %2056 = vmatprep.subr.mxu0 0.0
        %2057 = vmatpush1.msra.mxu0 %v1664
        %2058 = vmatprep.subr.mxu0 0.0
        %2059 = vmatpush1.msra.mxu0 %v1667
        %2060 = vmatprep.subr.mxu0 0.0
        %2061 = vmatpush1.msra.mxu0 %v1670
        %2062 = vmatprep.subr.mxu0 0.0
        %2063 = vmatpush1.msra.mxu0 %v1673
        %2064 = vmatprep.subr.mxu0 0.0
        %2065 = vmatpush1.msra.mxu0 %v1676
        %2066 = vmatprep.subr.mxu0 0.0
        %2067 = vmatpush1.msra.mxu0 %v1679
        %2068 = vmatprep.subr.mxu0 0.0
        %2069 = vmatpush1.msra.mxu0 %v1682
        %2070 = vmatprep.subr.mxu0 0.0
        %2071 = vmatpush1.msra.mxu0 %v1685
        %2072 = vmatprep.subr.mxu0 0.0
        %2073 = vmatpush1.msra.mxu0 %v1688
        %2074 = vmatprep.subr.mxu0 0.0
        %2075 = vmatpush1.msra.mxu0 %v1691
        %2076 = vmatprep.subr.mxu0 0.0
        %2077 = vmatpush1.msra.mxu0 %v1694
        %2078 = vmatprep.subr.mxu0 0.0
        %2079 = vmatpush1.msra.mxu0 %v1697
        %2080 = vmatprep.subr.mxu0 0.0
        %2081 = vmatpush1.msra.mxu0 %v1700
        %2082 = vmatprep.subr.mxu0 0.0
        %2083 = vmatpush1.msra.mxu0 %v1703
        %2084 = vmatprep.subr.mxu0 0.0
        %2085 = vmatpush1.msra.mxu0 %v1706
        %2086 = vmatprep.subr.mxu0 0.0
        %2087 = vmatpush1.msra.mxu0 %v1709
        %2088 = vmatprep.subr.mxu0 0.0
        %2089 = vmatpush1.msra.mxu0 %v1712
        %2090 = vmatprep.subr.mxu0 0.0
        %2091 = vmatpush1.msra.mxu0 %v1715
        %2092 = vmatprep.subr.mxu0 0.0
        %2093 = vmatpush1.msra.mxu0 %v1718
        %2094 = vmatprep.subr.mxu0 0.0
        %2095 = vmatpush1.msra.mxu0 %v1721
        %2096 = vmatprep.subr.mxu0 0.0
        %2097 = vmatpush1.msra.mxu0 %v1724
        %2098 = vmatprep.subr.mxu0 0.0
        %2099 = vmatpush1.msra.mxu0 %v1727
        %2100 = vmatprep.subr.mxu0 0.0
        %2101 = vmatpush1.msra.mxu0 %v1730
        %2102 = vmatprep.subr.mxu0 0.0
        %2103 = vmatpush1.msra.mxu0 %v1733
        %2104 = vmatprep.mubr.f32.mxu0 %v1847
        %2105 = vmatmul.mubr.f32.gmra.mrb[0].mxu0 %v1844
        %v2106 = vpop.f32.mrb[0].mxu0
        %v2107 = vadd.f32 0.0, %v2106
        %v2108 = vpop.f32.mrb[0].mxu0
        %2109 = vmatprep.mubr.f32.mxu0 %v1857
        %2110 = vmatmul.mubr.f32.gmra.mrb[0].mxu0 %v1855
        %v2111 = vpop.f32.mrb[0].mxu0
        %v2112 = vadd.f32 0.0, %v2111
        %v2113 = vpop.f32.mrb[0].mxu0
        %2114 = vmatprep.mubr.f32.mxu0 %v1856
        %2115 = vmatmul.mubr.f32.gmra.mrb[0].mxu0 %v1854
        %v2116 = vpop.f32.mrb[0].mxu0
        %v2117 = vadd.f32 0.0, %v2116
        %v2118 = vpop.f32.mrb[0].mxu0
        %2119 = vdwg.mxu0
        %2120 = vmatprep.subr.mxu0 0.0
        %2121 = vmatpush1.msra.mxu0 %v1736
        %2122 = vmatprep.subr.mxu0 0.0
        %2123 = vmatpush1.msra.mxu0 %v1739
        %2124 = vmatprep.subr.mxu0 0.0
        %2125 = vmatpush1.msra.mxu0 %v1742
        %2126 = vmatprep.subr.mxu0 0.0
        %2127 = vmatpush1.msra.mxu0 %v1745
        %2128 = vmatprep.subr.mxu0 0.0
        %2129 = vmatpush1.msra.mxu0 %v1748
        %2130 = vmatprep.subr.mxu0 0.0
        %2131 = vmatpush1.msra.mxu0 %v1751
        %2132 = vmatprep.subr.mxu0 0.0
        %2133 = vmatpush1.msra.mxu0 %v1754
        %2134 = vmatprep.subr.mxu0 0.0
        %2135 = vmatpush1.msra.mxu0 %v1757
        %2136 = vmatprep.subr.mxu0 0.0
        %2137 = vmatpush1.msra.mxu0 %v1760
        %2138 = vmatprep.subr.mxu0 0.0
        %2139 = vmatpush1.msra.mxu0 %v1763
        %2140 = vmatprep.subr.mxu0 0.0
        %2141 = vmatpush1.msra.mxu0 %v1766
        %2142 = vmatprep.subr.mxu0 0.0
        %2143 = vmatpush1.msra.mxu0 %v1769
        %2144 = vmatprep.subr.mxu0 0.0
        %2145 = vmatpush1.msra.mxu0 %v1772
        %2146 = vmatprep.subr.mxu0 0.0
        %2147 = vmatpush1.msra.mxu0 %v1775
        %2148 = vmatprep.subr.mxu0 0.0
        %2149 = vmatpush1.msra.mxu0 %v1778
        %2150 = vmatprep.subr.mxu0 0.0
        %2151 = vmatpush1.msra.mxu0 %v1781
        %2152 = vmatprep.subr.mxu0 0.0
        %2153 = vmatpush1.msra.mxu0 %v1784
        %2154 = vmatprep.subr.mxu0 0.0
        %2155 = vmatpush1.msra.mxu0 %v1787
        %2156 = vmatprep.subr.mxu0 0.0
        %2157 = vmatpush1.msra.mxu0 %v1790
        %2158 = vmatprep.subr.mxu0 0.0
        %2159 = vmatpush1.msra.mxu0 %v1793
        %2160 = vmatprep.subr.mxu0 0.0
        %2161 = vmatpush1.msra.mxu0 %v1796
        %2162 = vmatprep.subr.mxu0 0.0
        %2163 = vmatpush1.msra.mxu0 %v1799
        %2164 = vmatprep.subr.mxu0 0.0
        %2165 = vmatpush1.msra.mxu0 %v1802
        %2166 = vmatprep.subr.mxu0 0.0
        %2167 = vmatpush1.msra.mxu0 %v1805
        %2168 = vmatprep.subr.mxu0 0.0
        %2169 = vmatpush1.msra.mxu0 %v1808
        %2170 = vmatprep.subr.mxu0 0.0
        %2171 = vmatpush1.msra.mxu0 %v1811
        %2172 = vmatprep.subr.mxu0 0.0
        %2173 = vmatpush1.msra.mxu0 %v1814
        %2174 = vmatprep.subr.mxu0 0.0
        %2175 = vmatpush1.msra.mxu0 %v1817
        %2176 = vmatprep.subr.mxu0 0.0
        %2177 = vmatpush1.msra.mxu0 %v1820
        %2178 = vmatprep.subr.mxu0 0.0
        %2179 = vmatpush1.msra.mxu0 %v1823
        %2180 = vmatprep.subr.mxu0 0.0
        %2181 = vmatpush1.msra.mxu0 %v1826
        %2182 = vmatprep.subr.mxu0 0.0
        %2183 = vmatpush1.msra.mxu0 %v1829
        %2184 = vmatprep.mubr.f32.mxu0 %v1853
        %2185 = vmatmul.mubr.f32.gmra.mrb[0].mxu0 %v1850
        %v2186 = vpop.f32.mrb[0].mxu0
        %v2187 = vadd.f32 %v2107, %v2186
        %v2188 = vpop.f32.mrb[0].mxu0
        %2189 = vmatprep.mubr.f32.mxu0 %v1861
        %2190 = vmatmul.mubr.f32.gmra.mrb[0].mxu0 %v1859
        %v2191 = vpop.f32.mrb[0].mxu0
        %v2192 = vadd.f32 %v2112, %v2191
        %v2193 = vpop.f32.mrb[0].mxu0
        %2194 = vmatprep.mubr.f32.mxu0 %v1860
        %2195 = vmatmul.mubr.f32.gmra.mrb[0].mxu0 %v1858
        %v2196 = vpop.f32.mrb[0].mxu0
        %v2197 = vadd.f32 %v2117, %v2196
        %v2198 = vpop.f32.mrb[0].mxu0
        %2199 = vdwg.mxu0
        %2200 = vmatprep.subr.mxu0 %v1446
        %2201 = vmatpush1.msra.mxu0 %v1445
        %2202 = vmatprep.subr.mxu0 %v1449
        %2203 = vmatpush1.msra.mxu0 %v1448
        %2204 = vmatprep.subr.mxu0 %v1452
        %2205 = vmatpush1.msra.mxu0 %v1451
        %2206 = vmatprep.subr.mxu0 %v1455
        %2207 = vmatpush1.msra.mxu0 %v1454
        %2208 = vmatprep.subr.mxu0 %v1458
        %2209 = vmatpush1.msra.mxu0 %v1457
        %2210 = vmatprep.subr.mxu0 %v1461
        %2211 = vmatpush1.msra.mxu0 %v1460
        %2212 = vmatprep.subr.mxu0 %v1464
        %2213 = vmatpush1.msra.mxu0 %v1463
        %2214 = vmatprep.subr.mxu0 %v1467
        %2215 = vmatpush1.msra.mxu0 %v1466
        %2216 = vmatprep.subr.mxu0 %v1470
        %2217 = vmatpush1.msra.mxu0 %v1469
        %2218 = vmatprep.subr.mxu0 %v1473
        %2219 = vmatpush1.msra.mxu0 %v1472
        %2220 = vmatprep.subr.mxu0 %v1476
        %2221 = vmatpush1.msra.mxu0 %v1475
        %2222 = vmatprep.subr.mxu0 %v1479
        %2223 = vmatpush1.msra.mxu0 %v1478
        %2224 = vmatprep.subr.mxu0 %v1482
        %2225 = vmatpush1.msra.mxu0 %v1481
        %2226 = vmatprep.subr.mxu0 %v1485
        %2227 = vmatpush1.msra.mxu0 %v1484
        %2228 = vmatprep.subr.mxu0 %v1488
        %2229 = vmatpush1.msra.mxu0 %v1487
        %2230 = vmatprep.subr.mxu0 %v1491
        %2231 = vmatpush1.msra.mxu0 %v1490
        %2232 = vmatprep.subr.mxu0 %v1494
        %2233 = vmatpush1.msra.mxu0 %v1493
        %2234 = vmatprep.subr.mxu0 %v1497
        %2235 = vmatpush1.msra.mxu0 %v1496
        %2236 = vmatprep.subr.mxu0 %v1500
        %2237 = vmatpush1.msra.mxu0 %v1499
        %2238 = vmatprep.subr.mxu0 %v1503
        %2239 = vmatpush1.msra.mxu0 %v1502
        %2240 = vmatprep.subr.mxu0 %v1506
        %2241 = vmatpush1.msra.mxu0 %v1505
        %2242 = vmatprep.subr.mxu0 %v1509
        %2243 = vmatpush1.msra.mxu0 %v1508
        %2244 = vmatprep.subr.mxu0 %v1512
        %2245 = vmatpush1.msra.mxu0 %v1511
        %2246 = vmatprep.subr.mxu0 %v1515
        %2247 = vmatpush1.msra.mxu0 %v1514
        %2248 = vmatprep.subr.mxu0 %v1518
        %2249 = vmatpush1.msra.mxu0 %v1517
        %2250 = vmatprep.subr.mxu0 %v1521
        %2251 = vmatpush1.msra.mxu0 %v1520
        %2252 = vmatprep.subr.mxu0 %v1524
        %2253 = vmatpush1.msra.mxu0 %v1523
        %2254 = vmatprep.subr.mxu0 %v1527
        %2255 = vmatpush1.msra.mxu0 %v1526
        %2256 = vmatprep.subr.mxu0 %v1530
        %2257 = vmatpush1.msra.mxu0 %v1529
        %2258 = vmatprep.subr.mxu0 %v1533
        %2259 = vmatpush1.msra.mxu0 %v1532
        %2260 = vmatprep.subr.mxu0 %v1536
        %2261 = vmatpush1.msra.mxu0 %v1535
        %2262 = vmatprep.subr.mxu0 %v1539
        %2263 = vmatpush1.msra.mxu0 %v1538
        %2264 = vmatprep.mubr.f32.mxu0 %v1434
        %2265 = vmatmul.mubr.f32.gmra.mrb[0].mxu0 %v1433
        %v2266 = vpop.f32.mrb[0].mxu0
        %v2267 = vadd.f32 %v2024, %v2266
        %v2268 = vpop.f32.mrb[0].mxu0
        %v2269 = vadd.f32 %v2026, %v2268
        %2270 = vmatprep.mubr.f32.mxu0 %v1438
        %2271 = vmatmul.mubr.f32.gmra.mrb[0].mxu0 %v1437
        %v2272 = vpop.f32.mrb[0].mxu0
        %v2273 = vadd.f32 %v2030, %v2272
        %v2274 = vpop.f32.mrb[0].mxu0
        %v2275 = vadd.f32 %v2032, %v2274
        %2276 = vmatprep.mubr.f32.mxu0 %v1442
        %2277 = vmatmul.mubr.f32.gmra.mrb[0].mxu0 %v1441
        %v2278 = vpop.f32.mrb[0].mxu0
        %v2279 = vadd.f32 %v2036, %v2278
        %v2280 = vpop.f32.mrb[0].mxu0
        %v2281 = vadd.f32 %v2038, %v2280
        %2282 = vdwg.mxu0
        %2283 = vmatprep.subr.mxu0 %v1542
        %2284 = vmatpush1.msra.mxu0 %v1541
        %2285 = vmatprep.subr.mxu0 %v1545
        %2286 = vmatpush1.msra.mxu0 %v1544
        %2287 = vmatprep.subr.mxu0 %v1548
        %2288 = vmatpush1.msra.mxu0 %v1547
        %2289 = vmatprep.subr.mxu0 %v1551
        %2290 = vmatpush1.msra.mxu0 %v1550
        %2291 = vmatprep.subr.mxu0 %v1554
        %2292 = vmatpush1.msra.mxu0 %v1553
        %2293 = vmatprep.subr.mxu0 %v1557
        %2294 = vmatpush1.msra.mxu0 %v1556
        %2295 = vmatprep.subr.mxu0 %v1560
        %2296 = vmatpush1.msra.mxu0 %v1559
        %2297 = vmatprep.subr.mxu0 %v1563
        %2298 = vmatpush1.msra.mxu0 %v1562
        %2299 = vmatprep.subr.mxu0 %v1566
        %2300 = vmatpush1.msra.mxu0 %v1565
        %2301 = vmatprep.subr.mxu0 %v1569
        %2302 = vmatpush1.msra.mxu0 %v1568
        %2303 = vmatprep.subr.mxu0 %v1572
        %2304 = vmatpush1.msra.mxu0 %v1571
        %2305 = vmatprep.subr.mxu0 %v1575
        %2306 = vmatpush1.msra.mxu0 %v1574
        %2307 = vmatprep.subr.mxu0 %v1578
        %2308 = vmatpush1.msra.mxu0 %v1577
        %2309 = vmatprep.subr.mxu0 %v1581
        %2310 = vmatpush1.msra.mxu0 %v1580
        %2311 = vmatprep.subr.mxu0 %v1584
        %2312 = vmatpush1.msra.mxu0 %v1583
        %2313 = vmatprep.subr.mxu0 %v1587
        %2314 = vmatpush1.msra.mxu0 %v1586
        %2315 = vmatprep.subr.mxu0 %v1590
        %2316 = vmatpush1.msra.mxu0 %v1589
        %2317 = vmatprep.subr.mxu0 %v1593
        %2318 = vmatpush1.msra.mxu0 %v1592
        %2319 = vmatprep.subr.mxu0 %v1596
        %2320 = vmatpush1.msra.mxu0 %v1595
        %2321 = vmatprep.subr.mxu0 %v1599
        %2322 = vmatpush1.msra.mxu0 %v1598
        %2323 = vmatprep.subr.mxu0 %v1602
        %2324 = vmatpush1.msra.mxu0 %v1601
        %2325 = vmatprep.subr.mxu0 %v1605
        %2326 = vmatpush1.msra.mxu0 %v1604
        %2327 = vmatprep.subr.mxu0 %v1608
        %2328 = vmatpush1.msra.mxu0 %v1607
        %2329 = vmatprep.subr.mxu0 %v1611
        %2330 = vmatpush1.msra.mxu0 %v1610
        %2331 = vmatprep.subr.mxu0 %v1614
        %2332 = vmatpush1.msra.mxu0 %v1613
        %2333 = vmatprep.subr.mxu0 %v1617
        %2334 = vmatpush1.msra.mxu0 %v1616
        %2335 = vmatprep.subr.mxu0 %v1620
        %2336 = vmatpush1.msra.mxu0 %v1619
        %2337 = vmatprep.subr.mxu0 %v1623
        %2338 = vmatpush1.msra.mxu0 %v1622
        %2339 = vmatprep.subr.mxu0 %v1626
        %2340 = vmatpush1.msra.mxu0 %v1625
        %2341 = vmatprep.subr.mxu0 %v1629
        %2342 = vmatpush1.msra.mxu0 %v1628
        %2343 = vmatprep.subr.mxu0 %v1632
        %2344 = vmatpush1.msra.mxu0 %v1631
        %2345 = vmatprep.subr.mxu0 %v1635
        %2346 = vmatpush1.msra.mxu0 %v1634
        %2347 = vmatprep.mubr.f32.mxu0 %v1436
        %2348 = vmatmul.mubr.f32.gmra.mrb[0].mxu0 %v1435
        %v2349 = vpop.f32.mrb[0].mxu0
        %v2350 = vadd.f32 %v2267, %v2349
        %v2351 = vpop.f32.mrb[0].mxu0
        %v2352 = vadd.f32 %v2269, %v2351
        %2353 = vmatprep.mubr.f32.mxu0 %v1440
        %2354 = vmatmul.mubr.f32.gmra.mrb[0].mxu0 %v1439
        %v2355 = vpop.f32.mrb[0].mxu0
        %v2356 = vadd.f32 %v2273, %v2355
        %v2357 = vpop.f32.mrb[0].mxu0
        %v2358 = vadd.f32 %v2275, %v2357
        %2359 = vmatprep.mubr.f32.mxu0 %v1444
        %2360 = vmatmul.mubr.f32.gmra.mrb[0].mxu0 %v1443
        %v2361 = vpop.f32.mrb[0].mxu0
        %v2362 = vadd.f32 %v2279, %v2361
        %v2363 = vpop.f32.mrb[0].mxu0
        %v2364 = vadd.f32 %v2281, %v2363
        %2365 = vdwg.mxu0
        %2366 = vmatprep.subr.mxu0 0.0
        %2367 = vmatpush1.msra.mxu0 %v1447
        %2368 = vmatprep.subr.mxu0 0.0
        %2369 = vmatpush1.msra.mxu0 %v1450
        %2370 = vmatprep.subr.mxu0 0.0
        %2371 = vmatpush1.msra.mxu0 %v1453
        %2372 = vmatprep.subr.mxu0 0.0
        %2373 = vmatpush1.msra.mxu0 %v1456
        %2374 = vmatprep.subr.mxu0 0.0
        %2375 = vmatpush1.msra.mxu0 %v1459
        %2376 = vmatprep.subr.mxu0 0.0
        %2377 = vmatpush1.msra.mxu0 %v1462
        %2378 = vmatprep.subr.mxu0 0.0
        %2379 = vmatpush1.msra.mxu0 %v1465
        %2380 = vmatprep.subr.mxu0 0.0
        %2381 = vmatpush1.msra.mxu0 %v1468
        %2382 = vmatprep.subr.mxu0 0.0
        %2383 = vmatpush1.msra.mxu0 %v1471
        %2384 = vmatprep.subr.mxu0 0.0
        %2385 = vmatpush1.msra.mxu0 %v1474
        %2386 = vmatprep.subr.mxu0 0.0
        %2387 = vmatpush1.msra.mxu0 %v1477
        %2388 = vmatprep.subr.mxu0 0.0
        %2389 = vmatpush1.msra.mxu0 %v1480
        %2390 = vmatprep.subr.mxu0 0.0
        %2391 = vmatpush1.msra.mxu0 %v1483
        %2392 = vmatprep.subr.mxu0 0.0
        %2393 = vmatpush1.msra.mxu0 %v1486
        %2394 = vmatprep.subr.mxu0 0.0
        %2395 = vmatpush1.msra.mxu0 %v1489
        %2396 = vmatprep.subr.mxu0 0.0
        %2397 = vmatpush1.msra.mxu0 %v1492
        %2398 = vmatprep.subr.mxu0 0.0
        %2399 = vmatpush1.msra.mxu0 %v1495
        %2400 = vmatprep.subr.mxu0 0.0
        %2401 = vmatpush1.msra.mxu0 %v1498
        %2402 = vmatprep.subr.mxu0 0.0
        %2403 = vmatpush1.msra.mxu0 %v1501
        %2404 = vmatprep.subr.mxu0 0.0
        %2405 = vmatpush1.msra.mxu0 %v1504
        %2406 = vmatprep.subr.mxu0 0.0
        %2407 = vmatpush1.msra.mxu0 %v1507
        %2408 = vmatprep.subr.mxu0 0.0
        %2409 = vmatpush1.msra.mxu0 %v1510
        %2410 = vmatprep.subr.mxu0 0.0
        %2411 = vmatpush1.msra.mxu0 %v1513
        %2412 = vmatprep.subr.mxu0 0.0
        %2413 = vmatpush1.msra.mxu0 %v1516
        %2414 = vmatprep.subr.mxu0 0.0
        %2415 = vmatpush1.msra.mxu0 %v1519
        %2416 = vmatprep.subr.mxu0 0.0
        %2417 = vmatpush1.msra.mxu0 %v1522
        %2418 = vmatprep.subr.mxu0 0.0
        %2419 = vmatpush1.msra.mxu0 %v1525
        %2420 = vmatprep.subr.mxu0 0.0
        %2421 = vmatpush1.msra.mxu0 %v1528
        %2422 = vmatprep.subr.mxu0 0.0
        %2423 = vmatpush1.msra.mxu0 %v1531
        %2424 = vmatprep.subr.mxu0 0.0
        %2425 = vmatpush1.msra.mxu0 %v1534
        %2426 = vmatprep.subr.mxu0 0.0
        %2427 = vmatpush1.msra.mxu0 %v1537
        %2428 = vmatprep.subr.mxu0 0.0
        %2429 = vmatpush1.msra.mxu0 %v1540
        %2430 = vmatprep.mubr.f32.mxu0 %v1434
        %2431 = vmatmul.mubr.f32.gmra.mrb[0].mxu0 %v1433
        %v2432 = vpop.f32.mrb[0].mxu0
        %v2433 = vadd.f32 %v2187, %v2432
        %v2434 = vpop.f32.mrb[0].mxu0
        %2435 = vmatprep.mubr.f32.mxu0 %v1438
        %2436 = vmatmul.mubr.f32.gmra.mrb[0].mxu0 %v1437
        %v2437 = vpop.f32.mrb[0].mxu0
        %v2438 = vadd.f32 %v2192, %v2437
        %v2439 = vpop.f32.mrb[0].mxu0
        %2440 = vmatprep.mubr.f32.mxu0 %v1442
        %2441 = vmatmul.mubr.f32.gmra.mrb[0].mxu0 %v1441
        %v2442 = vpop.f32.mrb[0].mxu0
        %v2443 = vadd.f32 %v2197, %v2442
        %v2444 = vpop.f32.mrb[0].mxu0
        %2445 = vdwg.mxu0
        %2446 = vmatprep.subr.mxu0 0.0
        %2447 = vmatpush1.msra.mxu0 %v1543
        %2448 = vmatprep.subr.mxu0 0.0
        %2449 = vmatpush1.msra.mxu0 %v1546
        %2450 = vmatprep.subr.mxu0 0.0
        %2451 = vmatpush1.msra.mxu0 %v1549
        %2452 = vmatprep.subr.mxu0 0.0
        %2453 = vmatpush1.msra.mxu0 %v1552
        %2454 = vmatprep.subr.mxu0 0.0
        %2455 = vmatpush1.msra.mxu0 %v1555
        %2456 = vmatprep.subr.mxu0 0.0
        %2457 = vmatpush1.msra.mxu0 %v1558
        %2458 = vmatprep.subr.mxu0 0.0
        %2459 = vmatpush1.msra.mxu0 %v1561
        %2460 = vmatprep.subr.mxu0 0.0
        %2461 = vmatpush1.msra.mxu0 %v1564
        %2462 = vmatprep.subr.mxu0 0.0
        %2463 = vmatpush1.msra.mxu0 %v1567
        %2464 = vmatprep.subr.mxu0 0.0
        %2465 = vmatpush1.msra.mxu0 %v1570
        %2466 = vmatprep.subr.mxu0 0.0
        %2467 = vmatpush1.msra.mxu0 %v1573
        %2468 = vmatprep.subr.mxu0 0.0
        %2469 = vmatpush1.msra.mxu0 %v1576
        %2470 = vmatprep.subr.mxu0 0.0
        %2471 = vmatpush1.msra.mxu0 %v1579
        %2472 = vmatprep.subr.mxu0 0.0
        %2473 = vmatpush1.msra.mxu0 %v1582
        %2474 = vmatprep.subr.mxu0 0.0
        %2475 = vmatpush1.msra.mxu0 %v1585
        %2476 = vmatprep.subr.mxu0 0.0
        %2477 = vmatpush1.msra.mxu0 %v1588
        %2478 = vmatprep.subr.mxu0 0.0
        %2479 = vmatpush1.msra.mxu0 %v1591
        %2480 = vmatprep.subr.mxu0 0.0
        %2481 = vmatpush1.msra.mxu0 %v1594
        %2482 = vmatprep.subr.mxu0 0.0
        %2483 = vmatpush1.msra.mxu0 %v1597
        %2484 = vmatprep.subr.mxu0 0.0
        %2485 = vmatpush1.msra.mxu0 %v1600
        %2486 = vmatprep.subr.mxu0 0.0
        %2487 = vmatpush1.msra.mxu0 %v1603
        %2488 = vmatprep.subr.mxu0 0.0
        %2489 = vmatpush1.msra.mxu0 %v1606
        %2490 = vmatprep.subr.mxu0 0.0
        %2491 = vmatpush1.msra.mxu0 %v1609
        %2492 = vmatprep.subr.mxu0 0.0
        %2493 = vmatpush1.msra.mxu0 %v1612
        %2494 = vmatprep.subr.mxu0 0.0
        %2495 = vmatpush1.msra.mxu0 %v1615
        %2496 = vmatprep.subr.mxu0 0.0
        %2497 = vmatpush1.msra.mxu0 %v1618
        %2498 = vmatprep.subr.mxu0 0.0
        %2499 = vmatpush1.msra.mxu0 %v1621
        %2500 = vmatprep.subr.mxu0 0.0
        %2501 = vmatpush1.msra.mxu0 %v1624
        %2502 = vmatprep.subr.mxu0 0.0
        %2503 = vmatpush1.msra.mxu0 %v1627
        %2504 = vmatprep.subr.mxu0 0.0
        %2505 = vmatpush1.msra.mxu0 %v1630
        %2506 = vmatprep.subr.mxu0 0.0
        %2507 = vmatpush1.msra.mxu0 %v1633
        %2508 = vmatprep.subr.mxu0 0.0
        %2509 = vmatpush1.msra.mxu0 %v1636
        %2510 = vmatprep.mubr.f32.mxu0 %v1436
        %2511 = vmatmul.mubr.f32.gmra.mrb[0].mxu0 %v1435
        %v2512 = vpop.f32.mrb[0].mxu0
        %v2513 = vadd.f32 %v2433, %v2512
        %v2514 = vpop.f32.mrb[0].mxu0
        %2515 = vmatprep.mubr.f32.mxu0 %v1440
        %2516 = vmatmul.mubr.f32.gmra.mrb[0].mxu0 %v1439
        %v2517 = vpop.f32.mrb[0].mxu0
        %v2518 = vadd.f32 %v2438, %v2517
        %v2519 = vpop.f32.mrb[0].mxu0
        %2520 = vmatprep.mubr.f32.mxu0 %v1444
        %2521 = vmatmul.mubr.f32.gmra.mrb[0].mxu0 %v1443
        %v2522 = vpop.f32.mrb[0].mxu0
        %v2523 = vadd.f32 %v2443, %v2522
        %v2524 = vpop.f32.mrb[0].mxu0
        %2525 = vdwg.mxu0
        %s2526 = scalar_lea.vmem %s2, 3072
        %v2527 = vld [vmem:[%s2526] sm:$0xff]
        %v2528 = vld [vmem:[%s2526 + $0x8] sm:$0xff]
        %v2529 = vld [vmem:[%s2526 + $0x10] sm:$0xff]
        %v2530 = vld [vmem:[%s2526 + $0x18] sm:$0xff]
        %v2531 = vld [vmem:[%s2526 + $0x20] sm:$0xff]
        %v2532 = vld [vmem:[%s2526 + $0x28] sm:$0xff]
        %v2533 = vld [vmem:[%s2526 + $0x30] sm:$0xff]
        %v2534 = vld [vmem:[%s2526 + $0x38] sm:$0xff]
        %v2535 = vld [vmem:[%s2526 + $0x40] sm:$0xff]
        %v2536 = vld [vmem:[%s2526 + $0x48] sm:$0xff]
        %v2537 = vld [vmem:[%s2526 + $0x50] sm:$0xff]
        %v2538 = vld [vmem:[%s2526 + $0x58] sm:$0xff]
        %v2539 = vld [vmem:[%s2526 + $0x60] sm:$0xff]
        %v2540 = vld [vmem:[%s2526 + $0x68] sm:$0xff]
        %v2541 = vld [vmem:[%s2526 + $0x70] sm:$0xff]
        %v2542 = vld [vmem:[%s2526 + $0x78] sm:$0xff]
        %v2543 = vld [vmem:[%s2526 + $0x80] sm:$0xff]
        %v2544 = vld [vmem:[%s2526 + $0x88] sm:$0xff]
        %v2545 = vld [vmem:[%s2526 + $0x90] sm:$0xff]
        %v2546 = vld [vmem:[%s2526 + $0x98] sm:$0xff]
        %v2547 = vld [vmem:[%s2526 + $0xa0] sm:$0xff]
        %v2548 = vld [vmem:[%s2526 + $0xa8] sm:$0xff]
        %v2549 = vld [vmem:[%s2526 + $0xb0] sm:$0xff]
        %v2550 = vld [vmem:[%s2526 + $0xb8] sm:$0xff]
        %v2551 = vld [vmem:[%s2526 + $0xc0] sm:$0xff]
        %v2552 = vld [vmem:[%s2526 + $0xc8] sm:$0xff]
        %v2553 = vld [vmem:[%s2526 + $0xd0] sm:$0xff]
        %v2554 = vld [vmem:[%s2526 + $0xd8] sm:$0xff]
        %v2555 = vld [vmem:[%s2526 + $0xe0] sm:$0xff]
        %v2556 = vld [vmem:[%s2526 + $0xe8] sm:$0xff]
        %v2557 = vld [vmem:[%s2526 + $0xf0] sm:$0xff]
        %v2558 = vld [vmem:[%s2526 + $0xf8] sm:$0xff]
        %v2559 = vld [vmem:[%s2526 + $0x100] sm:$0xff]
        %v2560 = vld [vmem:[%s2526 + $0x108] sm:$0xff]
        %v2561 = vld [vmem:[%s2526 + $0x110] sm:$0xff]
        %v2562 = vld [vmem:[%s2526 + $0x118] sm:$0xff]
        %v2563 = vld [vmem:[%s2526 + $0x120] sm:$0xff]
        %v2564 = vld [vmem:[%s2526 + $0x128] sm:$0xff]
        %v2565 = vld [vmem:[%s2526 + $0x130] sm:$0xff]
        %v2566 = vld [vmem:[%s2526 + $0x138] sm:$0xff]
        %v2567 = vld [vmem:[%s2526 + $0x140] sm:$0xff]
        %v2568 = vld [vmem:[%s2526 + $0x148] sm:$0xff]
        %v2569 = vld [vmem:[%s2526 + $0x150] sm:$0xff]
        %v2570 = vld [vmem:[%s2526 + $0x158] sm:$0xff]
        %v2571 = vld [vmem:[%s2526 + $0x160] sm:$0xff]
        %v2572 = vld [vmem:[%s2526 + $0x168] sm:$0xff]
        %v2573 = vld [vmem:[%s2526 + $0x170] sm:$0xff]
        %v2574 = vld [vmem:[%s2526 + $0x178] sm:$0xff]
        %v2575 = vld [vmem:[%s2526 + $0x180] sm:$0xff]
        %v2576 = vld [vmem:[%s2526 + $0x188] sm:$0xff]
        %v2577 = vld [vmem:[%s2526 + $0x190] sm:$0xff]
        %v2578 = vld [vmem:[%s2526 + $0x198] sm:$0xff]
        %v2579 = vld [vmem:[%s2526 + $0x1a0] sm:$0xff]
        %v2580 = vld [vmem:[%s2526 + $0x1a8] sm:$0xff]
        %v2581 = vld [vmem:[%s2526 + $0x1b0] sm:$0xff]
        %v2582 = vld [vmem:[%s2526 + $0x1b8] sm:$0xff]
        %v2583 = vld [vmem:[%s2526 + $0x1c0] sm:$0xff]
        %v2584 = vld [vmem:[%s2526 + $0x1c8] sm:$0xff]
        %v2585 = vld [vmem:[%s2526 + $0x1d0] sm:$0xff]
        %v2586 = vld [vmem:[%s2526 + $0x1d8] sm:$0xff]
        %v2587 = vld [vmem:[%s2526 + $0x1e0] sm:$0xff]
        %v2588 = vld [vmem:[%s2526 + $0x1e8] sm:$0xff]
        %v2589 = vld [vmem:[%s2526 + $0x1f0] sm:$0xff]
        %v2590 = vld [vmem:[%s2526 + $0x1f8] sm:$0xff]
        %v2591 = vld [vmem:[%s2526 + $0x200] sm:$0xff]
        %v2592 = vld [vmem:[%s2526 + $0x208] sm:$0xff]
        %v2593 = vld [vmem:[%s2526 + $0x210] sm:$0xff]
        %v2594 = vld [vmem:[%s2526 + $0x218] sm:$0xff]
        %v2595 = vld [vmem:[%s2526 + $0x220] sm:$0xff]
        %v2596 = vld [vmem:[%s2526 + $0x228] sm:$0xff]
        %v2597 = vld [vmem:[%s2526 + $0x230] sm:$0xff]
        %v2598 = vld [vmem:[%s2526 + $0x238] sm:$0xff]
        %v2599 = vld [vmem:[%s2526 + $0x240] sm:$0xff]
        %v2600 = vld [vmem:[%s2526 + $0x248] sm:$0xff]
        %v2601 = vld [vmem:[%s2526 + $0x250] sm:$0xff]
        %v2602 = vld [vmem:[%s2526 + $0x258] sm:$0xff]
        %v2603 = vld [vmem:[%s2526 + $0x260] sm:$0xff]
        %v2604 = vld [vmem:[%s2526 + $0x268] sm:$0xff]
        %v2605 = vld [vmem:[%s2526 + $0x270] sm:$0xff]
        %v2606 = vld [vmem:[%s2526 + $0x278] sm:$0xff]
        %v2607 = vld [vmem:[%s2526 + $0x280] sm:$0xff]
        %v2608 = vld [vmem:[%s2526 + $0x288] sm:$0xff]
        %v2609 = vld [vmem:[%s2526 + $0x290] sm:$0xff]
        %v2610 = vld [vmem:[%s2526 + $0x298] sm:$0xff]
        %v2611 = vld [vmem:[%s2526 + $0x2a0] sm:$0xff]
        %v2612 = vld [vmem:[%s2526 + $0x2a8] sm:$0xff]
        %v2613 = vld [vmem:[%s2526 + $0x2b0] sm:$0xff]
        %v2614 = vld [vmem:[%s2526 + $0x2b8] sm:$0xff]
        %v2615 = vld [vmem:[%s2526 + $0x2c0] sm:$0xff]
        %v2616 = vld [vmem:[%s2526 + $0x2c8] sm:$0xff]
        %v2617 = vld [vmem:[%s2526 + $0x2d0] sm:$0xff]
        %v2618 = vld [vmem:[%s2526 + $0x2d8] sm:$0xff]
        %v2619 = vld [vmem:[%s2526 + $0x2e0] sm:$0xff]
        %v2620 = vld [vmem:[%s2526 + $0x2e8] sm:$0xff]
        %v2621 = vld [vmem:[%s2526 + $0x2f0] sm:$0xff]
        %v2622 = vld [vmem:[%s2526 + $0x2f8] sm:$0xff]
        %v2623 = vld [vmem:[%s2526 + $0x300] sm:$0xff]
        %v2624 = vld [vmem:[%s2526 + $0x308] sm:$0xff]
        %v2625 = vld [vmem:[%s2526 + $0x310] sm:$0xff]
        %v2626 = vld [vmem:[%s2526 + $0x318] sm:$0xff]
        %v2627 = vld [vmem:[%s2526 + $0x320] sm:$0xff]
        %v2628 = vld [vmem:[%s2526 + $0x328] sm:$0xff]
        %v2629 = vld [vmem:[%s2526 + $0x330] sm:$0xff]
        %v2630 = vld [vmem:[%s2526 + $0x338] sm:$0xff]
        %v2631 = vld [vmem:[%s2526 + $0x340] sm:$0xff]
        %v2632 = vld [vmem:[%s2526 + $0x348] sm:$0xff]
        %v2633 = vld [vmem:[%s2526 + $0x350] sm:$0xff]
        %v2634 = vld [vmem:[%s2526 + $0x358] sm:$0xff]
        %v2635 = vld [vmem:[%s2526 + $0x360] sm:$0xff]
        %v2636 = vld [vmem:[%s2526 + $0x368] sm:$0xff]
        %v2637 = vld [vmem:[%s2526 + $0x370] sm:$0xff]
        %v2638 = vld [vmem:[%s2526 + $0x378] sm:$0xff]
        %v2639 = vld [vmem:[%s2526 + $0x380] sm:$0xff]
        %v2640 = vld [vmem:[%s2526 + $0x388] sm:$0xff]
        %v2641 = vld [vmem:[%s2526 + $0x390] sm:$0xff]
        %v2642 = vld [vmem:[%s2526 + $0x398] sm:$0xff]
        %v2643 = vld [vmem:[%s2526 + $0x3a0] sm:$0xff]
        %v2644 = vld [vmem:[%s2526 + $0x3a8] sm:$0xff]
        %v2645 = vld [vmem:[%s2526 + $0x3b0] sm:$0xff]
        %v2646 = vld [vmem:[%s2526 + $0x3b8] sm:$0xff]
        %v2647 = vld [vmem:[%s2526 + $0x3c0] sm:$0xff]
        %v2648 = vld [vmem:[%s2526 + $0x3c8] sm:$0xff]
        %v2649 = vld [vmem:[%s2526 + $0x3d0] sm:$0xff]
        %v2650 = vld [vmem:[%s2526 + $0x3d8] sm:$0xff]
        %v2651 = vld [vmem:[%s2526 + $0x3e0] sm:$0xff]
        %v2652 = vld [vmem:[%s2526 + $0x3e8] sm:$0xff]
        %v2653 = vld [vmem:[%s2526 + $0x3f0] sm:$0xff]
        %v2654 = vld [vmem:[%s2526 + $0x3f8] sm:$0xff]
        %v2655 = vld [vmem:[%s2526 + $0x400] sm:$0xff]
        %v2656 = vld [vmem:[%s2526 + $0x408] sm:$0xff]
        %v2657 = vld [vmem:[%s2526 + $0x410] sm:$0xff]
        %v2658 = vld [vmem:[%s2526 + $0x418] sm:$0xff]
        %v2659 = vld [vmem:[%s2526 + $0x420] sm:$0xff]
        %v2660 = vld [vmem:[%s2526 + $0x428] sm:$0xff]
        %v2661 = vld [vmem:[%s2526 + $0x430] sm:$0xff]
        %v2662 = vld [vmem:[%s2526 + $0x438] sm:$0xff]
        %v2663 = vld [vmem:[%s2526 + $0x440] sm:$0xff]
        %v2664 = vld [vmem:[%s2526 + $0x448] sm:$0xff]
        %v2665 = vld [vmem:[%s2526 + $0x450] sm:$0xff]
        %v2666 = vld [vmem:[%s2526 + $0x458] sm:$0xff]
        %v2667 = vld [vmem:[%s2526 + $0x460] sm:$0xff]
        %v2668 = vld [vmem:[%s2526 + $0x468] sm:$0xff]
        %v2669 = vld [vmem:[%s2526 + $0x470] sm:$0xff]
        %v2670 = vld [vmem:[%s2526 + $0x478] sm:$0xff]
        %v2671 = vld [vmem:[%s2526 + $0x480] sm:$0xff]
        %v2672 = vld [vmem:[%s2526 + $0x488] sm:$0xff]
        %v2673 = vld [vmem:[%s2526 + $0x490] sm:$0xff]
        %v2674 = vld [vmem:[%s2526 + $0x498] sm:$0xff]
        %v2675 = vld [vmem:[%s2526 + $0x4a0] sm:$0xff]
        %v2676 = vld [vmem:[%s2526 + $0x4a8] sm:$0xff]
        %v2677 = vld [vmem:[%s2526 + $0x4b0] sm:$0xff]
        %v2678 = vld [vmem:[%s2526 + $0x4b8] sm:$0xff]
        %v2679 = vld [vmem:[%s2526 + $0x4c0] sm:$0xff]
        %v2680 = vld [vmem:[%s2526 + $0x4c8] sm:$0xff]
        %v2681 = vld [vmem:[%s2526 + $0x4d0] sm:$0xff]
        %v2682 = vld [vmem:[%s2526 + $0x4d8] sm:$0xff]
        %v2683 = vld [vmem:[%s2526 + $0x4e0] sm:$0xff]
        %v2684 = vld [vmem:[%s2526 + $0x4e8] sm:$0xff]
        %v2685 = vld [vmem:[%s2526 + $0x4f0] sm:$0xff]
        %v2686 = vld [vmem:[%s2526 + $0x4f8] sm:$0xff]
        %v2687 = vld [vmem:[%s2526 + $0x500] sm:$0xff]
        %v2688 = vld [vmem:[%s2526 + $0x508] sm:$0xff]
        %v2689 = vld [vmem:[%s2526 + $0x510] sm:$0xff]
        %v2690 = vld [vmem:[%s2526 + $0x518] sm:$0xff]
        %v2691 = vld [vmem:[%s2526 + $0x520] sm:$0xff]
        %v2692 = vld [vmem:[%s2526 + $0x528] sm:$0xff]
        %v2693 = vld [vmem:[%s2526 + $0x530] sm:$0xff]
        %v2694 = vld [vmem:[%s2526 + $0x538] sm:$0xff]
        %v2695 = vld [vmem:[%s2526 + $0x540] sm:$0xff]
        %v2696 = vld [vmem:[%s2526 + $0x548] sm:$0xff]
        %v2697 = vld [vmem:[%s2526 + $0x550] sm:$0xff]
        %v2698 = vld [vmem:[%s2526 + $0x558] sm:$0xff]
        %v2699 = vld [vmem:[%s2526 + $0x560] sm:$0xff]
        %v2700 = vld [vmem:[%s2526 + $0x568] sm:$0xff]
        %v2701 = vld [vmem:[%s2526 + $0x570] sm:$0xff]
        %v2702 = vld [vmem:[%s2526 + $0x578] sm:$0xff]
        %v2703 = vld [vmem:[%s2526 + $0x580] sm:$0xff]
        %v2704 = vld [vmem:[%s2526 + $0x588] sm:$0xff]
        %v2705 = vld [vmem:[%s2526 + $0x590] sm:$0xff]
        %v2706 = vld [vmem:[%s2526 + $0x598] sm:$0xff]
        %v2707 = vld [vmem:[%s2526 + $0x5a0] sm:$0xff]
        %v2708 = vld [vmem:[%s2526 + $0x5a8] sm:$0xff]
        %v2709 = vld [vmem:[%s2526 + $0x5b0] sm:$0xff]
        %v2710 = vld [vmem:[%s2526 + $0x5b8] sm:$0xff]
        %v2711 = vld [vmem:[%s2526 + $0x5c0] sm:$0xff]
        %v2712 = vld [vmem:[%s2526 + $0x5c8] sm:$0xff]
        %v2713 = vld [vmem:[%s2526 + $0x5d0] sm:$0xff]
        %v2714 = vld [vmem:[%s2526 + $0x5d8] sm:$0xff]
        %v2715 = vld [vmem:[%s2526 + $0x5e0] sm:$0xff]
        %v2716 = vld [vmem:[%s2526 + $0x5e8] sm:$0xff]
        %v2717 = vld [vmem:[%s2526 + $0x5f0] sm:$0xff]
        %v2718 = vld [vmem:[%s2526 + $0x5f8] sm:$0xff]
        %v2719 = vrot.slane %v1433, 2
        %v2720 = vrot.slane %v1437, 2
        %v2721 = vsel %vm1201, %v2719, %v2720
        %v2722 = vrot.slane %v1434, 2
        %v2723 = vrot.slane %v1438, 2
        %v2724 = vsel %vm1201, %v2722, %v2723
        %v2725 = vrot.slane %v1435, 2
        %v2726 = vrot.slane %v1439, 2
        %v2727 = vsel %vm1201, %v2725, %v2726
        %v2728 = vrot.slane %v1436, 2
        %v2729 = vrot.slane %v1440, 2
        %v2730 = vsel %vm1201, %v2728, %v2729
        %v2731 = vrot.slane %v1441, 2
        %v2732 = vsel %vm1201, %v2720, %v2731
        %v2733 = vrot.slane %v1442, 2
        %v2734 = vsel %vm1201, %v2723, %v2733
        %v2735 = vrot.slane %v1443, 2
        %v2736 = vsel %vm1201, %v2726, %v2735
        %v2737 = vrot.slane %v1444, 2
        %v2738 = vsel %vm1201, %v2729, %v2737
        %2751 = vmatprep.subr.mxu0 %v2528
        %2752 = vmatpush1.msra.mxu0 %v2527
        %2753 = vmatprep.subr.mxu0 %v2531
        %2754 = vmatpush1.msra.mxu0 %v2530
        %2755 = vmatprep.subr.mxu0 %v2534
        %2756 = vmatpush1.msra.mxu0 %v2533
        %2757 = vmatprep.subr.mxu0 %v2537
        %2758 = vmatpush1.msra.mxu0 %v2536
        %2759 = vmatprep.subr.mxu0 %v2540
        %2760 = vmatpush1.msra.mxu0 %v2539
        %2761 = vmatprep.subr.mxu0 %v2543
        %2762 = vmatpush1.msra.mxu0 %v2542
        %2763 = vmatprep.subr.mxu0 %v2546
        %2764 = vmatpush1.msra.mxu0 %v2545
        %2765 = vmatprep.subr.mxu0 %v2549
        %2766 = vmatpush1.msra.mxu0 %v2548
        %2767 = vmatprep.subr.mxu0 %v2552
        %2768 = vmatpush1.msra.mxu0 %v2551
        %2769 = vmatprep.subr.mxu0 %v2555
        %2770 = vmatpush1.msra.mxu0 %v2554
        %2771 = vmatprep.subr.mxu0 %v2558
        %2772 = vmatpush1.msra.mxu0 %v2557
        %2773 = vmatprep.subr.mxu0 %v2561
        %2774 = vmatpush1.msra.mxu0 %v2560
        %2775 = vmatprep.subr.mxu0 %v2564
        %2776 = vmatpush1.msra.mxu0 %v2563
        %2777 = vmatprep.subr.mxu0 %v2567
        %2778 = vmatpush1.msra.mxu0 %v2566
        %2779 = vmatprep.subr.mxu0 %v2570
        %2780 = vmatpush1.msra.mxu0 %v2569
        %2781 = vmatprep.subr.mxu0 %v2573
        %2782 = vmatpush1.msra.mxu0 %v2572
        %2783 = vmatprep.subr.mxu0 %v2576
        %2784 = vmatpush1.msra.mxu0 %v2575
        %2785 = vmatprep.subr.mxu0 %v2579
        %2786 = vmatpush1.msra.mxu0 %v2578
        %2787 = vmatprep.subr.mxu0 %v2582
        %2788 = vmatpush1.msra.mxu0 %v2581
        %2789 = vmatprep.subr.mxu0 %v2585
        %2790 = vmatpush1.msra.mxu0 %v2584
        %2791 = vmatprep.subr.mxu0 %v2588
        %2792 = vmatpush1.msra.mxu0 %v2587
        %2793 = vmatprep.subr.mxu0 %v2591
        %2794 = vmatpush1.msra.mxu0 %v2590
        %2795 = vmatprep.subr.mxu0 %v2594
        %2796 = vmatpush1.msra.mxu0 %v2593
        %2797 = vmatprep.subr.mxu0 %v2597
        %2798 = vmatpush1.msra.mxu0 %v2596
        %2799 = vmatprep.subr.mxu0 %v2600
        %2800 = vmatpush1.msra.mxu0 %v2599
        %2801 = vmatprep.subr.mxu0 %v2603
        %2802 = vmatpush1.msra.mxu0 %v2602
        %2803 = vmatprep.subr.mxu0 %v2606
        %2804 = vmatpush1.msra.mxu0 %v2605
        %2805 = vmatprep.subr.mxu0 %v2609
        %2806 = vmatpush1.msra.mxu0 %v2608
        %2807 = vmatprep.subr.mxu0 %v2612
        %2808 = vmatpush1.msra.mxu0 %v2611
        %2809 = vmatprep.subr.mxu0 %v2615
        %2810 = vmatpush1.msra.mxu0 %v2614
        %2811 = vmatprep.subr.mxu0 %v2618
        %2812 = vmatpush1.msra.mxu0 %v2617
        %2813 = vmatprep.subr.mxu0 %v2621
        %2814 = vmatpush1.msra.mxu0 %v2620
        %2815 = vmatprep.mubr.f32.mxu0 %v2724
        %2816 = vmatmul.mubr.f32.gmra.mrb[0].mxu0 %v2721
        %v2817 = vpop.f32.mrb[0].mxu0
        %v2818 = vadd.f32 0.0, %v2817
        %v2819 = vpop.f32.mrb[0].mxu0
        %v2820 = vadd.f32 0.0, %v2819
        %2821 = vmatprep.mubr.f32.mxu0 %v2734
        %2822 = vmatmul.mubr.f32.gmra.mrb[0].mxu0 %v2732
        %v2823 = vpop.f32.mrb[0].mxu0
        %v2824 = vadd.f32 0.0, %v2823
        %v2825 = vpop.f32.mrb[0].mxu0
        %v2826 = vadd.f32 0.0, %v2825
        %2827 = vmatprep.mubr.f32.mxu0 %v2733
        %2828 = vmatmul.mubr.f32.gmra.mrb[0].mxu0 %v2731
        %v2829 = vpop.f32.mrb[0].mxu0
        %v2830 = vadd.f32 0.0, %v2829
        %v2831 = vpop.f32.mrb[0].mxu0
        %v2832 = vadd.f32 0.0, %v2831
        %2833 = vdwg.mxu0
        %2834 = vmatprep.subr.mxu0 %v2624
        %2835 = vmatpush1.msra.mxu0 %v2623
        %2836 = vmatprep.subr.mxu0 %v2627
        %2837 = vmatpush1.msra.mxu0 %v2626
        %2838 = vmatprep.subr.mxu0 %v2630
        %2839 = vmatpush1.msra.mxu0 %v2629
        %2840 = vmatprep.subr.mxu0 %v2633
        %2841 = vmatpush1.msra.mxu0 %v2632
        %2842 = vmatprep.subr.mxu0 %v2636
        %2843 = vmatpush1.msra.mxu0 %v2635
        %2844 = vmatprep.subr.mxu0 %v2639
        %2845 = vmatpush1.msra.mxu0 %v2638
        %2846 = vmatprep.subr.mxu0 %v2642
        %2847 = vmatpush1.msra.mxu0 %v2641
        %2848 = vmatprep.subr.mxu0 %v2645
        %2849 = vmatpush1.msra.mxu0 %v2644
        %2850 = vmatprep.subr.mxu0 %v2648
        %2851 = vmatpush1.msra.mxu0 %v2647
        %2852 = vmatprep.subr.mxu0 %v2651
        %2853 = vmatpush1.msra.mxu0 %v2650
        %2854 = vmatprep.subr.mxu0 %v2654
        %2855 = vmatpush1.msra.mxu0 %v2653
        %2856 = vmatprep.subr.mxu0 %v2657
        %2857 = vmatpush1.msra.mxu0 %v2656
        %2858 = vmatprep.subr.mxu0 %v2660
        %2859 = vmatpush1.msra.mxu0 %v2659
        %2860 = vmatprep.subr.mxu0 %v2663
        %2861 = vmatpush1.msra.mxu0 %v2662
        %2862 = vmatprep.subr.mxu0 %v2666
        %2863 = vmatpush1.msra.mxu0 %v2665
        %2864 = vmatprep.subr.mxu0 %v2669
        %2865 = vmatpush1.msra.mxu0 %v2668
        %2866 = vmatprep.subr.mxu0 %v2672
        %2867 = vmatpush1.msra.mxu0 %v2671
        %2868 = vmatprep.subr.mxu0 %v2675
        %2869 = vmatpush1.msra.mxu0 %v2674
        %2870 = vmatprep.subr.mxu0 %v2678
        %2871 = vmatpush1.msra.mxu0 %v2677
        %2872 = vmatprep.subr.mxu0 %v2681
        %2873 = vmatpush1.msra.mxu0 %v2680
        %2874 = vmatprep.subr.mxu0 %v2684
        %2875 = vmatpush1.msra.mxu0 %v2683
        %2876 = vmatprep.subr.mxu0 %v2687
        %2877 = vmatpush1.msra.mxu0 %v2686
        %2878 = vmatprep.subr.mxu0 %v2690
        %2879 = vmatpush1.msra.mxu0 %v2689
        %2880 = vmatprep.subr.mxu0 %v2693
        %2881 = vmatpush1.msra.mxu0 %v2692
        %2882 = vmatprep.subr.mxu0 %v2696
        %2883 = vmatpush1.msra.mxu0 %v2695
        %2884 = vmatprep.subr.mxu0 %v2699
        %2885 = vmatpush1.msra.mxu0 %v2698
        %2886 = vmatprep.subr.mxu0 %v2702
        %2887 = vmatpush1.msra.mxu0 %v2701
        %2888 = vmatprep.subr.mxu0 %v2705
        %2889 = vmatpush1.msra.mxu0 %v2704
        %2890 = vmatprep.subr.mxu0 %v2708
        %2891 = vmatpush1.msra.mxu0 %v2707
        %2892 = vmatprep.subr.mxu0 %v2711
        %2893 = vmatpush1.msra.mxu0 %v2710
        %2894 = vmatprep.subr.mxu0 %v2714
        %2895 = vmatpush1.msra.mxu0 %v2713
        %2896 = vmatprep.subr.mxu0 %v2717
        %2897 = vmatpush1.msra.mxu0 %v2716
        %2898 = vmatprep.mubr.f32.mxu0 %v2730
        %2899 = vmatmul.mubr.f32.gmra.mrb[0].mxu0 %v2727
        %v2900 = vpop.f32.mrb[0].mxu0
        %v2901 = vadd.f32 %v2818, %v2900
        %v2902 = vpop.f32.mrb[0].mxu0
        %v2903 = vadd.f32 %v2820, %v2902
        %2904 = vmatprep.mubr.f32.mxu0 %v2738
        %2905 = vmatmul.mubr.f32.gmra.mrb[0].mxu0 %v2736
        %v2906 = vpop.f32.mrb[0].mxu0
        %v2907 = vadd.f32 %v2824, %v2906
        %v2908 = vpop.f32.mrb[0].mxu0
        %v2909 = vadd.f32 %v2826, %v2908
        %2910 = vmatprep.mubr.f32.mxu0 %v2737
        %2911 = vmatmul.mubr.f32.gmra.mrb[0].mxu0 %v2735
        %v2912 = vpop.f32.mrb[0].mxu0
        %v2913 = vadd.f32 %v2830, %v2912
        %v2914 = vpop.f32.mrb[0].mxu0
        %v2915 = vadd.f32 %v2832, %v2914
        %2916 = vdwg.mxu0
        %2917 = vmatprep.subr.mxu0 0.0
        %2918 = vmatpush1.msra.mxu0 %v2529
        %2919 = vmatprep.subr.mxu0 0.0
        %2920 = vmatpush1.msra.mxu0 %v2532
        %2921 = vmatprep.subr.mxu0 0.0
        %2922 = vmatpush1.msra.mxu0 %v2535
        %2923 = vmatprep.subr.mxu0 0.0
        %2924 = vmatpush1.msra.mxu0 %v2538
        %2925 = vmatprep.subr.mxu0 0.0
        %2926 = vmatpush1.msra.mxu0 %v2541
        %2927 = vmatprep.subr.mxu0 0.0
        %2928 = vmatpush1.msra.mxu0 %v2544
        %2929 = vmatprep.subr.mxu0 0.0
        %2930 = vmatpush1.msra.mxu0 %v2547
        %2931 = vmatprep.subr.mxu0 0.0
        %2932 = vmatpush1.msra.mxu0 %v2550
        %2933 = vmatprep.subr.mxu0 0.0
        %2934 = vmatpush1.msra.mxu0 %v2553
        %2935 = vmatprep.subr.mxu0 0.0
        %2936 = vmatpush1.msra.mxu0 %v2556
        %2937 = vmatprep.subr.mxu0 0.0
        %2938 = vmatpush1.msra.mxu0 %v2559
        %2939 = vmatprep.subr.mxu0 0.0
        %2940 = vmatpush1.msra.mxu0 %v2562
        %2941 = vmatprep.subr.mxu0 0.0
        %2942 = vmatpush1.msra.mxu0 %v2565
        %2943 = vmatprep.subr.mxu0 0.0
        %2944 = vmatpush1.msra.mxu0 %v2568
        %2945 = vmatprep.subr.mxu0 0.0
        %2946 = vmatpush1.msra.mxu0 %v2571
        %2947 = vmatprep.subr.mxu0 0.0
        %2948 = vmatpush1.msra.mxu0 %v2574
        %2949 = vmatprep.subr.mxu0 0.0
        %2950 = vmatpush1.msra.mxu0 %v2577
        %2951 = vmatprep.subr.mxu0 0.0
        %2952 = vmatpush1.msra.mxu0 %v2580
        %2953 = vmatprep.subr.mxu0 0.0
        %2954 = vmatpush1.msra.mxu0 %v2583
        %2955 = vmatprep.subr.mxu0 0.0
        %2956 = vmatpush1.msra.mxu0 %v2586
        %2957 = vmatprep.subr.mxu0 0.0
        %2958 = vmatpush1.msra.mxu0 %v2589
        %2959 = vmatprep.subr.mxu0 0.0
        %2960 = vmatpush1.msra.mxu0 %v2592
        %2961 = vmatprep.subr.mxu0 0.0
        %2962 = vmatpush1.msra.mxu0 %v2595
        %2963 = vmatprep.subr.mxu0 0.0
        %2964 = vmatpush1.msra.mxu0 %v2598
        %2965 = vmatprep.subr.mxu0 0.0
        %2966 = vmatpush1.msra.mxu0 %v2601
        %2967 = vmatprep.subr.mxu0 0.0
        %2968 = vmatpush1.msra.mxu0 %v2604
        %2969 = vmatprep.subr.mxu0 0.0
        %2970 = vmatpush1.msra.mxu0 %v2607
        %2971 = vmatprep.subr.mxu0 0.0
        %2972 = vmatpush1.msra.mxu0 %v2610
        %2973 = vmatprep.subr.mxu0 0.0
        %2974 = vmatpush1.msra.mxu0 %v2613
        %2975 = vmatprep.subr.mxu0 0.0
        %2976 = vmatpush1.msra.mxu0 %v2616
        %2977 = vmatprep.subr.mxu0 0.0
        %2978 = vmatpush1.msra.mxu0 %v2619
        %2979 = vmatprep.subr.mxu0 0.0
        %2980 = vmatpush1.msra.mxu0 %v2622
        %2981 = vmatprep.mubr.f32.mxu0 %v2724
        %2982 = vmatmul.mubr.f32.gmra.mrb[0].mxu0 %v2721
        %v2983 = vpop.f32.mrb[0].mxu0
        %v2984 = vadd.f32 0.0, %v2983
        %v2985 = vpop.f32.mrb[0].mxu0
        %2986 = vmatprep.mubr.f32.mxu0 %v2734
        %2987 = vmatmul.mubr.f32.gmra.mrb[0].mxu0 %v2732
        %v2988 = vpop.f32.mrb[0].mxu0
        %v2989 = vadd.f32 0.0, %v2988
        %v2990 = vpop.f32.mrb[0].mxu0
        %2991 = vmatprep.mubr.f32.mxu0 %v2733
        %2992 = vmatmul.mubr.f32.gmra.mrb[0].mxu0 %v2731
        %v2993 = vpop.f32.mrb[0].mxu0
        %v2994 = vadd.f32 0.0, %v2993
        %v2995 = vpop.f32.mrb[0].mxu0
        %2996 = vdwg.mxu0
        %2997 = vmatprep.subr.mxu0 0.0
        %2998 = vmatpush1.msra.mxu0 %v2625
        %2999 = vmatprep.subr.mxu0 0.0
        %3000 = vmatpush1.msra.mxu0 %v2628
        %3001 = vmatprep.subr.mxu0 0.0
        %3002 = vmatpush1.msra.mxu0 %v2631
        %3003 = vmatprep.subr.mxu0 0.0
        %3004 = vmatpush1.msra.mxu0 %v2634
        %3005 = vmatprep.subr.mxu0 0.0
        %3006 = vmatpush1.msra.mxu0 %v2637
        %3007 = vmatprep.subr.mxu0 0.0
        %3008 = vmatpush1.msra.mxu0 %v2640
        %3009 = vmatprep.subr.mxu0 0.0
        %3010 = vmatpush1.msra.mxu0 %v2643
        %3011 = vmatprep.subr.mxu0 0.0
        %3012 = vmatpush1.msra.mxu0 %v2646
        %3013 = vmatprep.subr.mxu0 0.0
        %3014 = vmatpush1.msra.mxu0 %v2649
        %3015 = vmatprep.subr.mxu0 0.0
        %3016 = vmatpush1.msra.mxu0 %v2652
        %3017 = vmatprep.subr.mxu0 0.0
        %3018 = vmatpush1.msra.mxu0 %v2655
        %3019 = vmatprep.subr.mxu0 0.0
        %3020 = vmatpush1.msra.mxu0 %v2658
        %3021 = vmatprep.subr.mxu0 0.0
        %3022 = vmatpush1.msra.mxu0 %v2661
        %3023 = vmatprep.subr.mxu0 0.0
        %3024 = vmatpush1.msra.mxu0 %v2664
        %3025 = vmatprep.subr.mxu0 0.0
        %3026 = vmatpush1.msra.mxu0 %v2667
        %3027 = vmatprep.subr.mxu0 0.0
        %3028 = vmatpush1.msra.mxu0 %v2670
        %3029 = vmatprep.subr.mxu0 0.0
        %3030 = vmatpush1.msra.mxu0 %v2673
        %3031 = vmatprep.subr.mxu0 0.0
        %3032 = vmatpush1.msra.mxu0 %v2676
        %3033 = vmatprep.subr.mxu0 0.0
        %3034 = vmatpush1.msra.mxu0 %v2679
        %3035 = vmatprep.subr.mxu0 0.0
        %3036 = vmatpush1.msra.mxu0 %v2682
        %3037 = vmatprep.subr.mxu0 0.0
        %3038 = vmatpush1.msra.mxu0 %v2685
        %3039 = vmatprep.subr.mxu0 0.0
        %3040 = vmatpush1.msra.mxu0 %v2688
        %3041 = vmatprep.subr.mxu0 0.0
        %3042 = vmatpush1.msra.mxu0 %v2691
        %3043 = vmatprep.subr.mxu0 0.0
        %3044 = vmatpush1.msra.mxu0 %v2694
        %3045 = vmatprep.subr.mxu0 0.0
        %3046 = vmatpush1.msra.mxu0 %v2697
        %3047 = vmatprep.subr.mxu0 0.0
        %3048 = vmatpush1.msra.mxu0 %v2700
        %3049 = vmatprep.subr.mxu0 0.0
        %3050 = vmatpush1.msra.mxu0 %v2703
        %3051 = vmatprep.subr.mxu0 0.0
        %3052 = vmatpush1.msra.mxu0 %v2706
        %3053 = vmatprep.subr.mxu0 0.0
        %3054 = vmatpush1.msra.mxu0 %v2709
        %3055 = vmatprep.subr.mxu0 0.0
        %3056 = vmatpush1.msra.mxu0 %v2712
        %3057 = vmatprep.subr.mxu0 0.0
        %3058 = vmatpush1.msra.mxu0 %v2715
        %3059 = vmatprep.subr.mxu0 0.0
        %3060 = vmatpush1.msra.mxu0 %v2718
        %3061 = vmatprep.mubr.f32.mxu0 %v2730
        %3062 = vmatmul.mubr.f32.gmra.mrb[0].mxu0 %v2727
        %v3063 = vpop.f32.mrb[0].mxu0
        %v3064 = vadd.f32 %v2984, %v3063
        %v3065 = vpop.f32.mrb[0].mxu0
        %3066 = vmatprep.mubr.f32.mxu0 %v2738
        %3067 = vmatmul.mubr.f32.gmra.mrb[0].mxu0 %v2736
        %v3068 = vpop.f32.mrb[0].mxu0
        %v3069 = vadd.f32 %v2989, %v3068
        %v3070 = vpop.f32.mrb[0].mxu0
        %3071 = vmatprep.mubr.f32.mxu0 %v2737
        %3072 = vmatmul.mubr.f32.gmra.mrb[0].mxu0 %v2735
        %v3073 = vpop.f32.mrb[0].mxu0
        %v3074 = vadd.f32 %v2994, %v3073
        %v3075 = vpop.f32.mrb[0].mxu0
        %3076 = vdwg.mxu0
        %v3077 = vadd.f32 %v2350, %v2901
        %v3078 = vadd.f32 %v2352, %v2903
        %v3079 = vadd.f32 %v2513, %v3064
        %v3080 = vadd.f32 %v2356, %v2907
        %v3081 = vadd.f32 %v2358, %v2909
        %v3082 = vadd.f32 %v2518, %v3069
        %v3083 = vadd.f32 %v2362, %v2913
        %v3084 = vadd.f32 %v2364, %v2915
        %v3085 = vadd.f32 %v2523, %v3074
        %v3086 = vld [vmem:[%s6] sm:$0x7]
        %v3088 = vlaneseq
        %v3089 = vshrl.u32 %v3088, 7
        %v3090 = vsub.s32 0, %v3089
        %v3091 = vrot.slane %v3086, %v3090
        %v3092 = vlaneseq
        %v3093 = vshrl.u32 %v3092, 7
        %v3094 = vsub.s32 1, %v3093
        %v3095 = vrot.slane %v3086, %v3094
        %v3096 = vlaneseq
        %v3097 = vshrl.u32 %v3096, 7
        %v3098 = vsub.s32 2, %v3097
        %v3099 = vrot.slane %v3086, %v3098
        %v3103 = vadd.f32 %v3077, %v3091
        %v3104 = vadd.f32 %v3078, %v3095
        %v3105 = vadd.f32 %v3079, %v3099
        %v3106 = vadd.f32 %v3080, %v3091
        %v3107 = vadd.f32 %v3081, %v3095
        %v3108 = vadd.f32 %v3082, %v3099
        %v3109 = vadd.f32 %v3083, %v3091
        %v3110 = vadd.f32 %v3084, %v3095
        %v3111 = vadd.f32 %v3085, %v3099
        %v3112 = vmax.f32 %v3103, 0.0
        %v3113 = vmax.f32 %v3104, 0.0
        %v3114 = vmax.f32 %v3105, 0.0
        %v3115 = vmax.f32 %v3106, 0.0
        %v3116 = vmax.f32 %v3107, 0.0
        %v3117 = vmax.f32 %v3108, 0.0
        %v3118 = vmax.f32 %v3109, 0.0
        %v3119 = vmax.f32 %v3110, 0.0
        %v3120 = vmax.f32 %v3111, 0.0
        %v3121 = vld [vmem:[%s7] sm:$0x7]
        %v3123 = vlaneseq
        %v3124 = vshrl.u32 %v3123, 7
        %v3125 = vsub.s32 0, %v3124
        %v3126 = vrot.slane %v3121, %v3125
        %v3127 = vlaneseq
        %v3128 = vshrl.u32 %v3127, 7
        %v3129 = vsub.s32 1, %v3128
        %v3130 = vrot.slane %v3121, %v3129
        %v3131 = vlaneseq
        %v3132 = vshrl.u32 %v3131, 7
        %v3133 = vsub.s32 2, %v3132
        %v3134 = vrot.slane %v3121, %v3133
        %v3138 = vmul.f32 %v3112, %v3126
        %v3139 = vmul.f32 %v3113, %v3130
        %v3140 = vmul.f32 %v3114, %v3134
        %v3141 = vmul.f32 %v3115, %v3126
        %v3142 = vmul.f32 %v3116, %v3130
        %v3143 = vmul.f32 %v3117, %v3134
        %v3144 = vmul.f32 %v3118, %v3126
        %v3145 = vmul.f32 %v3119, %v3130
        %v3146 = vmul.f32 %v3120, %v3134
        %v3147 = vld [vmem:[%s8] sm:$0x7]
        %v3149 = vlaneseq
        %v3150 = vshrl.u32 %v3149, 7
        %v3151 = vsub.s32 0, %v3150
        %v3152 = vrot.slane %v3147, %v3151
        %v3153 = vlaneseq
        %v3154 = vshrl.u32 %v3153, 7
        %v3155 = vsub.s32 1, %v3154
        %v3156 = vrot.slane %v3147, %v3155
        %v3157 = vlaneseq
        %v3158 = vshrl.u32 %v3157, 7
        %v3159 = vsub.s32 2, %v3158
        %v3160 = vrot.slane %v3147, %v3159
        %v3164 = vadd.f32 %v3138, %v3152
        %v3165 = vadd.f32 %v3139, %v3156
        %v3166 = vadd.f32 %v3140, %v3160
        %v3167 = vadd.f32 %v3141, %v3152
        %v3168 = vadd.f32 %v3142, %v3156
        %v3169 = vadd.f32 %v3143, %v3160
        %v3170 = vadd.f32 %v3144, %v3152
        %v3171 = vadd.f32 %v3145, %v3156
        %v3172 = vadd.f32 %v3146, %v3160
        %v3173 = vld [vmem:[%s3] sm:$0xff]
        %v3174 = vld [vmem:[%s3 + $0x8] sm:$0xff]
        %v3175 = vld [vmem:[%s3 + $0x10] sm:$0xff]
        %v3176 = vld [vmem:[%s3 + $0x18] sm:$0xff]
        %v3177 = vld [vmem:[%s3 + $0x20] sm:$0xff]
        %v3178 = vld [vmem:[%s3 + $0x28] sm:$0xff]
        %v3179 = vld [vmem:[%s3 + $0x30] sm:$0xff]
        %v3180 = vld [vmem:[%s3 + $0x38] sm:$0xff]
        %v3181 = vld [vmem:[%s3 + $0x40] sm:$0xff]
        %v3182 = vld [vmem:[%s3 + $0x48] sm:$0xff]
        %v3183 = vld [vmem:[%s3 + $0x50] sm:$0xff]
        %v3184 = vld [vmem:[%s3 + $0x58] sm:$0xff]
        %v3185 = vld [vmem:[%s3 + $0x60] sm:$0xff]
        %v3186 = vld [vmem:[%s3 + $0x68] sm:$0xff]
        %v3187 = vld [vmem:[%s3 + $0x70] sm:$0xff]
        %v3188 = vld [vmem:[%s3 + $0x78] sm:$0xff]
        %v3189 = vld [vmem:[%s3 + $0x80] sm:$0xff]
        %v3190 = vld [vmem:[%s3 + $0x88] sm:$0xff]
        %v3191 = vld [vmem:[%s3 + $0x90] sm:$0xff]
        %v3192 = vld [vmem:[%s3 + $0x98] sm:$0xff]
        %v3193 = vld [vmem:[%s3 + $0xa0] sm:$0xff]
        %v3194 = vld [vmem:[%s3 + $0xa8] sm:$0xff]
        %v3195 = vld [vmem:[%s3 + $0xb0] sm:$0xff]
        %v3196 = vld [vmem:[%s3 + $0xb8] sm:$0xff]
        %v3197 = vld [vmem:[%s3 + $0xc0] sm:$0xff]
        %v3198 = vld [vmem:[%s3 + $0xc8] sm:$0xff]
        %v3199 = vld [vmem:[%s3 + $0xd0] sm:$0xff]
        %v3200 = vld [vmem:[%s3 + $0xd8] sm:$0xff]
        %v3201 = vld [vmem:[%s3 + $0xe0] sm:$0xff]
        %v3202 = vld [vmem:[%s3 + $0xe8] sm:$0xff]
        %v3203 = vld [vmem:[%s3 + $0xf0] sm:$0xff]
        %v3204 = vld [vmem:[%s3 + $0xf8] sm:$0xff]
        %v3205 = vld [vmem:[%s3 + $0x100] sm:$0xff]
        %v3206 = vld [vmem:[%s3 + $0x108] sm:$0xff]
        %v3207 = vld [vmem:[%s3 + $0x110] sm:$0xff]
        %v3208 = vld [vmem:[%s3 + $0x118] sm:$0xff]
        %v3209 = vld [vmem:[%s3 + $0x120] sm:$0xff]
        %v3210 = vld [vmem:[%s3 + $0x128] sm:$0xff]
        %v3211 = vld [vmem:[%s3 + $0x130] sm:$0xff]
        %v3212 = vld [vmem:[%s3 + $0x138] sm:$0xff]
        %v3213 = vld [vmem:[%s3 + $0x140] sm:$0xff]
        %v3214 = vld [vmem:[%s3 + $0x148] sm:$0xff]
        %v3215 = vld [vmem:[%s3 + $0x150] sm:$0xff]
        %v3216 = vld [vmem:[%s3 + $0x158] sm:$0xff]
        %v3217 = vld [vmem:[%s3 + $0x160] sm:$0xff]
        %v3218 = vld [vmem:[%s3 + $0x168] sm:$0xff]
        %v3219 = vld [vmem:[%s3 + $0x170] sm:$0xff]
        %v3220 = vld [vmem:[%s3 + $0x178] sm:$0xff]
        %v3221 = vld [vmem:[%s3 + $0x180] sm:$0xff]
        %v3222 = vld [vmem:[%s3 + $0x188] sm:$0xff]
        %v3223 = vld [vmem:[%s3 + $0x190] sm:$0xff]
        %v3224 = vld [vmem:[%s3 + $0x198] sm:$0xff]
        %v3225 = vld [vmem:[%s3 + $0x1a0] sm:$0xff]
        %v3226 = vld [vmem:[%s3 + $0x1a8] sm:$0xff]
        %v3227 = vld [vmem:[%s3 + $0x1b0] sm:$0xff]
        %v3228 = vld [vmem:[%s3 + $0x1b8] sm:$0xff]
        %v3229 = vld [vmem:[%s3 + $0x1c0] sm:$0xff]
        %v3230 = vld [vmem:[%s3 + $0x1c8] sm:$0xff]
        %v3231 = vld [vmem:[%s3 + $0x1d0] sm:$0xff]
        %v3232 = vld [vmem:[%s3 + $0x1d8] sm:$0xff]
        %v3233 = vld [vmem:[%s3 + $0x1e0] sm:$0xff]
        %v3234 = vld [vmem:[%s3 + $0x1e8] sm:$0xff]
        %v3235 = vld [vmem:[%s3 + $0x1f0] sm:$0xff]
        %v3236 = vld [vmem:[%s3 + $0x1f8] sm:$0xff]
        %v3237 = vld [vmem:[%s3 + $0x200] sm:$0xff]
        %v3238 = vld [vmem:[%s3 + $0x208] sm:$0xff]
        %v3239 = vld [vmem:[%s3 + $0x210] sm:$0xff]
        %v3240 = vld [vmem:[%s3 + $0x218] sm:$0xff]
        %v3241 = vld [vmem:[%s3 + $0x220] sm:$0xff]
        %v3242 = vld [vmem:[%s3 + $0x228] sm:$0xff]
        %v3243 = vld [vmem:[%s3 + $0x230] sm:$0xff]
        %v3244 = vld [vmem:[%s3 + $0x238] sm:$0xff]
        %v3245 = vld [vmem:[%s3 + $0x240] sm:$0xff]
        %v3246 = vld [vmem:[%s3 + $0x248] sm:$0xff]
        %v3247 = vld [vmem:[%s3 + $0x250] sm:$0xff]
        %v3248 = vld [vmem:[%s3 + $0x258] sm:$0xff]
        %v3249 = vld [vmem:[%s3 + $0x260] sm:$0xff]
        %v3250 = vld [vmem:[%s3 + $0x268] sm:$0xff]
        %v3251 = vld [vmem:[%s3 + $0x270] sm:$0xff]
        %v3252 = vld [vmem:[%s3 + $0x278] sm:$0xff]
        %v3253 = vld [vmem:[%s3 + $0x280] sm:$0xff]
        %v3254 = vld [vmem:[%s3 + $0x288] sm:$0xff]
        %v3255 = vld [vmem:[%s3 + $0x290] sm:$0xff]
        %v3256 = vld [vmem:[%s3 + $0x298] sm:$0xff]
        %v3257 = vld [vmem:[%s3 + $0x2a0] sm:$0xff]
        %v3258 = vld [vmem:[%s3 + $0x2a8] sm:$0xff]
        %v3259 = vld [vmem:[%s3 + $0x2b0] sm:$0xff]
        %v3260 = vld [vmem:[%s3 + $0x2b8] sm:$0xff]
        %v3261 = vld [vmem:[%s3 + $0x2c0] sm:$0xff]
        %v3262 = vld [vmem:[%s3 + $0x2c8] sm:$0xff]
        %v3263 = vld [vmem:[%s3 + $0x2d0] sm:$0xff]
        %v3264 = vld [vmem:[%s3 + $0x2d8] sm:$0xff]
        %v3265 = vld [vmem:[%s3 + $0x2e0] sm:$0xff]
        %v3266 = vld [vmem:[%s3 + $0x2e8] sm:$0xff]
        %v3267 = vld [vmem:[%s3 + $0x2f0] sm:$0xff]
        %v3268 = vld [vmem:[%s3 + $0x2f8] sm:$0xff]
        %v3269 = vld [vmem:[%s3 + $0x300] sm:$0xff]
        %v3270 = vld [vmem:[%s3 + $0x308] sm:$0xff]
        %v3271 = vld [vmem:[%s3 + $0x310] sm:$0xff]
        %v3272 = vld [vmem:[%s3 + $0x318] sm:$0xff]
        %v3273 = vld [vmem:[%s3 + $0x320] sm:$0xff]
        %v3274 = vld [vmem:[%s3 + $0x328] sm:$0xff]
        %v3275 = vld [vmem:[%s3 + $0x330] sm:$0xff]
        %v3276 = vld [vmem:[%s3 + $0x338] sm:$0xff]
        %v3277 = vld [vmem:[%s3 + $0x340] sm:$0xff]
        %v3278 = vld [vmem:[%s3 + $0x348] sm:$0xff]
        %v3279 = vld [vmem:[%s3 + $0x350] sm:$0xff]
        %v3280 = vld [vmem:[%s3 + $0x358] sm:$0xff]
        %v3281 = vld [vmem:[%s3 + $0x360] sm:$0xff]
        %v3282 = vld [vmem:[%s3 + $0x368] sm:$0xff]
        %v3283 = vld [vmem:[%s3 + $0x370] sm:$0xff]
        %v3284 = vld [vmem:[%s3 + $0x378] sm:$0xff]
        %v3285 = vld [vmem:[%s3 + $0x380] sm:$0xff]
        %v3286 = vld [vmem:[%s3 + $0x388] sm:$0xff]
        %v3287 = vld [vmem:[%s3 + $0x390] sm:$0xff]
        %v3288 = vld [vmem:[%s3 + $0x398] sm:$0xff]
        %v3289 = vld [vmem:[%s3 + $0x3a0] sm:$0xff]
        %v3290 = vld [vmem:[%s3 + $0x3a8] sm:$0xff]
        %v3291 = vld [vmem:[%s3 + $0x3b0] sm:$0xff]
        %v3292 = vld [vmem:[%s3 + $0x3b8] sm:$0xff]
        %v3293 = vld [vmem:[%s3 + $0x3c0] sm:$0xff]
        %v3294 = vld [vmem:[%s3 + $0x3c8] sm:$0xff]
        %v3295 = vld [vmem:[%s3 + $0x3d0] sm:$0xff]
        %v3296 = vld [vmem:[%s3 + $0x3d8] sm:$0xff]
        %v3297 = vld [vmem:[%s3 + $0x3e0] sm:$0xff]
        %v3298 = vld [vmem:[%s3 + $0x3e8] sm:$0xff]
        %v3299 = vld [vmem:[%s3 + $0x3f0] sm:$0xff]
        %v3300 = vld [vmem:[%s3 + $0x3f8] sm:$0xff]
        %v3301 = vld [vmem:[%s3 + $0x400] sm:$0xff]
        %v3302 = vld [vmem:[%s3 + $0x408] sm:$0xff]
        %v3303 = vld [vmem:[%s3 + $0x410] sm:$0xff]
        %v3304 = vld [vmem:[%s3 + $0x418] sm:$0xff]
        %v3305 = vld [vmem:[%s3 + $0x420] sm:$0xff]
        %v3306 = vld [vmem:[%s3 + $0x428] sm:$0xff]
        %v3307 = vld [vmem:[%s3 + $0x430] sm:$0xff]
        %v3308 = vld [vmem:[%s3 + $0x438] sm:$0xff]
        %v3309 = vld [vmem:[%s3 + $0x440] sm:$0xff]
        %v3310 = vld [vmem:[%s3 + $0x448] sm:$0xff]
        %v3311 = vld [vmem:[%s3 + $0x450] sm:$0xff]
        %v3312 = vld [vmem:[%s3 + $0x458] sm:$0xff]
        %v3313 = vld [vmem:[%s3 + $0x460] sm:$0xff]
        %v3314 = vld [vmem:[%s3 + $0x468] sm:$0xff]
        %v3315 = vld [vmem:[%s3 + $0x470] sm:$0xff]
        %v3316 = vld [vmem:[%s3 + $0x478] sm:$0xff]
        %s3317 = scalar_lea.vmem %s3, 1152
        %v3318 = vld [vmem:[%s3317] sm:$0xff]
        %v3319 = vld [vmem:[%s3317 + $0x8] sm:$0xff]
        %v3320 = vld [vmem:[%s3317 + $0x10] sm:$0xff]
        %v3321 = vld [vmem:[%s3317 + $0x18] sm:$0xff]
        %v3322 = vld [vmem:[%s3317 + $0x20] sm:$0xff]
        %v3323 = vld [vmem:[%s3317 + $0x28] sm:$0xff]
        %v3324 = vld [vmem:[%s3317 + $0x30] sm:$0xff]
        %v3325 = vld [vmem:[%s3317 + $0x38] sm:$0xff]
        %v3326 = vld [vmem:[%s3317 + $0x40] sm:$0xff]
        %v3327 = vld [vmem:[%s3317 + $0x48] sm:$0xff]
        %v3328 = vld [vmem:[%s3317 + $0x50] sm:$0xff]
        %v3329 = vld [vmem:[%s3317 + $0x58] sm:$0xff]
        %v3330 = vld [vmem:[%s3317 + $0x60] sm:$0xff]
        %v3331 = vld [vmem:[%s3317 + $0x68] sm:$0xff]
        %v3332 = vld [vmem:[%s3317 + $0x70] sm:$0xff]
        %v3333 = vld [vmem:[%s3317 + $0x78] sm:$0xff]
        %v3334 = vld [vmem:[%s3317 + $0x80] sm:$0xff]
        %v3335 = vld [vmem:[%s3317 + $0x88] sm:$0xff]
        %v3336 = vld [vmem:[%s3317 + $0x90] sm:$0xff]
        %v3337 = vld [vmem:[%s3317 + $0x98] sm:$0xff]
        %v3338 = vld [vmem:[%s3317 + $0xa0] sm:$0xff]
        %v3339 = vld [vmem:[%s3317 + $0xa8] sm:$0xff]
        %v3340 = vld [vmem:[%s3317 + $0xb0] sm:$0xff]
        %v3341 = vld [vmem:[%s3317 + $0xb8] sm:$0xff]
        %v3342 = vld [vmem:[%s3317 + $0xc0] sm:$0xff]
        %v3343 = vld [vmem:[%s3317 + $0xc8] sm:$0xff]
        %v3344 = vld [vmem:[%s3317 + $0xd0] sm:$0xff]
        %v3345 = vld [vmem:[%s3317 + $0xd8] sm:$0xff]
        %v3346 = vld [vmem:[%s3317 + $0xe0] sm:$0xff]
        %v3347 = vld [vmem:[%s3317 + $0xe8] sm:$0xff]
        %v3348 = vld [vmem:[%s3317 + $0xf0] sm:$0xff]
        %v3349 = vld [vmem:[%s3317 + $0xf8] sm:$0xff]
        %v3350 = vld [vmem:[%s3317 + $0x100] sm:$0xff]
        %v3351 = vld [vmem:[%s3317 + $0x108] sm:$0xff]
        %v3352 = vld [vmem:[%s3317 + $0x110] sm:$0xff]
        %v3353 = vld [vmem:[%s3317 + $0x118] sm:$0xff]
        %v3354 = vld [vmem:[%s3317 + $0x120] sm:$0xff]
        %v3355 = vld [vmem:[%s3317 + $0x128] sm:$0xff]
        %v3356 = vld [vmem:[%s3317 + $0x130] sm:$0xff]
        %v3357 = vld [vmem:[%s3317 + $0x138] sm:$0xff]
        %v3358 = vld [vmem:[%s3317 + $0x140] sm:$0xff]
        %v3359 = vld [vmem:[%s3317 + $0x148] sm:$0xff]
        %v3360 = vld [vmem:[%s3317 + $0x150] sm:$0xff]
        %v3361 = vld [vmem:[%s3317 + $0x158] sm:$0xff]
        %v3362 = vld [vmem:[%s3317 + $0x160] sm:$0xff]
        %v3363 = vld [vmem:[%s3317 + $0x168] sm:$0xff]
        %v3364 = vld [vmem:[%s3317 + $0x170] sm:$0xff]
        %v3365 = vld [vmem:[%s3317 + $0x178] sm:$0xff]
        %v3366 = vld [vmem:[%s3317 + $0x180] sm:$0xff]
        %v3367 = vld [vmem:[%s3317 + $0x188] sm:$0xff]
        %v3368 = vld [vmem:[%s3317 + $0x190] sm:$0xff]
        %v3369 = vld [vmem:[%s3317 + $0x198] sm:$0xff]
        %v3370 = vld [vmem:[%s3317 + $0x1a0] sm:$0xff]
        %v3371 = vld [vmem:[%s3317 + $0x1a8] sm:$0xff]
        %v3372 = vld [vmem:[%s3317 + $0x1b0] sm:$0xff]
        %v3373 = vld [vmem:[%s3317 + $0x1b8] sm:$0xff]
        %v3374 = vld [vmem:[%s3317 + $0x1c0] sm:$0xff]
        %v3375 = vld [vmem:[%s3317 + $0x1c8] sm:$0xff]
        %v3376 = vld [vmem:[%s3317 + $0x1d0] sm:$0xff]
        %v3377 = vld [vmem:[%s3317 + $0x1d8] sm:$0xff]
        %v3378 = vld [vmem:[%s3317 + $0x1e0] sm:$0xff]
        %v3379 = vld [vmem:[%s3317 + $0x1e8] sm:$0xff]
        %v3380 = vld [vmem:[%s3317 + $0x1f0] sm:$0xff]
        %v3381 = vld [vmem:[%s3317 + $0x1f8] sm:$0xff]
        %v3382 = vld [vmem:[%s3317 + $0x200] sm:$0xff]
        %v3383 = vld [vmem:[%s3317 + $0x208] sm:$0xff]
        %v3384 = vld [vmem:[%s3317 + $0x210] sm:$0xff]
        %v3385 = vld [vmem:[%s3317 + $0x218] sm:$0xff]
        %v3386 = vld [vmem:[%s3317 + $0x220] sm:$0xff]
        %v3387 = vld [vmem:[%s3317 + $0x228] sm:$0xff]
        %v3388 = vld [vmem:[%s3317 + $0x230] sm:$0xff]
        %v3389 = vld [vmem:[%s3317 + $0x238] sm:$0xff]
        %v3390 = vld [vmem:[%s3317 + $0x240] sm:$0xff]
        %v3391 = vld [vmem:[%s3317 + $0x248] sm:$0xff]
        %v3392 = vld [vmem:[%s3317 + $0x250] sm:$0xff]
        %v3393 = vld [vmem:[%s3317 + $0x258] sm:$0xff]
        %v3394 = vld [vmem:[%s3317 + $0x260] sm:$0xff]
        %v3395 = vld [vmem:[%s3317 + $0x268] sm:$0xff]
        %v3396 = vld [vmem:[%s3317 + $0x270] sm:$0xff]
        %v3397 = vld [vmem:[%s3317 + $0x278] sm:$0xff]
        %v3398 = vld [vmem:[%s3317 + $0x280] sm:$0xff]
        %v3399 = vld [vmem:[%s3317 + $0x288] sm:$0xff]
        %v3400 = vld [vmem:[%s3317 + $0x290] sm:$0xff]
        %v3401 = vld [vmem:[%s3317 + $0x298] sm:$0xff]
        %v3402 = vld [vmem:[%s3317 + $0x2a0] sm:$0xff]
        %v3403 = vld [vmem:[%s3317 + $0x2a8] sm:$0xff]
        %v3404 = vld [vmem:[%s3317 + $0x2b0] sm:$0xff]
        %v3405 = vld [vmem:[%s3317 + $0x2b8] sm:$0xff]
        %v3406 = vld [vmem:[%s3317 + $0x2c0] sm:$0xff]
        %v3407 = vld [vmem:[%s3317 + $0x2c8] sm:$0xff]
        %v3408 = vld [vmem:[%s3317 + $0x2d0] sm:$0xff]
        %v3409 = vld [vmem:[%s3317 + $0x2d8] sm:$0xff]
        %v3410 = vld [vmem:[%s3317 + $0x2e0] sm:$0xff]
        %v3411 = vld [vmem:[%s3317 + $0x2e8] sm:$0xff]
        %v3412 = vld [vmem:[%s3317 + $0x2f0] sm:$0xff]
        %v3413 = vld [vmem:[%s3317 + $0x2f8] sm:$0xff]
        %v3414 = vld [vmem:[%s3317 + $0x300] sm:$0xff]
        %v3415 = vld [vmem:[%s3317 + $0x308] sm:$0xff]
        %v3416 = vld [vmem:[%s3317 + $0x310] sm:$0xff]
        %v3417 = vld [vmem:[%s3317 + $0x318] sm:$0xff]
        %v3418 = vld [vmem:[%s3317 + $0x320] sm:$0xff]
        %v3419 = vld [vmem:[%s3317 + $0x328] sm:$0xff]
        %v3420 = vld [vmem:[%s3317 + $0x330] sm:$0xff]
        %v3421 = vld [vmem:[%s3317 + $0x338] sm:$0xff]
        %v3422 = vld [vmem:[%s3317 + $0x340] sm:$0xff]
        %v3423 = vld [vmem:[%s3317 + $0x348] sm:$0xff]
        %v3424 = vld [vmem:[%s3317 + $0x350] sm:$0xff]
        %v3425 = vld [vmem:[%s3317 + $0x358] sm:$0xff]
        %v3426 = vld [vmem:[%s3317 + $0x360] sm:$0xff]
        %v3427 = vld [vmem:[%s3317 + $0x368] sm:$0xff]
        %v3428 = vld [vmem:[%s3317 + $0x370] sm:$0xff]
        %v3429 = vld [vmem:[%s3317 + $0x378] sm:$0xff]
        %v3430 = vld [vmem:[%s3317 + $0x380] sm:$0xff]
        %v3431 = vld [vmem:[%s3317 + $0x388] sm:$0xff]
        %v3432 = vld [vmem:[%s3317 + $0x390] sm:$0xff]
        %v3433 = vld [vmem:[%s3317 + $0x398] sm:$0xff]
        %v3434 = vld [vmem:[%s3317 + $0x3a0] sm:$0xff]
        %v3435 = vld [vmem:[%s3317 + $0x3a8] sm:$0xff]
        %v3436 = vld [vmem:[%s3317 + $0x3b0] sm:$0xff]
        %v3437 = vld [vmem:[%s3317 + $0x3b8] sm:$0xff]
        %v3438 = vld [vmem:[%s3317 + $0x3c0] sm:$0xff]
        %v3439 = vld [vmem:[%s3317 + $0x3c8] sm:$0xff]
        %v3440 = vld [vmem:[%s3317 + $0x3d0] sm:$0xff]
        %v3441 = vld [vmem:[%s3317 + $0x3d8] sm:$0xff]
        %v3442 = vld [vmem:[%s3317 + $0x3e0] sm:$0xff]
        %v3443 = vld [vmem:[%s3317 + $0x3e8] sm:$0xff]
        %v3444 = vld [vmem:[%s3317 + $0x3f0] sm:$0xff]
        %v3445 = vld [vmem:[%s3317 + $0x3f8] sm:$0xff]
        %v3446 = vld [vmem:[%s3317 + $0x400] sm:$0xff]
        %v3447 = vld [vmem:[%s3317 + $0x408] sm:$0xff]
        %v3448 = vld [vmem:[%s3317 + $0x410] sm:$0xff]
        %v3449 = vld [vmem:[%s3317 + $0x418] sm:$0xff]
        %v3450 = vld [vmem:[%s3317 + $0x420] sm:$0xff]
        %v3451 = vld [vmem:[%s3317 + $0x428] sm:$0xff]
        %v3452 = vld [vmem:[%s3317 + $0x430] sm:$0xff]
        %v3453 = vld [vmem:[%s3317 + $0x438] sm:$0xff]
        %v3454 = vld [vmem:[%s3317 + $0x440] sm:$0xff]
        %v3455 = vld [vmem:[%s3317 + $0x448] sm:$0xff]
        %v3456 = vld [vmem:[%s3317 + $0x450] sm:$0xff]
        %v3457 = vld [vmem:[%s3317 + $0x458] sm:$0xff]
        %v3458 = vld [vmem:[%s3317 + $0x460] sm:$0xff]
        %v3459 = vld [vmem:[%s3317 + $0x468] sm:$0xff]
        %v3460 = vld [vmem:[%s3317 + $0x470] sm:$0xff]
        %v3461 = vld [vmem:[%s3317 + $0x478] sm:$0xff]
        %v3471 = vrot.slane %v3164, 1
        %v3472 = vrot.slane %v3167, 1
        %v3473 = vsel %vm721, %v3471, %v3472
        %v3474 = vrot.slane %v3165, 1
        %v3475 = vrot.slane %v3168, 1
        %v3476 = vsel %vm721, %v3474, %v3475
        %v3477 = vrot.slane %v3166, 1
        %v3478 = vrot.slane %v3169, 1
        %v3479 = vsel %vm721, %v3477, %v3478
        %v3480 = vrot.slane %v3170, 1
        %v3481 = vsel %vm721, %v3472, %v3480
        %v3482 = vrot.slane %v3171, 1
        %v3483 = vsel %vm721, %v3475, %v3482
        %v3484 = vrot.slane %v3172, 1
        %v3485 = vsel %vm721, %v3478, %v3484
        %3495 = vmatprep.subr.mxu0 %v3319
        %3496 = vmatpush1.msra.mxu0 %v3318
        %3497 = vmatprep.subr.mxu0 %v3322
        %3498 = vmatpush1.msra.mxu0 %v3321
        %3499 = vmatprep.subr.mxu0 %v3325
        %3500 = vmatpush1.msra.mxu0 %v3324
        %3501 = vmatprep.subr.mxu0 %v3328
        %3502 = vmatpush1.msra.mxu0 %v3327
        %3503 = vmatprep.subr.mxu0 %v3331
        %3504 = vmatpush1.msra.mxu0 %v3330
        %3505 = vmatprep.subr.mxu0 %v3334
        %3506 = vmatpush1.msra.mxu0 %v3333
        %3507 = vmatprep.subr.mxu0 %v3337
        %3508 = vmatpush1.msra.mxu0 %v3336
        %3509 = vmatprep.subr.mxu0 %v3340
        %3510 = vmatpush1.msra.mxu0 %v3339
        %3511 = vmatprep.subr.mxu0 %v3343
        %3512 = vmatpush1.msra.mxu0 %v3342
        %3513 = vmatprep.subr.mxu0 %v3346
        %3514 = vmatpush1.msra.mxu0 %v3345
        %3515 = vmatprep.subr.mxu0 %v3349
        %3516 = vmatpush1.msra.mxu0 %v3348
        %3517 = vmatprep.subr.mxu0 %v3352
        %3518 = vmatpush1.msra.mxu0 %v3351
        %3519 = vmatprep.subr.mxu0 %v3355
        %3520 = vmatpush1.msra.mxu0 %v3354
        %3521 = vmatprep.subr.mxu0 %v3358
        %3522 = vmatpush1.msra.mxu0 %v3357
        %3523 = vmatprep.subr.mxu0 %v3361
        %3524 = vmatpush1.msra.mxu0 %v3360
        %3525 = vmatprep.subr.mxu0 %v3364
        %3526 = vmatpush1.msra.mxu0 %v3363
        %3527 = vmatprep.subr.mxu0 %v3367
        %3528 = vmatpush1.msra.mxu0 %v3366
        %3529 = vmatprep.subr.mxu0 %v3370
        %3530 = vmatpush1.msra.mxu0 %v3369
        %3531 = vmatprep.subr.mxu0 %v3373
        %3532 = vmatpush1.msra.mxu0 %v3372
        %3533 = vmatprep.subr.mxu0 %v3376
        %3534 = vmatpush1.msra.mxu0 %v3375
        %3535 = vmatprep.subr.mxu0 %v3379
        %3536 = vmatpush1.msra.mxu0 %v3378
        %3537 = vmatprep.subr.mxu0 %v3382
        %3538 = vmatpush1.msra.mxu0 %v3381
        %3539 = vmatprep.subr.mxu0 %v3385
        %3540 = vmatpush1.msra.mxu0 %v3384
        %3541 = vmatprep.subr.mxu0 %v3388
        %3542 = vmatpush1.msra.mxu0 %v3387
        %3543 = vmatprep.subr.mxu0 %v3391
        %3544 = vmatpush1.msra.mxu0 %v3390
        %3545 = vmatprep.subr.mxu0 %v3394
        %3546 = vmatpush1.msra.mxu0 %v3393
        %3547 = vmatprep.subr.mxu0 %v3397
        %3548 = vmatpush1.msra.mxu0 %v3396
        %3549 = vmatprep.subr.mxu0 %v3400
        %3550 = vmatpush1.msra.mxu0 %v3399
        %3551 = vmatprep.subr.mxu0 %v3403
        %3552 = vmatpush1.msra.mxu0 %v3402
        %3553 = vmatprep.subr.mxu0 %v3406
        %3554 = vmatpush1.msra.mxu0 %v3405
        %3555 = vmatprep.subr.mxu0 %v3409
        %3556 = vmatpush1.msra.mxu0 %v3408
        %3557 = vmatprep.subr.mxu0 %v3412
        %3558 = vmatpush1.msra.mxu0 %v3411
        %3559 = vmatprep.mubr.f32.mxu0 %v3476
        %3560 = vmatmul.mubr.f32.gmra.mrb[0].mxu0 %v3473
        %v3561 = vpop.f32.mrb[0].mxu0
        %v3562 = vadd.f32 0.0, %v3561
        %v3563 = vpop.f32.mrb[0].mxu0
        %v3564 = vadd.f32 0.0, %v3563
        %3565 = vmatprep.mubr.f32.mxu0 %v3483
        %3566 = vmatmul.mubr.f32.gmra.mrb[0].mxu0 %v3481
        %v3567 = vpop.f32.mrb[0].mxu0
        %v3568 = vadd.f32 0.0, %v3567
        %v3569 = vpop.f32.mrb[0].mxu0
        %v3570 = vadd.f32 0.0, %v3569
        %3571 = vmatprep.mubr.f32.mxu0 %v3482
        %3572 = vmatmul.mubr.f32.gmra.mrb[0].mxu0 %v3480
        %v3573 = vpop.f32.mrb[0].mxu0
        %v3574 = vadd.f32 0.0, %v3573
        %v3575 = vpop.f32.mrb[0].mxu0
        %v3576 = vadd.f32 0.0, %v3575
        %3577 = vdwg.mxu0
        %3578 = vmatprep.subr.mxu0 %v3415
        %3579 = vmatpush1.msra.mxu0 %v3414
        %3580 = vmatprep.subr.mxu0 %v3418
        %3581 = vmatpush1.msra.mxu0 %v3417
        %3582 = vmatprep.subr.mxu0 %v3421
        %3583 = vmatpush1.msra.mxu0 %v3420
        %3584 = vmatprep.subr.mxu0 %v3424
        %3585 = vmatpush1.msra.mxu0 %v3423
        %3586 = vmatprep.subr.mxu0 %v3427
        %3587 = vmatpush1.msra.mxu0 %v3426
        %3588 = vmatprep.subr.mxu0 %v3430
        %3589 = vmatpush1.msra.mxu0 %v3429
        %3590 = vmatprep.subr.mxu0 %v3433
        %3591 = vmatpush1.msra.mxu0 %v3432
        %3592 = vmatprep.subr.mxu0 %v3436
        %3593 = vmatpush1.msra.mxu0 %v3435
        %3594 = vmatprep.subr.mxu0 %v3439
        %3595 = vmatpush1.msra.mxu0 %v3438
        %3596 = vmatprep.subr.mxu0 %v3442
        %3597 = vmatpush1.msra.mxu0 %v3441
        %3598 = vmatprep.subr.mxu0 %v3445
        %3599 = vmatpush1.msra.mxu0 %v3444
        %3600 = vmatprep.subr.mxu0 %v3448
        %3601 = vmatpush1.msra.mxu0 %v3447
        %3602 = vmatprep.subr.mxu0 %v3451
        %3603 = vmatpush1.msra.mxu0 %v3450
        %3604 = vmatprep.subr.mxu0 %v3454
        %3605 = vmatpush1.msra.mxu0 %v3453
        %3606 = vmatprep.subr.mxu0 %v3457
        %3607 = vmatpush1.msra.mxu0 %v3456
        %3608 = vmatprep.subr.mxu0 %v3460
        %3609 = vmatpush1.msra.mxu0 %v3459
        %3610 = vmatprep.subr.mxu0 0.0
        %3611 = vmatpush1.msra.mxu0 0.0
        %3612 = vmatprep.subr.mxu0 0.0
        %3613 = vmatpush1.msra.mxu0 0.0
        %3614 = vmatprep.subr.mxu0 0.0
        %3615 = vmatpush1.msra.mxu0 0.0
        %3616 = vmatprep.subr.mxu0 0.0
        %3617 = vmatpush1.msra.mxu0 0.0
        %3618 = vmatprep.subr.mxu0 0.0
        %3619 = vmatpush1.msra.mxu0 0.0
        %3620 = vmatprep.subr.mxu0 0.0
        %3621 = vmatpush1.msra.mxu0 0.0
        %3622 = vmatprep.subr.mxu0 0.0
        %3623 = vmatpush1.msra.mxu0 0.0
        %3624 = vmatprep.subr.mxu0 0.0
        %3625 = vmatpush1.msra.mxu0 0.0
        %3626 = vmatprep.subr.mxu0 0.0
        %3627 = vmatpush1.msra.mxu0 0.0
        %3628 = vmatprep.subr.mxu0 0.0
        %3629 = vmatpush1.msra.mxu0 0.0
        %3630 = vmatprep.subr.mxu0 0.0
        %3631 = vmatpush1.msra.mxu0 0.0
        %3632 = vmatprep.subr.mxu0 0.0
        %3633 = vmatpush1.msra.mxu0 0.0
        %3634 = vmatprep.subr.mxu0 0.0
        %3635 = vmatpush1.msra.mxu0 0.0
        %3636 = vmatprep.subr.mxu0 0.0
        %3637 = vmatpush1.msra.mxu0 0.0
        %3638 = vmatprep.subr.mxu0 0.0
        %3639 = vmatpush1.msra.mxu0 0.0
        %3640 = vmatprep.subr.mxu0 0.0
        %3641 = vmatpush1.msra.mxu0 0.0
        %3642 = vmatprep.mubr.f32.mxu0 0.0
        %3643 = vmatmul.mubr.f32.gmra.mrb[0].mxu0 %v3479
        %v3644 = vpop.f32.mrb[0].mxu0
        %v3645 = vadd.f32 %v3562, %v3644
        %v3646 = vpop.f32.mrb[0].mxu0
        %v3647 = vadd.f32 %v3564, %v3646
        %3648 = vmatprep.mubr.f32.mxu0 0.0
        %3649 = vmatmul.mubr.f32.gmra.mrb[0].mxu0 %v3485
        %v3650 = vpop.f32.mrb[0].mxu0
        %v3651 = vadd.f32 %v3568, %v3650
        %v3652 = vpop.f32.mrb[0].mxu0
        %v3653 = vadd.f32 %v3570, %v3652
        %3654 = vmatprep.mubr.f32.mxu0 0.0
        %3655 = vmatmul.mubr.f32.gmra.mrb[0].mxu0 %v3484
        %v3656 = vpop.f32.mrb[0].mxu0
        %v3657 = vadd.f32 %v3574, %v3656
        %v3658 = vpop.f32.mrb[0].mxu0
        %v3659 = vadd.f32 %v3576, %v3658
        %3660 = vdwg.mxu0
        %3661 = vmatprep.subr.mxu0 0.0
        %3662 = vmatpush1.msra.mxu0 %v3320
        %3663 = vmatprep.subr.mxu0 0.0
        %3664 = vmatpush1.msra.mxu0 %v3323
        %3665 = vmatprep.subr.mxu0 0.0
        %3666 = vmatpush1.msra.mxu0 %v3326
        %3667 = vmatprep.subr.mxu0 0.0
        %3668 = vmatpush1.msra.mxu0 %v3329
        %3669 = vmatprep.subr.mxu0 0.0
        %3670 = vmatpush1.msra.mxu0 %v3332
        %3671 = vmatprep.subr.mxu0 0.0
        %3672 = vmatpush1.msra.mxu0 %v3335
        %3673 = vmatprep.subr.mxu0 0.0
        %3674 = vmatpush1.msra.mxu0 %v3338
        %3675 = vmatprep.subr.mxu0 0.0
        %3676 = vmatpush1.msra.mxu0 %v3341
        %3677 = vmatprep.subr.mxu0 0.0
        %3678 = vmatpush1.msra.mxu0 %v3344
        %3679 = vmatprep.subr.mxu0 0.0
        %3680 = vmatpush1.msra.mxu0 %v3347
        %3681 = vmatprep.subr.mxu0 0.0
        %3682 = vmatpush1.msra.mxu0 %v3350
        %3683 = vmatprep.subr.mxu0 0.0
        %3684 = vmatpush1.msra.mxu0 %v3353
        %3685 = vmatprep.subr.mxu0 0.0
        %3686 = vmatpush1.msra.mxu0 %v3356
        %3687 = vmatprep.subr.mxu0 0.0
        %3688 = vmatpush1.msra.mxu0 %v3359
        %3689 = vmatprep.subr.mxu0 0.0
        %3690 = vmatpush1.msra.mxu0 %v3362
        %3691 = vmatprep.subr.mxu0 0.0
        %3692 = vmatpush1.msra.mxu0 %v3365
        %3693 = vmatprep.subr.mxu0 0.0
        %3694 = vmatpush1.msra.mxu0 %v3368
        %3695 = vmatprep.subr.mxu0 0.0
        %3696 = vmatpush1.msra.mxu0 %v3371
        %3697 = vmatprep.subr.mxu0 0.0
        %3698 = vmatpush1.msra.mxu0 %v3374
        %3699 = vmatprep.subr.mxu0 0.0
        %3700 = vmatpush1.msra.mxu0 %v3377
        %3701 = vmatprep.subr.mxu0 0.0
        %3702 = vmatpush1.msra.mxu0 %v3380
        %3703 = vmatprep.subr.mxu0 0.0
        %3704 = vmatpush1.msra.mxu0 %v3383
        %3705 = vmatprep.subr.mxu0 0.0
        %3706 = vmatpush1.msra.mxu0 %v3386
        %3707 = vmatprep.subr.mxu0 0.0
        %3708 = vmatpush1.msra.mxu0 %v3389
        %3709 = vmatprep.subr.mxu0 0.0
        %3710 = vmatpush1.msra.mxu0 %v3392
        %3711 = vmatprep.subr.mxu0 0.0
        %3712 = vmatpush1.msra.mxu0 %v3395
        %3713 = vmatprep.subr.mxu0 0.0
        %3714 = vmatpush1.msra.mxu0 %v3398
        %3715 = vmatprep.subr.mxu0 0.0
        %3716 = vmatpush1.msra.mxu0 %v3401
        %3717 = vmatprep.subr.mxu0 0.0
        %3718 = vmatpush1.msra.mxu0 %v3404
        %3719 = vmatprep.subr.mxu0 0.0
        %3720 = vmatpush1.msra.mxu0 %v3407
        %3721 = vmatprep.subr.mxu0 0.0
        %3722 = vmatpush1.msra.mxu0 %v3410
        %3723 = vmatprep.subr.mxu0 0.0
        %3724 = vmatpush1.msra.mxu0 %v3413
        %3725 = vmatprep.mubr.f32.mxu0 %v3476
        %3726 = vmatmul.mubr.f32.gmra.mrb[0].mxu0 %v3473
        %v3727 = vpop.f32.mrb[0].mxu0
        %v3728 = vadd.f32 0.0, %v3727
        %v3729 = vpop.f32.mrb[0].mxu0
        %3730 = vmatprep.mubr.f32.mxu0 %v3483
        %3731 = vmatmul.mubr.f32.gmra.mrb[0].mxu0 %v3481
        %v3732 = vpop.f32.mrb[0].mxu0
        %v3733 = vadd.f32 0.0, %v3732
        %v3734 = vpop.f32.mrb[0].mxu0
        %3735 = vmatprep.mubr.f32.mxu0 %v3482
        %3736 = vmatmul.mubr.f32.gmra.mrb[0].mxu0 %v3480
        %v3737 = vpop.f32.mrb[0].mxu0
        %v3738 = vadd.f32 0.0, %v3737
        %v3739 = vpop.f32.mrb[0].mxu0
        %3740 = vdwg.mxu0
        %3741 = vmatprep.subr.mxu0 0.0
        %3742 = vmatpush1.msra.mxu0 %v3416
        %3743 = vmatprep.subr.mxu0 0.0
        %3744 = vmatpush1.msra.mxu0 %v3419
        %3745 = vmatprep.subr.mxu0 0.0
        %3746 = vmatpush1.msra.mxu0 %v3422
        %3747 = vmatprep.subr.mxu0 0.0
        %3748 = vmatpush1.msra.mxu0 %v3425
        %3749 = vmatprep.subr.mxu0 0.0
        %3750 = vmatpush1.msra.mxu0 %v3428
        %3751 = vmatprep.subr.mxu0 0.0
        %3752 = vmatpush1.msra.mxu0 %v3431
        %3753 = vmatprep.subr.mxu0 0.0
        %3754 = vmatpush1.msra.mxu0 %v3434
        %3755 = vmatprep.subr.mxu0 0.0
        %3756 = vmatpush1.msra.mxu0 %v3437
        %3757 = vmatprep.subr.mxu0 0.0
        %3758 = vmatpush1.msra.mxu0 %v3440
        %3759 = vmatprep.subr.mxu0 0.0
        %3760 = vmatpush1.msra.mxu0 %v3443
        %3761 = vmatprep.subr.mxu0 0.0
        %3762 = vmatpush1.msra.mxu0 %v3446
        %3763 = vmatprep.subr.mxu0 0.0
        %3764 = vmatpush1.msra.mxu0 %v3449
        %3765 = vmatprep.subr.mxu0 0.0
        %3766 = vmatpush1.msra.mxu0 %v3452
        %3767 = vmatprep.subr.mxu0 0.0
        %3768 = vmatpush1.msra.mxu0 %v3455
        %3769 = vmatprep.subr.mxu0 0.0
        %3770 = vmatpush1.msra.mxu0 %v3458
        %3771 = vmatprep.subr.mxu0 0.0
        %3772 = vmatpush1.msra.mxu0 %v3461
        %3773 = vmatprep.subr.mxu0 0.0
        %3774 = vmatpush1.msra.mxu0 0.0
        %3775 = vmatprep.subr.mxu0 0.0
        %3776 = vmatpush1.msra.mxu0 0.0
        %3777 = vmatprep.subr.mxu0 0.0
        %3778 = vmatpush1.msra.mxu0 0.0
        %3779 = vmatprep.subr.mxu0 0.0
        %3780 = vmatpush1.msra.mxu0 0.0
        %3781 = vmatprep.subr.mxu0 0.0
        %3782 = vmatpush1.msra.mxu0 0.0
        %3783 = vmatprep.subr.mxu0 0.0
        %3784 = vmatpush1.msra.mxu0 0.0
        %3785 = vmatprep.subr.mxu0 0.0
        %3786 = vmatpush1.msra.mxu0 0.0
        %3787 = vmatprep.subr.mxu0 0.0
        %3788 = vmatpush1.msra.mxu0 0.0
        %3789 = vmatprep.subr.mxu0 0.0
        %3790 = vmatpush1.msra.mxu0 0.0
        %3791 = vmatprep.subr.mxu0 0.0
        %3792 = vmatpush1.msra.mxu0 0.0
        %3793 = vmatprep.subr.mxu0 0.0
        %3794 = vmatpush1.msra.mxu0 0.0
        %3795 = vmatprep.subr.mxu0 0.0
        %3796 = vmatpush1.msra.mxu0 0.0
        %3797 = vmatprep.subr.mxu0 0.0
        %3798 = vmatpush1.msra.mxu0 0.0
        %3799 = vmatprep.subr.mxu0 0.0
        %3800 = vmatpush1.msra.mxu0 0.0
        %3801 = vmatprep.subr.mxu0 0.0
        %3802 = vmatpush1.msra.mxu0 0.0
        %3803 = vmatprep.subr.mxu0 0.0
        %3804 = vmatpush1.msra.mxu0 0.0
        %3805 = vmatprep.mubr.f32.mxu0 0.0
        %3806 = vmatmul.mubr.f32.gmra.mrb[0].mxu0 %v3479
        %v3807 = vpop.f32.mrb[0].mxu0
        %v3808 = vadd.f32 %v3728, %v3807
        %v3809 = vpop.f32.mrb[0].mxu0
        %3810 = vmatprep.mubr.f32.mxu0 0.0
        %3811 = vmatmul.mubr.f32.gmra.mrb[0].mxu0 %v3485
        %v3812 = vpop.f32.mrb[0].mxu0
        %v3813 = vadd.f32 %v3733, %v3812
        %v3814 = vpop.f32.mrb[0].mxu0
        %3815 = vmatprep.mubr.f32.mxu0 0.0
        %3816 = vmatmul.mubr.f32.gmra.mrb[0].mxu0 %v3484
        %v3817 = vpop.f32.mrb[0].mxu0
        %v3818 = vadd.f32 %v3738, %v3817
        %v3819 = vpop.f32.mrb[0].mxu0
        %3820 = vdwg.mxu0
        %3821 = vmatprep.subr.mxu0 %v3174
        %3822 = vmatpush1.msra.mxu0 %v3173
        %3823 = vmatprep.subr.mxu0 %v3177
        %3824 = vmatpush1.msra.mxu0 %v3176
        %3825 = vmatprep.subr.mxu0 %v3180
        %3826 = vmatpush1.msra.mxu0 %v3179
        %3827 = vmatprep.subr.mxu0 %v3183
        %3828 = vmatpush1.msra.mxu0 %v3182
        %3829 = vmatprep.subr.mxu0 %v3186
        %3830 = vmatpush1.msra.mxu0 %v3185
        %3831 = vmatprep.subr.mxu0 %v3189
        %3832 = vmatpush1.msra.mxu0 %v3188
        %3833 = vmatprep.subr.mxu0 %v3192
        %3834 = vmatpush1.msra.mxu0 %v3191
        %3835 = vmatprep.subr.mxu0 %v3195
        %3836 = vmatpush1.msra.mxu0 %v3194
        %3837 = vmatprep.subr.mxu0 %v3198
        %3838 = vmatpush1.msra.mxu0 %v3197
        %3839 = vmatprep.subr.mxu0 %v3201
        %3840 = vmatpush1.msra.mxu0 %v3200
        %3841 = vmatprep.subr.mxu0 %v3204
        %3842 = vmatpush1.msra.mxu0 %v3203
        %3843 = vmatprep.subr.mxu0 %v3207
        %3844 = vmatpush1.msra.mxu0 %v3206
        %3845 = vmatprep.subr.mxu0 %v3210
        %3846 = vmatpush1.msra.mxu0 %v3209
        %3847 = vmatprep.subr.mxu0 %v3213
        %3848 = vmatpush1.msra.mxu0 %v3212
        %3849 = vmatprep.subr.mxu0 %v3216
        %3850 = vmatpush1.msra.mxu0 %v3215
        %3851 = vmatprep.subr.mxu0 %v3219
        %3852 = vmatpush1.msra.mxu0 %v3218
        %3853 = vmatprep.subr.mxu0 %v3222
        %3854 = vmatpush1.msra.mxu0 %v3221
        %3855 = vmatprep.subr.mxu0 %v3225
        %3856 = vmatpush1.msra.mxu0 %v3224
        %3857 = vmatprep.subr.mxu0 %v3228
        %3858 = vmatpush1.msra.mxu0 %v3227
        %3859 = vmatprep.subr.mxu0 %v3231
        %3860 = vmatpush1.msra.mxu0 %v3230
        %3861 = vmatprep.subr.mxu0 %v3234
        %3862 = vmatpush1.msra.mxu0 %v3233
        %3863 = vmatprep.subr.mxu0 %v3237
        %3864 = vmatpush1.msra.mxu0 %v3236
        %3865 = vmatprep.subr.mxu0 %v3240
        %3866 = vmatpush1.msra.mxu0 %v3239
        %3867 = vmatprep.subr.mxu0 %v3243
        %3868 = vmatpush1.msra.mxu0 %v3242
        %3869 = vmatprep.subr.mxu0 %v3246
        %3870 = vmatpush1.msra.mxu0 %v3245
        %3871 = vmatprep.subr.mxu0 %v3249
        %3872 = vmatpush1.msra.mxu0 %v3248
        %3873 = vmatprep.subr.mxu0 %v3252
        %3874 = vmatpush1.msra.mxu0 %v3251
        %3875 = vmatprep.subr.mxu0 %v3255
        %3876 = vmatpush1.msra.mxu0 %v3254
        %3877 = vmatprep.subr.mxu0 %v3258
        %3878 = vmatpush1.msra.mxu0 %v3257
        %3879 = vmatprep.subr.mxu0 %v3261
        %3880 = vmatpush1.msra.mxu0 %v3260
        %3881 = vmatprep.subr.mxu0 %v3264
        %3882 = vmatpush1.msra.mxu0 %v3263
        %3883 = vmatprep.subr.mxu0 %v3267
        %3884 = vmatpush1.msra.mxu0 %v3266
        %3885 = vmatprep.mubr.f32.mxu0 %v3165
        %3886 = vmatmul.mubr.f32.gmra.mrb[0].mxu0 %v3164
        %v3887 = vpop.f32.mrb[0].mxu0
        %v3888 = vadd.f32 %v3645, %v3887
        %v3889 = vpop.f32.mrb[0].mxu0
        %v3890 = vadd.f32 %v3647, %v3889
        %3891 = vmatprep.mubr.f32.mxu0 %v3168
        %3892 = vmatmul.mubr.f32.gmra.mrb[0].mxu0 %v3167
        %v3893 = vpop.f32.mrb[0].mxu0
        %v3894 = vadd.f32 %v3651, %v3893
        %v3895 = vpop.f32.mrb[0].mxu0
        %v3896 = vadd.f32 %v3653, %v3895
        %3897 = vmatprep.mubr.f32.mxu0 %v3171
        %3898 = vmatmul.mubr.f32.gmra.mrb[0].mxu0 %v3170
        %v3899 = vpop.f32.mrb[0].mxu0
        %v3900 = vadd.f32 %v3657, %v3899
        %v3901 = vpop.f32.mrb[0].mxu0
        %v3902 = vadd.f32 %v3659, %v3901
        %3903 = vdwg.mxu0
        %3904 = vmatprep.subr.mxu0 %v3270
        %3905 = vmatpush1.msra.mxu0 %v3269
        %3906 = vmatprep.subr.mxu0 %v3273
        %3907 = vmatpush1.msra.mxu0 %v3272
        %3908 = vmatprep.subr.mxu0 %v3276
        %3909 = vmatpush1.msra.mxu0 %v3275
        %3910 = vmatprep.subr.mxu0 %v3279
        %3911 = vmatpush1.msra.mxu0 %v3278
        %3912 = vmatprep.subr.mxu0 %v3282
        %3913 = vmatpush1.msra.mxu0 %v3281
        %3914 = vmatprep.subr.mxu0 %v3285
        %3915 = vmatpush1.msra.mxu0 %v3284
        %3916 = vmatprep.subr.mxu0 %v3288
        %3917 = vmatpush1.msra.mxu0 %v3287
        %3918 = vmatprep.subr.mxu0 %v3291
        %3919 = vmatpush1.msra.mxu0 %v3290
        %3920 = vmatprep.subr.mxu0 %v3294
        %3921 = vmatpush1.msra.mxu0 %v3293
        %3922 = vmatprep.subr.mxu0 %v3297
        %3923 = vmatpush1.msra.mxu0 %v3296
        %3924 = vmatprep.subr.mxu0 %v3300
        %3925 = vmatpush1.msra.mxu0 %v3299
        %3926 = vmatprep.subr.mxu0 %v3303
        %3927 = vmatpush1.msra.mxu0 %v3302
        %3928 = vmatprep.subr.mxu0 %v3306
        %3929 = vmatpush1.msra.mxu0 %v3305
        %3930 = vmatprep.subr.mxu0 %v3309
        %3931 = vmatpush1.msra.mxu0 %v3308
        %3932 = vmatprep.subr.mxu0 %v3312
        %3933 = vmatpush1.msra.mxu0 %v3311
        %3934 = vmatprep.subr.mxu0 %v3315
        %3935 = vmatpush1.msra.mxu0 %v3314
        %3936 = vmatprep.subr.mxu0 0.0
        %3937 = vmatpush1.msra.mxu0 0.0
        %3938 = vmatprep.subr.mxu0 0.0
        %3939 = vmatpush1.msra.mxu0 0.0
        %3940 = vmatprep.subr.mxu0 0.0
        %3941 = vmatpush1.msra.mxu0 0.0
        %3942 = vmatprep.subr.mxu0 0.0
        %3943 = vmatpush1.msra.mxu0 0.0
        %3944 = vmatprep.subr.mxu0 0.0
        %3945 = vmatpush1.msra.mxu0 0.0
        %3946 = vmatprep.subr.mxu0 0.0
        %3947 = vmatpush1.msra.mxu0 0.0
        %3948 = vmatprep.subr.mxu0 0.0
        %3949 = vmatpush1.msra.mxu0 0.0
        %3950 = vmatprep.subr.mxu0 0.0
        %3951 = vmatpush1.msra.mxu0 0.0
        %3952 = vmatprep.subr.mxu0 0.0
        %3953 = vmatpush1.msra.mxu0 0.0
        %3954 = vmatprep.subr.mxu0 0.0
        %3955 = vmatpush1.msra.mxu0 0.0
        %3956 = vmatprep.subr.mxu0 0.0
        %3957 = vmatpush1.msra.mxu0 0.0
        %3958 = vmatprep.subr.mxu0 0.0
        %3959 = vmatpush1.msra.mxu0 0.0
        %3960 = vmatprep.subr.mxu0 0.0
        %3961 = vmatpush1.msra.mxu0 0.0
        %3962 = vmatprep.subr.mxu0 0.0
        %3963 = vmatpush1.msra.mxu0 0.0
        %3964 = vmatprep.subr.mxu0 0.0
        %3965 = vmatpush1.msra.mxu0 0.0
        %3966 = vmatprep.subr.mxu0 0.0
        %3967 = vmatpush1.msra.mxu0 0.0
        %3968 = vmatprep.mubr.f32.mxu0 0.0
        %3969 = vmatmul.mubr.f32.gmra.mrb[0].mxu0 %v3166
        %v3970 = vpop.f32.mrb[0].mxu0
        %v3971 = vadd.f32 %v3888, %v3970
        %v3972 = vpop.f32.mrb[0].mxu0
        %v3973 = vadd.f32 %v3890, %v3972
        %3974 = vmatprep.mubr.f32.mxu0 0.0
        %3975 = vmatmul.mubr.f32.gmra.mrb[0].mxu0 %v3169
        %v3976 = vpop.f32.mrb[0].mxu0
        %v3977 = vadd.f32 %v3894, %v3976
        %v3978 = vpop.f32.mrb[0].mxu0
        %v3979 = vadd.f32 %v3896, %v3978
        %3980 = vmatprep.mubr.f32.mxu0 0.0
        %3981 = vmatmul.mubr.f32.gmra.mrb[0].mxu0 %v3172
        %v3982 = vpop.f32.mrb[0].mxu0
        %v3983 = vadd.f32 %v3900, %v3982
        %v3984 = vpop.f32.mrb[0].mxu0
        %v3985 = vadd.f32 %v3902, %v3984
        %3986 = vdwg.mxu0
        %3987 = vmatprep.subr.mxu0 0.0
        %3988 = vmatpush1.msra.mxu0 %v3175
        %3989 = vmatprep.subr.mxu0 0.0
        %3990 = vmatpush1.msra.mxu0 %v3178
        %3991 = vmatprep.subr.mxu0 0.0
        %3992 = vmatpush1.msra.mxu0 %v3181
        %3993 = vmatprep.subr.mxu0 0.0
        %3994 = vmatpush1.msra.mxu0 %v3184
        %3995 = vmatprep.subr.mxu0 0.0
        %3996 = vmatpush1.msra.mxu0 %v3187
        %3997 = vmatprep.subr.mxu0 0.0
        %3998 = vmatpush1.msra.mxu0 %v3190
        %3999 = vmatprep.subr.mxu0 0.0
        %4000 = vmatpush1.msra.mxu0 %v3193
        %4001 = vmatprep.subr.mxu0 0.0
        %4002 = vmatpush1.msra.mxu0 %v3196
        %4003 = vmatprep.subr.mxu0 0.0
        %4004 = vmatpush1.msra.mxu0 %v3199
        %4005 = vmatprep.subr.mxu0 0.0
        %4006 = vmatpush1.msra.mxu0 %v3202
        %4007 = vmatprep.subr.mxu0 0.0
        %4008 = vmatpush1.msra.mxu0 %v3205
        %4009 = vmatprep.subr.mxu0 0.0
        %4010 = vmatpush1.msra.mxu0 %v3208
        %4011 = vmatprep.subr.mxu0 0.0
        %4012 = vmatpush1.msra.mxu0 %v3211
        %4013 = vmatprep.subr.mxu0 0.0
        %4014 = vmatpush1.msra.mxu0 %v3214
        %4015 = vmatprep.subr.mxu0 0.0
        %4016 = vmatpush1.msra.mxu0 %v3217
        %4017 = vmatprep.subr.mxu0 0.0
        %4018 = vmatpush1.msra.mxu0 %v3220
        %4019 = vmatprep.subr.mxu0 0.0
        %4020 = vmatpush1.msra.mxu0 %v3223
        %4021 = vmatprep.subr.mxu0 0.0
        %4022 = vmatpush1.msra.mxu0 %v3226
        %4023 = vmatprep.subr.mxu0 0.0
        %4024 = vmatpush1.msra.mxu0 %v3229
        %4025 = vmatprep.subr.mxu0 0.0
        %4026 = vmatpush1.msra.mxu0 %v3232
        %4027 = vmatprep.subr.mxu0 0.0
        %4028 = vmatpush1.msra.mxu0 %v3235
        %4029 = vmatprep.subr.mxu0 0.0
        %4030 = vmatpush1.msra.mxu0 %v3238
        %4031 = vmatprep.subr.mxu0 0.0
        %4032 = vmatpush1.msra.mxu0 %v3241
        %4033 = vmatprep.subr.mxu0 0.0
        %4034 = vmatpush1.msra.mxu0 %v3244
        %4035 = vmatprep.subr.mxu0 0.0
        %4036 = vmatpush1.msra.mxu0 %v3247
        %4037 = vmatprep.subr.mxu0 0.0
        %4038 = vmatpush1.msra.mxu0 %v3250
        %4039 = vmatprep.subr.mxu0 0.0
        %4040 = vmatpush1.msra.mxu0 %v3253
        %4041 = vmatprep.subr.mxu0 0.0
        %4042 = vmatpush1.msra.mxu0 %v3256
        %4043 = vmatprep.subr.mxu0 0.0
        %4044 = vmatpush1.msra.mxu0 %v3259
        %4045 = vmatprep.subr.mxu0 0.0
        %4046 = vmatpush1.msra.mxu0 %v3262
        %4047 = vmatprep.subr.mxu0 0.0
        %4048 = vmatpush1.msra.mxu0 %v3265
        %4049 = vmatprep.subr.mxu0 0.0
        %4050 = vmatpush1.msra.mxu0 %v3268
        %4051 = vmatprep.mubr.f32.mxu0 %v3165
        %4052 = vmatmul.mubr.f32.gmra.mrb[0].mxu0 %v3164
        %v4053 = vpop.f32.mrb[0].mxu0
        %v4054 = vadd.f32 %v3808, %v4053
        %v4055 = vpop.f32.mrb[0].mxu0
        %4056 = vmatprep.mubr.f32.mxu0 %v3168
        %4057 = vmatmul.mubr.f32.gmra.mrb[0].mxu0 %v3167
        %v4058 = vpop.f32.mrb[0].mxu0
        %v4059 = vadd.f32 %v3813, %v4058
        %v4060 = vpop.f32.mrb[0].mxu0
        %4061 = vmatprep.mubr.f32.mxu0 %v3171
        %4062 = vmatmul.mubr.f32.gmra.mrb[0].mxu0 %v3170
        %v4063 = vpop.f32.mrb[0].mxu0
        %v4064 = vadd.f32 %v3818, %v4063
        %v4065 = vpop.f32.mrb[0].mxu0
        %4066 = vdwg.mxu0
        %4067 = vmatprep.subr.mxu0 0.0
        %4068 = vmatpush1.msra.mxu0 %v3271
        %4069 = vmatprep.subr.mxu0 0.0
        %4070 = vmatpush1.msra.mxu0 %v3274
        %4071 = vmatprep.subr.mxu0 0.0
        %4072 = vmatpush1.msra.mxu0 %v3277
        %4073 = vmatprep.subr.mxu0 0.0
        %4074 = vmatpush1.msra.mxu0 %v3280
        %4075 = vmatprep.subr.mxu0 0.0
        %4076 = vmatpush1.msra.mxu0 %v3283
        %4077 = vmatprep.subr.mxu0 0.0
        %4078 = vmatpush1.msra.mxu0 %v3286
        %4079 = vmatprep.subr.mxu0 0.0
        %4080 = vmatpush1.msra.mxu0 %v3289
        %4081 = vmatprep.subr.mxu0 0.0
        %4082 = vmatpush1.msra.mxu0 %v3292
        %4083 = vmatprep.subr.mxu0 0.0
        %4084 = vmatpush1.msra.mxu0 %v3295
        %4085 = vmatprep.subr.mxu0 0.0
        %4086 = vmatpush1.msra.mxu0 %v3298
        %4087 = vmatprep.subr.mxu0 0.0
        %4088 = vmatpush1.msra.mxu0 %v3301
        %4089 = vmatprep.subr.mxu0 0.0
        %4090 = vmatpush1.msra.mxu0 %v3304
        %4091 = vmatprep.subr.mxu0 0.0
        %4092 = vmatpush1.msra.mxu0 %v3307
        %4093 = vmatprep.subr.mxu0 0.0
        %4094 = vmatpush1.msra.mxu0 %v3310
        %4095 = vmatprep.subr.mxu0 0.0
        %4096 = vmatpush1.msra.mxu0 %v3313
        %4097 = vmatprep.subr.mxu0 0.0
        %4098 = vmatpush1.msra.mxu0 %v3316
        %4099 = vmatprep.subr.mxu0 0.0
        %4100 = vmatpush1.msra.mxu0 0.0
        %4101 = vmatprep.subr.mxu0 0.0
        %4102 = vmatpush1.msra.mxu0 0.0
        %4103 = vmatprep.subr.mxu0 0.0
        %4104 = vmatpush1.msra.mxu0 0.0
        %4105 = vmatprep.subr.mxu0 0.0
        %4106 = vmatpush1.msra.mxu0 0.0
        %4107 = vmatprep.subr.mxu0 0.0
        %4108 = vmatpush1.msra.mxu0 0.0
        %4109 = vmatprep.subr.mxu0 0.0
        %4110 = vmatpush1.msra.mxu0 0.0
        %4111 = vmatprep.subr.mxu0 0.0
        %4112 = vmatpush1.msra.mxu0 0.0
        %4113 = vmatprep.subr.mxu0 0.0
        %4114 = vmatpush1.msra.mxu0 0.0
        %4115 = vmatprep.subr.mxu0 0.0
        %4116 = vmatpush1.msra.mxu0 0.0
        %4117 = vmatprep.subr.mxu0 0.0
        %4118 = vmatpush1.msra.mxu0 0.0
        %4119 = vmatprep.subr.mxu0 0.0
        %4120 = vmatpush1.msra.mxu0 0.0
        %4121 = vmatprep.subr.mxu0 0.0
        %4122 = vmatpush1.msra.mxu0 0.0
        %4123 = vmatprep.subr.mxu0 0.0
        %4124 = vmatpush1.msra.mxu0 0.0
        %4125 = vmatprep.subr.mxu0 0.0
        %4126 = vmatpush1.msra.mxu0 0.0
        %4127 = vmatprep.subr.mxu0 0.0
        %4128 = vmatpush1.msra.mxu0 0.0
        %4129 = vmatprep.subr.mxu0 0.0
        %4130 = vmatpush1.msra.mxu0 0.0
        %4131 = vmatprep.mubr.f32.mxu0 0.0
        %4132 = vmatmul.mubr.f32.gmra.mrb[0].mxu0 %v3166
        %v4133 = vpop.f32.mrb[0].mxu0
        %v4134 = vadd.f32 %v4054, %v4133
        %v4135 = vpop.f32.mrb[0].mxu0
        %4136 = vmatprep.mubr.f32.mxu0 0.0
        %4137 = vmatmul.mubr.f32.gmra.mrb[0].mxu0 %v3169
        %v4138 = vpop.f32.mrb[0].mxu0
        %v4139 = vadd.f32 %v4059, %v4138
        %v4140 = vpop.f32.mrb[0].mxu0
        %4141 = vmatprep.mubr.f32.mxu0 0.0
        %4142 = vmatmul.mubr.f32.gmra.mrb[0].mxu0 %v3172
        %v4143 = vpop.f32.mrb[0].mxu0
        %v4144 = vadd.f32 %v4064, %v4143
        %v4145 = vpop.f32.mrb[0].mxu0
        %4146 = vdwg.mxu0
        %s4147 = scalar_lea.vmem %s3, 2304
        %v4148 = vld [vmem:[%s4147] sm:$0xff]
        %v4149 = vld [vmem:[%s4147 + $0x8] sm:$0xff]
        %v4150 = vld [vmem:[%s4147 + $0x10] sm:$0xff]
        %v4151 = vld [vmem:[%s4147 + $0x18] sm:$0xff]
        %v4152 = vld [vmem:[%s4147 + $0x20] sm:$0xff]
        %v4153 = vld [vmem:[%s4147 + $0x28] sm:$0xff]
        %v4154 = vld [vmem:[%s4147 + $0x30] sm:$0xff]
        %v4155 = vld [vmem:[%s4147 + $0x38] sm:$0xff]
        %v4156 = vld [vmem:[%s4147 + $0x40] sm:$0xff]
        %v4157 = vld [vmem:[%s4147 + $0x48] sm:$0xff]
        %v4158 = vld [vmem:[%s4147 + $0x50] sm:$0xff]
        %v4159 = vld [vmem:[%s4147 + $0x58] sm:$0xff]
        %v4160 = vld [vmem:[%s4147 + $0x60] sm:$0xff]
        %v4161 = vld [vmem:[%s4147 + $0x68] sm:$0xff]
        %v4162 = vld [vmem:[%s4147 + $0x70] sm:$0xff]
        %v4163 = vld [vmem:[%s4147 + $0x78] sm:$0xff]
        %v4164 = vld [vmem:[%s4147 + $0x80] sm:$0xff]
        %v4165 = vld [vmem:[%s4147 + $0x88] sm:$0xff]
        %v4166 = vld [vmem:[%s4147 + $0x90] sm:$0xff]
        %v4167 = vld [vmem:[%s4147 + $0x98] sm:$0xff]
        %v4168 = vld [vmem:[%s4147 + $0xa0] sm:$0xff]
        %v4169 = vld [vmem:[%s4147 + $0xa8] sm:$0xff]
        %v4170 = vld [vmem:[%s4147 + $0xb0] sm:$0xff]
        %v4171 = vld [vmem:[%s4147 + $0xb8] sm:$0xff]
        %v4172 = vld [vmem:[%s4147 + $0xc0] sm:$0xff]
        %v4173 = vld [vmem:[%s4147 + $0xc8] sm:$0xff]
        %v4174 = vld [vmem:[%s4147 + $0xd0] sm:$0xff]
        %v4175 = vld [vmem:[%s4147 + $0xd8] sm:$0xff]
        %v4176 = vld [vmem:[%s4147 + $0xe0] sm:$0xff]
        %v4177 = vld [vmem:[%s4147 + $0xe8] sm:$0xff]
        %v4178 = vld [vmem:[%s4147 + $0xf0] sm:$0xff]
        %v4179 = vld [vmem:[%s4147 + $0xf8] sm:$0xff]
        %v4180 = vld [vmem:[%s4147 + $0x100] sm:$0xff]
        %v4181 = vld [vmem:[%s4147 + $0x108] sm:$0xff]
        %v4182 = vld [vmem:[%s4147 + $0x110] sm:$0xff]
        %v4183 = vld [vmem:[%s4147 + $0x118] sm:$0xff]
        %v4184 = vld [vmem:[%s4147 + $0x120] sm:$0xff]
        %v4185 = vld [vmem:[%s4147 + $0x128] sm:$0xff]
        %v4186 = vld [vmem:[%s4147 + $0x130] sm:$0xff]
        %v4187 = vld [vmem:[%s4147 + $0x138] sm:$0xff]
        %v4188 = vld [vmem:[%s4147 + $0x140] sm:$0xff]
        %v4189 = vld [vmem:[%s4147 + $0x148] sm:$0xff]
        %v4190 = vld [vmem:[%s4147 + $0x150] sm:$0xff]
        %v4191 = vld [vmem:[%s4147 + $0x158] sm:$0xff]
        %v4192 = vld [vmem:[%s4147 + $0x160] sm:$0xff]
        %v4193 = vld [vmem:[%s4147 + $0x168] sm:$0xff]
        %v4194 = vld [vmem:[%s4147 + $0x170] sm:$0xff]
        %v4195 = vld [vmem:[%s4147 + $0x178] sm:$0xff]
        %v4196 = vld [vmem:[%s4147 + $0x180] sm:$0xff]
        %v4197 = vld [vmem:[%s4147 + $0x188] sm:$0xff]
        %v4198 = vld [vmem:[%s4147 + $0x190] sm:$0xff]
        %v4199 = vld [vmem:[%s4147 + $0x198] sm:$0xff]
        %v4200 = vld [vmem:[%s4147 + $0x1a0] sm:$0xff]
        %v4201 = vld [vmem:[%s4147 + $0x1a8] sm:$0xff]
        %v4202 = vld [vmem:[%s4147 + $0x1b0] sm:$0xff]
        %v4203 = vld [vmem:[%s4147 + $0x1b8] sm:$0xff]
        %v4204 = vld [vmem:[%s4147 + $0x1c0] sm:$0xff]
        %v4205 = vld [vmem:[%s4147 + $0x1c8] sm:$0xff]
        %v4206 = vld [vmem:[%s4147 + $0x1d0] sm:$0xff]
        %v4207 = vld [vmem:[%s4147 + $0x1d8] sm:$0xff]
        %v4208 = vld [vmem:[%s4147 + $0x1e0] sm:$0xff]
        %v4209 = vld [vmem:[%s4147 + $0x1e8] sm:$0xff]
        %v4210 = vld [vmem:[%s4147 + $0x1f0] sm:$0xff]
        %v4211 = vld [vmem:[%s4147 + $0x1f8] sm:$0xff]
        %v4212 = vld [vmem:[%s4147 + $0x200] sm:$0xff]
        %v4213 = vld [vmem:[%s4147 + $0x208] sm:$0xff]
        %v4214 = vld [vmem:[%s4147 + $0x210] sm:$0xff]
        %v4215 = vld [vmem:[%s4147 + $0x218] sm:$0xff]
        %v4216 = vld [vmem:[%s4147 + $0x220] sm:$0xff]
        %v4217 = vld [vmem:[%s4147 + $0x228] sm:$0xff]
        %v4218 = vld [vmem:[%s4147 + $0x230] sm:$0xff]
        %v4219 = vld [vmem:[%s4147 + $0x238] sm:$0xff]
        %v4220 = vld [vmem:[%s4147 + $0x240] sm:$0xff]
        %v4221 = vld [vmem:[%s4147 + $0x248] sm:$0xff]
        %v4222 = vld [vmem:[%s4147 + $0x250] sm:$0xff]
        %v4223 = vld [vmem:[%s4147 + $0x258] sm:$0xff]
        %v4224 = vld [vmem:[%s4147 + $0x260] sm:$0xff]
        %v4225 = vld [vmem:[%s4147 + $0x268] sm:$0xff]
        %v4226 = vld [vmem:[%s4147 + $0x270] sm:$0xff]
        %v4227 = vld [vmem:[%s4147 + $0x278] sm:$0xff]
        %v4228 = vld [vmem:[%s4147 + $0x280] sm:$0xff]
        %v4229 = vld [vmem:[%s4147 + $0x288] sm:$0xff]
        %v4230 = vld [vmem:[%s4147 + $0x290] sm:$0xff]
        %v4231 = vld [vmem:[%s4147 + $0x298] sm:$0xff]
        %v4232 = vld [vmem:[%s4147 + $0x2a0] sm:$0xff]
        %v4233 = vld [vmem:[%s4147 + $0x2a8] sm:$0xff]
        %v4234 = vld [vmem:[%s4147 + $0x2b0] sm:$0xff]
        %v4235 = vld [vmem:[%s4147 + $0x2b8] sm:$0xff]
        %v4236 = vld [vmem:[%s4147 + $0x2c0] sm:$0xff]
        %v4237 = vld [vmem:[%s4147 + $0x2c8] sm:$0xff]
        %v4238 = vld [vmem:[%s4147 + $0x2d0] sm:$0xff]
        %v4239 = vld [vmem:[%s4147 + $0x2d8] sm:$0xff]
        %v4240 = vld [vmem:[%s4147 + $0x2e0] sm:$0xff]
        %v4241 = vld [vmem:[%s4147 + $0x2e8] sm:$0xff]
        %v4242 = vld [vmem:[%s4147 + $0x2f0] sm:$0xff]
        %v4243 = vld [vmem:[%s4147 + $0x2f8] sm:$0xff]
        %v4244 = vld [vmem:[%s4147 + $0x300] sm:$0xff]
        %v4245 = vld [vmem:[%s4147 + $0x308] sm:$0xff]
        %v4246 = vld [vmem:[%s4147 + $0x310] sm:$0xff]
        %v4247 = vld [vmem:[%s4147 + $0x318] sm:$0xff]
        %v4248 = vld [vmem:[%s4147 + $0x320] sm:$0xff]
        %v4249 = vld [vmem:[%s4147 + $0x328] sm:$0xff]
        %v4250 = vld [vmem:[%s4147 + $0x330] sm:$0xff]
        %v4251 = vld [vmem:[%s4147 + $0x338] sm:$0xff]
        %v4252 = vld [vmem:[%s4147 + $0x340] sm:$0xff]
        %v4253 = vld [vmem:[%s4147 + $0x348] sm:$0xff]
        %v4254 = vld [vmem:[%s4147 + $0x350] sm:$0xff]
        %v4255 = vld [vmem:[%s4147 + $0x358] sm:$0xff]
        %v4256 = vld [vmem:[%s4147 + $0x360] sm:$0xff]
        %v4257 = vld [vmem:[%s4147 + $0x368] sm:$0xff]
        %v4258 = vld [vmem:[%s4147 + $0x370] sm:$0xff]
        %v4259 = vld [vmem:[%s4147 + $0x378] sm:$0xff]
        %v4260 = vld [vmem:[%s4147 + $0x380] sm:$0xff]
        %v4261 = vld [vmem:[%s4147 + $0x388] sm:$0xff]
        %v4262 = vld [vmem:[%s4147 + $0x390] sm:$0xff]
        %v4263 = vld [vmem:[%s4147 + $0x398] sm:$0xff]
        %v4264 = vld [vmem:[%s4147 + $0x3a0] sm:$0xff]
        %v4265 = vld [vmem:[%s4147 + $0x3a8] sm:$0xff]
        %v4266 = vld [vmem:[%s4147 + $0x3b0] sm:$0xff]
        %v4267 = vld [vmem:[%s4147 + $0x3b8] sm:$0xff]
        %v4268 = vld [vmem:[%s4147 + $0x3c0] sm:$0xff]
        %v4269 = vld [vmem:[%s4147 + $0x3c8] sm:$0xff]
        %v4270 = vld [vmem:[%s4147 + $0x3d0] sm:$0xff]
        %v4271 = vld [vmem:[%s4147 + $0x3d8] sm:$0xff]
        %v4272 = vld [vmem:[%s4147 + $0x3e0] sm:$0xff]
        %v4273 = vld [vmem:[%s4147 + $0x3e8] sm:$0xff]
        %v4274 = vld [vmem:[%s4147 + $0x3f0] sm:$0xff]
        %v4275 = vld [vmem:[%s4147 + $0x3f8] sm:$0xff]
        %v4276 = vld [vmem:[%s4147 + $0x400] sm:$0xff]
        %v4277 = vld [vmem:[%s4147 + $0x408] sm:$0xff]
        %v4278 = vld [vmem:[%s4147 + $0x410] sm:$0xff]
        %v4279 = vld [vmem:[%s4147 + $0x418] sm:$0xff]
        %v4280 = vld [vmem:[%s4147 + $0x420] sm:$0xff]
        %v4281 = vld [vmem:[%s4147 + $0x428] sm:$0xff]
        %v4282 = vld [vmem:[%s4147 + $0x430] sm:$0xff]
        %v4283 = vld [vmem:[%s4147 + $0x438] sm:$0xff]
        %v4284 = vld [vmem:[%s4147 + $0x440] sm:$0xff]
        %v4285 = vld [vmem:[%s4147 + $0x448] sm:$0xff]
        %v4286 = vld [vmem:[%s4147 + $0x450] sm:$0xff]
        %v4287 = vld [vmem:[%s4147 + $0x458] sm:$0xff]
        %v4288 = vld [vmem:[%s4147 + $0x460] sm:$0xff]
        %v4289 = vld [vmem:[%s4147 + $0x468] sm:$0xff]
        %v4290 = vld [vmem:[%s4147 + $0x470] sm:$0xff]
        %v4291 = vld [vmem:[%s4147 + $0x478] sm:$0xff]
        %v4292 = vrot.slane %v3164, 2
        %v4293 = vrot.slane %v3167, 2
        %v4294 = vsel %vm1201, %v4292, %v4293
        %v4295 = vrot.slane %v3165, 2
        %v4296 = vrot.slane %v3168, 2
        %v4297 = vsel %vm1201, %v4295, %v4296
        %v4298 = vrot.slane %v3166, 2
        %v4299 = vrot.slane %v3169, 2
        %v4300 = vsel %vm1201, %v4298, %v4299
        %v4301 = vrot.slane %v3170, 2
        %v4302 = vsel %vm1201, %v4293, %v4301
        %v4303 = vrot.slane %v3171, 2
        %v4304 = vsel %vm1201, %v4296, %v4303
        %v4305 = vrot.slane %v3172, 2
        %v4306 = vsel %vm1201, %v4299, %v4305
        %4316 = vmatprep.subr.mxu0 %v4149
        %4317 = vmatpush1.msra.mxu0 %v4148
        %4318 = vmatprep.subr.mxu0 %v4152
        %4319 = vmatpush1.msra.mxu0 %v4151
        %4320 = vmatprep.subr.mxu0 %v4155
        %4321 = vmatpush1.msra.mxu0 %v4154
        %4322 = vmatprep.subr.mxu0 %v4158
        %4323 = vmatpush1.msra.mxu0 %v4157
        %4324 = vmatprep.subr.mxu0 %v4161
        %4325 = vmatpush1.msra.mxu0 %v4160
        %4326 = vmatprep.subr.mxu0 %v4164
        %4327 = vmatpush1.msra.mxu0 %v4163
        %4328 = vmatprep.subr.mxu0 %v4167
        %4329 = vmatpush1.msra.mxu0 %v4166
        %4330 = vmatprep.subr.mxu0 %v4170
        %4331 = vmatpush1.msra.mxu0 %v4169
        %4332 = vmatprep.subr.mxu0 %v4173
        %4333 = vmatpush1.msra.mxu0 %v4172
        %4334 = vmatprep.subr.mxu0 %v4176
        %4335 = vmatpush1.msra.mxu0 %v4175
        %4336 = vmatprep.subr.mxu0 %v4179
        %4337 = vmatpush1.msra.mxu0 %v4178
        %4338 = vmatprep.subr.mxu0 %v4182
        %4339 = vmatpush1.msra.mxu0 %v4181
        %4340 = vmatprep.subr.mxu0 %v4185
        %4341 = vmatpush1.msra.mxu0 %v4184
        %4342 = vmatprep.subr.mxu0 %v4188
        %4343 = vmatpush1.msra.mxu0 %v4187
        %4344 = vmatprep.subr.mxu0 %v4191
        %4345 = vmatpush1.msra.mxu0 %v4190
        %4346 = vmatprep.subr.mxu0 %v4194
        %4347 = vmatpush1.msra.mxu0 %v4193
        %4348 = vmatprep.subr.mxu0 %v4197
        %4349 = vmatpush1.msra.mxu0 %v4196
        %4350 = vmatprep.subr.mxu0 %v4200
        %4351 = vmatpush1.msra.mxu0 %v4199
        %4352 = vmatprep.subr.mxu0 %v4203
        %4353 = vmatpush1.msra.mxu0 %v4202
        %4354 = vmatprep.subr.mxu0 %v4206
        %4355 = vmatpush1.msra.mxu0 %v4205
        %4356 = vmatprep.subr.mxu0 %v4209
        %4357 = vmatpush1.msra.mxu0 %v4208
        %4358 = vmatprep.subr.mxu0 %v4212
        %4359 = vmatpush1.msra.mxu0 %v4211
        %4360 = vmatprep.subr.mxu0 %v4215
        %4361 = vmatpush1.msra.mxu0 %v4214
        %4362 = vmatprep.subr.mxu0 %v4218
        %4363 = vmatpush1.msra.mxu0 %v4217
        %4364 = vmatprep.subr.mxu0 %v4221
        %4365 = vmatpush1.msra.mxu0 %v4220
        %4366 = vmatprep.subr.mxu0 %v4224
        %4367 = vmatpush1.msra.mxu0 %v4223
        %4368 = vmatprep.subr.mxu0 %v4227
        %4369 = vmatpush1.msra.mxu0 %v4226
        %4370 = vmatprep.subr.mxu0 %v4230
        %4371 = vmatpush1.msra.mxu0 %v4229
        %4372 = vmatprep.subr.mxu0 %v4233
        %4373 = vmatpush1.msra.mxu0 %v4232
        %4374 = vmatprep.subr.mxu0 %v4236
        %4375 = vmatpush1.msra.mxu0 %v4235
        %4376 = vmatprep.subr.mxu0 %v4239
        %4377 = vmatpush1.msra.mxu0 %v4238
        %4378 = vmatprep.subr.mxu0 %v4242
        %4379 = vmatpush1.msra.mxu0 %v4241
        %4380 = vmatprep.mubr.f32.mxu0 %v4297
        %4381 = vmatmul.mubr.f32.gmra.mrb[0].mxu0 %v4294
        %v4382 = vpop.f32.mrb[0].mxu0
        %v4383 = vadd.f32 0.0, %v4382
        %v4384 = vpop.f32.mrb[0].mxu0
        %v4385 = vadd.f32 0.0, %v4384
        %4386 = vmatprep.mubr.f32.mxu0 %v4304
        %4387 = vmatmul.mubr.f32.gmra.mrb[0].mxu0 %v4302
        %v4388 = vpop.f32.mrb[0].mxu0
        %v4389 = vadd.f32 0.0, %v4388
        %v4390 = vpop.f32.mrb[0].mxu0
        %v4391 = vadd.f32 0.0, %v4390
        %4392 = vmatprep.mubr.f32.mxu0 %v4303
        %4393 = vmatmul.mubr.f32.gmra.mrb[0].mxu0 %v4301
        %v4394 = vpop.f32.mrb[0].mxu0
        %v4395 = vadd.f32 0.0, %v4394
        %v4396 = vpop.f32.mrb[0].mxu0
        %v4397 = vadd.f32 0.0, %v4396
        %4398 = vdwg.mxu0
        %4399 = vmatprep.subr.mxu0 %v4245
        %4400 = vmatpush1.msra.mxu0 %v4244
        %4401 = vmatprep.subr.mxu0 %v4248
        %4402 = vmatpush1.msra.mxu0 %v4247
        %4403 = vmatprep.subr.mxu0 %v4251
        %4404 = vmatpush1.msra.mxu0 %v4250
        %4405 = vmatprep.subr.mxu0 %v4254
        %4406 = vmatpush1.msra.mxu0 %v4253
        %4407 = vmatprep.subr.mxu0 %v4257
        %4408 = vmatpush1.msra.mxu0 %v4256
        %4409 = vmatprep.subr.mxu0 %v4260
        %4410 = vmatpush1.msra.mxu0 %v4259
        %4411 = vmatprep.subr.mxu0 %v4263
        %4412 = vmatpush1.msra.mxu0 %v4262
        %4413 = vmatprep.subr.mxu0 %v4266
        %4414 = vmatpush1.msra.mxu0 %v4265
        %4415 = vmatprep.subr.mxu0 %v4269
        %4416 = vmatpush1.msra.mxu0 %v4268
        %4417 = vmatprep.subr.mxu0 %v4272
        %4418 = vmatpush1.msra.mxu0 %v4271
        %4419 = vmatprep.subr.mxu0 %v4275
        %4420 = vmatpush1.msra.mxu0 %v4274
        %4421 = vmatprep.subr.mxu0 %v4278
        %4422 = vmatpush1.msra.mxu0 %v4277
        %4423 = vmatprep.subr.mxu0 %v4281
        %4424 = vmatpush1.msra.mxu0 %v4280
        %4425 = vmatprep.subr.mxu0 %v4284
        %4426 = vmatpush1.msra.mxu0 %v4283
        %4427 = vmatprep.subr.mxu0 %v4287
        %4428 = vmatpush1.msra.mxu0 %v4286
        %4429 = vmatprep.subr.mxu0 %v4290
        %4430 = vmatpush1.msra.mxu0 %v4289
        %4431 = vmatprep.subr.mxu0 0.0
        %4432 = vmatpush1.msra.mxu0 0.0
        %4433 = vmatprep.subr.mxu0 0.0
        %4434 = vmatpush1.msra.mxu0 0.0
        %4435 = vmatprep.subr.mxu0 0.0
        %4436 = vmatpush1.msra.mxu0 0.0
        %4437 = vmatprep.subr.mxu0 0.0
        %4438 = vmatpush1.msra.mxu0 0.0
        %4439 = vmatprep.subr.mxu0 0.0
        %4440 = vmatpush1.msra.mxu0 0.0
        %4441 = vmatprep.subr.mxu0 0.0
        %4442 = vmatpush1.msra.mxu0 0.0
        %4443 = vmatprep.subr.mxu0 0.0
        %4444 = vmatpush1.msra.mxu0 0.0
        %4445 = vmatprep.subr.mxu0 0.0
        %4446 = vmatpush1.msra.mxu0 0.0
        %4447 = vmatprep.subr.mxu0 0.0
        %4448 = vmatpush1.msra.mxu0 0.0
        %4449 = vmatprep.subr.mxu0 0.0
        %4450 = vmatpush1.msra.mxu0 0.0
        %4451 = vmatprep.subr.mxu0 0.0
        %4452 = vmatpush1.msra.mxu0 0.0
        %4453 = vmatprep.subr.mxu0 0.0
        %4454 = vmatpush1.msra.mxu0 0.0
        %4455 = vmatprep.subr.mxu0 0.0
        %4456 = vmatpush1.msra.mxu0 0.0
        %4457 = vmatprep.subr.mxu0 0.0
        %4458 = vmatpush1.msra.mxu0 0.0
        %4459 = vmatprep.subr.mxu0 0.0
        %4460 = vmatpush1.msra.mxu0 0.0
        %4461 = vmatprep.subr.mxu0 0.0
        %4462 = vmatpush1.msra.mxu0 0.0
        %4463 = vmatprep.mubr.f32.mxu0 0.0
        %4464 = vmatmul.mubr.f32.gmra.mrb[0].mxu0 %v4300
        %v4465 = vpop.f32.mrb[0].mxu0
        %v4466 = vadd.f32 %v4383, %v4465
        %v4467 = vpop.f32.mrb[0].mxu0
        %v4468 = vadd.f32 %v4385, %v4467
        %4469 = vmatprep.mubr.f32.mxu0 0.0
        %4470 = vmatmul.mubr.f32.gmra.mrb[0].mxu0 %v4306
        %v4471 = vpop.f32.mrb[0].mxu0
        %v4472 = vadd.f32 %v4389, %v4471
        %v4473 = vpop.f32.mrb[0].mxu0
        %v4474 = vadd.f32 %v4391, %v4473
        %4475 = vmatprep.mubr.f32.mxu0 0.0
        %4476 = vmatmul.mubr.f32.gmra.mrb[0].mxu0 %v4305
        %v4477 = vpop.f32.mrb[0].mxu0
        %v4478 = vadd.f32 %v4395, %v4477
        %v4479 = vpop.f32.mrb[0].mxu0
        %v4480 = vadd.f32 %v4397, %v4479
        %4481 = vdwg.mxu0
        %4482 = vmatprep.subr.mxu0 0.0
        %4483 = vmatpush1.msra.mxu0 %v4150
        %4484 = vmatprep.subr.mxu0 0.0
        %4485 = vmatpush1.msra.mxu0 %v4153
        %4486 = vmatprep.subr.mxu0 0.0
        %4487 = vmatpush1.msra.mxu0 %v4156
        %4488 = vmatprep.subr.mxu0 0.0
        %4489 = vmatpush1.msra.mxu0 %v4159
        %4490 = vmatprep.subr.mxu0 0.0
        %4491 = vmatpush1.msra.mxu0 %v4162
        %4492 = vmatprep.subr.mxu0 0.0
        %4493 = vmatpush1.msra.mxu0 %v4165
        %4494 = vmatprep.subr.mxu0 0.0
        %4495 = vmatpush1.msra.mxu0 %v4168
        %4496 = vmatprep.subr.mxu0 0.0
        %4497 = vmatpush1.msra.mxu0 %v4171
        %4498 = vmatprep.subr.mxu0 0.0
        %4499 = vmatpush1.msra.mxu0 %v4174
        %4500 = vmatprep.subr.mxu0 0.0
        %4501 = vmatpush1.msra.mxu0 %v4177
        %4502 = vmatprep.subr.mxu0 0.0
        %4503 = vmatpush1.msra.mxu0 %v4180
        %4504 = vmatprep.subr.mxu0 0.0
        %4505 = vmatpush1.msra.mxu0 %v4183
        %4506 = vmatprep.subr.mxu0 0.0
        %4507 = vmatpush1.msra.mxu0 %v4186
        %4508 = vmatprep.subr.mxu0 0.0
        %4509 = vmatpush1.msra.mxu0 %v4189
        %4510 = vmatprep.subr.mxu0 0.0
        %4511 = vmatpush1.msra.mxu0 %v4192
        %4512 = vmatprep.subr.mxu0 0.0
        %4513 = vmatpush1.msra.mxu0 %v4195
        %4514 = vmatprep.subr.mxu0 0.0
        %4515 = vmatpush1.msra.mxu0 %v4198
        %4516 = vmatprep.subr.mxu0 0.0
        %4517 = vmatpush1.msra.mxu0 %v4201
        %4518 = vmatprep.subr.mxu0 0.0
        %4519 = vmatpush1.msra.mxu0 %v4204
        %4520 = vmatprep.subr.mxu0 0.0
        %4521 = vmatpush1.msra.mxu0 %v4207
        %4522 = vmatprep.subr.mxu0 0.0
        %4523 = vmatpush1.msra.mxu0 %v4210
        %4524 = vmatprep.subr.mxu0 0.0
        %4525 = vmatpush1.msra.mxu0 %v4213
        %4526 = vmatprep.subr.mxu0 0.0
        %4527 = vmatpush1.msra.mxu0 %v4216
        %4528 = vmatprep.subr.mxu0 0.0
        %4529 = vmatpush1.msra.mxu0 %v4219
        %4530 = vmatprep.subr.mxu0 0.0
        %4531 = vmatpush1.msra.mxu0 %v4222
        %4532 = vmatprep.subr.mxu0 0.0
        %4533 = vmatpush1.msra.mxu0 %v4225
        %4534 = vmatprep.subr.mxu0 0.0
        %4535 = vmatpush1.msra.mxu0 %v4228
        %4536 = vmatprep.subr.mxu0 0.0
        %4537 = vmatpush1.msra.mxu0 %v4231
        %4538 = vmatprep.subr.mxu0 0.0
        %4539 = vmatpush1.msra.mxu0 %v4234
        %4540 = vmatprep.subr.mxu0 0.0
        %4541 = vmatpush1.msra.mxu0 %v4237
        %4542 = vmatprep.subr.mxu0 0.0
        %4543 = vmatpush1.msra.mxu0 %v4240
        %4544 = vmatprep.subr.mxu0 0.0
        %4545 = vmatpush1.msra.mxu0 %v4243
        %4546 = vmatprep.mubr.f32.mxu0 %v4297
        %4547 = vmatmul.mubr.f32.gmra.mrb[0].mxu0 %v4294
        %v4548 = vpop.f32.mrb[0].mxu0
        %v4549 = vadd.f32 0.0, %v4548
        %v4550 = vpop.f32.mrb[0].mxu0
        %4551 = vmatprep.mubr.f32.mxu0 %v4304
        %4552 = vmatmul.mubr.f32.gmra.mrb[0].mxu0 %v4302
        %v4553 = vpop.f32.mrb[0].mxu0
        %v4554 = vadd.f32 0.0, %v4553
        %v4555 = vpop.f32.mrb[0].mxu0
        %4556 = vmatprep.mubr.f32.mxu0 %v4303
        %4557 = vmatmul.mubr.f32.gmra.mrb[0].mxu0 %v4301
        %v4558 = vpop.f32.mrb[0].mxu0
        %v4559 = vadd.f32 0.0, %v4558
        %v4560 = vpop.f32.mrb[0].mxu0
        %4561 = vdwg.mxu0
        %4562 = vmatprep.subr.mxu0 0.0
        %4563 = vmatpush1.msra.mxu0 %v4246
        %4564 = vmatprep.subr.mxu0 0.0
        %4565 = vmatpush1.msra.mxu0 %v4249
        %4566 = vmatprep.subr.mxu0 0.0
        %4567 = vmatpush1.msra.mxu0 %v4252
        %4568 = vmatprep.subr.mxu0 0.0
        %4569 = vmatpush1.msra.mxu0 %v4255
        %4570 = vmatprep.subr.mxu0 0.0
        %4571 = vmatpush1.msra.mxu0 %v4258
        %4572 = vmatprep.subr.mxu0 0.0
        %4573 = vmatpush1.msra.mxu0 %v4261
        %4574 = vmatprep.subr.mxu0 0.0
        %4575 = vmatpush1.msra.mxu0 %v4264
        %4576 = vmatprep.subr.mxu0 0.0
        %4577 = vmatpush1.msra.mxu0 %v4267
        %4578 = vmatprep.subr.mxu0 0.0
        %4579 = vmatpush1.msra.mxu0 %v4270
        %4580 = vmatprep.subr.mxu0 0.0
        %4581 = vmatpush1.msra.mxu0 %v4273
        %4582 = vmatprep.subr.mxu0 0.0
        %4583 = vmatpush1.msra.mxu0 %v4276
        %4584 = vmatprep.subr.mxu0 0.0
        %4585 = vmatpush1.msra.mxu0 %v4279
        %4586 = vmatprep.subr.mxu0 0.0
        %4587 = vmatpush1.msra.mxu0 %v4282
        %4588 = vmatprep.subr.mxu0 0.0
        %4589 = vmatpush1.msra.mxu0 %v4285
        %4590 = vmatprep.subr.mxu0 0.0
        %4591 = vmatpush1.msra.mxu0 %v4288
        %4592 = vmatprep.subr.mxu0 0.0
        %4593 = vmatpush1.msra.mxu0 %v4291
        %4594 = vmatprep.subr.mxu0 0.0
        %4595 = vmatpush1.msra.mxu0 0.0
        %4596 = vmatprep.subr.mxu0 0.0
        %4597 = vmatpush1.msra.mxu0 0.0
        %4598 = vmatprep.subr.mxu0 0.0
        %4599 = vmatpush1.msra.mxu0 0.0
        %4600 = vmatprep.subr.mxu0 0.0
        %4601 = vmatpush1.msra.mxu0 0.0
        %4602 = vmatprep.subr.mxu0 0.0
        %4603 = vmatpush1.msra.mxu0 0.0
        %4604 = vmatprep.subr.mxu0 0.0
        %4605 = vmatpush1.msra.mxu0 0.0
        %4606 = vmatprep.subr.mxu0 0.0
        %4607 = vmatpush1.msra.mxu0 0.0
        %4608 = vmatprep.subr.mxu0 0.0
        %4609 = vmatpush1.msra.mxu0 0.0
        %4610 = vmatprep.subr.mxu0 0.0
        %4611 = vmatpush1.msra.mxu0 0.0
        %4612 = vmatprep.subr.mxu0 0.0
        %4613 = vmatpush1.msra.mxu0 0.0
        %4614 = vmatprep.subr.mxu0 0.0
        %4615 = vmatpush1.msra.mxu0 0.0
        %4616 = vmatprep.subr.mxu0 0.0
        %4617 = vmatpush1.msra.mxu0 0.0
        %4618 = vmatprep.subr.mxu0 0.0
        %4619 = vmatpush1.msra.mxu0 0.0
        %4620 = vmatprep.subr.mxu0 0.0
        %4621 = vmatpush1.msra.mxu0 0.0
        %4622 = vmatprep.subr.mxu0 0.0
        %4623 = vmatpush1.msra.mxu0 0.0
        %4624 = vmatprep.subr.mxu0 0.0
        %4625 = vmatpush1.msra.mxu0 0.0
        %4626 = vmatprep.mubr.f32.mxu0 0.0
        %4627 = vmatmul.mubr.f32.gmra.mrb[0].mxu0 %v4300
        %v4628 = vpop.f32.mrb[0].mxu0
        %v4629 = vadd.f32 %v4549, %v4628
        %v4630 = vpop.f32.mrb[0].mxu0
        %4631 = vmatprep.mubr.f32.mxu0 0.0
        %4632 = vmatmul.mubr.f32.gmra.mrb[0].mxu0 %v4306
        %v4633 = vpop.f32.mrb[0].mxu0
        %v4634 = vadd.f32 %v4554, %v4633
        %v4635 = vpop.f32.mrb[0].mxu0
        %4636 = vmatprep.mubr.f32.mxu0 0.0
        %4637 = vmatmul.mubr.f32.gmra.mrb[0].mxu0 %v4305
        %v4638 = vpop.f32.mrb[0].mxu0
        %v4639 = vadd.f32 %v4559, %v4638
        %v4640 = vpop.f32.mrb[0].mxu0
        %4641 = vdwg.mxu0
        %v4642 = vadd.f32 %v3971, %v4466
        %v4643 = vadd.f32 %v3973, %v4468
        %v4644 = vadd.f32 %v4134, %v4629
        %v4645 = vadd.f32 %v3977, %v4472
        %v4646 = vadd.f32 %v3979, %v4474
        %v4647 = vadd.f32 %v4139, %v4634
        %v4648 = vadd.f32 %v3983, %v4478
        %v4649 = vadd.f32 %v3985, %v4480
        %v4650 = vadd.f32 %v4144, %v4639
        %v4651 = vld [vmem:[%s9] sm:$0x7]
        %v4653 = vlaneseq
        %v4654 = vshrl.u32 %v4653, 7
        %v4655 = vsub.s32 0, %v4654
        %v4656 = vrot.slane %v4651, %v4655
        %v4657 = vlaneseq
        %v4658 = vshrl.u32 %v4657, 7
        %v4659 = vsub.s32 1, %v4658
        %v4660 = vrot.slane %v4651, %v4659
        %v4661 = vlaneseq
        %v4662 = vshrl.u32 %v4661, 7
        %v4663 = vsub.s32 2, %v4662
        %v4664 = vrot.slane %v4651, %v4663
        %v4668 = vadd.f32 %v4642, %v4656
        %v4669 = vadd.f32 %v4643, %v4660
        %v4670 = vadd.f32 %v4644, %v4664
        %v4671 = vadd.f32 %v4645, %v4656
        %v4672 = vadd.f32 %v4646, %v4660
        %v4673 = vadd.f32 %v4647, %v4664
        %v4674 = vadd.f32 %v4648, %v4656
        %v4675 = vadd.f32 %v4649, %v4660
        %v4676 = vadd.f32 %v4650, %v4664
        %v4677 = vld [vmem:[#allocation5] sm:$0xff]
        %v4678 = vld [vmem:[#allocation5 + $0x8] sm:$0xff]
        %v4679 = vld [vmem:[#allocation5 + $0x10] sm:$0xff]
        %v4680 = vld [vmem:[#allocation5 + $0x18] sm:$0xff]
        %v4681 = vld [vmem:[#allocation5 + $0x20] sm:$0xff]
        %v4682 = vld [vmem:[#allocation5 + $0x28] sm:$0xff]
        %v4683 = vld [vmem:[#allocation5 + $0x30] sm:$0xff]
        %v4684 = vld [vmem:[#allocation5 + $0x38] sm:$0xff]
        %v4685 = vld [vmem:[#allocation5 + $0x40] sm:$0xff]
        %v4686 = vld [vmem:[#allocation5 + $0x48] sm:$0xff]
        %v4687 = vld [vmem:[#allocation5 + $0x50] sm:$0xff]
        %v4688 = vld [vmem:[#allocation5 + $0x58] sm:$0xff]
        %v4689 = vld [vmem:[#allocation5 + $0x60] sm:$0xff]
        %v4690 = vld [vmem:[#allocation5 + $0x68] sm:$0xff]
        %v4691 = vld [vmem:[#allocation5 + $0x70] sm:$0xff]
        %v4692 = vld [vmem:[#allocation5 + $0x78] sm:$0xff]
        %v4693 = vld [vmem:[#allocation5 + $0x80] sm:$0xff]
        %v4694 = vld [vmem:[#allocation5 + $0x88] sm:$0xff]
        %v4695 = vld [vmem:[#allocation5 + $0x90] sm:$0xff]
        %v4696 = vld [vmem:[#allocation5 + $0x98] sm:$0xff]
        %v4697 = vld [vmem:[#allocation5 + $0xa0] sm:$0xff]
        %v4698 = vld [vmem:[#allocation5 + $0xa8] sm:$0xff]
        %v4699 = vld [vmem:[#allocation5 + $0xb0] sm:$0xff]
        %v4700 = vld [vmem:[#allocation5 + $0xb8] sm:$0xff]
        %v4701 = vld [vmem:[#allocation5 + $0xc0] sm:$0xff]
        %v4702 = vld [vmem:[#allocation5 + $0xc8] sm:$0xff]
        %v4703 = vld [vmem:[#allocation5 + $0xd0] sm:$0xff]
        %v4704 = vld [vmem:[#allocation5 + $0xd8] sm:$0xff]
        %v4705 = vld [vmem:[#allocation5 + $0xe0] sm:$0xff]
        %v4706 = vld [vmem:[#allocation5 + $0xe8] sm:$0xff]
        %v4707 = vld [vmem:[#allocation5 + $0xf0] sm:$0xff]
        %v4708 = vld [vmem:[#allocation5 + $0xf8] sm:$0xff]
        %v4709 = vld [vmem:[#allocation5 + $0x100] sm:$0xff]
        %v4710 = vld [vmem:[#allocation5 + $0x108] sm:$0xff]
        %v4711 = vld [vmem:[#allocation5 + $0x110] sm:$0xff]
        %v4712 = vld [vmem:[#allocation5 + $0x118] sm:$0xff]
        %v4713 = vld [vmem:[#allocation5 + $0x120] sm:$0xff]
        %v4714 = vld [vmem:[#allocation5 + $0x128] sm:$0xff]
        %v4715 = vld [vmem:[#allocation5 + $0x130] sm:$0xff]
        %v4716 = vld [vmem:[#allocation5 + $0x138] sm:$0xff]
        %v4717 = vld [vmem:[#allocation5 + $0x140] sm:$0xff]
        %v4718 = vld [vmem:[#allocation5 + $0x148] sm:$0xff]
        %v4719 = vld [vmem:[#allocation5 + $0x150] sm:$0xff]
        %v4720 = vld [vmem:[#allocation5 + $0x158] sm:$0xff]
        %v4721 = vld [vmem:[#allocation5 + $0x160] sm:$0xff]
        %v4722 = vld [vmem:[#allocation5 + $0x168] sm:$0xff]
        %v4723 = vld [vmem:[#allocation5 + $0x170] sm:$0xff]
        %v4724 = vld [vmem:[#allocation5 + $0x178] sm:$0xff]
        %v4725 = vld [vmem:[#allocation5 + $0x180] sm:$0xff]
        %v4726 = vld [vmem:[#allocation5 + $0x188] sm:$0xff]
        %v4727 = vld [vmem:[#allocation5 + $0x190] sm:$0xff]
        %v4728 = vld [vmem:[#allocation5 + $0x198] sm:$0xff]
        %v4729 = vld [vmem:[#allocation5 + $0x1a0] sm:$0xff]
        %v4730 = vld [vmem:[#allocation5 + $0x1a8] sm:$0xff]
        %v4731 = vld [vmem:[#allocation5 + $0x1b0] sm:$0xff]
        %v4732 = vld [vmem:[#allocation5 + $0x1b8] sm:$0xff]
        %v4733 = vld [vmem:[#allocation5 + $0x1c0] sm:$0xff]
        %v4734 = vld [vmem:[#allocation5 + $0x1c8] sm:$0xff]
        %v4735 = vld [vmem:[#allocation5 + $0x1d0] sm:$0xff]
        %v4736 = vld [vmem:[#allocation5 + $0x1d8] sm:$0xff]
        %v4737 = vld [vmem:[#allocation5 + $0x1e0] sm:$0xff]
        %v4738 = vld [vmem:[#allocation5 + $0x1e8] sm:$0xff]
        %v4739 = vld [vmem:[#allocation5 + $0x1f0] sm:$0xff]
        %v4740 = vld [vmem:[#allocation5 + $0x1f8] sm:$0xff]
        %v4741 = vld [vmem:[#allocation5 + $0x200] sm:$0xff]
        %v4742 = vld [vmem:[#allocation5 + $0x208] sm:$0xff]
        %v4743 = vld [vmem:[#allocation5 + $0x210] sm:$0xff]
        %v4744 = vld [vmem:[#allocation5 + $0x218] sm:$0xff]
        %v4745 = vld [vmem:[#allocation5 + $0x220] sm:$0xff]
        %v4746 = vld [vmem:[#allocation5 + $0x228] sm:$0xff]
        %v4747 = vld [vmem:[#allocation5 + $0x230] sm:$0xff]
        %v4748 = vld [vmem:[#allocation5 + $0x238] sm:$0xff]
        %v4749 = vld [vmem:[#allocation5 + $0x240] sm:$0xff]
        %v4750 = vld [vmem:[#allocation5 + $0x248] sm:$0xff]
        %v4751 = vld [vmem:[#allocation5 + $0x250] sm:$0xff]
        %v4752 = vld [vmem:[#allocation5 + $0x258] sm:$0xff]
        %v4753 = vld [vmem:[#allocation5 + $0x260] sm:$0xff]
        %v4754 = vld [vmem:[#allocation5 + $0x268] sm:$0xff]
        %v4755 = vld [vmem:[#allocation5 + $0x270] sm:$0xff]
        %v4756 = vld [vmem:[#allocation5 + $0x278] sm:$0xff]
        %v4757 = vld [vmem:[#allocation5 + $0x280] sm:$0xff]
        %v4758 = vld [vmem:[#allocation5 + $0x288] sm:$0xff]
        %v4759 = vld [vmem:[#allocation5 + $0x290] sm:$0xff]
        %v4760 = vld [vmem:[#allocation5 + $0x298] sm:$0xff]
        %v4761 = vld [vmem:[#allocation5 + $0x2a0] sm:$0xff]
        %v4762 = vld [vmem:[#allocation5 + $0x2a8] sm:$0xff]
        %v4763 = vld [vmem:[#allocation5 + $0x2b0] sm:$0xff]
        %v4764 = vld [vmem:[#allocation5 + $0x2b8] sm:$0xff]
        %v4765 = vld [vmem:[#allocation5 + $0x2c0] sm:$0xff]
        %v4766 = vld [vmem:[#allocation5 + $0x2c8] sm:$0xff]
        %v4767 = vld [vmem:[#allocation5 + $0x2d0] sm:$0xff]
        %v4768 = vld [vmem:[#allocation5 + $0x2d8] sm:$0xff]
        %v4769 = vld [vmem:[#allocation5 + $0x2e0] sm:$0xff]
        %v4770 = vld [vmem:[#allocation5 + $0x2e8] sm:$0xff]
        %v4771 = vld [vmem:[#allocation5 + $0x2f0] sm:$0xff]
        %v4772 = vld [vmem:[#allocation5 + $0x2f8] sm:$0xff]
        %v4773 = vld [vmem:[#allocation5 + $0x300] sm:$0xff]
        %v4774 = vld [vmem:[#allocation5 + $0x308] sm:$0xff]
        %v4775 = vld [vmem:[#allocation5 + $0x310] sm:$0xff]
        %v4776 = vld [vmem:[#allocation5 + $0x318] sm:$0xff]
        %v4777 = vld [vmem:[#allocation5 + $0x320] sm:$0xff]
        %v4778 = vld [vmem:[#allocation5 + $0x328] sm:$0xff]
        %v4779 = vld [vmem:[#allocation5 + $0x330] sm:$0xff]
        %v4780 = vld [vmem:[#allocation5 + $0x338] sm:$0xff]
        %v4781 = vld [vmem:[#allocation5 + $0x340] sm:$0xff]
        %v4782 = vld [vmem:[#allocation5 + $0x348] sm:$0xff]
        %v4783 = vld [vmem:[#allocation5 + $0x350] sm:$0xff]
        %v4784 = vld [vmem:[#allocation5 + $0x358] sm:$0xff]
        %v4785 = vld [vmem:[#allocation5 + $0x360] sm:$0xff]
        %v4786 = vld [vmem:[#allocation5 + $0x368] sm:$0xff]
        %v4787 = vld [vmem:[#allocation5 + $0x370] sm:$0xff]
        %v4788 = vld [vmem:[#allocation5 + $0x378] sm:$0xff]
        %v4789 = vld [vmem:[#allocation5 + $0x380] sm:$0xff]
        %v4790 = vld [vmem:[#allocation5 + $0x388] sm:$0xff]
        %v4791 = vld [vmem:[#allocation5 + $0x390] sm:$0xff]
        %v4792 = vld [vmem:[#allocation5 + $0x398] sm:$0xff]
        %v4793 = vld [vmem:[#allocation5 + $0x3a0] sm:$0xff]
        %v4794 = vld [vmem:[#allocation5 + $0x3a8] sm:$0xff]
        %v4795 = vld [vmem:[#allocation5 + $0x3b0] sm:$0xff]
        %v4796 = vld [vmem:[#allocation5 + $0x3b8] sm:$0xff]
        %v4797 = vld [vmem:[#allocation5 + $0x3c0] sm:$0xff]
        %v4798 = vld [vmem:[#allocation5 + $0x3c8] sm:$0xff]
        %v4799 = vld [vmem:[#allocation5 + $0x3d0] sm:$0xff]
        %v4800 = vld [vmem:[#allocation5 + $0x3d8] sm:$0xff]
        %v4801 = vld [vmem:[#allocation5 + $0x3e0] sm:$0xff]
        %v4802 = vld [vmem:[#allocation5 + $0x3e8] sm:$0xff]
        %v4803 = vld [vmem:[#allocation5 + $0x3f0] sm:$0xff]
        %v4804 = vld [vmem:[#allocation5 + $0x3f8] sm:$0xff]
        %v4805 = vld [vmem:[#allocation5 + $0x400] sm:$0xff]
        %v4806 = vld [vmem:[#allocation5 + $0x408] sm:$0xff]
        %v4807 = vld [vmem:[#allocation5 + $0x410] sm:$0xff]
        %v4808 = vld [vmem:[#allocation5 + $0x418] sm:$0xff]
        %v4809 = vld [vmem:[#allocation5 + $0x420] sm:$0xff]
        %v4810 = vld [vmem:[#allocation5 + $0x428] sm:$0xff]
        %v4811 = vld [vmem:[#allocation5 + $0x430] sm:$0xff]
        %v4812 = vld [vmem:[#allocation5 + $0x438] sm:$0xff]
        %v4813 = vld [vmem:[#allocation5 + $0x440] sm:$0xff]
        %v4814 = vld [vmem:[#allocation5 + $0x448] sm:$0xff]
        %v4815 = vld [vmem:[#allocation5 + $0x450] sm:$0xff]
        %v4816 = vld [vmem:[#allocation5 + $0x458] sm:$0xff]
        %v4817 = vld [vmem:[#allocation5 + $0x460] sm:$0xff]
        %v4818 = vld [vmem:[#allocation5 + $0x468] sm:$0xff]
        %v4819 = vld [vmem:[#allocation5 + $0x470] sm:$0xff]
        %v4820 = vld [vmem:[#allocation5 + $0x478] sm:$0xff]
        %s4821 = scalar_lea.vmem [#allocation5], 1152
        %v4822 = vld [vmem:[%s4821] sm:$0xff]
        %v4823 = vld [vmem:[%s4821 + $0x8] sm:$0xff]
        %v4824 = vld [vmem:[%s4821 + $0x10] sm:$0xff]
        %v4825 = vld [vmem:[%s4821 + $0x18] sm:$0xff]
        %v4826 = vld [vmem:[%s4821 + $0x20] sm:$0xff]
        %v4827 = vld [vmem:[%s4821 + $0x28] sm:$0xff]
        %v4828 = vld [vmem:[%s4821 + $0x30] sm:$0xff]
        %v4829 = vld [vmem:[%s4821 + $0x38] sm:$0xff]
        %v4830 = vld [vmem:[%s4821 + $0x40] sm:$0xff]
        %v4831 = vld [vmem:[%s4821 + $0x48] sm:$0xff]
        %v4832 = vld [vmem:[%s4821 + $0x50] sm:$0xff]
        %v4833 = vld [vmem:[%s4821 + $0x58] sm:$0xff]
        %v4834 = vld [vmem:[%s4821 + $0x60] sm:$0xff]
        %v4835 = vld [vmem:[%s4821 + $0x68] sm:$0xff]
        %v4836 = vld [vmem:[%s4821 + $0x70] sm:$0xff]
        %v4837 = vld [vmem:[%s4821 + $0x78] sm:$0xff]
        %v4838 = vld [vmem:[%s4821 + $0x80] sm:$0xff]
        %v4839 = vld [vmem:[%s4821 + $0x88] sm:$0xff]
        %v4840 = vld [vmem:[%s4821 + $0x90] sm:$0xff]
        %v4841 = vld [vmem:[%s4821 + $0x98] sm:$0xff]
        %v4842 = vld [vmem:[%s4821 + $0xa0] sm:$0xff]
        %v4843 = vld [vmem:[%s4821 + $0xa8] sm:$0xff]
        %v4844 = vld [vmem:[%s4821 + $0xb0] sm:$0xff]
        %v4845 = vld [vmem:[%s4821 + $0xb8] sm:$0xff]
        %v4846 = vld [vmem:[%s4821 + $0xc0] sm:$0xff]
        %v4847 = vld [vmem:[%s4821 + $0xc8] sm:$0xff]
        %v4848 = vld [vmem:[%s4821 + $0xd0] sm:$0xff]
        %v4849 = vld [vmem:[%s4821 + $0xd8] sm:$0xff]
        %v4850 = vld [vmem:[%s4821 + $0xe0] sm:$0xff]
        %v4851 = vld [vmem:[%s4821 + $0xe8] sm:$0xff]
        %v4852 = vld [vmem:[%s4821 + $0xf0] sm:$0xff]
        %v4853 = vld [vmem:[%s4821 + $0xf8] sm:$0xff]
        %v4854 = vld [vmem:[%s4821 + $0x100] sm:$0xff]
        %v4855 = vld [vmem:[%s4821 + $0x108] sm:$0xff]
        %v4856 = vld [vmem:[%s4821 + $0x110] sm:$0xff]
        %v4857 = vld [vmem:[%s4821 + $0x118] sm:$0xff]
        %v4858 = vld [vmem:[%s4821 + $0x120] sm:$0xff]
        %v4859 = vld [vmem:[%s4821 + $0x128] sm:$0xff]
        %v4860 = vld [vmem:[%s4821 + $0x130] sm:$0xff]
        %v4861 = vld [vmem:[%s4821 + $0x138] sm:$0xff]
        %v4862 = vld [vmem:[%s4821 + $0x140] sm:$0xff]
        %v4863 = vld [vmem:[%s4821 + $0x148] sm:$0xff]
        %v4864 = vld [vmem:[%s4821 + $0x150] sm:$0xff]
        %v4865 = vld [vmem:[%s4821 + $0x158] sm:$0xff]
        %v4866 = vld [vmem:[%s4821 + $0x160] sm:$0xff]
        %v4867 = vld [vmem:[%s4821 + $0x168] sm:$0xff]
        %v4868 = vld [vmem:[%s4821 + $0x170] sm:$0xff]
        %v4869 = vld [vmem:[%s4821 + $0x178] sm:$0xff]
        %v4870 = vld [vmem:[%s4821 + $0x180] sm:$0xff]
        %v4871 = vld [vmem:[%s4821 + $0x188] sm:$0xff]
        %v4872 = vld [vmem:[%s4821 + $0x190] sm:$0xff]
        %v4873 = vld [vmem:[%s4821 + $0x198] sm:$0xff]
        %v4874 = vld [vmem:[%s4821 + $0x1a0] sm:$0xff]
        %v4875 = vld [vmem:[%s4821 + $0x1a8] sm:$0xff]
        %v4876 = vld [vmem:[%s4821 + $0x1b0] sm:$0xff]
        %v4877 = vld [vmem:[%s4821 + $0x1b8] sm:$0xff]
        %v4878 = vld [vmem:[%s4821 + $0x1c0] sm:$0xff]
        %v4879 = vld [vmem:[%s4821 + $0x1c8] sm:$0xff]
        %v4880 = vld [vmem:[%s4821 + $0x1d0] sm:$0xff]
        %v4881 = vld [vmem:[%s4821 + $0x1d8] sm:$0xff]
        %v4882 = vld [vmem:[%s4821 + $0x1e0] sm:$0xff]
        %v4883 = vld [vmem:[%s4821 + $0x1e8] sm:$0xff]
        %v4884 = vld [vmem:[%s4821 + $0x1f0] sm:$0xff]
        %v4885 = vld [vmem:[%s4821 + $0x1f8] sm:$0xff]
        %v4886 = vld [vmem:[%s4821 + $0x200] sm:$0xff]
        %v4887 = vld [vmem:[%s4821 + $0x208] sm:$0xff]
        %v4888 = vld [vmem:[%s4821 + $0x210] sm:$0xff]
        %v4889 = vld [vmem:[%s4821 + $0x218] sm:$0xff]
        %v4890 = vld [vmem:[%s4821 + $0x220] sm:$0xff]
        %v4891 = vld [vmem:[%s4821 + $0x228] sm:$0xff]
        %v4892 = vld [vmem:[%s4821 + $0x230] sm:$0xff]
        %v4893 = vld [vmem:[%s4821 + $0x238] sm:$0xff]
        %v4894 = vld [vmem:[%s4821 + $0x240] sm:$0xff]
        %v4895 = vld [vmem:[%s4821 + $0x248] sm:$0xff]
        %v4896 = vld [vmem:[%s4821 + $0x250] sm:$0xff]
        %v4897 = vld [vmem:[%s4821 + $0x258] sm:$0xff]
        %v4898 = vld [vmem:[%s4821 + $0x260] sm:$0xff]
        %v4899 = vld [vmem:[%s4821 + $0x268] sm:$0xff]
        %v4900 = vld [vmem:[%s4821 + $0x270] sm:$0xff]
        %v4901 = vld [vmem:[%s4821 + $0x278] sm:$0xff]
        %v4902 = vld [vmem:[%s4821 + $0x280] sm:$0xff]
        %v4903 = vld [vmem:[%s4821 + $0x288] sm:$0xff]
        %v4904 = vld [vmem:[%s4821 + $0x290] sm:$0xff]
        %v4905 = vld [vmem:[%s4821 + $0x298] sm:$0xff]
        %v4906 = vld [vmem:[%s4821 + $0x2a0] sm:$0xff]
        %v4907 = vld [vmem:[%s4821 + $0x2a8] sm:$0xff]
        %v4908 = vld [vmem:[%s4821 + $0x2b0] sm:$0xff]
        %v4909 = vld [vmem:[%s4821 + $0x2b8] sm:$0xff]
        %v4910 = vld [vmem:[%s4821 + $0x2c0] sm:$0xff]
        %v4911 = vld [vmem:[%s4821 + $0x2c8] sm:$0xff]
        %v4912 = vld [vmem:[%s4821 + $0x2d0] sm:$0xff]
        %v4913 = vld [vmem:[%s4821 + $0x2d8] sm:$0xff]
        %v4914 = vld [vmem:[%s4821 + $0x2e0] sm:$0xff]
        %v4915 = vld [vmem:[%s4821 + $0x2e8] sm:$0xff]
        %v4916 = vld [vmem:[%s4821 + $0x2f0] sm:$0xff]
        %v4917 = vld [vmem:[%s4821 + $0x2f8] sm:$0xff]
        %v4918 = vld [vmem:[%s4821 + $0x300] sm:$0xff]
        %v4919 = vld [vmem:[%s4821 + $0x308] sm:$0xff]
        %v4920 = vld [vmem:[%s4821 + $0x310] sm:$0xff]
        %v4921 = vld [vmem:[%s4821 + $0x318] sm:$0xff]
        %v4922 = vld [vmem:[%s4821 + $0x320] sm:$0xff]
        %v4923 = vld [vmem:[%s4821 + $0x328] sm:$0xff]
        %v4924 = vld [vmem:[%s4821 + $0x330] sm:$0xff]
        %v4925 = vld [vmem:[%s4821 + $0x338] sm:$0xff]
        %v4926 = vld [vmem:[%s4821 + $0x340] sm:$0xff]
        %v4927 = vld [vmem:[%s4821 + $0x348] sm:$0xff]
        %v4928 = vld [vmem:[%s4821 + $0x350] sm:$0xff]
        %v4929 = vld [vmem:[%s4821 + $0x358] sm:$0xff]
        %v4930 = vld [vmem:[%s4821 + $0x360] sm:$0xff]
        %v4931 = vld [vmem:[%s4821 + $0x368] sm:$0xff]
        %v4932 = vld [vmem:[%s4821 + $0x370] sm:$0xff]
        %v4933 = vld [vmem:[%s4821 + $0x378] sm:$0xff]
        %v4934 = vld [vmem:[%s4821 + $0x380] sm:$0xff]
        %v4935 = vld [vmem:[%s4821 + $0x388] sm:$0xff]
        %v4936 = vld [vmem:[%s4821 + $0x390] sm:$0xff]
        %v4937 = vld [vmem:[%s4821 + $0x398] sm:$0xff]
        %v4938 = vld [vmem:[%s4821 + $0x3a0] sm:$0xff]
        %v4939 = vld [vmem:[%s4821 + $0x3a8] sm:$0xff]
        %v4940 = vld [vmem:[%s4821 + $0x3b0] sm:$0xff]
        %v4941 = vld [vmem:[%s4821 + $0x3b8] sm:$0xff]
        %v4942 = vld [vmem:[%s4821 + $0x3c0] sm:$0xff]
        %v4943 = vld [vmem:[%s4821 + $0x3c8] sm:$0xff]
        %v4944 = vld [vmem:[%s4821 + $0x3d0] sm:$0xff]
        %v4945 = vld [vmem:[%s4821 + $0x3d8] sm:$0xff]
        %v4946 = vld [vmem:[%s4821 + $0x3e0] sm:$0xff]
        %v4947 = vld [vmem:[%s4821 + $0x3e8] sm:$0xff]
        %v4948 = vld [vmem:[%s4821 + $0x3f0] sm:$0xff]
        %v4949 = vld [vmem:[%s4821 + $0x3f8] sm:$0xff]
        %v4950 = vld [vmem:[%s4821 + $0x400] sm:$0xff]
        %v4951 = vld [vmem:[%s4821 + $0x408] sm:$0xff]
        %v4952 = vld [vmem:[%s4821 + $0x410] sm:$0xff]
        %v4953 = vld [vmem:[%s4821 + $0x418] sm:$0xff]
        %v4954 = vld [vmem:[%s4821 + $0x420] sm:$0xff]
        %v4955 = vld [vmem:[%s4821 + $0x428] sm:$0xff]
        %v4956 = vld [vmem:[%s4821 + $0x430] sm:$0xff]
        %v4957 = vld [vmem:[%s4821 + $0x438] sm:$0xff]
        %v4958 = vld [vmem:[%s4821 + $0x440] sm:$0xff]
        %v4959 = vld [vmem:[%s4821 + $0x448] sm:$0xff]
        %v4960 = vld [vmem:[%s4821 + $0x450] sm:$0xff]
        %v4961 = vld [vmem:[%s4821 + $0x458] sm:$0xff]
        %v4962 = vld [vmem:[%s4821 + $0x460] sm:$0xff]
        %v4963 = vld [vmem:[%s4821 + $0x468] sm:$0xff]
        %v4964 = vld [vmem:[%s4821 + $0x470] sm:$0xff]
        %v4965 = vld [vmem:[%s4821 + $0x478] sm:$0xff]
        %v4975 = vrot.slane %v4668, 1
        %v4976 = vrot.slane %v4671, 1
        %v4977 = vsel %vm721, %v4975, %v4976
        %v4978 = vrot.slane %v4669, 1
        %v4979 = vrot.slane %v4672, 1
        %v4980 = vsel %vm721, %v4978, %v4979
        %v4981 = vrot.slane %v4670, 1
        %v4982 = vrot.slane %v4673, 1
        %v4983 = vsel %vm721, %v4981, %v4982
        %v4984 = vrot.slane %v4674, 1
        %v4985 = vsel %vm721, %v4976, %v4984
        %v4986 = vrot.slane %v4675, 1
        %v4987 = vsel %vm721, %v4979, %v4986
        %v4988 = vrot.slane %v4676, 1
        %v4989 = vsel %vm721, %v4982, %v4988
        %4996 = vmatprep.subr.mxu0 %v4823
        %4997 = vmatpush1.msra.mxu0 %v4822
        %4998 = vmatprep.subr.mxu0 %v4826
        %4999 = vmatpush1.msra.mxu0 %v4825
        %5000 = vmatprep.subr.mxu0 %v4829
        %5001 = vmatpush1.msra.mxu0 %v4828
        %5002 = vmatprep.subr.mxu0 %v4832
        %5003 = vmatpush1.msra.mxu0 %v4831
        %5004 = vmatprep.subr.mxu0 %v4835
        %5005 = vmatpush1.msra.mxu0 %v4834
        %5006 = vmatprep.subr.mxu0 %v4838
        %5007 = vmatpush1.msra.mxu0 %v4837
        %5008 = vmatprep.subr.mxu0 %v4841
        %5009 = vmatpush1.msra.mxu0 %v4840
        %5010 = vmatprep.subr.mxu0 %v4844
        %5011 = vmatpush1.msra.mxu0 %v4843
        %5012 = vmatprep.subr.mxu0 %v4847
        %5013 = vmatpush1.msra.mxu0 %v4846
        %5014 = vmatprep.subr.mxu0 %v4850
        %5015 = vmatpush1.msra.mxu0 %v4849
        %5016 = vmatprep.subr.mxu0 %v4853
        %5017 = vmatpush1.msra.mxu0 %v4852
        %5018 = vmatprep.subr.mxu0 %v4856
        %5019 = vmatpush1.msra.mxu0 %v4855
        %5020 = vmatprep.subr.mxu0 %v4859
        %5021 = vmatpush1.msra.mxu0 %v4858
        %5022 = vmatprep.subr.mxu0 %v4862
        %5023 = vmatpush1.msra.mxu0 %v4861
        %5024 = vmatprep.subr.mxu0 %v4865
        %5025 = vmatpush1.msra.mxu0 %v4864
        %5026 = vmatprep.subr.mxu0 %v4868
        %5027 = vmatpush1.msra.mxu0 %v4867
        %5028 = vmatprep.subr.mxu0 %v4871
        %5029 = vmatpush1.msra.mxu0 %v4870
        %5030 = vmatprep.subr.mxu0 %v4874
        %5031 = vmatpush1.msra.mxu0 %v4873
        %5032 = vmatprep.subr.mxu0 %v4877
        %5033 = vmatpush1.msra.mxu0 %v4876
        %5034 = vmatprep.subr.mxu0 %v4880
        %5035 = vmatpush1.msra.mxu0 %v4879
        %5036 = vmatprep.subr.mxu0 %v4883
        %5037 = vmatpush1.msra.mxu0 %v4882
        %5038 = vmatprep.subr.mxu0 %v4886
        %5039 = vmatpush1.msra.mxu0 %v4885
        %5040 = vmatprep.subr.mxu0 %v4889
        %5041 = vmatpush1.msra.mxu0 %v4888
        %5042 = vmatprep.subr.mxu0 %v4892
        %5043 = vmatpush1.msra.mxu0 %v4891
        %5044 = vmatprep.subr.mxu0 %v4895
        %5045 = vmatpush1.msra.mxu0 %v4894
        %5046 = vmatprep.subr.mxu0 %v4898
        %5047 = vmatpush1.msra.mxu0 %v4897
        %5048 = vmatprep.subr.mxu0 %v4901
        %5049 = vmatpush1.msra.mxu0 %v4900
        %5050 = vmatprep.subr.mxu0 %v4904
        %5051 = vmatpush1.msra.mxu0 %v4903
        %5052 = vmatprep.subr.mxu0 %v4907
        %5053 = vmatpush1.msra.mxu0 %v4906
        %5054 = vmatprep.subr.mxu0 %v4910
        %5055 = vmatpush1.msra.mxu0 %v4909
        %5056 = vmatprep.subr.mxu0 %v4913
        %5057 = vmatpush1.msra.mxu0 %v4912
        %5058 = vmatprep.subr.mxu0 %v4916
        %5059 = vmatpush1.msra.mxu0 %v4915
        %5060 = vmatprep.mubr.f32.mxu0 %v4980
        %5061 = vmatmul.mubr.f32.gmra.mrb[0].mxu0 %v4977
        %v5062 = vpop.f32.mrb[0].mxu0
        %v5063 = vadd.f32 0.0, %v5062
        %v5064 = vpop.f32.mrb[0].mxu0
        %v5065 = vadd.f32 0.0, %v5064
        %5066 = vmatprep.mubr.f32.mxu0 %v4987
        %5067 = vmatmul.mubr.f32.gmra.mrb[0].mxu0 %v4985
        %v5068 = vpop.f32.mrb[0].mxu0
        %v5069 = vadd.f32 0.0, %v5068
        %v5070 = vpop.f32.mrb[0].mxu0
        %v5071 = vadd.f32 0.0, %v5070
        %5072 = vdwg.mxu0
        %5073 = vmatprep.subr.mxu0 %v4919
        %5074 = vmatpush1.msra.mxu0 %v4918
        %5075 = vmatprep.subr.mxu0 %v4922
        %5076 = vmatpush1.msra.mxu0 %v4921
        %5077 = vmatprep.subr.mxu0 %v4925
        %5078 = vmatpush1.msra.mxu0 %v4924
        %5079 = vmatprep.subr.mxu0 %v4928
        %5080 = vmatpush1.msra.mxu0 %v4927
        %5081 = vmatprep.subr.mxu0 %v4931
        %5082 = vmatpush1.msra.mxu0 %v4930
        %5083 = vmatprep.subr.mxu0 %v4934
        %5084 = vmatpush1.msra.mxu0 %v4933
        %5085 = vmatprep.subr.mxu0 %v4937
        %5086 = vmatpush1.msra.mxu0 %v4936
        %5087 = vmatprep.subr.mxu0 %v4940
        %5088 = vmatpush1.msra.mxu0 %v4939
        %5089 = vmatprep.subr.mxu0 %v4943
        %5090 = vmatpush1.msra.mxu0 %v4942
        %5091 = vmatprep.subr.mxu0 %v4946
        %5092 = vmatpush1.msra.mxu0 %v4945
        %5093 = vmatprep.subr.mxu0 %v4949
        %5094 = vmatpush1.msra.mxu0 %v4948
        %5095 = vmatprep.subr.mxu0 %v4952
        %5096 = vmatpush1.msra.mxu0 %v4951
        %5097 = vmatprep.subr.mxu0 %v4955
        %5098 = vmatpush1.msra.mxu0 %v4954
        %5099 = vmatprep.subr.mxu0 %v4958
        %5100 = vmatpush1.msra.mxu0 %v4957
        %5101 = vmatprep.subr.mxu0 %v4961
        %5102 = vmatpush1.msra.mxu0 %v4960
        %5103 = vmatprep.subr.mxu0 %v4964
        %5104 = vmatpush1.msra.mxu0 %v4963
        %5105 = vmatprep.subr.mxu0 0.0
        %5106 = vmatpush1.msra.mxu0 0.0
        %5107 = vmatprep.subr.mxu0 0.0
        %5108 = vmatpush1.msra.mxu0 0.0
        %5109 = vmatprep.subr.mxu0 0.0
        %5110 = vmatpush1.msra.mxu0 0.0
        %5111 = vmatprep.subr.mxu0 0.0
        %5112 = vmatpush1.msra.mxu0 0.0
        %5113 = vmatprep.subr.mxu0 0.0
        %5114 = vmatpush1.msra.mxu0 0.0
        %5115 = vmatprep.subr.mxu0 0.0
        %5116 = vmatpush1.msra.mxu0 0.0
        %5117 = vmatprep.subr.mxu0 0.0
        %5118 = vmatpush1.msra.mxu0 0.0
        %5119 = vmatprep.subr.mxu0 0.0
        %5120 = vmatpush1.msra.mxu0 0.0
        %5121 = vmatprep.subr.mxu0 0.0
        %5122 = vmatpush1.msra.mxu0 0.0
        %5123 = vmatprep.subr.mxu0 0.0
        %5124 = vmatpush1.msra.mxu0 0.0
        %5125 = vmatprep.subr.mxu0 0.0
        %5126 = vmatpush1.msra.mxu0 0.0
        %5127 = vmatprep.subr.mxu0 0.0
        %5128 = vmatpush1.msra.mxu0 0.0
        %5129 = vmatprep.subr.mxu0 0.0
        %5130 = vmatpush1.msra.mxu0 0.0
        %5131 = vmatprep.subr.mxu0 0.0
        %5132 = vmatpush1.msra.mxu0 0.0
        %5133 = vmatprep.subr.mxu0 0.0
        %5134 = vmatpush1.msra.mxu0 0.0
        %5135 = vmatprep.subr.mxu0 0.0
        %5136 = vmatpush1.msra.mxu0 0.0
        %5137 = vmatprep.mubr.f32.mxu0 0.0
        %5138 = vmatmul.mubr.f32.gmra.mrb[0].mxu0 %v4983
        %v5139 = vpop.f32.mrb[0].mxu0
        %v5140 = vadd.f32 %v5063, %v5139
        %v5141 = vpop.f32.mrb[0].mxu0
        %v5142 = vadd.f32 %v5065, %v5141
        %5143 = vmatprep.mubr.f32.mxu0 0.0
        %5144 = vmatmul.mubr.f32.gmra.mrb[0].mxu0 %v4989
        %v5145 = vpop.f32.mrb[0].mxu0
        %v5146 = vadd.f32 %v5069, %v5145
        %v5147 = vpop.f32.mrb[0].mxu0
        %v5148 = vadd.f32 %v5071, %v5147
        %5149 = vdwg.mxu0
        %5150 = vmatprep.subr.mxu0 0.0
        %5151 = vmatpush1.msra.mxu0 %v4824
        %5152 = vmatprep.subr.mxu0 0.0
        %5153 = vmatpush1.msra.mxu0 %v4827
        %5154 = vmatprep.subr.mxu0 0.0
        %5155 = vmatpush1.msra.mxu0 %v4830
        %5156 = vmatprep.subr.mxu0 0.0
        %5157 = vmatpush1.msra.mxu0 %v4833
        %5158 = vmatprep.subr.mxu0 0.0
        %5159 = vmatpush1.msra.mxu0 %v4836
        %5160 = vmatprep.subr.mxu0 0.0
        %5161 = vmatpush1.msra.mxu0 %v4839
        %5162 = vmatprep.subr.mxu0 0.0
        %5163 = vmatpush1.msra.mxu0 %v4842
        %5164 = vmatprep.subr.mxu0 0.0
        %5165 = vmatpush1.msra.mxu0 %v4845
        %5166 = vmatprep.subr.mxu0 0.0
        %5167 = vmatpush1.msra.mxu0 %v4848
        %5168 = vmatprep.subr.mxu0 0.0
        %5169 = vmatpush1.msra.mxu0 %v4851
        %5170 = vmatprep.subr.mxu0 0.0
        %5171 = vmatpush1.msra.mxu0 %v4854
        %5172 = vmatprep.subr.mxu0 0.0
        %5173 = vmatpush1.msra.mxu0 %v4857
        %5174 = vmatprep.subr.mxu0 0.0
        %5175 = vmatpush1.msra.mxu0 %v4860
        %5176 = vmatprep.subr.mxu0 0.0
        %5177 = vmatpush1.msra.mxu0 %v4863
        %5178 = vmatprep.subr.mxu0 0.0
        %5179 = vmatpush1.msra.mxu0 %v4866
        %5180 = vmatprep.subr.mxu0 0.0
        %5181 = vmatpush1.msra.mxu0 %v4869
        %5182 = vmatprep.subr.mxu0 0.0
        %5183 = vmatpush1.msra.mxu0 %v4872
        %5184 = vmatprep.subr.mxu0 0.0
        %5185 = vmatpush1.msra.mxu0 %v4875
        %5186 = vmatprep.subr.mxu0 0.0
        %5187 = vmatpush1.msra.mxu0 %v4878
        %5188 = vmatprep.subr.mxu0 0.0
        %5189 = vmatpush1.msra.mxu0 %v4881
        %5190 = vmatprep.subr.mxu0 0.0
        %5191 = vmatpush1.msra.mxu0 %v4884
        %5192 = vmatprep.subr.mxu0 0.0
        %5193 = vmatpush1.msra.mxu0 %v4887
        %5194 = vmatprep.subr.mxu0 0.0
        %5195 = vmatpush1.msra.mxu0 %v4890
        %5196 = vmatprep.subr.mxu0 0.0
        %5197 = vmatpush1.msra.mxu0 %v4893
        %5198 = vmatprep.subr.mxu0 0.0
        %5199 = vmatpush1.msra.mxu0 %v4896
        %5200 = vmatprep.subr.mxu0 0.0
        %5201 = vmatpush1.msra.mxu0 %v4899
        %5202 = vmatprep.subr.mxu0 0.0
        %5203 = vmatpush1.msra.mxu0 %v4902
        %5204 = vmatprep.subr.mxu0 0.0
        %5205 = vmatpush1.msra.mxu0 %v4905
        %5206 = vmatprep.subr.mxu0 0.0
        %5207 = vmatpush1.msra.mxu0 %v4908
        %5208 = vmatprep.subr.mxu0 0.0
        %5209 = vmatpush1.msra.mxu0 %v4911
        %5210 = vmatprep.subr.mxu0 0.0
        %5211 = vmatpush1.msra.mxu0 %v4914
        %5212 = vmatprep.subr.mxu0 0.0
        %5213 = vmatpush1.msra.mxu0 %v4917
        %5214 = vmatprep.mubr.f32.mxu0 %v4980
        %5215 = vmatmul.mubr.f32.gmra.mrb[0].mxu0 %v4977
        %v5216 = vpop.f32.mrb[0].mxu0
        %v5217 = vadd.f32 0.0, %v5216
        %v5218 = vpop.f32.mrb[0].mxu0
        %5219 = vmatprep.mubr.f32.mxu0 %v4987
        %5220 = vmatmul.mubr.f32.gmra.mrb[0].mxu0 %v4985
        %v5221 = vpop.f32.mrb[0].mxu0
        %v5222 = vadd.f32 0.0, %v5221
        %v5223 = vpop.f32.mrb[0].mxu0
        %5224 = vdwg.mxu0
        %5225 = vmatprep.subr.mxu0 0.0
        %5226 = vmatpush1.msra.mxu0 %v4920
        %5227 = vmatprep.subr.mxu0 0.0
        %5228 = vmatpush1.msra.mxu0 %v4923
        %5229 = vmatprep.subr.mxu0 0.0
        %5230 = vmatpush1.msra.mxu0 %v4926
        %5231 = vmatprep.subr.mxu0 0.0
        %5232 = vmatpush1.msra.mxu0 %v4929
        %5233 = vmatprep.subr.mxu0 0.0
        %5234 = vmatpush1.msra.mxu0 %v4932
        %5235 = vmatprep.subr.mxu0 0.0
        %5236 = vmatpush1.msra.mxu0 %v4935
        %5237 = vmatprep.subr.mxu0 0.0
        %5238 = vmatpush1.msra.mxu0 %v4938
        %5239 = vmatprep.subr.mxu0 0.0
        %5240 = vmatpush1.msra.mxu0 %v4941
        %5241 = vmatprep.subr.mxu0 0.0
        %5242 = vmatpush1.msra.mxu0 %v4944
        %5243 = vmatprep.subr.mxu0 0.0
        %5244 = vmatpush1.msra.mxu0 %v4947
        %5245 = vmatprep.subr.mxu0 0.0
        %5246 = vmatpush1.msra.mxu0 %v4950
        %5247 = vmatprep.subr.mxu0 0.0
        %5248 = vmatpush1.msra.mxu0 %v4953
        %5249 = vmatprep.subr.mxu0 0.0
        %5250 = vmatpush1.msra.mxu0 %v4956
        %5251 = vmatprep.subr.mxu0 0.0
        %5252 = vmatpush1.msra.mxu0 %v4959
        %5253 = vmatprep.subr.mxu0 0.0
        %5254 = vmatpush1.msra.mxu0 %v4962
        %5255 = vmatprep.subr.mxu0 0.0
        %5256 = vmatpush1.msra.mxu0 %v4965
        %5257 = vmatprep.subr.mxu0 0.0
        %5258 = vmatpush1.msra.mxu0 0.0
        %5259 = vmatprep.subr.mxu0 0.0
        %5260 = vmatpush1.msra.mxu0 0.0
        %5261 = vmatprep.subr.mxu0 0.0
        %5262 = vmatpush1.msra.mxu0 0.0
        %5263 = vmatprep.subr.mxu0 0.0
        %5264 = vmatpush1.msra.mxu0 0.0
        %5265 = vmatprep.subr.mxu0 0.0
        %5266 = vmatpush1.msra.mxu0 0.0
        %5267 = vmatprep.subr.mxu0 0.0
        %5268 = vmatpush1.msra.mxu0 0.0
        %5269 = vmatprep.subr.mxu0 0.0
        %5270 = vmatpush1.msra.mxu0 0.0
        %5271 = vmatprep.subr.mxu0 0.0
        %5272 = vmatpush1.msra.mxu0 0.0
        %5273 = vmatprep.subr.mxu0 0.0
        %5274 = vmatpush1.msra.mxu0 0.0
        %5275 = vmatprep.subr.mxu0 0.0
        %5276 = vmatpush1.msra.mxu0 0.0
        %5277 = vmatprep.subr.mxu0 0.0
        %5278 = vmatpush1.msra.mxu0 0.0
        %5279 = vmatprep.subr.mxu0 0.0
        %5280 = vmatpush1.msra.mxu0 0.0
        %5281 = vmatprep.subr.mxu0 0.0
        %5282 = vmatpush1.msra.mxu0 0.0
        %5283 = vmatprep.subr.mxu0 0.0
        %5284 = vmatpush1.msra.mxu0 0.0
        %5285 = vmatprep.subr.mxu0 0.0
        %5286 = vmatpush1.msra.mxu0 0.0
        %5287 = vmatprep.subr.mxu0 0.0
        %5288 = vmatpush1.msra.mxu0 0.0
        %5289 = vmatprep.mubr.f32.mxu0 0.0
        %5290 = vmatmul.mubr.f32.gmra.mrb[0].mxu0 %v4983
        %v5291 = vpop.f32.mrb[0].mxu0
        %v5292 = vadd.f32 %v5217, %v5291
        %v5293 = vpop.f32.mrb[0].mxu0
        %5294 = vmatprep.mubr.f32.mxu0 0.0
        %5295 = vmatmul.mubr.f32.gmra.mrb[0].mxu0 %v4989
        %v5296 = vpop.f32.mrb[0].mxu0
        %v5297 = vadd.f32 %v5222, %v5296
        %v5298 = vpop.f32.mrb[0].mxu0
        %5299 = vdwg.mxu0
        %5300 = vmatprep.subr.mxu0 %v4678
        %5301 = vmatpush1.msra.mxu0 %v4677
        %5302 = vmatprep.subr.mxu0 %v4681
        %5303 = vmatpush1.msra.mxu0 %v4680
        %5304 = vmatprep.subr.mxu0 %v4684
        %5305 = vmatpush1.msra.mxu0 %v4683
        %5306 = vmatprep.subr.mxu0 %v4687
        %5307 = vmatpush1.msra.mxu0 %v4686
        %5308 = vmatprep.subr.mxu0 %v4690
        %5309 = vmatpush1.msra.mxu0 %v4689
        %5310 = vmatprep.subr.mxu0 %v4693
        %5311 = vmatpush1.msra.mxu0 %v4692
        %5312 = vmatprep.subr.mxu0 %v4696
        %5313 = vmatpush1.msra.mxu0 %v4695
        %5314 = vmatprep.subr.mxu0 %v4699
        %5315 = vmatpush1.msra.mxu0 %v4698
        %5316 = vmatprep.subr.mxu0 %v4702
        %5317 = vmatpush1.msra.mxu0 %v4701
        %5318 = vmatprep.subr.mxu0 %v4705
        %5319 = vmatpush1.msra.mxu0 %v4704
        %5320 = vmatprep.subr.mxu0 %v4708
        %5321 = vmatpush1.msra.mxu0 %v4707
        %5322 = vmatprep.subr.mxu0 %v4711
        %5323 = vmatpush1.msra.mxu0 %v4710
        %5324 = vmatprep.subr.mxu0 %v4714
        %5325 = vmatpush1.msra.mxu0 %v4713
        %5326 = vmatprep.subr.mxu0 %v4717
        %5327 = vmatpush1.msra.mxu0 %v4716
        %5328 = vmatprep.subr.mxu0 %v4720
        %5329 = vmatpush1.msra.mxu0 %v4719
        %5330 = vmatprep.subr.mxu0 %v4723
        %5331 = vmatpush1.msra.mxu0 %v4722
        %5332 = vmatprep.subr.mxu0 %v4726
        %5333 = vmatpush1.msra.mxu0 %v4725
        %5334 = vmatprep.subr.mxu0 %v4729
        %5335 = vmatpush1.msra.mxu0 %v4728
        %5336 = vmatprep.subr.mxu0 %v4732
        %5337 = vmatpush1.msra.mxu0 %v4731
        %5338 = vmatprep.subr.mxu0 %v4735
        %5339 = vmatpush1.msra.mxu0 %v4734
        %5340 = vmatprep.subr.mxu0 %v4738
        %5341 = vmatpush1.msra.mxu0 %v4737
        %5342 = vmatprep.subr.mxu0 %v4741
        %5343 = vmatpush1.msra.mxu0 %v4740
        %5344 = vmatprep.subr.mxu0 %v4744
        %5345 = vmatpush1.msra.mxu0 %v4743
        %5346 = vmatprep.subr.mxu0 %v4747
        %5347 = vmatpush1.msra.mxu0 %v4746
        %5348 = vmatprep.subr.mxu0 %v4750
        %5349 = vmatpush1.msra.mxu0 %v4749
        %5350 = vmatprep.subr.mxu0 %v4753
        %5351 = vmatpush1.msra.mxu0 %v4752
        %5352 = vmatprep.subr.mxu0 %v4756
        %5353 = vmatpush1.msra.mxu0 %v4755
        %5354 = vmatprep.subr.mxu0 %v4759
        %5355 = vmatpush1.msra.mxu0 %v4758
        %5356 = vmatprep.subr.mxu0 %v4762
        %5357 = vmatpush1.msra.mxu0 %v4761
        %5358 = vmatprep.subr.mxu0 %v4765
        %5359 = vmatpush1.msra.mxu0 %v4764
        %5360 = vmatprep.subr.mxu0 %v4768
        %5361 = vmatpush1.msra.mxu0 %v4767
        %5362 = vmatprep.subr.mxu0 %v4771
        %5363 = vmatpush1.msra.mxu0 %v4770
        %5364 = vmatprep.mubr.f32.mxu0 %v4669
        %5365 = vmatmul.mubr.f32.gmra.mrb[0].mxu0 %v4668
        %v5366 = vpop.f32.mrb[0].mxu0
        %v5367 = vadd.f32 %v5140, %v5366
        %v5368 = vpop.f32.mrb[0].mxu0
        %v5369 = vadd.f32 %v5142, %v5368
        %5370 = vmatprep.mubr.f32.mxu0 %v4672
        %5371 = vmatmul.mubr.f32.gmra.mrb[0].mxu0 %v4671
        %v5372 = vpop.f32.mrb[0].mxu0
        %v5373 = vadd.f32 %v5146, %v5372
        %v5374 = vpop.f32.mrb[0].mxu0
        %v5375 = vadd.f32 %v5148, %v5374
        %5376 = vdwg.mxu0
        %5377 = vmatprep.subr.mxu0 %v4774
        %5378 = vmatpush1.msra.mxu0 %v4773
        %5379 = vmatprep.subr.mxu0 %v4777
        %5380 = vmatpush1.msra.mxu0 %v4776
        %5381 = vmatprep.subr.mxu0 %v4780
        %5382 = vmatpush1.msra.mxu0 %v4779
        %5383 = vmatprep.subr.mxu0 %v4783
        %5384 = vmatpush1.msra.mxu0 %v4782
        %5385 = vmatprep.subr.mxu0 %v4786
        %5386 = vmatpush1.msra.mxu0 %v4785
        %5387 = vmatprep.subr.mxu0 %v4789
        %5388 = vmatpush1.msra.mxu0 %v4788
        %5389 = vmatprep.subr.mxu0 %v4792
        %5390 = vmatpush1.msra.mxu0 %v4791
        %5391 = vmatprep.subr.mxu0 %v4795
        %5392 = vmatpush1.msra.mxu0 %v4794
        %5393 = vmatprep.subr.mxu0 %v4798
        %5394 = vmatpush1.msra.mxu0 %v4797
        %5395 = vmatprep.subr.mxu0 %v4801
        %5396 = vmatpush1.msra.mxu0 %v4800
        %5397 = vmatprep.subr.mxu0 %v4804
        %5398 = vmatpush1.msra.mxu0 %v4803
        %5399 = vmatprep.subr.mxu0 %v4807
        %5400 = vmatpush1.msra.mxu0 %v4806
        %5401 = vmatprep.subr.mxu0 %v4810
        %5402 = vmatpush1.msra.mxu0 %v4809
        %5403 = vmatprep.subr.mxu0 %v4813
        %5404 = vmatpush1.msra.mxu0 %v4812
        %5405 = vmatprep.subr.mxu0 %v4816
        %5406 = vmatpush1.msra.mxu0 %v4815
        %5407 = vmatprep.subr.mxu0 %v4819
        %5408 = vmatpush1.msra.mxu0 %v4818
        %5409 = vmatprep.subr.mxu0 0.0
        %5410 = vmatpush1.msra.mxu0 0.0
        %5411 = vmatprep.subr.mxu0 0.0
        %5412 = vmatpush1.msra.mxu0 0.0
        %5413 = vmatprep.subr.mxu0 0.0
        %5414 = vmatpush1.msra.mxu0 0.0
        %5415 = vmatprep.subr.mxu0 0.0
        %5416 = vmatpush1.msra.mxu0 0.0
        %5417 = vmatprep.subr.mxu0 0.0
        %5418 = vmatpush1.msra.mxu0 0.0
        %5419 = vmatprep.subr.mxu0 0.0
        %5420 = vmatpush1.msra.mxu0 0.0
        %5421 = vmatprep.subr.mxu0 0.0
        %5422 = vmatpush1.msra.mxu0 0.0
        %5423 = vmatprep.subr.mxu0 0.0
        %5424 = vmatpush1.msra.mxu0 0.0
        %5425 = vmatprep.subr.mxu0 0.0
        %5426 = vmatpush1.msra.mxu0 0.0
        %5427 = vmatprep.subr.mxu0 0.0
        %5428 = vmatpush1.msra.mxu0 0.0
        %5429 = vmatprep.subr.mxu0 0.0
        %5430 = vmatpush1.msra.mxu0 0.0
        %5431 = vmatprep.subr.mxu0 0.0
        %5432 = vmatpush1.msra.mxu0 0.0
        %5433 = vmatprep.subr.mxu0 0.0
        %5434 = vmatpush1.msra.mxu0 0.0
        %5435 = vmatprep.subr.mxu0 0.0
        %5436 = vmatpush1.msra.mxu0 0.0
        %5437 = vmatprep.subr.mxu0 0.0
        %5438 = vmatpush1.msra.mxu0 0.0
        %5439 = vmatprep.subr.mxu0 0.0
        %5440 = vmatpush1.msra.mxu0 0.0
        %5441 = vmatprep.mubr.f32.mxu0 0.0
        %5442 = vmatmul.mubr.f32.gmra.mrb[0].mxu0 %v4670
        %v5443 = vpop.f32.mrb[0].mxu0
        %v5444 = vadd.f32 %v5367, %v5443
        %v5445 = vpop.f32.mrb[0].mxu0
        %v5446 = vadd.f32 %v5369, %v5445
        %5447 = vmatprep.mubr.f32.mxu0 0.0
        %5448 = vmatmul.mubr.f32.gmra.mrb[0].mxu0 %v4673
        %v5449 = vpop.f32.mrb[0].mxu0
        %v5450 = vadd.f32 %v5373, %v5449
        %v5451 = vpop.f32.mrb[0].mxu0
        %v5452 = vadd.f32 %v5375, %v5451
        %5453 = vdwg.mxu0
        %5454 = vmatprep.subr.mxu0 0.0
        %5455 = vmatpush1.msra.mxu0 %v4679
        %5456 = vmatprep.subr.mxu0 0.0
        %5457 = vmatpush1.msra.mxu0 %v4682
        %5458 = vmatprep.subr.mxu0 0.0
        %5459 = vmatpush1.msra.mxu0 %v4685
        %5460 = vmatprep.subr.mxu0 0.0
        %5461 = vmatpush1.msra.mxu0 %v4688
        %5462 = vmatprep.subr.mxu0 0.0
        %5463 = vmatpush1.msra.mxu0 %v4691
        %5464 = vmatprep.subr.mxu0 0.0
        %5465 = vmatpush1.msra.mxu0 %v4694
        %5466 = vmatprep.subr.mxu0 0.0
        %5467 = vmatpush1.msra.mxu0 %v4697
        %5468 = vmatprep.subr.mxu0 0.0
        %5469 = vmatpush1.msra.mxu0 %v4700
        %5470 = vmatprep.subr.mxu0 0.0
        %5471 = vmatpush1.msra.mxu0 %v4703
        %5472 = vmatprep.subr.mxu0 0.0
        %5473 = vmatpush1.msra.mxu0 %v4706
        %5474 = vmatprep.subr.mxu0 0.0
        %5475 = vmatpush1.msra.mxu0 %v4709
        %5476 = vmatprep.subr.mxu0 0.0
        %5477 = vmatpush1.msra.mxu0 %v4712
        %5478 = vmatprep.subr.mxu0 0.0
        %5479 = vmatpush1.msra.mxu0 %v4715
        %5480 = vmatprep.subr.mxu0 0.0
        %5481 = vmatpush1.msra.mxu0 %v4718
        %5482 = vmatprep.subr.mxu0 0.0
        %5483 = vmatpush1.msra.mxu0 %v4721
        %5484 = vmatprep.subr.mxu0 0.0
        %5485 = vmatpush1.msra.mxu0 %v4724
        %5486 = vmatprep.subr.mxu0 0.0
        %5487 = vmatpush1.msra.mxu0 %v4727
        %5488 = vmatprep.subr.mxu0 0.0
        %5489 = vmatpush1.msra.mxu0 %v4730
        %5490 = vmatprep.subr.mxu0 0.0
        %5491 = vmatpush1.msra.mxu0 %v4733
        %5492 = vmatprep.subr.mxu0 0.0
        %5493 = vmatpush1.msra.mxu0 %v4736
        %5494 = vmatprep.subr.mxu0 0.0
        %5495 = vmatpush1.msra.mxu0 %v4739
        %5496 = vmatprep.subr.mxu0 0.0
        %5497 = vmatpush1.msra.mxu0 %v4742
        %5498 = vmatprep.subr.mxu0 0.0
        %5499 = vmatpush1.msra.mxu0 %v4745
        %5500 = vmatprep.subr.mxu0 0.0
        %5501 = vmatpush1.msra.mxu0 %v4748
        %5502 = vmatprep.subr.mxu0 0.0
        %5503 = vmatpush1.msra.mxu0 %v4751
        %5504 = vmatprep.subr.mxu0 0.0
        %5505 = vmatpush1.msra.mxu0 %v4754
        %5506 = vmatprep.subr.mxu0 0.0
        %5507 = vmatpush1.msra.mxu0 %v4757
        %5508 = vmatprep.subr.mxu0 0.0
        %5509 = vmatpush1.msra.mxu0 %v4760
        %5510 = vmatprep.subr.mxu0 0.0
        %5511 = vmatpush1.msra.mxu0 %v4763
        %5512 = vmatprep.subr.mxu0 0.0
        %5513 = vmatpush1.msra.mxu0 %v4766
        %5514 = vmatprep.subr.mxu0 0.0
        %5515 = vmatpush1.msra.mxu0 %v4769
        %5516 = vmatprep.subr.mxu0 0.0
        %5517 = vmatpush1.msra.mxu0 %v4772
        %5518 = vmatprep.mubr.f32.mxu0 %v4669
        %5519 = vmatmul.mubr.f32.gmra.mrb[0].mxu0 %v4668
        %v5520 = vpop.f32.mrb[0].mxu0
        %v5521 = vadd.f32 %v5292, %v5520
        %v5522 = vpop.f32.mrb[0].mxu0
        %5523 = vmatprep.mubr.f32.mxu0 %v4672
        %5524 = vmatmul.mubr.f32.gmra.mrb[0].mxu0 %v4671
        %v5525 = vpop.f32.mrb[0].mxu0
        %v5526 = vadd.f32 %v5297, %v5525
        %v5527 = vpop.f32.mrb[0].mxu0
        %5528 = vdwg.mxu0
        %5529 = vmatprep.subr.mxu0 0.0
        %5530 = vmatpush1.msra.mxu0 %v4775
        %5531 = vmatprep.subr.mxu0 0.0
        %5532 = vmatpush1.msra.mxu0 %v4778
        %5533 = vmatprep.subr.mxu0 0.0
        %5534 = vmatpush1.msra.mxu0 %v4781
        %5535 = vmatprep.subr.mxu0 0.0
        %5536 = vmatpush1.msra.mxu0 %v4784
        %5537 = vmatprep.subr.mxu0 0.0
        %5538 = vmatpush1.msra.mxu0 %v4787
        %5539 = vmatprep.subr.mxu0 0.0
        %5540 = vmatpush1.msra.mxu0 %v4790
        %5541 = vmatprep.subr.mxu0 0.0
        %5542 = vmatpush1.msra.mxu0 %v4793
        %5543 = vmatprep.subr.mxu0 0.0
        %5544 = vmatpush1.msra.mxu0 %v4796
        %5545 = vmatprep.subr.mxu0 0.0
        %5546 = vmatpush1.msra.mxu0 %v4799
        %5547 = vmatprep.subr.mxu0 0.0
        %5548 = vmatpush1.msra.mxu0 %v4802
        %5549 = vmatprep.subr.mxu0 0.0
        %5550 = vmatpush1.msra.mxu0 %v4805
        %5551 = vmatprep.subr.mxu0 0.0
        %5552 = vmatpush1.msra.mxu0 %v4808
        %5553 = vmatprep.subr.mxu0 0.0
        %5554 = vmatpush1.msra.mxu0 %v4811
        %5555 = vmatprep.subr.mxu0 0.0
        %5556 = vmatpush1.msra.mxu0 %v4814
        %5557 = vmatprep.subr.mxu0 0.0
        %5558 = vmatpush1.msra.mxu0 %v4817
        %5559 = vmatprep.subr.mxu0 0.0
        %5560 = vmatpush1.msra.mxu0 %v4820
        %5561 = vmatprep.subr.mxu0 0.0
        %5562 = vmatpush1.msra.mxu0 0.0
        %5563 = vmatprep.subr.mxu0 0.0
        %5564 = vmatpush1.msra.mxu0 0.0
        %5565 = vmatprep.subr.mxu0 0.0
        %5566 = vmatpush1.msra.mxu0 0.0
        %5567 = vmatprep.subr.mxu0 0.0
        %5568 = vmatpush1.msra.mxu0 0.0
        %5569 = vmatprep.subr.mxu0 0.0
        %5570 = vmatpush1.msra.mxu0 0.0
        %5571 = vmatprep.subr.mxu0 0.0
        %5572 = vmatpush1.msra.mxu0 0.0
        %5573 = vmatprep.subr.mxu0 0.0
        %5574 = vmatpush1.msra.mxu0 0.0
        %5575 = vmatprep.subr.mxu0 0.0
        %5576 = vmatpush1.msra.mxu0 0.0
        %5577 = vmatprep.subr.mxu0 0.0
        %5578 = vmatpush1.msra.mxu0 0.0
        %5579 = vmatprep.subr.mxu0 0.0
        %5580 = vmatpush1.msra.mxu0 0.0
        %5581 = vmatprep.subr.mxu0 0.0
        %5582 = vmatpush1.msra.mxu0 0.0
        %5583 = vmatprep.subr.mxu0 0.0
        %5584 = vmatpush1.msra.mxu0 0.0
        %5585 = vmatprep.subr.mxu0 0.0
        %5586 = vmatpush1.msra.mxu0 0.0
        %5587 = vmatprep.subr.mxu0 0.0
        %5588 = vmatpush1.msra.mxu0 0.0
        %5589 = vmatprep.subr.mxu0 0.0
        %5590 = vmatpush1.msra.mxu0 0.0
        %5591 = vmatprep.subr.mxu0 0.0
        %5592 = vmatpush1.msra.mxu0 0.0
        %5593 = vmatprep.mubr.f32.mxu0 0.0
        %5594 = vmatmul.mubr.f32.gmra.mrb[0].mxu0 %v4670
        %v5595 = vpop.f32.mrb[0].mxu0
        %v5596 = vadd.f32 %v5521, %v5595
        %v5597 = vpop.f32.mrb[0].mxu0
        %5598 = vmatprep.mubr.f32.mxu0 0.0
        %5599 = vmatmul.mubr.f32.gmra.mrb[0].mxu0 %v4673
        %v5600 = vpop.f32.mrb[0].mxu0
        %v5601 = vadd.f32 %v5526, %v5600
        %v5602 = vpop.f32.mrb[0].mxu0
        %5603 = vdwg.mxu0
        %s5604 = scalar_lea.vmem [#allocation5], 2304
        %v5605 = vld [vmem:[%s5604] sm:$0xff]
        %v5606 = vld [vmem:[%s5604 + $0x8] sm:$0xff]
        %v5607 = vld [vmem:[%s5604 + $0x10] sm:$0xff]
        %v5608 = vld [vmem:[%s5604 + $0x18] sm:$0xff]
        %v5609 = vld [vmem:[%s5604 + $0x20] sm:$0xff]
        %v5610 = vld [vmem:[%s5604 + $0x28] sm:$0xff]
        %v5611 = vld [vmem:[%s5604 + $0x30] sm:$0xff]
        %v5612 = vld [vmem:[%s5604 + $0x38] sm:$0xff]
        %v5613 = vld [vmem:[%s5604 + $0x40] sm:$0xff]
        %v5614 = vld [vmem:[%s5604 + $0x48] sm:$0xff]
        %v5615 = vld [vmem:[%s5604 + $0x50] sm:$0xff]
        %v5616 = vld [vmem:[%s5604 + $0x58] sm:$0xff]
        %v5617 = vld [vmem:[%s5604 + $0x60] sm:$0xff]
        %v5618 = vld [vmem:[%s5604 + $0x68] sm:$0xff]
        %v5619 = vld [vmem:[%s5604 + $0x70] sm:$0xff]
        %v5620 = vld [vmem:[%s5604 + $0x78] sm:$0xff]
        %v5621 = vld [vmem:[%s5604 + $0x80] sm:$0xff]
        %v5622 = vld [vmem:[%s5604 + $0x88] sm:$0xff]
        %v5623 = vld [vmem:[%s5604 + $0x90] sm:$0xff]
        %v5624 = vld [vmem:[%s5604 + $0x98] sm:$0xff]
        %v5625 = vld [vmem:[%s5604 + $0xa0] sm:$0xff]
        %v5626 = vld [vmem:[%s5604 + $0xa8] sm:$0xff]
        %v5627 = vld [vmem:[%s5604 + $0xb0] sm:$0xff]
        %v5628 = vld [vmem:[%s5604 + $0xb8] sm:$0xff]
        %v5629 = vld [vmem:[%s5604 + $0xc0] sm:$0xff]
        %v5630 = vld [vmem:[%s5604 + $0xc8] sm:$0xff]
        %v5631 = vld [vmem:[%s5604 + $0xd0] sm:$0xff]
        %v5632 = vld [vmem:[%s5604 + $0xd8] sm:$0xff]
        %v5633 = vld [vmem:[%s5604 + $0xe0] sm:$0xff]
        %v5634 = vld [vmem:[%s5604 + $0xe8] sm:$0xff]
        %v5635 = vld [vmem:[%s5604 + $0xf0] sm:$0xff]
        %v5636 = vld [vmem:[%s5604 + $0xf8] sm:$0xff]
        %v5637 = vld [vmem:[%s5604 + $0x100] sm:$0xff]
        %v5638 = vld [vmem:[%s5604 + $0x108] sm:$0xff]
        %v5639 = vld [vmem:[%s5604 + $0x110] sm:$0xff]
        %v5640 = vld [vmem:[%s5604 + $0x118] sm:$0xff]
        %v5641 = vld [vmem:[%s5604 + $0x120] sm:$0xff]
        %v5642 = vld [vmem:[%s5604 + $0x128] sm:$0xff]
        %v5643 = vld [vmem:[%s5604 + $0x130] sm:$0xff]
        %v5644 = vld [vmem:[%s5604 + $0x138] sm:$0xff]
        %v5645 = vld [vmem:[%s5604 + $0x140] sm:$0xff]
        %v5646 = vld [vmem:[%s5604 + $0x148] sm:$0xff]
        %v5647 = vld [vmem:[%s5604 + $0x150] sm:$0xff]
        %v5648 = vld [vmem:[%s5604 + $0x158] sm:$0xff]
        %v5649 = vld [vmem:[%s5604 + $0x160] sm:$0xff]
        %v5650 = vld [vmem:[%s5604 + $0x168] sm:$0xff]
        %v5651 = vld [vmem:[%s5604 + $0x170] sm:$0xff]
        %v5652 = vld [vmem:[%s5604 + $0x178] sm:$0xff]
        %v5653 = vld [vmem:[%s5604 + $0x180] sm:$0xff]
        %v5654 = vld [vmem:[%s5604 + $0x188] sm:$0xff]
        %v5655 = vld [vmem:[%s5604 + $0x190] sm:$0xff]
        %v5656 = vld [vmem:[%s5604 + $0x198] sm:$0xff]
        %v5657 = vld [vmem:[%s5604 + $0x1a0] sm:$0xff]
        %v5658 = vld [vmem:[%s5604 + $0x1a8] sm:$0xff]
        %v5659 = vld [vmem:[%s5604 + $0x1b0] sm:$0xff]
        %v5660 = vld [vmem:[%s5604 + $0x1b8] sm:$0xff]
        %v5661 = vld [vmem:[%s5604 + $0x1c0] sm:$0xff]
        %v5662 = vld [vmem:[%s5604 + $0x1c8] sm:$0xff]
        %v5663 = vld [vmem:[%s5604 + $0x1d0] sm:$0xff]
        %v5664 = vld [vmem:[%s5604 + $0x1d8] sm:$0xff]
        %v5665 = vld [vmem:[%s5604 + $0x1e0] sm:$0xff]
        %v5666 = vld [vmem:[%s5604 + $0x1e8] sm:$0xff]
        %v5667 = vld [vmem:[%s5604 + $0x1f0] sm:$0xff]
        %v5668 = vld [vmem:[%s5604 + $0x1f8] sm:$0xff]
        %v5669 = vld [vmem:[%s5604 + $0x200] sm:$0xff]
        %v5670 = vld [vmem:[%s5604 + $0x208] sm:$0xff]
        %v5671 = vld [vmem:[%s5604 + $0x210] sm:$0xff]
        %v5672 = vld [vmem:[%s5604 + $0x218] sm:$0xff]
        %v5673 = vld [vmem:[%s5604 + $0x220] sm:$0xff]
        %v5674 = vld [vmem:[%s5604 + $0x228] sm:$0xff]
        %v5675 = vld [vmem:[%s5604 + $0x230] sm:$0xff]
        %v5676 = vld [vmem:[%s5604 + $0x238] sm:$0xff]
        %v5677 = vld [vmem:[%s5604 + $0x240] sm:$0xff]
        %v5678 = vld [vmem:[%s5604 + $0x248] sm:$0xff]
        %v5679 = vld [vmem:[%s5604 + $0x250] sm:$0xff]
        %v5680 = vld [vmem:[%s5604 + $0x258] sm:$0xff]
        %v5681 = vld [vmem:[%s5604 + $0x260] sm:$0xff]
        %v5682 = vld [vmem:[%s5604 + $0x268] sm:$0xff]
        %v5683 = vld [vmem:[%s5604 + $0x270] sm:$0xff]
        %v5684 = vld [vmem:[%s5604 + $0x278] sm:$0xff]
        %v5685 = vld [vmem:[%s5604 + $0x280] sm:$0xff]
        %v5686 = vld [vmem:[%s5604 + $0x288] sm:$0xff]
        %v5687 = vld [vmem:[%s5604 + $0x290] sm:$0xff]
        %v5688 = vld [vmem:[%s5604 + $0x298] sm:$0xff]
        %v5689 = vld [vmem:[%s5604 + $0x2a0] sm:$0xff]
        %v5690 = vld [vmem:[%s5604 + $0x2a8] sm:$0xff]
        %v5691 = vld [vmem:[%s5604 + $0x2b0] sm:$0xff]
        %v5692 = vld [vmem:[%s5604 + $0x2b8] sm:$0xff]
        %v5693 = vld [vmem:[%s5604 + $0x2c0] sm:$0xff]
        %v5694 = vld [vmem:[%s5604 + $0x2c8] sm:$0xff]
        %v5695 = vld [vmem:[%s5604 + $0x2d0] sm:$0xff]
        %v5696 = vld [vmem:[%s5604 + $0x2d8] sm:$0xff]
        %v5697 = vld [vmem:[%s5604 + $0x2e0] sm:$0xff]
        %v5698 = vld [vmem:[%s5604 + $0x2e8] sm:$0xff]
        %v5699 = vld [vmem:[%s5604 + $0x2f0] sm:$0xff]
        %v5700 = vld [vmem:[%s5604 + $0x2f8] sm:$0xff]
        %v5701 = vld [vmem:[%s5604 + $0x300] sm:$0xff]
        %v5702 = vld [vmem:[%s5604 + $0x308] sm:$0xff]
        %v5703 = vld [vmem:[%s5604 + $0x310] sm:$0xff]
        %v5704 = vld [vmem:[%s5604 + $0x318] sm:$0xff]
        %v5705 = vld [vmem:[%s5604 + $0x320] sm:$0xff]
        %v5706 = vld [vmem:[%s5604 + $0x328] sm:$0xff]
        %v5707 = vld [vmem:[%s5604 + $0x330] sm:$0xff]
        %v5708 = vld [vmem:[%s5604 + $0x338] sm:$0xff]
        %v5709 = vld [vmem:[%s5604 + $0x340] sm:$0xff]
        %v5710 = vld [vmem:[%s5604 + $0x348] sm:$0xff]
        %v5711 = vld [vmem:[%s5604 + $0x350] sm:$0xff]
        %v5712 = vld [vmem:[%s5604 + $0x358] sm:$0xff]
        %v5713 = vld [vmem:[%s5604 + $0x360] sm:$0xff]
        %v5714 = vld [vmem:[%s5604 + $0x368] sm:$0xff]
        %v5715 = vld [vmem:[%s5604 + $0x370] sm:$0xff]
        %v5716 = vld [vmem:[%s5604 + $0x378] sm:$0xff]
        %v5717 = vld [vmem:[%s5604 + $0x380] sm:$0xff]
        %v5718 = vld [vmem:[%s5604 + $0x388] sm:$0xff]
        %v5719 = vld [vmem:[%s5604 + $0x390] sm:$0xff]
        %v5720 = vld [vmem:[%s5604 + $0x398] sm:$0xff]
        %v5721 = vld [vmem:[%s5604 + $0x3a0] sm:$0xff]
        %v5722 = vld [vmem:[%s5604 + $0x3a8] sm:$0xff]
        %v5723 = vld [vmem:[%s5604 + $0x3b0] sm:$0xff]
        %v5724 = vld [vmem:[%s5604 + $0x3b8] sm:$0xff]
        %v5725 = vld [vmem:[%s5604 + $0x3c0] sm:$0xff]
        %v5726 = vld [vmem:[%s5604 + $0x3c8] sm:$0xff]
        %v5727 = vld [vmem:[%s5604 + $0x3d0] sm:$0xff]
        %v5728 = vld [vmem:[%s5604 + $0x3d8] sm:$0xff]
        %v5729 = vld [vmem:[%s5604 + $0x3e0] sm:$0xff]
        %v5730 = vld [vmem:[%s5604 + $0x3e8] sm:$0xff]
        %v5731 = vld [vmem:[%s5604 + $0x3f0] sm:$0xff]
        %v5732 = vld [vmem:[%s5604 + $0x3f8] sm:$0xff]
        %v5733 = vld [vmem:[%s5604 + $0x400] sm:$0xff]
        %v5734 = vld [vmem:[%s5604 + $0x408] sm:$0xff]
        %v5735 = vld [vmem:[%s5604 + $0x410] sm:$0xff]
        %v5736 = vld [vmem:[%s5604 + $0x418] sm:$0xff]
        %v5737 = vld [vmem:[%s5604 + $0x420] sm:$0xff]
        %v5738 = vld [vmem:[%s5604 + $0x428] sm:$0xff]
        %v5739 = vld [vmem:[%s5604 + $0x430] sm:$0xff]
        %v5740 = vld [vmem:[%s5604 + $0x438] sm:$0xff]
        %v5741 = vld [vmem:[%s5604 + $0x440] sm:$0xff]
        %v5742 = vld [vmem:[%s5604 + $0x448] sm:$0xff]
        %v5743 = vld [vmem:[%s5604 + $0x450] sm:$0xff]
        %v5744 = vld [vmem:[%s5604 + $0x458] sm:$0xff]
        %v5745 = vld [vmem:[%s5604 + $0x460] sm:$0xff]
        %v5746 = vld [vmem:[%s5604 + $0x468] sm:$0xff]
        %v5747 = vld [vmem:[%s5604 + $0x470] sm:$0xff]
        %v5748 = vld [vmem:[%s5604 + $0x478] sm:$0xff]
        %v5749 = vrot.slane %v4668, 2
        %v5750 = vrot.slane %v4671, 2
        %v5751 = vsel %vm1201, %v5749, %v5750
        %v5752 = vrot.slane %v4669, 2
        %v5753 = vrot.slane %v4672, 2
        %v5754 = vsel %vm1201, %v5752, %v5753
        %v5755 = vrot.slane %v4670, 2
        %v5756 = vrot.slane %v4673, 2
        %v5757 = vsel %vm1201, %v5755, %v5756
        %v5758 = vrot.slane %v4674, 2
        %v5759 = vsel %vm1201, %v5750, %v5758
        %v5760 = vrot.slane %v4675, 2
        %v5761 = vsel %vm1201, %v5753, %v5760
        %v5762 = vrot.slane %v4676, 2
        %v5763 = vsel %vm1201, %v5756, %v5762
        %5770 = vmatprep.subr.mxu0 %v5606
        %5771 = vmatpush1.msra.mxu0 %v5605
        %5772 = vmatprep.subr.mxu0 %v5609
        %5773 = vmatpush1.msra.mxu0 %v5608
        %5774 = vmatprep.subr.mxu0 %v5612
        %5775 = vmatpush1.msra.mxu0 %v5611
        %5776 = vmatprep.subr.mxu0 %v5615
        %5777 = vmatpush1.msra.mxu0 %v5614
        %5778 = vmatprep.subr.mxu0 %v5618
        %5779 = vmatpush1.msra.mxu0 %v5617
        %5780 = vmatprep.subr.mxu0 %v5621
        %5781 = vmatpush1.msra.mxu0 %v5620
        %5782 = vmatprep.subr.mxu0 %v5624
        %5783 = vmatpush1.msra.mxu0 %v5623
        %5784 = vmatprep.subr.mxu0 %v5627
        %5785 = vmatpush1.msra.mxu0 %v5626
        %5786 = vmatprep.subr.mxu0 %v5630
        %5787 = vmatpush1.msra.mxu0 %v5629
        %5788 = vmatprep.subr.mxu0 %v5633
        %5789 = vmatpush1.msra.mxu0 %v5632
        %5790 = vmatprep.subr.mxu0 %v5636
        %5791 = vmatpush1.msra.mxu0 %v5635
        %5792 = vmatprep.subr.mxu0 %v5639
        %5793 = vmatpush1.msra.mxu0 %v5638
        %5794 = vmatprep.subr.mxu0 %v5642
        %5795 = vmatpush1.msra.mxu0 %v5641
        %5796 = vmatprep.subr.mxu0 %v5645
        %5797 = vmatpush1.msra.mxu0 %v5644
        %5798 = vmatprep.subr.mxu0 %v5648
        %5799 = vmatpush1.msra.mxu0 %v5647
        %5800 = vmatprep.subr.mxu0 %v5651
        %5801 = vmatpush1.msra.mxu0 %v5650
        %5802 = vmatprep.subr.mxu0 %v5654
        %5803 = vmatpush1.msra.mxu0 %v5653
        %5804 = vmatprep.subr.mxu0 %v5657
        %5805 = vmatpush1.msra.mxu0 %v5656
        %5806 = vmatprep.subr.mxu0 %v5660
        %5807 = vmatpush1.msra.mxu0 %v5659
        %5808 = vmatprep.subr.mxu0 %v5663
        %5809 = vmatpush1.msra.mxu0 %v5662
        %5810 = vmatprep.subr.mxu0 %v5666
        %5811 = vmatpush1.msra.mxu0 %v5665
        %5812 = vmatprep.subr.mxu0 %v5669
        %5813 = vmatpush1.msra.mxu0 %v5668
        %5814 = vmatprep.subr.mxu0 %v5672
        %5815 = vmatpush1.msra.mxu0 %v5671
        %5816 = vmatprep.subr.mxu0 %v5675
        %5817 = vmatpush1.msra.mxu0 %v5674
        %5818 = vmatprep.subr.mxu0 %v5678
        %5819 = vmatpush1.msra.mxu0 %v5677
        %5820 = vmatprep.subr.mxu0 %v5681
        %5821 = vmatpush1.msra.mxu0 %v5680
        %5822 = vmatprep.subr.mxu0 %v5684
        %5823 = vmatpush1.msra.mxu0 %v5683
        %5824 = vmatprep.subr.mxu0 %v5687
        %5825 = vmatpush1.msra.mxu0 %v5686
        %5826 = vmatprep.subr.mxu0 %v5690
        %5827 = vmatpush1.msra.mxu0 %v5689
        %5828 = vmatprep.subr.mxu0 %v5693
        %5829 = vmatpush1.msra.mxu0 %v5692
        %5830 = vmatprep.subr.mxu0 %v5696
        %5831 = vmatpush1.msra.mxu0 %v5695
        %5832 = vmatprep.subr.mxu0 %v5699
        %5833 = vmatpush1.msra.mxu0 %v5698
        %5834 = vmatprep.mubr.f32.mxu0 %v5754
        %5835 = vmatmul.mubr.f32.gmra.mrb[0].mxu0 %v5751
        %v5836 = vpop.f32.mrb[0].mxu0
        %v5837 = vadd.f32 0.0, %v5836
        %v5838 = vpop.f32.mrb[0].mxu0
        %v5839 = vadd.f32 0.0, %v5838
        %5840 = vmatprep.mubr.f32.mxu0 %v5761
        %5841 = vmatmul.mubr.f32.gmra.mrb[0].mxu0 %v5759
        %v5842 = vpop.f32.mrb[0].mxu0
        %v5843 = vadd.f32 0.0, %v5842
        %v5844 = vpop.f32.mrb[0].mxu0
        %v5845 = vadd.f32 0.0, %v5844
        %5846 = vdwg.mxu0
        %5847 = vmatprep.subr.mxu0 %v5702
        %5848 = vmatpush1.msra.mxu0 %v5701
        %5849 = vmatprep.subr.mxu0 %v5705
        %5850 = vmatpush1.msra.mxu0 %v5704
        %5851 = vmatprep.subr.mxu0 %v5708
        %5852 = vmatpush1.msra.mxu0 %v5707
        %5853 = vmatprep.subr.mxu0 %v5711
        %5854 = vmatpush1.msra.mxu0 %v5710
        %5855 = vmatprep.subr.mxu0 %v5714
        %5856 = vmatpush1.msra.mxu0 %v5713
        %5857 = vmatprep.subr.mxu0 %v5717
        %5858 = vmatpush1.msra.mxu0 %v5716
        %5859 = vmatprep.subr.mxu0 %v5720
        %5860 = vmatpush1.msra.mxu0 %v5719
        %5861 = vmatprep.subr.mxu0 %v5723
        %5862 = vmatpush1.msra.mxu0 %v5722
        %5863 = vmatprep.subr.mxu0 %v5726
        %5864 = vmatpush1.msra.mxu0 %v5725
        %5865 = vmatprep.subr.mxu0 %v5729
        %5866 = vmatpush1.msra.mxu0 %v5728
        %5867 = vmatprep.subr.mxu0 %v5732
        %5868 = vmatpush1.msra.mxu0 %v5731
        %5869 = vmatprep.subr.mxu0 %v5735
        %5870 = vmatpush1.msra.mxu0 %v5734
        %5871 = vmatprep.subr.mxu0 %v5738
        %5872 = vmatpush1.msra.mxu0 %v5737
        %5873 = vmatprep.subr.mxu0 %v5741
        %5874 = vmatpush1.msra.mxu0 %v5740
        %5875 = vmatprep.subr.mxu0 %v5744
        %5876 = vmatpush1.msra.mxu0 %v5743
        %5877 = vmatprep.subr.mxu0 %v5747
        %5878 = vmatpush1.msra.mxu0 %v5746
        %5879 = vmatprep.subr.mxu0 0.0
        %5880 = vmatpush1.msra.mxu0 0.0
        %5881 = vmatprep.subr.mxu0 0.0
        %5882 = vmatpush1.msra.mxu0 0.0
        %5883 = vmatprep.subr.mxu0 0.0
        %5884 = vmatpush1.msra.mxu0 0.0
        %5885 = vmatprep.subr.mxu0 0.0
        %5886 = vmatpush1.msra.mxu0 0.0
        %5887 = vmatprep.subr.mxu0 0.0
        %5888 = vmatpush1.msra.mxu0 0.0
        %5889 = vmatprep.subr.mxu0 0.0
        %5890 = vmatpush1.msra.mxu0 0.0
        %5891 = vmatprep.subr.mxu0 0.0
        %5892 = vmatpush1.msra.mxu0 0.0
        %5893 = vmatprep.subr.mxu0 0.0
        %5894 = vmatpush1.msra.mxu0 0.0
        %5895 = vmatprep.subr.mxu0 0.0
        %5896 = vmatpush1.msra.mxu0 0.0
        %5897 = vmatprep.subr.mxu0 0.0
        %5898 = vmatpush1.msra.mxu0 0.0
        %5899 = vmatprep.subr.mxu0 0.0
        %5900 = vmatpush1.msra.mxu0 0.0
        %5901 = vmatprep.subr.mxu0 0.0
        %5902 = vmatpush1.msra.mxu0 0.0
        %5903 = vmatprep.subr.mxu0 0.0
        %5904 = vmatpush1.msra.mxu0 0.0
        %5905 = vmatprep.subr.mxu0 0.0
        %5906 = vmatpush1.msra.mxu0 0.0
        %5907 = vmatprep.subr.mxu0 0.0
        %5908 = vmatpush1.msra.mxu0 0.0
        %5909 = vmatprep.subr.mxu0 0.0
        %5910 = vmatpush1.msra.mxu0 0.0
        %5911 = vmatprep.mubr.f32.mxu0 0.0
        %5912 = vmatmul.mubr.f32.gmra.mrb[0].mxu0 %v5757
        %v5913 = vpop.f32.mrb[0].mxu0
        %v5914 = vadd.f32 %v5837, %v5913
        %v5915 = vpop.f32.mrb[0].mxu0
        %v5916 = vadd.f32 %v5839, %v5915
        %5917 = vmatprep.mubr.f32.mxu0 0.0
        %5918 = vmatmul.mubr.f32.gmra.mrb[0].mxu0 %v5763
        %v5919 = vpop.f32.mrb[0].mxu0
        %v5920 = vadd.f32 %v5843, %v5919
        %v5921 = vpop.f32.mrb[0].mxu0
        %v5922 = vadd.f32 %v5845, %v5921
        %5923 = vdwg.mxu0
        %5924 = vmatprep.subr.mxu0 0.0
        %5925 = vmatpush1.msra.mxu0 %v5607
        %5926 = vmatprep.subr.mxu0 0.0
        %5927 = vmatpush1.msra.mxu0 %v5610
        %5928 = vmatprep.subr.mxu0 0.0
        %5929 = vmatpush1.msra.mxu0 %v5613
        %5930 = vmatprep.subr.mxu0 0.0
        %5931 = vmatpush1.msra.mxu0 %v5616
        %5932 = vmatprep.subr.mxu0 0.0
        %5933 = vmatpush1.msra.mxu0 %v5619
        %5934 = vmatprep.subr.mxu0 0.0
        %5935 = vmatpush1.msra.mxu0 %v5622
        %5936 = vmatprep.subr.mxu0 0.0
        %5937 = vmatpush1.msra.mxu0 %v5625
        %5938 = vmatprep.subr.mxu0 0.0
        %5939 = vmatpush1.msra.mxu0 %v5628
        %5940 = vmatprep.subr.mxu0 0.0
        %5941 = vmatpush1.msra.mxu0 %v5631
        %5942 = vmatprep.subr.mxu0 0.0
        %5943 = vmatpush1.msra.mxu0 %v5634
        %5944 = vmatprep.subr.mxu0 0.0
        %5945 = vmatpush1.msra.mxu0 %v5637
        %5946 = vmatprep.subr.mxu0 0.0
        %5947 = vmatpush1.msra.mxu0 %v5640
        %5948 = vmatprep.subr.mxu0 0.0
        %5949 = vmatpush1.msra.mxu0 %v5643
        %5950 = vmatprep.subr.mxu0 0.0
        %5951 = vmatpush1.msra.mxu0 %v5646
        %5952 = vmatprep.subr.mxu0 0.0
        %5953 = vmatpush1.msra.mxu0 %v5649
        %5954 = vmatprep.subr.mxu0 0.0
        %5955 = vmatpush1.msra.mxu0 %v5652
        %5956 = vmatprep.subr.mxu0 0.0
        %5957 = vmatpush1.msra.mxu0 %v5655
        %5958 = vmatprep.subr.mxu0 0.0
        %5959 = vmatpush1.msra.mxu0 %v5658
        %5960 = vmatprep.subr.mxu0 0.0
        %5961 = vmatpush1.msra.mxu0 %v5661
        %5962 = vmatprep.subr.mxu0 0.0
        %5963 = vmatpush1.msra.mxu0 %v5664
        %5964 = vmatprep.subr.mxu0 0.0
        %5965 = vmatpush1.msra.mxu0 %v5667
        %5966 = vmatprep.subr.mxu0 0.0
        %5967 = vmatpush1.msra.mxu0 %v5670
        %5968 = vmatprep.subr.mxu0 0.0
        %5969 = vmatpush1.msra.mxu0 %v5673
        %5970 = vmatprep.subr.mxu0 0.0
        %5971 = vmatpush1.msra.mxu0 %v5676
        %5972 = vmatprep.subr.mxu0 0.0
        %5973 = vmatpush1.msra.mxu0 %v5679
        %5974 = vmatprep.subr.mxu0 0.0
        %5975 = vmatpush1.msra.mxu0 %v5682
        %5976 = vmatprep.subr.mxu0 0.0
        %5977 = vmatpush1.msra.mxu0 %v5685
        %5978 = vmatprep.subr.mxu0 0.0
        %5979 = vmatpush1.msra.mxu0 %v5688
        %5980 = vmatprep.subr.mxu0 0.0
        %5981 = vmatpush1.msra.mxu0 %v5691
        %5982 = vmatprep.subr.mxu0 0.0
        %5983 = vmatpush1.msra.mxu0 %v5694
        %5984 = vmatprep.subr.mxu0 0.0
        %5985 = vmatpush1.msra.mxu0 %v5697
        %5986 = vmatprep.subr.mxu0 0.0
        %5987 = vmatpush1.msra.mxu0 %v5700
        %5988 = vmatprep.mubr.f32.mxu0 %v5754
        %5989 = vmatmul.mubr.f32.gmra.mrb[0].mxu0 %v5751
        %v5990 = vpop.f32.mrb[0].mxu0
        %v5991 = vadd.f32 0.0, %v5990
        %v5992 = vpop.f32.mrb[0].mxu0
        %5993 = vmatprep.mubr.f32.mxu0 %v5761
        %5994 = vmatmul.mubr.f32.gmra.mrb[0].mxu0 %v5759
        %v5995 = vpop.f32.mrb[0].mxu0
        %v5996 = vadd.f32 0.0, %v5995
        %v5997 = vpop.f32.mrb[0].mxu0
        %5998 = vdwg.mxu0
        %5999 = vmatprep.subr.mxu0 0.0
        %6000 = vmatpush1.msra.mxu0 %v5703
        %6001 = vmatprep.subr.mxu0 0.0
        %6002 = vmatpush1.msra.mxu0 %v5706
        %6003 = vmatprep.subr.mxu0 0.0
        %6004 = vmatpush1.msra.mxu0 %v5709
        %6005 = vmatprep.subr.mxu0 0.0
        %6006 = vmatpush1.msra.mxu0 %v5712
        %6007 = vmatprep.subr.mxu0 0.0
        %6008 = vmatpush1.msra.mxu0 %v5715
        %6009 = vmatprep.subr.mxu0 0.0
        %6010 = vmatpush1.msra.mxu0 %v5718
        %6011 = vmatprep.subr.mxu0 0.0
        %6012 = vmatpush1.msra.mxu0 %v5721
        %6013 = vmatprep.subr.mxu0 0.0
        %6014 = vmatpush1.msra.mxu0 %v5724
        %6015 = vmatprep.subr.mxu0 0.0
        %6016 = vmatpush1.msra.mxu0 %v5727
        %6017 = vmatprep.subr.mxu0 0.0
        %6018 = vmatpush1.msra.mxu0 %v5730
        %6019 = vmatprep.subr.mxu0 0.0
        %6020 = vmatpush1.msra.mxu0 %v5733
        %6021 = vmatprep.subr.mxu0 0.0
        %6022 = vmatpush1.msra.mxu0 %v5736
        %6023 = vmatprep.subr.mxu0 0.0
        %6024 = vmatpush1.msra.mxu0 %v5739
        %6025 = vmatprep.subr.mxu0 0.0
        %6026 = vmatpush1.msra.mxu0 %v5742
        %6027 = vmatprep.subr.mxu0 0.0
        %6028 = vmatpush1.msra.mxu0 %v5745
        %6029 = vmatprep.subr.mxu0 0.0
        %6030 = vmatpush1.msra.mxu0 %v5748
        %6031 = vmatprep.subr.mxu0 0.0
        %6032 = vmatpush1.msra.mxu0 0.0
        %6033 = vmatprep.subr.mxu0 0.0
        %6034 = vmatpush1.msra.mxu0 0.0
        %6035 = vmatprep.subr.mxu0 0.0
        %6036 = vmatpush1.msra.mxu0 0.0
        %6037 = vmatprep.subr.mxu0 0.0
        %6038 = vmatpush1.msra.mxu0 0.0
        %6039 = vmatprep.subr.mxu0 0.0
        %6040 = vmatpush1.msra.mxu0 0.0
        %6041 = vmatprep.subr.mxu0 0.0
        %6042 = vmatpush1.msra.mxu0 0.0
        %6043 = vmatprep.subr.mxu0 0.0
        %6044 = vmatpush1.msra.mxu0 0.0
        %6045 = vmatprep.subr.mxu0 0.0
        %6046 = vmatpush1.msra.mxu0 0.0
        %6047 = vmatprep.subr.mxu0 0.0
        %6048 = vmatpush1.msra.mxu0 0.0
        %6049 = vmatprep.subr.mxu0 0.0
        %6050 = vmatpush1.msra.mxu0 0.0
        %6051 = vmatprep.subr.mxu0 0.0
        %6052 = vmatpush1.msra.mxu0 0.0
        %6053 = vmatprep.subr.mxu0 0.0
        %6054 = vmatpush1.msra.mxu0 0.0
        %6055 = vmatprep.subr.mxu0 0.0
        %6056 = vmatpush1.msra.mxu0 0.0
        %6057 = vmatprep.subr.mxu0 0.0
        %6058 = vmatpush1.msra.mxu0 0.0
        %6059 = vmatprep.subr.mxu0 0.0
        %6060 = vmatpush1.msra.mxu0 0.0
        %6061 = vmatprep.subr.mxu0 0.0
        %6062 = vmatpush1.msra.mxu0 0.0
        %6063 = vmatprep.mubr.f32.mxu0 0.0
        %6064 = vmatmul.mubr.f32.gmra.mrb[0].mxu0 %v5757
        %v6065 = vpop.f32.mrb[0].mxu0
        %v6066 = vadd.f32 %v5991, %v6065
        %v6067 = vpop.f32.mrb[0].mxu0
        %6068 = vmatprep.mubr.f32.mxu0 0.0
        %6069 = vmatmul.mubr.f32.gmra.mrb[0].mxu0 %v5763
        %v6070 = vpop.f32.mrb[0].mxu0
        %v6071 = vadd.f32 %v5996, %v6070
        %v6072 = vpop.f32.mrb[0].mxu0
        %6073 = vdwg.mxu0
        %v6074 = vadd.f32 %v5444, %v5914
        %v6075 = vadd.f32 %v5446, %v5916
        %v6076 = vadd.f32 %v5596, %v6066
        %v6077 = vadd.f32 %v5450, %v5920
        %v6078 = vadd.f32 %v5452, %v5922
        %v6079 = vadd.f32 %v5601, %v6071
        %v6080 = vld [vmem:[%s10] sm:$0x7]
        %v6082 = vlaneseq
        %v6083 = vshrl.u32 %v6082, 7
        %v6084 = vsub.s32 0, %v6083
        %v6085 = vrot.slane %v6080, %v6084
        %v6086 = vlaneseq
        %v6087 = vshrl.u32 %v6086, 7
        %v6088 = vsub.s32 1, %v6087
        %v6089 = vrot.slane %v6080, %v6088
        %v6090 = vlaneseq
        %v6091 = vshrl.u32 %v6090, 7
        %v6092 = vsub.s32 2, %v6091
        %v6093 = vrot.slane %v6080, %v6092
        %v6097 = vadd.f32 %v6074, %v6085
        %v6098 = vadd.f32 %v6075, %v6089
        %v6099 = vadd.f32 %v6076, %v6093
        %v6100 = vadd.f32 %v6077, %v6085
        %v6101 = vadd.f32 %v6078, %v6089
        %v6102 = vadd.f32 %v6079, %v6093
        %v6103 = vld [vmem:[%s12] sm:$0x1]
        %v6104 = vld [vmem:[%s11] sm:$0xff]
        %v6105 = vld [vmem:[%s11 + $0x8] sm:$0xff]
        %v6106 = vld [vmem:[%s11 + $0x10] sm:$0xff]
        %v6107 = vld [vmem:[%s11 + $0x18] sm:$0xff]
        %v6108 = vld [vmem:[%s11 + $0x20] sm:$0xff]
        %v6109 = vld [vmem:[%s11 + $0x28] sm:$0xff]
        %v6110 = vld [vmem:[%s11 + $0x30] sm:$0xff]
        %v6111 = vld [vmem:[%s11 + $0x38] sm:$0xff]
        %v6112 = vld [vmem:[%s11 + $0x40] sm:$0xff]
        %v6113 = vld [vmem:[%s11 + $0x48] sm:$0xff]
        %v6114 = vld [vmem:[%s11 + $0x50] sm:$0xff]
        %v6115 = vld [vmem:[%s11 + $0x58] sm:$0xff]
        %v6116 = vld [vmem:[%s11 + $0x60] sm:$0xff]
        %v6117 = vld [vmem:[%s11 + $0x68] sm:$0xff]
        %v6118 = vld [vmem:[%s11 + $0x70] sm:$0xff]
        %v6119 = vld [vmem:[%s11 + $0x78] sm:$0xff]
        %v6120 = vld [vmem:[%s11 + $0x80] sm:$0xff]
        %v6121 = vld [vmem:[%s11 + $0x88] sm:$0xff]
        %v6122 = vld [vmem:[%s11 + $0x90] sm:$0xff]
        %v6123 = vld [vmem:[%s11 + $0x98] sm:$0xff]
        %v6124 = vld [vmem:[%s11 + $0xa0] sm:$0xff]
        %v6125 = vld [vmem:[%s11 + $0xa8] sm:$0xff]
        %v6126 = vld [vmem:[%s11 + $0xb0] sm:$0xff]
        %v6127 = vld [vmem:[%s11 + $0xb8] sm:$0xff]
        %v6128 = vld [vmem:[%s11 + $0xc0] sm:$0xff]
        %v6129 = vld [vmem:[%s11 + $0xc8] sm:$0xff]
        %v6130 = vld [vmem:[%s11 + $0xd0] sm:$0xff]
        %v6131 = vld [vmem:[%s11 + $0xd8] sm:$0xff]
        %v6132 = vld [vmem:[%s11 + $0xe0] sm:$0xff]
        %v6133 = vld [vmem:[%s11 + $0xe8] sm:$0xff]
        %v6134 = vld [vmem:[%s11 + $0xf0] sm:$0xff]
        %v6135 = vld [vmem:[%s11 + $0xf8] sm:$0xff]
        %v6136 = vld [vmem:[%s11 + $0x100] sm:$0xff]
        %v6137 = vld [vmem:[%s11 + $0x108] sm:$0xff]
        %v6138 = vld [vmem:[%s11 + $0x110] sm:$0xff]
        %v6139 = vld [vmem:[%s11 + $0x118] sm:$0xff]
        %v6140 = vld [vmem:[%s11 + $0x120] sm:$0xff]
        %v6141 = vld [vmem:[%s11 + $0x128] sm:$0xff]
        %v6142 = vld [vmem:[%s11 + $0x130] sm:$0xff]
        %v6143 = vld [vmem:[%s11 + $0x138] sm:$0xff]
        %v6144 = vld [vmem:[%s11 + $0x140] sm:$0xff]
        %v6145 = vld [vmem:[%s11 + $0x148] sm:$0xff]
        %v6146 = vld [vmem:[%s11 + $0x150] sm:$0xff]
        %v6147 = vld [vmem:[%s11 + $0x158] sm:$0xff]
        %v6148 = vld [vmem:[%s11 + $0x160] sm:$0xff]
        %v6149 = vld [vmem:[%s11 + $0x168] sm:$0xff]
        %v6150 = vld [vmem:[%s11 + $0x170] sm:$0xff]
        %v6151 = vld [vmem:[%s11 + $0x178] sm:$0xff]
        %6152 = vmatprep.subr.mxu0 0.0
        %6153 = vmatpush1.msra.mxu0 %v6104
        %6154 = vmatprep.subr.mxu0 0.0
        %6155 = vmatpush1.msra.mxu0 %v6105
        %6156 = vmatprep.subr.mxu0 0.0
        %6157 = vmatpush1.msra.mxu0 %v6106
        %6158 = vmatprep.subr.mxu0 0.0
        %6159 = vmatpush1.msra.mxu0 %v6107
        %6160 = vmatprep.subr.mxu0 0.0
        %6161 = vmatpush1.msra.mxu0 %v6108
        %6162 = vmatprep.subr.mxu0 0.0
        %6163 = vmatpush1.msra.mxu0 %v6109
        %6164 = vmatprep.subr.mxu0 0.0
        %6165 = vmatpush1.msra.mxu0 %v6110
        %6166 = vmatprep.subr.mxu0 0.0
        %6167 = vmatpush1.msra.mxu0 %v6111
        %6168 = vmatprep.subr.mxu0 0.0
        %6169 = vmatpush1.msra.mxu0 %v6112
        %6170 = vmatprep.subr.mxu0 0.0
        %6171 = vmatpush1.msra.mxu0 %v6113
        %6172 = vmatprep.subr.mxu0 0.0
        %6173 = vmatpush1.msra.mxu0 %v6114
        %6174 = vmatprep.subr.mxu0 0.0
        %6175 = vmatpush1.msra.mxu0 %v6115
        %6176 = vmatprep.subr.mxu0 0.0
        %6177 = vmatpush1.msra.mxu0 %v6116
        %6178 = vmatprep.subr.mxu0 0.0
        %6179 = vmatpush1.msra.mxu0 %v6117
        %6180 = vmatprep.subr.mxu0 0.0
        %6181 = vmatpush1.msra.mxu0 %v6118
        %6182 = vmatprep.subr.mxu0 0.0
        %6183 = vmatpush1.msra.mxu0 %v6119
        %6184 = vmatprep.subr.mxu0 0.0
        %6185 = vmatpush1.msra.mxu0 %v6120
        %6186 = vmatprep.subr.mxu0 0.0
        %6187 = vmatpush1.msra.mxu0 %v6121
        %6188 = vmatprep.subr.mxu0 0.0
        %6189 = vmatpush1.msra.mxu0 %v6122
        %6190 = vmatprep.subr.mxu0 0.0
        %6191 = vmatpush1.msra.mxu0 %v6123
        %6192 = vmatprep.subr.mxu0 0.0
        %6193 = vmatpush1.msra.mxu0 %v6124
        %6194 = vmatprep.subr.mxu0 0.0
        %6195 = vmatpush1.msra.mxu0 %v6125
        %6196 = vmatprep.subr.mxu0 0.0
        %6197 = vmatpush1.msra.mxu0 %v6126
        %6198 = vmatprep.subr.mxu0 0.0
        %6199 = vmatpush1.msra.mxu0 %v6127
        %6200 = vmatprep.subr.mxu0 0.0
        %6201 = vmatpush1.msra.mxu0 %v6128
        %6202 = vmatprep.subr.mxu0 0.0
        %6203 = vmatpush1.msra.mxu0 %v6129
        %6204 = vmatprep.subr.mxu0 0.0
        %6205 = vmatpush1.msra.mxu0 %v6130
        %6206 = vmatprep.subr.mxu0 0.0
        %6207 = vmatpush1.msra.mxu0 %v6131
        %6208 = vmatprep.subr.mxu0 0.0
        %6209 = vmatpush1.msra.mxu0 %v6132
        %6210 = vmatprep.subr.mxu0 0.0
        %6211 = vmatpush1.msra.mxu0 %v6133
        %6212 = vmatprep.subr.mxu0 0.0
        %6213 = vmatpush1.msra.mxu0 %v6134
        %6214 = vmatprep.subr.mxu0 0.0
        %6215 = vmatpush1.msra.mxu0 %v6135
        %6216 = vmatprep.mubr.f32.mxu0 %v6098
        %6217 = vmatmul.mubr.f32.gmra.mrb[0].mxu0 %v6097
        %v6218 = vpop.f32.mrb[0].mxu0
        %v6219 = vadd.f32 0.0, %v6218
        %v6220 = vpop.f32.mrb[0].mxu0
        %6221 = vdwg.mxu0
        %6222 = vmatprep.subr.mxu0 0.0
        %6223 = vmatpush1.msra.mxu0 %v6136
        %6224 = vmatprep.subr.mxu0 0.0
        %6225 = vmatpush1.msra.mxu0 %v6137
        %6226 = vmatprep.subr.mxu0 0.0
        %6227 = vmatpush1.msra.mxu0 %v6138
        %6228 = vmatprep.subr.mxu0 0.0
        %6229 = vmatpush1.msra.mxu0 %v6139
        %6230 = vmatprep.subr.mxu0 0.0
        %6231 = vmatpush1.msra.mxu0 %v6140
        %6232 = vmatprep.subr.mxu0 0.0
        %6233 = vmatpush1.msra.mxu0 %v6141
        %6234 = vmatprep.subr.mxu0 0.0
        %6235 = vmatpush1.msra.mxu0 %v6142
        %6236 = vmatprep.subr.mxu0 0.0
        %6237 = vmatpush1.msra.mxu0 %v6143
        %6238 = vmatprep.subr.mxu0 0.0
        %6239 = vmatpush1.msra.mxu0 %v6144
        %6240 = vmatprep.subr.mxu0 0.0
        %6241 = vmatpush1.msra.mxu0 %v6145
        %6242 = vmatprep.subr.mxu0 0.0
        %6243 = vmatpush1.msra.mxu0 %v6146
        %6244 = vmatprep.subr.mxu0 0.0
        %6245 = vmatpush1.msra.mxu0 %v6147
        %6246 = vmatprep.subr.mxu0 0.0
        %6247 = vmatpush1.msra.mxu0 %v6148
        %6248 = vmatprep.subr.mxu0 0.0
        %6249 = vmatpush1.msra.mxu0 %v6149
        %6250 = vmatprep.subr.mxu0 0.0
        %6251 = vmatpush1.msra.mxu0 %v6150
        %6252 = vmatprep.subr.mxu0 0.0
        %6253 = vmatpush1.msra.mxu0 %v6151
        %6254 = vmatprep.subr.mxu0 0.0
        %6255 = vmatpush1.msra.mxu0 0.0
        %6256 = vmatprep.subr.mxu0 0.0
        %6257 = vmatpush1.msra.mxu0 0.0
        %6258 = vmatprep.subr.mxu0 0.0
        %6259 = vmatpush1.msra.mxu0 0.0
        %6260 = vmatprep.subr.mxu0 0.0
        %6261 = vmatpush1.msra.mxu0 0.0
        %6262 = vmatprep.subr.mxu0 0.0
        %6263 = vmatpush1.msra.mxu0 0.0
        %6264 = vmatprep.subr.mxu0 0.0
        %6265 = vmatpush1.msra.mxu0 0.0
        %6266 = vmatprep.subr.mxu0 0.0
        %6267 = vmatpush1.msra.mxu0 0.0
        %6268 = vmatprep.subr.mxu0 0.0
        %6269 = vmatpush1.msra.mxu0 0.0
        %6270 = vmatprep.subr.mxu0 0.0
        %6271 = vmatpush1.msra.mxu0 0.0
        %6272 = vmatprep.subr.mxu0 0.0
        %6273 = vmatpush1.msra.mxu0 0.0
        %6274 = vmatprep.subr.mxu0 0.0
        %6275 = vmatpush1.msra.mxu0 0.0
        %6276 = vmatprep.subr.mxu0 0.0
        %6277 = vmatpush1.msra.mxu0 0.0
        %6278 = vmatprep.subr.mxu0 0.0
        %6279 = vmatpush1.msra.mxu0 0.0
        %6280 = vmatprep.subr.mxu0 0.0
        %6281 = vmatpush1.msra.mxu0 0.0
        %6282 = vmatprep.subr.mxu0 0.0
        %6283 = vmatpush1.msra.mxu0 0.0
        %6284 = vmatprep.subr.mxu0 0.0
        %6285 = vmatpush1.msra.mxu0 0.0
        %6286 = vmatprep.mubr.f32.mxu0 0.0
        %6287 = vmatmul.mubr.f32.gmra.mrb[0].mxu0 %v6099
        %v6288 = vpop.f32.mrb[0].mxu0
        %v6289 = vadd.f32 %v6219, %v6288
        %v6290 = vpop.f32.mrb[0].mxu0
        %6291 = vdwg.mxu0
        %v6292 = vadd.f32 %v6103, %v6289
        %s6293 = scalar_lea.vmem %s11, 384
        %v6294 = vld [vmem:[%s6293] sm:$0xff]
        %v6295 = vld [vmem:[%s6293 + $0x8] sm:$0xff]
        %v6296 = vld [vmem:[%s6293 + $0x10] sm:$0xff]
        %v6297 = vld [vmem:[%s6293 + $0x18] sm:$0xff]
        %v6298 = vld [vmem:[%s6293 + $0x20] sm:$0xff]
        %v6299 = vld [vmem:[%s6293 + $0x28] sm:$0xff]
        %v6300 = vld [vmem:[%s6293 + $0x30] sm:$0xff]
        %v6301 = vld [vmem:[%s6293 + $0x38] sm:$0xff]
        %v6302 = vld [vmem:[%s6293 + $0x40] sm:$0xff]
        %v6303 = vld [vmem:[%s6293 + $0x48] sm:$0xff]
        %v6304 = vld [vmem:[%s6293 + $0x50] sm:$0xff]
        %v6305 = vld [vmem:[%s6293 + $0x58] sm:$0xff]
        %v6306 = vld [vmem:[%s6293 + $0x60] sm:$0xff]
        %v6307 = vld [vmem:[%s6293 + $0x68] sm:$0xff]
        %v6308 = vld [vmem:[%s6293 + $0x70] sm:$0xff]
        %v6309 = vld [vmem:[%s6293 + $0x78] sm:$0xff]
        %v6310 = vld [vmem:[%s6293 + $0x80] sm:$0xff]
        %v6311 = vld [vmem:[%s6293 + $0x88] sm:$0xff]
        %v6312 = vld [vmem:[%s6293 + $0x90] sm:$0xff]
        %v6313 = vld [vmem:[%s6293 + $0x98] sm:$0xff]
        %v6314 = vld [vmem:[%s6293 + $0xa0] sm:$0xff]
        %v6315 = vld [vmem:[%s6293 + $0xa8] sm:$0xff]
        %v6316 = vld [vmem:[%s6293 + $0xb0] sm:$0xff]
        %v6317 = vld [vmem:[%s6293 + $0xb8] sm:$0xff]
        %v6318 = vld [vmem:[%s6293 + $0xc0] sm:$0xff]
        %v6319 = vld [vmem:[%s6293 + $0xc8] sm:$0xff]
        %v6320 = vld [vmem:[%s6293 + $0xd0] sm:$0xff]
        %v6321 = vld [vmem:[%s6293 + $0xd8] sm:$0xff]
        %v6322 = vld [vmem:[%s6293 + $0xe0] sm:$0xff]
        %v6323 = vld [vmem:[%s6293 + $0xe8] sm:$0xff]
        %v6324 = vld [vmem:[%s6293 + $0xf0] sm:$0xff]
        %v6325 = vld [vmem:[%s6293 + $0xf8] sm:$0xff]
        %v6326 = vld [vmem:[%s6293 + $0x100] sm:$0xff]
        %v6327 = vld [vmem:[%s6293 + $0x108] sm:$0xff]
        %v6328 = vld [vmem:[%s6293 + $0x110] sm:$0xff]
        %v6329 = vld [vmem:[%s6293 + $0x118] sm:$0xff]
        %v6330 = vld [vmem:[%s6293 + $0x120] sm:$0xff]
        %v6331 = vld [vmem:[%s6293 + $0x128] sm:$0xff]
        %v6332 = vld [vmem:[%s6293 + $0x130] sm:$0xff]
        %v6333 = vld [vmem:[%s6293 + $0x138] sm:$0xff]
        %v6334 = vld [vmem:[%s6293 + $0x140] sm:$0xff]
        %v6335 = vld [vmem:[%s6293 + $0x148] sm:$0xff]
        %v6336 = vld [vmem:[%s6293 + $0x150] sm:$0xff]
        %v6337 = vld [vmem:[%s6293 + $0x158] sm:$0xff]
        %v6338 = vld [vmem:[%s6293 + $0x160] sm:$0xff]
        %v6339 = vld [vmem:[%s6293 + $0x168] sm:$0xff]
        %v6340 = vld [vmem:[%s6293 + $0x170] sm:$0xff]
        %v6341 = vld [vmem:[%s6293 + $0x178] sm:$0xff]
        %v6345 = vrot.slane %v6097, 1
        %v6346 = vrot.slane %v6098, 1
        %v6347 = vrot.slane %v6099, 1
        %6351 = vmatprep.subr.mxu0 0.0
        %6352 = vmatpush1.msra.mxu0 %v6294
        %6353 = vmatprep.subr.mxu0 0.0
        %6354 = vmatpush1.msra.mxu0 %v6295
        %6355 = vmatprep.subr.mxu0 0.0
        %6356 = vmatpush1.msra.mxu0 %v6296
        %6357 = vmatprep.subr.mxu0 0.0
        %6358 = vmatpush1.msra.mxu0 %v6297
        %6359 = vmatprep.subr.mxu0 0.0
        %6360 = vmatpush1.msra.mxu0 %v6298
        %6361 = vmatprep.subr.mxu0 0.0
        %6362 = vmatpush1.msra.mxu0 %v6299
        %6363 = vmatprep.subr.mxu0 0.0
        %6364 = vmatpush1.msra.mxu0 %v6300
        %6365 = vmatprep.subr.mxu0 0.0
        %6366 = vmatpush1.msra.mxu0 %v6301
        %6367 = vmatprep.subr.mxu0 0.0
        %6368 = vmatpush1.msra.mxu0 %v6302
        %6369 = vmatprep.subr.mxu0 0.0
        %6370 = vmatpush1.msra.mxu0 %v6303
        %6371 = vmatprep.subr.mxu0 0.0
        %6372 = vmatpush1.msra.mxu0 %v6304
        %6373 = vmatprep.subr.mxu0 0.0
        %6374 = vmatpush1.msra.mxu0 %v6305
        %6375 = vmatprep.subr.mxu0 0.0
        %6376 = vmatpush1.msra.mxu0 %v6306
        %6377 = vmatprep.subr.mxu0 0.0
        %6378 = vmatpush1.msra.mxu0 %v6307
        %6379 = vmatprep.subr.mxu0 0.0
        %6380 = vmatpush1.msra.mxu0 %v6308
        %6381 = vmatprep.subr.mxu0 0.0
        %6382 = vmatpush1.msra.mxu0 %v6309
        %6383 = vmatprep.subr.mxu0 0.0
        %6384 = vmatpush1.msra.mxu0 %v6310
        %6385 = vmatprep.subr.mxu0 0.0
        %6386 = vmatpush1.msra.mxu0 %v6311
        %6387 = vmatprep.subr.mxu0 0.0
        %6388 = vmatpush1.msra.mxu0 %v6312
        %6389 = vmatprep.subr.mxu0 0.0
        %6390 = vmatpush1.msra.mxu0 %v6313
        %6391 = vmatprep.subr.mxu0 0.0
        %6392 = vmatpush1.msra.mxu0 %v6314
        %6393 = vmatprep.subr.mxu0 0.0
        %6394 = vmatpush1.msra.mxu0 %v6315
        %6395 = vmatprep.subr.mxu0 0.0
        %6396 = vmatpush1.msra.mxu0 %v6316
        %6397 = vmatprep.subr.mxu0 0.0
        %6398 = vmatpush1.msra.mxu0 %v6317
        %6399 = vmatprep.subr.mxu0 0.0
        %6400 = vmatpush1.msra.mxu0 %v6318
        %6401 = vmatprep.subr.mxu0 0.0
        %6402 = vmatpush1.msra.mxu0 %v6319
        %6403 = vmatprep.subr.mxu0 0.0
        %6404 = vmatpush1.msra.mxu0 %v6320
        %6405 = vmatprep.subr.mxu0 0.0
        %6406 = vmatpush1.msra.mxu0 %v6321
        %6407 = vmatprep.subr.mxu0 0.0
        %6408 = vmatpush1.msra.mxu0 %v6322
        %6409 = vmatprep.subr.mxu0 0.0
        %6410 = vmatpush1.msra.mxu0 %v6323
        %6411 = vmatprep.subr.mxu0 0.0
        %6412 = vmatpush1.msra.mxu0 %v6324
        %6413 = vmatprep.subr.mxu0 0.0
        %6414 = vmatpush1.msra.mxu0 %v6325
        %6415 = vmatprep.mubr.f32.mxu0 %v6346
        %6416 = vmatmul.mubr.f32.gmra.mrb[0].mxu0 %v6345
        %v6417 = vpop.f32.mrb[0].mxu0
        %v6418 = vadd.f32 0.0, %v6417
        %v6419 = vpop.f32.mrb[0].mxu0
        %6420 = vdwg.mxu0
        %6421 = vmatprep.subr.mxu0 0.0
        %6422 = vmatpush1.msra.mxu0 %v6326
        %6423 = vmatprep.subr.mxu0 0.0
        %6424 = vmatpush1.msra.mxu0 %v6327
        %6425 = vmatprep.subr.mxu0 0.0
        %6426 = vmatpush1.msra.mxu0 %v6328
        %6427 = vmatprep.subr.mxu0 0.0
        %6428 = vmatpush1.msra.mxu0 %v6329
        %6429 = vmatprep.subr.mxu0 0.0
        %6430 = vmatpush1.msra.mxu0 %v6330
        %6431 = vmatprep.subr.mxu0 0.0
        %6432 = vmatpush1.msra.mxu0 %v6331
        %6433 = vmatprep.subr.mxu0 0.0
        %6434 = vmatpush1.msra.mxu0 %v6332
        %6435 = vmatprep.subr.mxu0 0.0
        %6436 = vmatpush1.msra.mxu0 %v6333
        %6437 = vmatprep.subr.mxu0 0.0
        %6438 = vmatpush1.msra.mxu0 %v6334
        %6439 = vmatprep.subr.mxu0 0.0
        %6440 = vmatpush1.msra.mxu0 %v6335
        %6441 = vmatprep.subr.mxu0 0.0
        %6442 = vmatpush1.msra.mxu0 %v6336
        %6443 = vmatprep.subr.mxu0 0.0
        %6444 = vmatpush1.msra.mxu0 %v6337
        %6445 = vmatprep.subr.mxu0 0.0
        %6446 = vmatpush1.msra.mxu0 %v6338
        %6447 = vmatprep.subr.mxu0 0.0
        %6448 = vmatpush1.msra.mxu0 %v6339
        %6449 = vmatprep.subr.mxu0 0.0
        %6450 = vmatpush1.msra.mxu0 %v6340
        %6451 = vmatprep.subr.mxu0 0.0
        %6452 = vmatpush1.msra.mxu0 %v6341
        %6453 = vmatprep.subr.mxu0 0.0
        %6454 = vmatpush1.msra.mxu0 0.0
        %6455 = vmatprep.subr.mxu0 0.0
        %6456 = vmatpush1.msra.mxu0 0.0
        %6457 = vmatprep.subr.mxu0 0.0
        %6458 = vmatpush1.msra.mxu0 0.0
        %6459 = vmatprep.subr.mxu0 0.0
        %6460 = vmatpush1.msra.mxu0 0.0
        %6461 = vmatprep.subr.mxu0 0.0
        %6462 = vmatpush1.msra.mxu0 0.0
        %6463 = vmatprep.subr.mxu0 0.0
        %6464 = vmatpush1.msra.mxu0 0.0
        %6465 = vmatprep.subr.mxu0 0.0
        %6466 = vmatpush1.msra.mxu0 0.0
        %6467 = vmatprep.subr.mxu0 0.0
        %6468 = vmatpush1.msra.mxu0 0.0
        %6469 = vmatprep.subr.mxu0 0.0
        %6470 = vmatpush1.msra.mxu0 0.0
        %6471 = vmatprep.subr.mxu0 0.0
        %6472 = vmatpush1.msra.mxu0 0.0
        %6473 = vmatprep.subr.mxu0 0.0
        %6474 = vmatpush1.msra.mxu0 0.0
        %6475 = vmatprep.subr.mxu0 0.0
        %6476 = vmatpush1.msra.mxu0 0.0
        %6477 = vmatprep.subr.mxu0 0.0
        %6478 = vmatpush1.msra.mxu0 0.0
        %6479 = vmatprep.subr.mxu0 0.0
        %6480 = vmatpush1.msra.mxu0 0.0
        %6481 = vmatprep.subr.mxu0 0.0
        %6482 = vmatpush1.msra.mxu0 0.0
        %6483 = vmatprep.subr.mxu0 0.0
        %6484 = vmatpush1.msra.mxu0 0.0
        %6485 = vmatprep.mubr.f32.mxu0 0.0
        %6486 = vmatmul.mubr.f32.gmra.mrb[0].mxu0 %v6347
        %v6487 = vpop.f32.mrb[0].mxu0
        %v6488 = vadd.f32 %v6418, %v6487
        %v6489 = vpop.f32.mrb[0].mxu0
        %6490 = vdwg.mxu0
        %v6491 = vadd.f32 %v6292, %v6488
        %s6492 = scalar_lea.vmem %s11, 768
        %v6493 = vld [vmem:[%s6492] sm:$0xff]
        %v6494 = vld [vmem:[%s6492 + $0x8] sm:$0xff]
        %v6495 = vld [vmem:[%s6492 + $0x10] sm:$0xff]
        %v6496 = vld [vmem:[%s6492 + $0x18] sm:$0xff]
        %v6497 = vld [vmem:[%s6492 + $0x20] sm:$0xff]
        %v6498 = vld [vmem:[%s6492 + $0x28] sm:$0xff]
        %v6499 = vld [vmem:[%s6492 + $0x30] sm:$0xff]
        %v6500 = vld [vmem:[%s6492 + $0x38] sm:$0xff]
        %v6501 = vld [vmem:[%s6492 + $0x40] sm:$0xff]
        %v6502 = vld [vmem:[%s6492 + $0x48] sm:$0xff]
        %v6503 = vld [vmem:[%s6492 + $0x50] sm:$0xff]
        %v6504 = vld [vmem:[%s6492 + $0x58] sm:$0xff]
        %v6505 = vld [vmem:[%s6492 + $0x60] sm:$0xff]
        %v6506 = vld [vmem:[%s6492 + $0x68] sm:$0xff]
        %v6507 = vld [vmem:[%s6492 + $0x70] sm:$0xff]
        %v6508 = vld [vmem:[%s6492 + $0x78] sm:$0xff]
        %v6509 = vld [vmem:[%s6492 + $0x80] sm:$0xff]
        %v6510 = vld [vmem:[%s6492 + $0x88] sm:$0xff]
        %v6511 = vld [vmem:[%s6492 + $0x90] sm:$0xff]
        %v6512 = vld [vmem:[%s6492 + $0x98] sm:$0xff]
        %v6513 = vld [vmem:[%s6492 + $0xa0] sm:$0xff]
        %v6514 = vld [vmem:[%s6492 + $0xa8] sm:$0xff]
        %v6515 = vld [vmem:[%s6492 + $0xb0] sm:$0xff]
        %v6516 = vld [vmem:[%s6492 + $0xb8] sm:$0xff]
        %v6517 = vld [vmem:[%s6492 + $0xc0] sm:$0xff]
        %v6518 = vld [vmem:[%s6492 + $0xc8] sm:$0xff]
        %v6519 = vld [vmem:[%s6492 + $0xd0] sm:$0xff]
        %v6520 = vld [vmem:[%s6492 + $0xd8] sm:$0xff]
        %v6521 = vld [vmem:[%s6492 + $0xe0] sm:$0xff]
        %v6522 = vld [vmem:[%s6492 + $0xe8] sm:$0xff]
        %v6523 = vld [vmem:[%s6492 + $0xf0] sm:$0xff]
        %v6524 = vld [vmem:[%s6492 + $0xf8] sm:$0xff]
        %v6525 = vld [vmem:[%s6492 + $0x100] sm:$0xff]
        %v6526 = vld [vmem:[%s6492 + $0x108] sm:$0xff]
        %v6527 = vld [vmem:[%s6492 + $0x110] sm:$0xff]
        %v6528 = vld [vmem:[%s6492 + $0x118] sm:$0xff]
        %v6529 = vld [vmem:[%s6492 + $0x120] sm:$0xff]
        %v6530 = vld [vmem:[%s6492 + $0x128] sm:$0xff]
        %v6531 = vld [vmem:[%s6492 + $0x130] sm:$0xff]
        %v6532 = vld [vmem:[%s6492 + $0x138] sm:$0xff]
        %v6533 = vld [vmem:[%s6492 + $0x140] sm:$0xff]
        %v6534 = vld [vmem:[%s6492 + $0x148] sm:$0xff]
        %v6535 = vld [vmem:[%s6492 + $0x150] sm:$0xff]
        %v6536 = vld [vmem:[%s6492 + $0x158] sm:$0xff]
        %v6537 = vld [vmem:[%s6492 + $0x160] sm:$0xff]
        %v6538 = vld [vmem:[%s6492 + $0x168] sm:$0xff]
        %v6539 = vld [vmem:[%s6492 + $0x170] sm:$0xff]
        %v6540 = vld [vmem:[%s6492 + $0x178] sm:$0xff]
        %v6541 = vrot.slane %v6097, 2
        %v6542 = vrot.slane %v6098, 2
        %v6543 = vrot.slane %v6099, 2
        %6547 = vmatprep.subr.mxu0 0.0
        %6548 = vmatpush1.msra.mxu0 %v6493
        %6549 = vmatprep.subr.mxu0 0.0
        %6550 = vmatpush1.msra.mxu0 %v6494
        %6551 = vmatprep.subr.mxu0 0.0
        %6552 = vmatpush1.msra.mxu0 %v6495
        %6553 = vmatprep.subr.mxu0 0.0
        %6554 = vmatpush1.msra.mxu0 %v6496
        %6555 = vmatprep.subr.mxu0 0.0
        %6556 = vmatpush1.msra.mxu0 %v6497
        %6557 = vmatprep.subr.mxu0 0.0
        %6558 = vmatpush1.msra.mxu0 %v6498
        %6559 = vmatprep.subr.mxu0 0.0
        %6560 = vmatpush1.msra.mxu0 %v6499
        %6561 = vmatprep.subr.mxu0 0.0
        %6562 = vmatpush1.msra.mxu0 %v6500
        %6563 = vmatprep.subr.mxu0 0.0
        %6564 = vmatpush1.msra.mxu0 %v6501
        %6565 = vmatprep.subr.mxu0 0.0
        %6566 = vmatpush1.msra.mxu0 %v6502
        %6567 = vmatprep.subr.mxu0 0.0
        %6568 = vmatpush1.msra.mxu0 %v6503
        %6569 = vmatprep.subr.mxu0 0.0
        %6570 = vmatpush1.msra.mxu0 %v6504
        %6571 = vmatprep.subr.mxu0 0.0
        %6572 = vmatpush1.msra.mxu0 %v6505
        %6573 = vmatprep.subr.mxu0 0.0
        %6574 = vmatpush1.msra.mxu0 %v6506
        %6575 = vmatprep.subr.mxu0 0.0
        %6576 = vmatpush1.msra.mxu0 %v6507
        %6577 = vmatprep.subr.mxu0 0.0
        %6578 = vmatpush1.msra.mxu0 %v6508
        %6579 = vmatprep.subr.mxu0 0.0
        %6580 = vmatpush1.msra.mxu0 %v6509
        %6581 = vmatprep.subr.mxu0 0.0
        %6582 = vmatpush1.msra.mxu0 %v6510
        %6583 = vmatprep.subr.mxu0 0.0
        %6584 = vmatpush1.msra.mxu0 %v6511
        %6585 = vmatprep.subr.mxu0 0.0
        %6586 = vmatpush1.msra.mxu0 %v6512
        %6587 = vmatprep.subr.mxu0 0.0
        %6588 = vmatpush1.msra.mxu0 %v6513
        %6589 = vmatprep.subr.mxu0 0.0
        %6590 = vmatpush1.msra.mxu0 %v6514
        %6591 = vmatprep.subr.mxu0 0.0
        %6592 = vmatpush1.msra.mxu0 %v6515
        %6593 = vmatprep.subr.mxu0 0.0
        %6594 = vmatpush1.msra.mxu0 %v6516
        %6595 = vmatprep.subr.mxu0 0.0
        %6596 = vmatpush1.msra.mxu0 %v6517
        %6597 = vmatprep.subr.mxu0 0.0
        %6598 = vmatpush1.msra.mxu0 %v6518
        %6599 = vmatprep.subr.mxu0 0.0
        %6600 = vmatpush1.msra.mxu0 %v6519
        %6601 = vmatprep.subr.mxu0 0.0
        %6602 = vmatpush1.msra.mxu0 %v6520
        %6603 = vmatprep.subr.mxu0 0.0
        %6604 = vmatpush1.msra.mxu0 %v6521
        %6605 = vmatprep.subr.mxu0 0.0
        %6606 = vmatpush1.msra.mxu0 %v6522
        %6607 = vmatprep.subr.mxu0 0.0
        %6608 = vmatpush1.msra.mxu0 %v6523
        %6609 = vmatprep.subr.mxu0 0.0
        %6610 = vmatpush1.msra.mxu0 %v6524
        %6611 = vmatprep.mubr.f32.mxu0 %v6542
        %6612 = vmatmul.mubr.f32.gmra.mrb[0].mxu0 %v6541
        %v6613 = vpop.f32.mrb[0].mxu0
        %v6614 = vadd.f32 0.0, %v6613
        %v6615 = vpop.f32.mrb[0].mxu0
        %6616 = vdwg.mxu0
        %6617 = vmatprep.subr.mxu0 0.0
        %6618 = vmatpush1.msra.mxu0 %v6525
        %6619 = vmatprep.subr.mxu0 0.0
        %6620 = vmatpush1.msra.mxu0 %v6526
        %6621 = vmatprep.subr.mxu0 0.0
        %6622 = vmatpush1.msra.mxu0 %v6527
        %6623 = vmatprep.subr.mxu0 0.0
        %6624 = vmatpush1.msra.mxu0 %v6528
        %6625 = vmatprep.subr.mxu0 0.0
        %6626 = vmatpush1.msra.mxu0 %v6529
        %6627 = vmatprep.subr.mxu0 0.0
        %6628 = vmatpush1.msra.mxu0 %v6530
        %6629 = vmatprep.subr.mxu0 0.0
        %6630 = vmatpush1.msra.mxu0 %v6531
        %6631 = vmatprep.subr.mxu0 0.0
        %6632 = vmatpush1.msra.mxu0 %v6532
        %6633 = vmatprep.subr.mxu0 0.0
        %6634 = vmatpush1.msra.mxu0 %v6533
        %6635 = vmatprep.subr.mxu0 0.0
        %6636 = vmatpush1.msra.mxu0 %v6534
        %6637 = vmatprep.subr.mxu0 0.0
        %6638 = vmatpush1.msra.mxu0 %v6535
        %6639 = vmatprep.subr.mxu0 0.0
        %6640 = vmatpush1.msra.mxu0 %v6536
        %6641 = vmatprep.subr.mxu0 0.0
        %6642 = vmatpush1.msra.mxu0 %v6537
        %6643 = vmatprep.subr.mxu0 0.0
        %6644 = vmatpush1.msra.mxu0 %v6538
        %6645 = vmatprep.subr.mxu0 0.0
        %6646 = vmatpush1.msra.mxu0 %v6539
        %6647 = vmatprep.subr.mxu0 0.0
        %6648 = vmatpush1.msra.mxu0 %v6540
        %6649 = vmatprep.subr.mxu0 0.0
        %6650 = vmatpush1.msra.mxu0 0.0
        %6651 = vmatprep.subr.mxu0 0.0
        %6652 = vmatpush1.msra.mxu0 0.0
        %6653 = vmatprep.subr.mxu0 0.0
        %6654 = vmatpush1.msra.mxu0 0.0
        %6655 = vmatprep.subr.mxu0 0.0
        %6656 = vmatpush1.msra.mxu0 0.0
        %6657 = vmatprep.subr.mxu0 0.0
        %6658 = vmatpush1.msra.mxu0 0.0
        %6659 = vmatprep.subr.mxu0 0.0
        %6660 = vmatpush1.msra.mxu0 0.0
        %6661 = vmatprep.subr.mxu0 0.0
        %6662 = vmatpush1.msra.mxu0 0.0
        %6663 = vmatprep.subr.mxu0 0.0
        %6664 = vmatpush1.msra.mxu0 0.0
        %6665 = vmatprep.subr.mxu0 0.0
        %6666 = vmatpush1.msra.mxu0 0.0
        %6667 = vmatprep.subr.mxu0 0.0
        %6668 = vmatpush1.msra.mxu0 0.0
        %6669 = vmatprep.subr.mxu0 0.0
        %6670 = vmatpush1.msra.mxu0 0.0
        %6671 = vmatprep.subr.mxu0 0.0
        %6672 = vmatpush1.msra.mxu0 0.0
        %6673 = vmatprep.subr.mxu0 0.0
        %6674 = vmatpush1.msra.mxu0 0.0
        %6675 = vmatprep.subr.mxu0 0.0
        %6676 = vmatpush1.msra.mxu0 0.0
        %6677 = vmatprep.subr.mxu0 0.0
        %6678 = vmatpush1.msra.mxu0 0.0
        %6679 = vmatprep.subr.mxu0 0.0
        %6680 = vmatpush1.msra.mxu0 0.0
        %6681 = vmatprep.mubr.f32.mxu0 0.0
        %6682 = vmatmul.mubr.f32.gmra.mrb[0].mxu0 %v6543
        %v6683 = vpop.f32.mrb[0].mxu0
        %v6684 = vadd.f32 %v6614, %v6683
        %v6685 = vpop.f32.mrb[0].mxu0
        %6686 = vdwg.mxu0
        %v6687 = vadd.f32 %v6491, %v6684
        %s6688 = scalar_lea.vmem %s11, 1152
        %v6689 = vld [vmem:[%s6688] sm:$0xff]
        %v6690 = vld [vmem:[%s6688 + $0x8] sm:$0xff]
        %v6691 = vld [vmem:[%s6688 + $0x10] sm:$0xff]
        %v6692 = vld [vmem:[%s6688 + $0x18] sm:$0xff]
        %v6693 = vld [vmem:[%s6688 + $0x20] sm:$0xff]
        %v6694 = vld [vmem:[%s6688 + $0x28] sm:$0xff]
        %v6695 = vld [vmem:[%s6688 + $0x30] sm:$0xff]
        %v6696 = vld [vmem:[%s6688 + $0x38] sm:$0xff]
        %v6697 = vld [vmem:[%s6688 + $0x40] sm:$0xff]
        %v6698 = vld [vmem:[%s6688 + $0x48] sm:$0xff]
        %v6699 = vld [vmem:[%s6688 + $0x50] sm:$0xff]
        %v6700 = vld [vmem:[%s6688 + $0x58] sm:$0xff]
        %v6701 = vld [vmem:[%s6688 + $0x60] sm:$0xff]
        %v6702 = vld [vmem:[%s6688 + $0x68] sm:$0xff]
        %v6703 = vld [vmem:[%s6688 + $0x70] sm:$0xff]
        %v6704 = vld [vmem:[%s6688 + $0x78] sm:$0xff]
        %v6705 = vld [vmem:[%s6688 + $0x80] sm:$0xff]
        %v6706 = vld [vmem:[%s6688 + $0x88] sm:$0xff]
        %v6707 = vld [vmem:[%s6688 + $0x90] sm:$0xff]
        %v6708 = vld [vmem:[%s6688 + $0x98] sm:$0xff]
        %v6709 = vld [vmem:[%s6688 + $0xa0] sm:$0xff]
        %v6710 = vld [vmem:[%s6688 + $0xa8] sm:$0xff]
        %v6711 = vld [vmem:[%s6688 + $0xb0] sm:$0xff]
        %v6712 = vld [vmem:[%s6688 + $0xb8] sm:$0xff]
        %v6713 = vld [vmem:[%s6688 + $0xc0] sm:$0xff]
        %v6714 = vld [vmem:[%s6688 + $0xc8] sm:$0xff]
        %v6715 = vld [vmem:[%s6688 + $0xd0] sm:$0xff]
        %v6716 = vld [vmem:[%s6688 + $0xd8] sm:$0xff]
        %v6717 = vld [vmem:[%s6688 + $0xe0] sm:$0xff]
        %v6718 = vld [vmem:[%s6688 + $0xe8] sm:$0xff]
        %v6719 = vld [vmem:[%s6688 + $0xf0] sm:$0xff]
        %v6720 = vld [vmem:[%s6688 + $0xf8] sm:$0xff]
        %v6721 = vld [vmem:[%s6688 + $0x100] sm:$0xff]
        %v6722 = vld [vmem:[%s6688 + $0x108] sm:$0xff]
        %v6723 = vld [vmem:[%s6688 + $0x110] sm:$0xff]
        %v6724 = vld [vmem:[%s6688 + $0x118] sm:$0xff]
        %v6725 = vld [vmem:[%s6688 + $0x120] sm:$0xff]
        %v6726 = vld [vmem:[%s6688 + $0x128] sm:$0xff]
        %v6727 = vld [vmem:[%s6688 + $0x130] sm:$0xff]
        %v6728 = vld [vmem:[%s6688 + $0x138] sm:$0xff]
        %v6729 = vld [vmem:[%s6688 + $0x140] sm:$0xff]
        %v6730 = vld [vmem:[%s6688 + $0x148] sm:$0xff]
        %v6731 = vld [vmem:[%s6688 + $0x150] sm:$0xff]
        %v6732 = vld [vmem:[%s6688 + $0x158] sm:$0xff]
        %v6733 = vld [vmem:[%s6688 + $0x160] sm:$0xff]
        %v6734 = vld [vmem:[%s6688 + $0x168] sm:$0xff]
        %v6735 = vld [vmem:[%s6688 + $0x170] sm:$0xff]
        %v6736 = vld [vmem:[%s6688 + $0x178] sm:$0xff]
        %v6737 = vrot.slane %v6097, 3
        %v6738 = vrot.slane %v6098, 3
        %v6739 = vrot.slane %v6099, 3
        %6743 = vmatprep.subr.mxu0 0.0
        %6744 = vmatpush1.msra.mxu0 %v6689
        %6745 = vmatprep.subr.mxu0 0.0
        %6746 = vmatpush1.msra.mxu0 %v6690
        %6747 = vmatprep.subr.mxu0 0.0
        %6748 = vmatpush1.msra.mxu0 %v6691
        %6749 = vmatprep.subr.mxu0 0.0
        %6750 = vmatpush1.msra.mxu0 %v6692
        %6751 = vmatprep.subr.mxu0 0.0
        %6752 = vmatpush1.msra.mxu0 %v6693
        %6753 = vmatprep.subr.mxu0 0.0
        %6754 = vmatpush1.msra.mxu0 %v6694
        %6755 = vmatprep.subr.mxu0 0.0
        %6756 = vmatpush1.msra.mxu0 %v6695
        %6757 = vmatprep.subr.mxu0 0.0
        %6758 = vmatpush1.msra.mxu0 %v6696
        %6759 = vmatprep.subr.mxu0 0.0
        %6760 = vmatpush1.msra.mxu0 %v6697
        %6761 = vmatprep.subr.mxu0 0.0
        %6762 = vmatpush1.msra.mxu0 %v6698
        %6763 = vmatprep.subr.mxu0 0.0
        %6764 = vmatpush1.msra.mxu0 %v6699
        %6765 = vmatprep.subr.mxu0 0.0
        %6766 = vmatpush1.msra.mxu0 %v6700
        %6767 = vmatprep.subr.mxu0 0.0
        %6768 = vmatpush1.msra.mxu0 %v6701
        %6769 = vmatprep.subr.mxu0 0.0
        %6770 = vmatpush1.msra.mxu0 %v6702
        %6771 = vmatprep.subr.mxu0 0.0
        %6772 = vmatpush1.msra.mxu0 %v6703
        %6773 = vmatprep.subr.mxu0 0.0
        %6774 = vmatpush1.msra.mxu0 %v6704
        %6775 = vmatprep.subr.mxu0 0.0
        %6776 = vmatpush1.msra.mxu0 %v6705
        %6777 = vmatprep.subr.mxu0 0.0
        %6778 = vmatpush1.msra.mxu0 %v6706
        %6779 = vmatprep.subr.mxu0 0.0
        %6780 = vmatpush1.msra.mxu0 %v6707
        %6781 = vmatprep.subr.mxu0 0.0
        %6782 = vmatpush1.msra.mxu0 %v6708
        %6783 = vmatprep.subr.mxu0 0.0
        %6784 = vmatpush1.msra.mxu0 %v6709
        %6785 = vmatprep.subr.mxu0 0.0
        %6786 = vmatpush1.msra.mxu0 %v6710
        %6787 = vmatprep.subr.mxu0 0.0
        %6788 = vmatpush1.msra.mxu0 %v6711
        %6789 = vmatprep.subr.mxu0 0.0
        %6790 = vmatpush1.msra.mxu0 %v6712
        %6791 = vmatprep.subr.mxu0 0.0
        %6792 = vmatpush1.msra.mxu0 %v6713
        %6793 = vmatprep.subr.mxu0 0.0
        %6794 = vmatpush1.msra.mxu0 %v6714
        %6795 = vmatprep.subr.mxu0 0.0
        %6796 = vmatpush1.msra.mxu0 %v6715
        %6797 = vmatprep.subr.mxu0 0.0
        %6798 = vmatpush1.msra.mxu0 %v6716
        %6799 = vmatprep.subr.mxu0 0.0
        %6800 = vmatpush1.msra.mxu0 %v6717
        %6801 = vmatprep.subr.mxu0 0.0
        %6802 = vmatpush1.msra.mxu0 %v6718
        %6803 = vmatprep.subr.mxu0 0.0
        %6804 = vmatpush1.msra.mxu0 %v6719
        %6805 = vmatprep.subr.mxu0 0.0
        %6806 = vmatpush1.msra.mxu0 %v6720
        %6807 = vmatprep.mubr.f32.mxu0 %v6738
        %6808 = vmatmul.mubr.f32.gmra.mrb[0].mxu0 %v6737
        %v6809 = vpop.f32.mrb[0].mxu0
        %v6810 = vadd.f32 0.0, %v6809
        %v6811 = vpop.f32.mrb[0].mxu0
        %6812 = vdwg.mxu0
        %6813 = vmatprep.subr.mxu0 0.0
        %6814 = vmatpush1.msra.mxu0 %v6721
        %6815 = vmatprep.subr.mxu0 0.0
        %6816 = vmatpush1.msra.mxu0 %v6722
        %6817 = vmatprep.subr.mxu0 0.0
        %6818 = vmatpush1.msra.mxu0 %v6723
        %6819 = vmatprep.subr.mxu0 0.0
        %6820 = vmatpush1.msra.mxu0 %v6724
        %6821 = vmatprep.subr.mxu0 0.0
        %6822 = vmatpush1.msra.mxu0 %v6725
        %6823 = vmatprep.subr.mxu0 0.0
        %6824 = vmatpush1.msra.mxu0 %v6726
        %6825 = vmatprep.subr.mxu0 0.0
        %6826 = vmatpush1.msra.mxu0 %v6727
        %6827 = vmatprep.subr.mxu0 0.0
        %6828 = vmatpush1.msra.mxu0 %v6728
        %6829 = vmatprep.subr.mxu0 0.0
        %6830 = vmatpush1.msra.mxu0 %v6729
        %6831 = vmatprep.subr.mxu0 0.0
        %6832 = vmatpush1.msra.mxu0 %v6730
        %6833 = vmatprep.subr.mxu0 0.0
        %6834 = vmatpush1.msra.mxu0 %v6731
        %6835 = vmatprep.subr.mxu0 0.0
        %6836 = vmatpush1.msra.mxu0 %v6732
        %6837 = vmatprep.subr.mxu0 0.0
        %6838 = vmatpush1.msra.mxu0 %v6733
        %6839 = vmatprep.subr.mxu0 0.0
        %6840 = vmatpush1.msra.mxu0 %v6734
        %6841 = vmatprep.subr.mxu0 0.0
        %6842 = vmatpush1.msra.mxu0 %v6735
        %6843 = vmatprep.subr.mxu0 0.0
        %6844 = vmatpush1.msra.mxu0 %v6736
        %6845 = vmatprep.subr.mxu0 0.0
        %6846 = vmatpush1.msra.mxu0 0.0
        %6847 = vmatprep.subr.mxu0 0.0
        %6848 = vmatpush1.msra.mxu0 0.0
        %6849 = vmatprep.subr.mxu0 0.0
        %6850 = vmatpush1.msra.mxu0 0.0
        %6851 = vmatprep.subr.mxu0 0.0
        %6852 = vmatpush1.msra.mxu0 0.0
        %6853 = vmatprep.subr.mxu0 0.0
        %6854 = vmatpush1.msra.mxu0 0.0
        %6855 = vmatprep.subr.mxu0 0.0
        %6856 = vmatpush1.msra.mxu0 0.0
        %6857 = vmatprep.subr.mxu0 0.0
        %6858 = vmatpush1.msra.mxu0 0.0
        %6859 = vmatprep.subr.mxu0 0.0
        %6860 = vmatpush1.msra.mxu0 0.0
        %6861 = vmatprep.subr.mxu0 0.0
        %6862 = vmatpush1.msra.mxu0 0.0
        %6863 = vmatprep.subr.mxu0 0.0
        %6864 = vmatpush1.msra.mxu0 0.0
        %6865 = vmatprep.subr.mxu0 0.0
        %6866 = vmatpush1.msra.mxu0 0.0
        %6867 = vmatprep.subr.mxu0 0.0
        %6868 = vmatpush1.msra.mxu0 0.0
        %6869 = vmatprep.subr.mxu0 0.0
        %6870 = vmatpush1.msra.mxu0 0.0
        %6871 = vmatprep.subr.mxu0 0.0
        %6872 = vmatpush1.msra.mxu0 0.0
        %6873 = vmatprep.subr.mxu0 0.0
        %6874 = vmatpush1.msra.mxu0 0.0
        %6875 = vmatprep.subr.mxu0 0.0
        %6876 = vmatpush1.msra.mxu0 0.0
        %6877 = vmatprep.mubr.f32.mxu0 0.0
        %6878 = vmatmul.mubr.f32.gmra.mrb[0].mxu0 %v6739
        %v6879 = vpop.f32.mrb[0].mxu0
        %v6880 = vadd.f32 %v6810, %v6879
        %v6881 = vpop.f32.mrb[0].mxu0
        %6882 = vdwg.mxu0
        %v6883 = vadd.f32 %v6687, %v6880
        %s6884 = scalar_lea.vmem %s11, 1536
        %v6885 = vld [vmem:[%s6884] sm:$0xff]
        %v6886 = vld [vmem:[%s6884 + $0x8] sm:$0xff]
        %v6887 = vld [vmem:[%s6884 + $0x10] sm:$0xff]
        %v6888 = vld [vmem:[%s6884 + $0x18] sm:$0xff]
        %v6889 = vld [vmem:[%s6884 + $0x20] sm:$0xff]
        %v6890 = vld [vmem:[%s6884 + $0x28] sm:$0xff]
        %v6891 = vld [vmem:[%s6884 + $0x30] sm:$0xff]
        %v6892 = vld [vmem:[%s6884 + $0x38] sm:$0xff]
        %v6893 = vld [vmem:[%s6884 + $0x40] sm:$0xff]
        %v6894 = vld [vmem:[%s6884 + $0x48] sm:$0xff]
        %v6895 = vld [vmem:[%s6884 + $0x50] sm:$0xff]
        %v6896 = vld [vmem:[%s6884 + $0x58] sm:$0xff]
        %v6897 = vld [vmem:[%s6884 + $0x60] sm:$0xff]
        %v6898 = vld [vmem:[%s6884 + $0x68] sm:$0xff]
        %v6899 = vld [vmem:[%s6884 + $0x70] sm:$0xff]
        %v6900 = vld [vmem:[%s6884 + $0x78] sm:$0xff]
        %v6901 = vld [vmem:[%s6884 + $0x80] sm:$0xff]
        %v6902 = vld [vmem:[%s6884 + $0x88] sm:$0xff]
        %v6903 = vld [vmem:[%s6884 + $0x90] sm:$0xff]
        %v6904 = vld [vmem:[%s6884 + $0x98] sm:$0xff]
        %v6905 = vld [vmem:[%s6884 + $0xa0] sm:$0xff]
        %v6906 = vld [vmem:[%s6884 + $0xa8] sm:$0xff]
        %v6907 = vld [vmem:[%s6884 + $0xb0] sm:$0xff]
        %v6908 = vld [vmem:[%s6884 + $0xb8] sm:$0xff]
        %v6909 = vld [vmem:[%s6884 + $0xc0] sm:$0xff]
        %v6910 = vld [vmem:[%s6884 + $0xc8] sm:$0xff]
        %v6911 = vld [vmem:[%s6884 + $0xd0] sm:$0xff]
        %v6912 = vld [vmem:[%s6884 + $0xd8] sm:$0xff]
        %v6913 = vld [vmem:[%s6884 + $0xe0] sm:$0xff]
        %v6914 = vld [vmem:[%s6884 + $0xe8] sm:$0xff]
        %v6915 = vld [vmem:[%s6884 + $0xf0] sm:$0xff]
        %v6916 = vld [vmem:[%s6884 + $0xf8] sm:$0xff]
        %v6917 = vld [vmem:[%s6884 + $0x100] sm:$0xff]
        %v6918 = vld [vmem:[%s6884 + $0x108] sm:$0xff]
        %v6919 = vld [vmem:[%s6884 + $0x110] sm:$0xff]
        %v6920 = vld [vmem:[%s6884 + $0x118] sm:$0xff]
        %v6921 = vld [vmem:[%s6884 + $0x120] sm:$0xff]
        %v6922 = vld [vmem:[%s6884 + $0x128] sm:$0xff]
        %v6923 = vld [vmem:[%s6884 + $0x130] sm:$0xff]
        %v6924 = vld [vmem:[%s6884 + $0x138] sm:$0xff]
        %v6925 = vld [vmem:[%s6884 + $0x140] sm:$0xff]
        %v6926 = vld [vmem:[%s6884 + $0x148] sm:$0xff]
        %v6927 = vld [vmem:[%s6884 + $0x150] sm:$0xff]
        %v6928 = vld [vmem:[%s6884 + $0x158] sm:$0xff]
        %v6929 = vld [vmem:[%s6884 + $0x160] sm:$0xff]
        %v6930 = vld [vmem:[%s6884 + $0x168] sm:$0xff]
        %v6931 = vld [vmem:[%s6884 + $0x170] sm:$0xff]
        %v6932 = vld [vmem:[%s6884 + $0x178] sm:$0xff]
        %v6933 = vrot.slane %v6097, 4
        %v6934 = vrot.slane %v6098, 4
        %v6935 = vrot.slane %v6099, 4
        %6939 = vmatprep.subr.mxu0 0.0
        %6940 = vmatpush1.msra.mxu0 %v6885
        %6941 = vmatprep.subr.mxu0 0.0
        %6942 = vmatpush1.msra.mxu0 %v6886
        %6943 = vmatprep.subr.mxu0 0.0
        %6944 = vmatpush1.msra.mxu0 %v6887
        %6945 = vmatprep.subr.mxu0 0.0
        %6946 = vmatpush1.msra.mxu0 %v6888
        %6947 = vmatprep.subr.mxu0 0.0
        %6948 = vmatpush1.msra.mxu0 %v6889
        %6949 = vmatprep.subr.mxu0 0.0
        %6950 = vmatpush1.msra.mxu0 %v6890
        %6951 = vmatprep.subr.mxu0 0.0
        %6952 = vmatpush1.msra.mxu0 %v6891
        %6953 = vmatprep.subr.mxu0 0.0
        %6954 = vmatpush1.msra.mxu0 %v6892
        %6955 = vmatprep.subr.mxu0 0.0
        %6956 = vmatpush1.msra.mxu0 %v6893
        %6957 = vmatprep.subr.mxu0 0.0
        %6958 = vmatpush1.msra.mxu0 %v6894
        %6959 = vmatprep.subr.mxu0 0.0
        %6960 = vmatpush1.msra.mxu0 %v6895
        %6961 = vmatprep.subr.mxu0 0.0
        %6962 = vmatpush1.msra.mxu0 %v6896
        %6963 = vmatprep.subr.mxu0 0.0
        %6964 = vmatpush1.msra.mxu0 %v6897
        %6965 = vmatprep.subr.mxu0 0.0
        %6966 = vmatpush1.msra.mxu0 %v6898
        %6967 = vmatprep.subr.mxu0 0.0
        %6968 = vmatpush1.msra.mxu0 %v6899
        %6969 = vmatprep.subr.mxu0 0.0
        %6970 = vmatpush1.msra.mxu0 %v6900
        %6971 = vmatprep.subr.mxu0 0.0
        %6972 = vmatpush1.msra.mxu0 %v6901
        %6973 = vmatprep.subr.mxu0 0.0
        %6974 = vmatpush1.msra.mxu0 %v6902
        %6975 = vmatprep.subr.mxu0 0.0
        %6976 = vmatpush1.msra.mxu0 %v6903
        %6977 = vmatprep.subr.mxu0 0.0
        %6978 = vmatpush1.msra.mxu0 %v6904
        %6979 = vmatprep.subr.mxu0 0.0
        %6980 = vmatpush1.msra.mxu0 %v6905
        %6981 = vmatprep.subr.mxu0 0.0
        %6982 = vmatpush1.msra.mxu0 %v6906
        %6983 = vmatprep.subr.mxu0 0.0
        %6984 = vmatpush1.msra.mxu0 %v6907
        %6985 = vmatprep.subr.mxu0 0.0
        %6986 = vmatpush1.msra.mxu0 %v6908
        %6987 = vmatprep.subr.mxu0 0.0
        %6988 = vmatpush1.msra.mxu0 %v6909
        %6989 = vmatprep.subr.mxu0 0.0
        %6990 = vmatpush1.msra.mxu0 %v6910
        %6991 = vmatprep.subr.mxu0 0.0
        %6992 = vmatpush1.msra.mxu0 %v6911
        %6993 = vmatprep.subr.mxu0 0.0
        %6994 = vmatpush1.msra.mxu0 %v6912
        %6995 = vmatprep.subr.mxu0 0.0
        %6996 = vmatpush1.msra.mxu0 %v6913
        %6997 = vmatprep.subr.mxu0 0.0
        %6998 = vmatpush1.msra.mxu0 %v6914
        %6999 = vmatprep.subr.mxu0 0.0
        %7000 = vmatpush1.msra.mxu0 %v6915
        %7001 = vmatprep.subr.mxu0 0.0
        %7002 = vmatpush1.msra.mxu0 %v6916
        %7003 = vmatprep.mubr.f32.mxu0 %v6934
        %7004 = vmatmul.mubr.f32.gmra.mrb[0].mxu0 %v6933
        %v7005 = vpop.f32.mrb[0].mxu0
        %v7006 = vadd.f32 0.0, %v7005
        %v7007 = vpop.f32.mrb[0].mxu0
        %7008 = vdwg.mxu0
        %7009 = vmatprep.subr.mxu0 0.0
        %7010 = vmatpush1.msra.mxu0 %v6917
        %7011 = vmatprep.subr.mxu0 0.0
        %7012 = vmatpush1.msra.mxu0 %v6918
        %7013 = vmatprep.subr.mxu0 0.0
        %7014 = vmatpush1.msra.mxu0 %v6919
        %7015 = vmatprep.subr.mxu0 0.0
        %7016 = vmatpush1.msra.mxu0 %v6920
        %7017 = vmatprep.subr.mxu0 0.0
        %7018 = vmatpush1.msra.mxu0 %v6921
        %7019 = vmatprep.subr.mxu0 0.0
        %7020 = vmatpush1.msra.mxu0 %v6922
        %7021 = vmatprep.subr.mxu0 0.0
        %7022 = vmatpush1.msra.mxu0 %v6923
        %7023 = vmatprep.subr.mxu0 0.0
        %7024 = vmatpush1.msra.mxu0 %v6924
        %7025 = vmatprep.subr.mxu0 0.0
        %7026 = vmatpush1.msra.mxu0 %v6925
        %7027 = vmatprep.subr.mxu0 0.0
        %7028 = vmatpush1.msra.mxu0 %v6926
        %7029 = vmatprep.subr.mxu0 0.0
        %7030 = vmatpush1.msra.mxu0 %v6927
        %7031 = vmatprep.subr.mxu0 0.0
        %7032 = vmatpush1.msra.mxu0 %v6928
        %7033 = vmatprep.subr.mxu0 0.0
        %7034 = vmatpush1.msra.mxu0 %v6929
        %7035 = vmatprep.subr.mxu0 0.0
        %7036 = vmatpush1.msra.mxu0 %v6930
        %7037 = vmatprep.subr.mxu0 0.0
        %7038 = vmatpush1.msra.mxu0 %v6931
        %7039 = vmatprep.subr.mxu0 0.0
        %7040 = vmatpush1.msra.mxu0 %v6932
        %7041 = vmatprep.subr.mxu0 0.0
        %7042 = vmatpush1.msra.mxu0 0.0
        %7043 = vmatprep.subr.mxu0 0.0
        %7044 = vmatpush1.msra.mxu0 0.0
        %7045 = vmatprep.subr.mxu0 0.0
        %7046 = vmatpush1.msra.mxu0 0.0
        %7047 = vmatprep.subr.mxu0 0.0
        %7048 = vmatpush1.msra.mxu0 0.0
        %7049 = vmatprep.subr.mxu0 0.0
        %7050 = vmatpush1.msra.mxu0 0.0
        %7051 = vmatprep.subr.mxu0 0.0
        %7052 = vmatpush1.msra.mxu0 0.0
        %7053 = vmatprep.subr.mxu0 0.0
        %7054 = vmatpush1.msra.mxu0 0.0
        %7055 = vmatprep.subr.mxu0 0.0
        %7056 = vmatpush1.msra.mxu0 0.0
        %7057 = vmatprep.subr.mxu0 0.0
        %7058 = vmatpush1.msra.mxu0 0.0
        %7059 = vmatprep.subr.mxu0 0.0
        %7060 = vmatpush1.msra.mxu0 0.0
        %7061 = vmatprep.subr.mxu0 0.0
        %7062 = vmatpush1.msra.mxu0 0.0
        %7063 = vmatprep.subr.mxu0 0.0
        %7064 = vmatpush1.msra.mxu0 0.0
        %7065 = vmatprep.subr.mxu0 0.0
        %7066 = vmatpush1.msra.mxu0 0.0
        %7067 = vmatprep.subr.mxu0 0.0
        %7068 = vmatpush1.msra.mxu0 0.0
        %7069 = vmatprep.subr.mxu0 0.0
        %7070 = vmatpush1.msra.mxu0 0.0
        %7071 = vmatprep.subr.mxu0 0.0
        %7072 = vmatpush1.msra.mxu0 0.0
        %7073 = vmatprep.mubr.f32.mxu0 0.0
        %7074 = vmatmul.mubr.f32.gmra.mrb[0].mxu0 %v6935
        %v7075 = vpop.f32.mrb[0].mxu0
        %v7076 = vadd.f32 %v7006, %v7075
        %v7077 = vpop.f32.mrb[0].mxu0
        %7078 = vdwg.mxu0
        %v7079 = vadd.f32 %v6883, %v7076
        %s7080 = scalar_lea.vmem %s11, 1920
        %v7081 = vld [vmem:[%s7080] sm:$0xff]
        %v7082 = vld [vmem:[%s7080 + $0x8] sm:$0xff]
        %v7083 = vld [vmem:[%s7080 + $0x10] sm:$0xff]
        %v7084 = vld [vmem:[%s7080 + $0x18] sm:$0xff]
        %v7085 = vld [vmem:[%s7080 + $0x20] sm:$0xff]
        %v7086 = vld [vmem:[%s7080 + $0x28] sm:$0xff]
        %v7087 = vld [vmem:[%s7080 + $0x30] sm:$0xff]
        %v7088 = vld [vmem:[%s7080 + $0x38] sm:$0xff]
        %v7089 = vld [vmem:[%s7080 + $0x40] sm:$0xff]
        %v7090 = vld [vmem:[%s7080 + $0x48] sm:$0xff]
        %v7091 = vld [vmem:[%s7080 + $0x50] sm:$0xff]
        %v7092 = vld [vmem:[%s7080 + $0x58] sm:$0xff]
        %v7093 = vld [vmem:[%s7080 + $0x60] sm:$0xff]
        %v7094 = vld [vmem:[%s7080 + $0x68] sm:$0xff]
        %v7095 = vld [vmem:[%s7080 + $0x70] sm:$0xff]
        %v7096 = vld [vmem:[%s7080 + $0x78] sm:$0xff]
        %v7097 = vld [vmem:[%s7080 + $0x80] sm:$0xff]
        %v7098 = vld [vmem:[%s7080 + $0x88] sm:$0xff]
        %v7099 = vld [vmem:[%s7080 + $0x90] sm:$0xff]
        %v7100 = vld [vmem:[%s7080 + $0x98] sm:$0xff]
        %v7101 = vld [vmem:[%s7080 + $0xa0] sm:$0xff]
        %v7102 = vld [vmem:[%s7080 + $0xa8] sm:$0xff]
        %v7103 = vld [vmem:[%s7080 + $0xb0] sm:$0xff]
        %v7104 = vld [vmem:[%s7080 + $0xb8] sm:$0xff]
        %v7105 = vld [vmem:[%s7080 + $0xc0] sm:$0xff]
        %v7106 = vld [vmem:[%s7080 + $0xc8] sm:$0xff]
        %v7107 = vld [vmem:[%s7080 + $0xd0] sm:$0xff]
        %v7108 = vld [vmem:[%s7080 + $0xd8] sm:$0xff]
        %v7109 = vld [vmem:[%s7080 + $0xe0] sm:$0xff]
        %v7110 = vld [vmem:[%s7080 + $0xe8] sm:$0xff]
        %v7111 = vld [vmem:[%s7080 + $0xf0] sm:$0xff]
        %v7112 = vld [vmem:[%s7080 + $0xf8] sm:$0xff]
        %v7113 = vld [vmem:[%s7080 + $0x100] sm:$0xff]
        %v7114 = vld [vmem:[%s7080 + $0x108] sm:$0xff]
        %v7115 = vld [vmem:[%s7080 + $0x110] sm:$0xff]
        %v7116 = vld [vmem:[%s7080 + $0x118] sm:$0xff]
        %v7117 = vld [vmem:[%s7080 + $0x120] sm:$0xff]
        %v7118 = vld [vmem:[%s7080 + $0x128] sm:$0xff]
        %v7119 = vld [vmem:[%s7080 + $0x130] sm:$0xff]
        %v7120 = vld [vmem:[%s7080 + $0x138] sm:$0xff]
        %v7121 = vld [vmem:[%s7080 + $0x140] sm:$0xff]
        %v7122 = vld [vmem:[%s7080 + $0x148] sm:$0xff]
        %v7123 = vld [vmem:[%s7080 + $0x150] sm:$0xff]
        %v7124 = vld [vmem:[%s7080 + $0x158] sm:$0xff]
        %v7125 = vld [vmem:[%s7080 + $0x160] sm:$0xff]
        %v7126 = vld [vmem:[%s7080 + $0x168] sm:$0xff]
        %v7127 = vld [vmem:[%s7080 + $0x170] sm:$0xff]
        %v7128 = vld [vmem:[%s7080 + $0x178] sm:$0xff]
        %v7129 = vrot.slane %v6097, 5
        %v7130 = vrot.slane %v6098, 5
        %v7131 = vrot.slane %v6099, 5
        %7135 = vmatprep.subr.mxu0 0.0
        %7136 = vmatpush1.msra.mxu0 %v7081
        %7137 = vmatprep.subr.mxu0 0.0
        %7138 = vmatpush1.msra.mxu0 %v7082
        %7139 = vmatprep.subr.mxu0 0.0
        %7140 = vmatpush1.msra.mxu0 %v7083
        %7141 = vmatprep.subr.mxu0 0.0
        %7142 = vmatpush1.msra.mxu0 %v7084
        %7143 = vmatprep.subr.mxu0 0.0
        %7144 = vmatpush1.msra.mxu0 %v7085
        %7145 = vmatprep.subr.mxu0 0.0
        %7146 = vmatpush1.msra.mxu0 %v7086
        %7147 = vmatprep.subr.mxu0 0.0
        %7148 = vmatpush1.msra.mxu0 %v7087
        %7149 = vmatprep.subr.mxu0 0.0
        %7150 = vmatpush1.msra.mxu0 %v7088
        %7151 = vmatprep.subr.mxu0 0.0
        %7152 = vmatpush1.msra.mxu0 %v7089
        %7153 = vmatprep.subr.mxu0 0.0
        %7154 = vmatpush1.msra.mxu0 %v7090
        %7155 = vmatprep.subr.mxu0 0.0
        %7156 = vmatpush1.msra.mxu0 %v7091
        %7157 = vmatprep.subr.mxu0 0.0
        %7158 = vmatpush1.msra.mxu0 %v7092
        %7159 = vmatprep.subr.mxu0 0.0
        %7160 = vmatpush1.msra.mxu0 %v7093
        %7161 = vmatprep.subr.mxu0 0.0
        %7162 = vmatpush1.msra.mxu0 %v7094
        %7163 = vmatprep.subr.mxu0 0.0
        %7164 = vmatpush1.msra.mxu0 %v7095
        %7165 = vmatprep.subr.mxu0 0.0
        %7166 = vmatpush1.msra.mxu0 %v7096
        %7167 = vmatprep.subr.mxu0 0.0
        %7168 = vmatpush1.msra.mxu0 %v7097
        %7169 = vmatprep.subr.mxu0 0.0
        %7170 = vmatpush1.msra.mxu0 %v7098
        %7171 = vmatprep.subr.mxu0 0.0
        %7172 = vmatpush1.msra.mxu0 %v7099
        %7173 = vmatprep.subr.mxu0 0.0
        %7174 = vmatpush1.msra.mxu0 %v7100
        %7175 = vmatprep.subr.mxu0 0.0
        %7176 = vmatpush1.msra.mxu0 %v7101
        %7177 = vmatprep.subr.mxu0 0.0
        %7178 = vmatpush1.msra.mxu0 %v7102
        %7179 = vmatprep.subr.mxu0 0.0
        %7180 = vmatpush1.msra.mxu0 %v7103
        %7181 = vmatprep.subr.mxu0 0.0
        %7182 = vmatpush1.msra.mxu0 %v7104
        %7183 = vmatprep.subr.mxu0 0.0
        %7184 = vmatpush1.msra.mxu0 %v7105
        %7185 = vmatprep.subr.mxu0 0.0
        %7186 = vmatpush1.msra.mxu0 %v7106
        %7187 = vmatprep.subr.mxu0 0.0
        %7188 = vmatpush1.msra.mxu0 %v7107
        %7189 = vmatprep.subr.mxu0 0.0
        %7190 = vmatpush1.msra.mxu0 %v7108
        %7191 = vmatprep.subr.mxu0 0.0
        %7192 = vmatpush1.msra.mxu0 %v7109
        %7193 = vmatprep.subr.mxu0 0.0
        %7194 = vmatpush1.msra.mxu0 %v7110
        %7195 = vmatprep.subr.mxu0 0.0
        %7196 = vmatpush1.msra.mxu0 %v7111
        %7197 = vmatprep.subr.mxu0 0.0
        %7198 = vmatpush1.msra.mxu0 %v7112
        %7199 = vmatprep.mubr.f32.mxu0 %v7130
        %7200 = vmatmul.mubr.f32.gmra.mrb[0].mxu0 %v7129
        %v7201 = vpop.f32.mrb[0].mxu0
        %v7202 = vadd.f32 0.0, %v7201
        %v7203 = vpop.f32.mrb[0].mxu0
        %7204 = vdwg.mxu0
        %7205 = vmatprep.subr.mxu0 0.0
        %7206 = vmatpush1.msra.mxu0 %v7113
        %7207 = vmatprep.subr.mxu0 0.0
        %7208 = vmatpush1.msra.mxu0 %v7114
        %7209 = vmatprep.subr.mxu0 0.0
        %7210 = vmatpush1.msra.mxu0 %v7115
        %7211 = vmatprep.subr.mxu0 0.0
        %7212 = vmatpush1.msra.mxu0 %v7116
        %7213 = vmatprep.subr.mxu0 0.0
        %7214 = vmatpush1.msra.mxu0 %v7117
        %7215 = vmatprep.subr.mxu0 0.0
        %7216 = vmatpush1.msra.mxu0 %v7118
        %7217 = vmatprep.subr.mxu0 0.0
        %7218 = vmatpush1.msra.mxu0 %v7119
        %7219 = vmatprep.subr.mxu0 0.0
        %7220 = vmatpush1.msra.mxu0 %v7120
        %7221 = vmatprep.subr.mxu0 0.0
        %7222 = vmatpush1.msra.mxu0 %v7121
        %7223 = vmatprep.subr.mxu0 0.0
        %7224 = vmatpush1.msra.mxu0 %v7122
        %7225 = vmatprep.subr.mxu0 0.0
        %7226 = vmatpush1.msra.mxu0 %v7123
        %7227 = vmatprep.subr.mxu0 0.0
        %7228 = vmatpush1.msra.mxu0 %v7124
        %7229 = vmatprep.subr.mxu0 0.0
        %7230 = vmatpush1.msra.mxu0 %v7125
        %7231 = vmatprep.subr.mxu0 0.0
        %7232 = vmatpush1.msra.mxu0 %v7126
        %7233 = vmatprep.subr.mxu0 0.0
        %7234 = vmatpush1.msra.mxu0 %v7127
        %7235 = vmatprep.subr.mxu0 0.0
        %7236 = vmatpush1.msra.mxu0 %v7128
        %7237 = vmatprep.subr.mxu0 0.0
        %7238 = vmatpush1.msra.mxu0 0.0
        %7239 = vmatprep.subr.mxu0 0.0
        %7240 = vmatpush1.msra.mxu0 0.0
        %7241 = vmatprep.subr.mxu0 0.0
        %7242 = vmatpush1.msra.mxu0 0.0
        %7243 = vmatprep.subr.mxu0 0.0
        %7244 = vmatpush1.msra.mxu0 0.0
        %7245 = vmatprep.subr.mxu0 0.0
        %7246 = vmatpush1.msra.mxu0 0.0
        %7247 = vmatprep.subr.mxu0 0.0
        %7248 = vmatpush1.msra.mxu0 0.0
        %7249 = vmatprep.subr.mxu0 0.0
        %7250 = vmatpush1.msra.mxu0 0.0
        %7251 = vmatprep.subr.mxu0 0.0
        %7252 = vmatpush1.msra.mxu0 0.0
        %7253 = vmatprep.subr.mxu0 0.0
        %7254 = vmatpush1.msra.mxu0 0.0
        %7255 = vmatprep.subr.mxu0 0.0
        %7256 = vmatpush1.msra.mxu0 0.0
        %7257 = vmatprep.subr.mxu0 0.0
        %7258 = vmatpush1.msra.mxu0 0.0
        %7259 = vmatprep.subr.mxu0 0.0
        %7260 = vmatpush1.msra.mxu0 0.0
        %7261 = vmatprep.subr.mxu0 0.0
        %7262 = vmatpush1.msra.mxu0 0.0
        %7263 = vmatprep.subr.mxu0 0.0
        %7264 = vmatpush1.msra.mxu0 0.0
        %7265 = vmatprep.subr.mxu0 0.0
        %7266 = vmatpush1.msra.mxu0 0.0
        %7267 = vmatprep.subr.mxu0 0.0
        %7268 = vmatpush1.msra.mxu0 0.0
        %7269 = vmatprep.mubr.f32.mxu0 0.0
        %7270 = vmatmul.mubr.f32.gmra.mrb[0].mxu0 %v7131
        %v7271 = vpop.f32.mrb[0].mxu0
        %v7272 = vadd.f32 %v7202, %v7271
        %v7273 = vpop.f32.mrb[0].mxu0
        %7274 = vdwg.mxu0
        %v7275 = vadd.f32 %v7079, %v7272
        %s7276 = scalar_lea.vmem %s11, 2304
        %v7277 = vld [vmem:[%s7276] sm:$0xff]
        %v7278 = vld [vmem:[%s7276 + $0x8] sm:$0xff]
        %v7279 = vld [vmem:[%s7276 + $0x10] sm:$0xff]
        %v7280 = vld [vmem:[%s7276 + $0x18] sm:$0xff]
        %v7281 = vld [vmem:[%s7276 + $0x20] sm:$0xff]
        %v7282 = vld [vmem:[%s7276 + $0x28] sm:$0xff]
        %v7283 = vld [vmem:[%s7276 + $0x30] sm:$0xff]
        %v7284 = vld [vmem:[%s7276 + $0x38] sm:$0xff]
        %v7285 = vld [vmem:[%s7276 + $0x40] sm:$0xff]
        %v7286 = vld [vmem:[%s7276 + $0x48] sm:$0xff]
        %v7287 = vld [vmem:[%s7276 + $0x50] sm:$0xff]
        %v7288 = vld [vmem:[%s7276 + $0x58] sm:$0xff]
        %v7289 = vld [vmem:[%s7276 + $0x60] sm:$0xff]
        %v7290 = vld [vmem:[%s7276 + $0x68] sm:$0xff]
        %v7291 = vld [vmem:[%s7276 + $0x70] sm:$0xff]
        %v7292 = vld [vmem:[%s7276 + $0x78] sm:$0xff]
        %v7293 = vld [vmem:[%s7276 + $0x80] sm:$0xff]
        %v7294 = vld [vmem:[%s7276 + $0x88] sm:$0xff]
        %v7295 = vld [vmem:[%s7276 + $0x90] sm:$0xff]
        %v7296 = vld [vmem:[%s7276 + $0x98] sm:$0xff]
        %v7297 = vld [vmem:[%s7276 + $0xa0] sm:$0xff]
        %v7298 = vld [vmem:[%s7276 + $0xa8] sm:$0xff]
        %v7299 = vld [vmem:[%s7276 + $0xb0] sm:$0xff]
        %v7300 = vld [vmem:[%s7276 + $0xb8] sm:$0xff]
        %v7301 = vld [vmem:[%s7276 + $0xc0] sm:$0xff]
        %v7302 = vld [vmem:[%s7276 + $0xc8] sm:$0xff]
        %v7303 = vld [vmem:[%s7276 + $0xd0] sm:$0xff]
        %v7304 = vld [vmem:[%s7276 + $0xd8] sm:$0xff]
        %v7305 = vld [vmem:[%s7276 + $0xe0] sm:$0xff]
        %v7306 = vld [vmem:[%s7276 + $0xe8] sm:$0xff]
        %v7307 = vld [vmem:[%s7276 + $0xf0] sm:$0xff]
        %v7308 = vld [vmem:[%s7276 + $0xf8] sm:$0xff]
        %v7309 = vld [vmem:[%s7276 + $0x100] sm:$0xff]
        %v7310 = vld [vmem:[%s7276 + $0x108] sm:$0xff]
        %v7311 = vld [vmem:[%s7276 + $0x110] sm:$0xff]
        %v7312 = vld [vmem:[%s7276 + $0x118] sm:$0xff]
        %v7313 = vld [vmem:[%s7276 + $0x120] sm:$0xff]
        %v7314 = vld [vmem:[%s7276 + $0x128] sm:$0xff]
        %v7315 = vld [vmem:[%s7276 + $0x130] sm:$0xff]
        %v7316 = vld [vmem:[%s7276 + $0x138] sm:$0xff]
        %v7317 = vld [vmem:[%s7276 + $0x140] sm:$0xff]
        %v7318 = vld [vmem:[%s7276 + $0x148] sm:$0xff]
        %v7319 = vld [vmem:[%s7276 + $0x150] sm:$0xff]
        %v7320 = vld [vmem:[%s7276 + $0x158] sm:$0xff]
        %v7321 = vld [vmem:[%s7276 + $0x160] sm:$0xff]
        %v7322 = vld [vmem:[%s7276 + $0x168] sm:$0xff]
        %v7323 = vld [vmem:[%s7276 + $0x170] sm:$0xff]
        %v7324 = vld [vmem:[%s7276 + $0x178] sm:$0xff]
        %v7325 = vrot.slane %v6097, 6
        %v7326 = vrot.slane %v6098, 6
        %v7327 = vrot.slane %v6099, 6
        %7331 = vmatprep.subr.mxu0 0.0
        %7332 = vmatpush1.msra.mxu0 %v7277
        %7333 = vmatprep.subr.mxu0 0.0
        %7334 = vmatpush1.msra.mxu0 %v7278
        %7335 = vmatprep.subr.mxu0 0.0
        %7336 = vmatpush1.msra.mxu0 %v7279
        %7337 = vmatprep.subr.mxu0 0.0
        %7338 = vmatpush1.msra.mxu0 %v7280
        %7339 = vmatprep.subr.mxu0 0.0
        %7340 = vmatpush1.msra.mxu0 %v7281
        %7341 = vmatprep.subr.mxu0 0.0
        %7342 = vmatpush1.msra.mxu0 %v7282
        %7343 = vmatprep.subr.mxu0 0.0
        %7344 = vmatpush1.msra.mxu0 %v7283
        %7345 = vmatprep.subr.mxu0 0.0
        %7346 = vmatpush1.msra.mxu0 %v7284
        %7347 = vmatprep.subr.mxu0 0.0
        %7348 = vmatpush1.msra.mxu0 %v7285
        %7349 = vmatprep.subr.mxu0 0.0
        %7350 = vmatpush1.msra.mxu0 %v7286
        %7351 = vmatprep.subr.mxu0 0.0
        %7352 = vmatpush1.msra.mxu0 %v7287
        %7353 = vmatprep.subr.mxu0 0.0
        %7354 = vmatpush1.msra.mxu0 %v7288
        %7355 = vmatprep.subr.mxu0 0.0
        %7356 = vmatpush1.msra.mxu0 %v7289
        %7357 = vmatprep.subr.mxu0 0.0
        %7358 = vmatpush1.msra.mxu0 %v7290
        %7359 = vmatprep.subr.mxu0 0.0
        %7360 = vmatpush1.msra.mxu0 %v7291
        %7361 = vmatprep.subr.mxu0 0.0
        %7362 = vmatpush1.msra.mxu0 %v7292
        %7363 = vmatprep.subr.mxu0 0.0
        %7364 = vmatpush1.msra.mxu0 %v7293
        %7365 = vmatprep.subr.mxu0 0.0
        %7366 = vmatpush1.msra.mxu0 %v7294
        %7367 = vmatprep.subr.mxu0 0.0
        %7368 = vmatpush1.msra.mxu0 %v7295
        %7369 = vmatprep.subr.mxu0 0.0
        %7370 = vmatpush1.msra.mxu0 %v7296
        %7371 = vmatprep.subr.mxu0 0.0
        %7372 = vmatpush1.msra.mxu0 %v7297
        %7373 = vmatprep.subr.mxu0 0.0
        %7374 = vmatpush1.msra.mxu0 %v7298
        %7375 = vmatprep.subr.mxu0 0.0
        %7376 = vmatpush1.msra.mxu0 %v7299
        %7377 = vmatprep.subr.mxu0 0.0
        %7378 = vmatpush1.msra.mxu0 %v7300
        %7379 = vmatprep.subr.mxu0 0.0
        %7380 = vmatpush1.msra.mxu0 %v7301
        %7381 = vmatprep.subr.mxu0 0.0
        %7382 = vmatpush1.msra.mxu0 %v7302
        %7383 = vmatprep.subr.mxu0 0.0
        %7384 = vmatpush1.msra.mxu0 %v7303
        %7385 = vmatprep.subr.mxu0 0.0
        %7386 = vmatpush1.msra.mxu0 %v7304
        %7387 = vmatprep.subr.mxu0 0.0
        %7388 = vmatpush1.msra.mxu0 %v7305
        %7389 = vmatprep.subr.mxu0 0.0
        %7390 = vmatpush1.msra.mxu0 %v7306
        %7391 = vmatprep.subr.mxu0 0.0
        %7392 = vmatpush1.msra.mxu0 %v7307
        %7393 = vmatprep.subr.mxu0 0.0
        %7394 = vmatpush1.msra.mxu0 %v7308
        %7395 = vmatprep.mubr.f32.mxu0 %v7326
        %7396 = vmatmul.mubr.f32.gmra.mrb[0].mxu0 %v7325
        %v7397 = vpop.f32.mrb[0].mxu0
        %v7398 = vadd.f32 0.0, %v7397
        %v7399 = vpop.f32.mrb[0].mxu0
        %7400 = vdwg.mxu0
        %7401 = vmatprep.subr.mxu0 0.0
        %7402 = vmatpush1.msra.mxu0 %v7309
        %7403 = vmatprep.subr.mxu0 0.0
        %7404 = vmatpush1.msra.mxu0 %v7310
        %7405 = vmatprep.subr.mxu0 0.0
        %7406 = vmatpush1.msra.mxu0 %v7311
        %7407 = vmatprep.subr.mxu0 0.0
        %7408 = vmatpush1.msra.mxu0 %v7312
        %7409 = vmatprep.subr.mxu0 0.0
        %7410 = vmatpush1.msra.mxu0 %v7313
        %7411 = vmatprep.subr.mxu0 0.0
        %7412 = vmatpush1.msra.mxu0 %v7314
        %7413 = vmatprep.subr.mxu0 0.0
        %7414 = vmatpush1.msra.mxu0 %v7315
        %7415 = vmatprep.subr.mxu0 0.0
        %7416 = vmatpush1.msra.mxu0 %v7316
        %7417 = vmatprep.subr.mxu0 0.0
        %7418 = vmatpush1.msra.mxu0 %v7317
        %7419 = vmatprep.subr.mxu0 0.0
        %7420 = vmatpush1.msra.mxu0 %v7318
        %7421 = vmatprep.subr.mxu0 0.0
        %7422 = vmatpush1.msra.mxu0 %v7319
        %7423 = vmatprep.subr.mxu0 0.0
        %7424 = vmatpush1.msra.mxu0 %v7320
        %7425 = vmatprep.subr.mxu0 0.0
        %7426 = vmatpush1.msra.mxu0 %v7321
        %7427 = vmatprep.subr.mxu0 0.0
        %7428 = vmatpush1.msra.mxu0 %v7322
        %7429 = vmatprep.subr.mxu0 0.0
        %7430 = vmatpush1.msra.mxu0 %v7323
        %7431 = vmatprep.subr.mxu0 0.0
        %7432 = vmatpush1.msra.mxu0 %v7324
        %7433 = vmatprep.subr.mxu0 0.0
        %7434 = vmatpush1.msra.mxu0 0.0
        %7435 = vmatprep.subr.mxu0 0.0
        %7436 = vmatpush1.msra.mxu0 0.0
        %7437 = vmatprep.subr.mxu0 0.0
        %7438 = vmatpush1.msra.mxu0 0.0
        %7439 = vmatprep.subr.mxu0 0.0
        %7440 = vmatpush1.msra.mxu0 0.0
        %7441 = vmatprep.subr.mxu0 0.0
        %7442 = vmatpush1.msra.mxu0 0.0
        %7443 = vmatprep.subr.mxu0 0.0
        %7444 = vmatpush1.msra.mxu0 0.0
        %7445 = vmatprep.subr.mxu0 0.0
        %7446 = vmatpush1.msra.mxu0 0.0
        %7447 = vmatprep.subr.mxu0 0.0
        %7448 = vmatpush1.msra.mxu0 0.0
        %7449 = vmatprep.subr.mxu0 0.0
        %7450 = vmatpush1.msra.mxu0 0.0
        %7451 = vmatprep.subr.mxu0 0.0
        %7452 = vmatpush1.msra.mxu0 0.0
        %7453 = vmatprep.subr.mxu0 0.0
        %7454 = vmatpush1.msra.mxu0 0.0
        %7455 = vmatprep.subr.mxu0 0.0
        %7456 = vmatpush1.msra.mxu0 0.0
        %7457 = vmatprep.subr.mxu0 0.0
        %7458 = vmatpush1.msra.mxu0 0.0
        %7459 = vmatprep.subr.mxu0 0.0
        %7460 = vmatpush1.msra.mxu0 0.0
        %7461 = vmatprep.subr.mxu0 0.0
        %7462 = vmatpush1.msra.mxu0 0.0
        %7463 = vmatprep.subr.mxu0 0.0
        %7464 = vmatpush1.msra.mxu0 0.0
        %7465 = vmatprep.mubr.f32.mxu0 0.0
        %7466 = vmatmul.mubr.f32.gmra.mrb[0].mxu0 %v7327
        %v7467 = vpop.f32.mrb[0].mxu0
        %v7468 = vadd.f32 %v7398, %v7467
        %v7469 = vpop.f32.mrb[0].mxu0
        %7470 = vdwg.mxu0
        %v7471 = vadd.f32 %v7275, %v7468
        %s7472 = scalar_lea.vmem %s11, 2688
        %v7473 = vld [vmem:[%s7472] sm:$0xff]
        %v7474 = vld [vmem:[%s7472 + $0x8] sm:$0xff]
        %v7475 = vld [vmem:[%s7472 + $0x10] sm:$0xff]
        %v7476 = vld [vmem:[%s7472 + $0x18] sm:$0xff]
        %v7477 = vld [vmem:[%s7472 + $0x20] sm:$0xff]
        %v7478 = vld [vmem:[%s7472 + $0x28] sm:$0xff]
        %v7479 = vld [vmem:[%s7472 + $0x30] sm:$0xff]
        %v7480 = vld [vmem:[%s7472 + $0x38] sm:$0xff]
        %v7481 = vld [vmem:[%s7472 + $0x40] sm:$0xff]
        %v7482 = vld [vmem:[%s7472 + $0x48] sm:$0xff]
        %v7483 = vld [vmem:[%s7472 + $0x50] sm:$0xff]
        %v7484 = vld [vmem:[%s7472 + $0x58] sm:$0xff]
        %v7485 = vld [vmem:[%s7472 + $0x60] sm:$0xff]
        %v7486 = vld [vmem:[%s7472 + $0x68] sm:$0xff]
        %v7487 = vld [vmem:[%s7472 + $0x70] sm:$0xff]
        %v7488 = vld [vmem:[%s7472 + $0x78] sm:$0xff]
        %v7489 = vld [vmem:[%s7472 + $0x80] sm:$0xff]
        %v7490 = vld [vmem:[%s7472 + $0x88] sm:$0xff]
        %v7491 = vld [vmem:[%s7472 + $0x90] sm:$0xff]
        %v7492 = vld [vmem:[%s7472 + $0x98] sm:$0xff]
        %v7493 = vld [vmem:[%s7472 + $0xa0] sm:$0xff]
        %v7494 = vld [vmem:[%s7472 + $0xa8] sm:$0xff]
        %v7495 = vld [vmem:[%s7472 + $0xb0] sm:$0xff]
        %v7496 = vld [vmem:[%s7472 + $0xb8] sm:$0xff]
        %v7497 = vld [vmem:[%s7472 + $0xc0] sm:$0xff]
        %v7498 = vld [vmem:[%s7472 + $0xc8] sm:$0xff]
        %v7499 = vld [vmem:[%s7472 + $0xd0] sm:$0xff]
        %v7500 = vld [vmem:[%s7472 + $0xd8] sm:$0xff]
        %v7501 = vld [vmem:[%s7472 + $0xe0] sm:$0xff]
        %v7502 = vld [vmem:[%s7472 + $0xe8] sm:$0xff]
        %v7503 = vld [vmem:[%s7472 + $0xf0] sm:$0xff]
        %v7504 = vld [vmem:[%s7472 + $0xf8] sm:$0xff]
        %v7505 = vld [vmem:[%s7472 + $0x100] sm:$0xff]
        %v7506 = vld [vmem:[%s7472 + $0x108] sm:$0xff]
        %v7507 = vld [vmem:[%s7472 + $0x110] sm:$0xff]
        %v7508 = vld [vmem:[%s7472 + $0x118] sm:$0xff]
        %v7509 = vld [vmem:[%s7472 + $0x120] sm:$0xff]
        %v7510 = vld [vmem:[%s7472 + $0x128] sm:$0xff]
        %v7511 = vld [vmem:[%s7472 + $0x130] sm:$0xff]
        %v7512 = vld [vmem:[%s7472 + $0x138] sm:$0xff]
        %v7513 = vld [vmem:[%s7472 + $0x140] sm:$0xff]
        %v7514 = vld [vmem:[%s7472 + $0x148] sm:$0xff]
        %v7515 = vld [vmem:[%s7472 + $0x150] sm:$0xff]
        %v7516 = vld [vmem:[%s7472 + $0x158] sm:$0xff]
        %v7517 = vld [vmem:[%s7472 + $0x160] sm:$0xff]
        %v7518 = vld [vmem:[%s7472 + $0x168] sm:$0xff]
        %v7519 = vld [vmem:[%s7472 + $0x170] sm:$0xff]
        %v7520 = vld [vmem:[%s7472 + $0x178] sm:$0xff]
        %v7521 = vrot.slane %v6097, 7
        %v7522 = vrot.slane %v6098, 7
        %v7523 = vrot.slane %v6099, 7
        %7527 = vmatprep.subr.mxu0 0.0
        %7528 = vmatpush1.msra.mxu0 %v7473
        %7529 = vmatprep.subr.mxu0 0.0
        %7530 = vmatpush1.msra.mxu0 %v7474
        %7531 = vmatprep.subr.mxu0 0.0
        %7532 = vmatpush1.msra.mxu0 %v7475
        %7533 = vmatprep.subr.mxu0 0.0
        %7534 = vmatpush1.msra.mxu0 %v7476
        %7535 = vmatprep.subr.mxu0 0.0
        %7536 = vmatpush1.msra.mxu0 %v7477
        %7537 = vmatprep.subr.mxu0 0.0
        %7538 = vmatpush1.msra.mxu0 %v7478
        %7539 = vmatprep.subr.mxu0 0.0
        %7540 = vmatpush1.msra.mxu0 %v7479
        %7541 = vmatprep.subr.mxu0 0.0
        %7542 = vmatpush1.msra.mxu0 %v7480
        %7543 = vmatprep.subr.mxu0 0.0
        %7544 = vmatpush1.msra.mxu0 %v7481
        %7545 = vmatprep.subr.mxu0 0.0
        %7546 = vmatpush1.msra.mxu0 %v7482
        %7547 = vmatprep.subr.mxu0 0.0
        %7548 = vmatpush1.msra.mxu0 %v7483
        %7549 = vmatprep.subr.mxu0 0.0
        %7550 = vmatpush1.msra.mxu0 %v7484
        %7551 = vmatprep.subr.mxu0 0.0
        %7552 = vmatpush1.msra.mxu0 %v7485
        %7553 = vmatprep.subr.mxu0 0.0
        %7554 = vmatpush1.msra.mxu0 %v7486
        %7555 = vmatprep.subr.mxu0 0.0
        %7556 = vmatpush1.msra.mxu0 %v7487
        %7557 = vmatprep.subr.mxu0 0.0
        %7558 = vmatpush1.msra.mxu0 %v7488
        %7559 = vmatprep.subr.mxu0 0.0
        %7560 = vmatpush1.msra.mxu0 %v7489
        %7561 = vmatprep.subr.mxu0 0.0
        %7562 = vmatpush1.msra.mxu0 %v7490
        %7563 = vmatprep.subr.mxu0 0.0
        %7564 = vmatpush1.msra.mxu0 %v7491
        %7565 = vmatprep.subr.mxu0 0.0
        %7566 = vmatpush1.msra.mxu0 %v7492
        %7567 = vmatprep.subr.mxu0 0.0
        %7568 = vmatpush1.msra.mxu0 %v7493
        %7569 = vmatprep.subr.mxu0 0.0
        %7570 = vmatpush1.msra.mxu0 %v7494
        %7571 = vmatprep.subr.mxu0 0.0
        %7572 = vmatpush1.msra.mxu0 %v7495
        %7573 = vmatprep.subr.mxu0 0.0
        %7574 = vmatpush1.msra.mxu0 %v7496
        %7575 = vmatprep.subr.mxu0 0.0
        %7576 = vmatpush1.msra.mxu0 %v7497
        %7577 = vmatprep.subr.mxu0 0.0
        %7578 = vmatpush1.msra.mxu0 %v7498
        %7579 = vmatprep.subr.mxu0 0.0
        %7580 = vmatpush1.msra.mxu0 %v7499
        %7581 = vmatprep.subr.mxu0 0.0
        %7582 = vmatpush1.msra.mxu0 %v7500
        %7583 = vmatprep.subr.mxu0 0.0
        %7584 = vmatpush1.msra.mxu0 %v7501
        %7585 = vmatprep.subr.mxu0 0.0
        %7586 = vmatpush1.msra.mxu0 %v7502
        %7587 = vmatprep.subr.mxu0 0.0
        %7588 = vmatpush1.msra.mxu0 %v7503
        %7589 = vmatprep.subr.mxu0 0.0
        %7590 = vmatpush1.msra.mxu0 %v7504
        %7591 = vmatprep.mubr.f32.mxu0 %v7522
        %7592 = vmatmul.mubr.f32.gmra.mrb[0].mxu0 %v7521
        %v7593 = vpop.f32.mrb[0].mxu0
        %v7594 = vadd.f32 0.0, %v7593
        %v7595 = vpop.f32.mrb[0].mxu0
        %7596 = vdwg.mxu0
        %7597 = vmatprep.subr.mxu0 0.0
        %7598 = vmatpush1.msra.mxu0 %v7505
        %7599 = vmatprep.subr.mxu0 0.0
        %7600 = vmatpush1.msra.mxu0 %v7506
        %7601 = vmatprep.subr.mxu0 0.0
        %7602 = vmatpush1.msra.mxu0 %v7507
        %7603 = vmatprep.subr.mxu0 0.0
        %7604 = vmatpush1.msra.mxu0 %v7508
        %7605 = vmatprep.subr.mxu0 0.0
        %7606 = vmatpush1.msra.mxu0 %v7509
        %7607 = vmatprep.subr.mxu0 0.0
        %7608 = vmatpush1.msra.mxu0 %v7510
        %7609 = vmatprep.subr.mxu0 0.0
        %7610 = vmatpush1.msra.mxu0 %v7511
        %7611 = vmatprep.subr.mxu0 0.0
        %7612 = vmatpush1.msra.mxu0 %v7512
        %7613 = vmatprep.subr.mxu0 0.0
        %7614 = vmatpush1.msra.mxu0 %v7513
        %7615 = vmatprep.subr.mxu0 0.0
        %7616 = vmatpush1.msra.mxu0 %v7514
        %7617 = vmatprep.subr.mxu0 0.0
        %7618 = vmatpush1.msra.mxu0 %v7515
        %7619 = vmatprep.subr.mxu0 0.0
        %7620 = vmatpush1.msra.mxu0 %v7516
        %7621 = vmatprep.subr.mxu0 0.0
        %7622 = vmatpush1.msra.mxu0 %v7517
        %7623 = vmatprep.subr.mxu0 0.0
        %7624 = vmatpush1.msra.mxu0 %v7518
        %7625 = vmatprep.subr.mxu0 0.0
        %7626 = vmatpush1.msra.mxu0 %v7519
        %7627 = vmatprep.subr.mxu0 0.0
        %7628 = vmatpush1.msra.mxu0 %v7520
        %7629 = vmatprep.subr.mxu0 0.0
        %7630 = vmatpush1.msra.mxu0 0.0
        %7631 = vmatprep.subr.mxu0 0.0
        %7632 = vmatpush1.msra.mxu0 0.0
        %7633 = vmatprep.subr.mxu0 0.0
        %7634 = vmatpush1.msra.mxu0 0.0
        %7635 = vmatprep.subr.mxu0 0.0
        %7636 = vmatpush1.msra.mxu0 0.0
        %7637 = vmatprep.subr.mxu0 0.0
        %7638 = vmatpush1.msra.mxu0 0.0
        %7639 = vmatprep.subr.mxu0 0.0
        %7640 = vmatpush1.msra.mxu0 0.0
        %7641 = vmatprep.subr.mxu0 0.0
        %7642 = vmatpush1.msra.mxu0 0.0
        %7643 = vmatprep.subr.mxu0 0.0
        %7644 = vmatpush1.msra.mxu0 0.0
        %7645 = vmatprep.subr.mxu0 0.0
        %7646 = vmatpush1.msra.mxu0 0.0
        %7647 = vmatprep.subr.mxu0 0.0
        %7648 = vmatpush1.msra.mxu0 0.0
        %7649 = vmatprep.subr.mxu0 0.0
        %7650 = vmatpush1.msra.mxu0 0.0
        %7651 = vmatprep.subr.mxu0 0.0
        %7652 = vmatpush1.msra.mxu0 0.0
        %7653 = vmatprep.subr.mxu0 0.0
        %7654 = vmatpush1.msra.mxu0 0.0
        %7655 = vmatprep.subr.mxu0 0.0
        %7656 = vmatpush1.msra.mxu0 0.0
        %7657 = vmatprep.subr.mxu0 0.0
        %7658 = vmatpush1.msra.mxu0 0.0
        %7659 = vmatprep.subr.mxu0 0.0
        %7660 = vmatpush1.msra.mxu0 0.0
        %7661 = vmatprep.mubr.f32.mxu0 0.0
        %7662 = vmatmul.mubr.f32.gmra.mrb[0].mxu0 %v7523
        %v7663 = vpop.f32.mrb[0].mxu0
        %v7664 = vadd.f32 %v7594, %v7663
        %v7665 = vpop.f32.mrb[0].mxu0
        %7666 = vdwg.mxu0
        %v7667 = vadd.f32 %v7471, %v7664
        %s7668 = scalar_lea.vmem %s11, 3072
        %v7669 = vld [vmem:[%s7668] sm:$0xff]
        %v7670 = vld [vmem:[%s7668 + $0x8] sm:$0xff]
        %v7671 = vld [vmem:[%s7668 + $0x10] sm:$0xff]
        %v7672 = vld [vmem:[%s7668 + $0x18] sm:$0xff]
        %v7673 = vld [vmem:[%s7668 + $0x20] sm:$0xff]
        %v7674 = vld [vmem:[%s7668 + $0x28] sm:$0xff]
        %v7675 = vld [vmem:[%s7668 + $0x30] sm:$0xff]
        %v7676 = vld [vmem:[%s7668 + $0x38] sm:$0xff]
        %v7677 = vld [vmem:[%s7668 + $0x40] sm:$0xff]
        %v7678 = vld [vmem:[%s7668 + $0x48] sm:$0xff]
        %v7679 = vld [vmem:[%s7668 + $0x50] sm:$0xff]
        %v7680 = vld [vmem:[%s7668 + $0x58] sm:$0xff]
        %v7681 = vld [vmem:[%s7668 + $0x60] sm:$0xff]
        %v7682 = vld [vmem:[%s7668 + $0x68] sm:$0xff]
        %v7683 = vld [vmem:[%s7668 + $0x70] sm:$0xff]
        %v7684 = vld [vmem:[%s7668 + $0x78] sm:$0xff]
        %v7685 = vld [vmem:[%s7668 + $0x80] sm:$0xff]
        %v7686 = vld [vmem:[%s7668 + $0x88] sm:$0xff]
        %v7687 = vld [vmem:[%s7668 + $0x90] sm:$0xff]
        %v7688 = vld [vmem:[%s7668 + $0x98] sm:$0xff]
        %v7689 = vld [vmem:[%s7668 + $0xa0] sm:$0xff]
        %v7690 = vld [vmem:[%s7668 + $0xa8] sm:$0xff]
        %v7691 = vld [vmem:[%s7668 + $0xb0] sm:$0xff]
        %v7692 = vld [vmem:[%s7668 + $0xb8] sm:$0xff]
        %v7693 = vld [vmem:[%s7668 + $0xc0] sm:$0xff]
        %v7694 = vld [vmem:[%s7668 + $0xc8] sm:$0xff]
        %v7695 = vld [vmem:[%s7668 + $0xd0] sm:$0xff]
        %v7696 = vld [vmem:[%s7668 + $0xd8] sm:$0xff]
        %v7697 = vld [vmem:[%s7668 + $0xe0] sm:$0xff]
        %v7698 = vld [vmem:[%s7668 + $0xe8] sm:$0xff]
        %v7699 = vld [vmem:[%s7668 + $0xf0] sm:$0xff]
        %v7700 = vld [vmem:[%s7668 + $0xf8] sm:$0xff]
        %v7701 = vld [vmem:[%s7668 + $0x100] sm:$0xff]
        %v7702 = vld [vmem:[%s7668 + $0x108] sm:$0xff]
        %v7703 = vld [vmem:[%s7668 + $0x110] sm:$0xff]
        %v7704 = vld [vmem:[%s7668 + $0x118] sm:$0xff]
        %v7705 = vld [vmem:[%s7668 + $0x120] sm:$0xff]
        %v7706 = vld [vmem:[%s7668 + $0x128] sm:$0xff]
        %v7707 = vld [vmem:[%s7668 + $0x130] sm:$0xff]
        %v7708 = vld [vmem:[%s7668 + $0x138] sm:$0xff]
        %v7709 = vld [vmem:[%s7668 + $0x140] sm:$0xff]
        %v7710 = vld [vmem:[%s7668 + $0x148] sm:$0xff]
        %v7711 = vld [vmem:[%s7668 + $0x150] sm:$0xff]
        %v7712 = vld [vmem:[%s7668 + $0x158] sm:$0xff]
        %v7713 = vld [vmem:[%s7668 + $0x160] sm:$0xff]
        %v7714 = vld [vmem:[%s7668 + $0x168] sm:$0xff]
        %v7715 = vld [vmem:[%s7668 + $0x170] sm:$0xff]
        %v7716 = vld [vmem:[%s7668 + $0x178] sm:$0xff]
        %7717 = vmatprep.subr.mxu0 0.0
        %7718 = vmatpush1.msra.mxu0 %v7669
        %7719 = vmatprep.subr.mxu0 0.0
        %7720 = vmatpush1.msra.mxu0 %v7670
        %7721 = vmatprep.subr.mxu0 0.0
        %7722 = vmatpush1.msra.mxu0 %v7671
        %7723 = vmatprep.subr.mxu0 0.0
        %7724 = vmatpush1.msra.mxu0 %v7672
        %7725 = vmatprep.subr.mxu0 0.0
        %7726 = vmatpush1.msra.mxu0 %v7673
        %7727 = vmatprep.subr.mxu0 0.0
        %7728 = vmatpush1.msra.mxu0 %v7674
        %7729 = vmatprep.subr.mxu0 0.0
        %7730 = vmatpush1.msra.mxu0 %v7675
        %7731 = vmatprep.subr.mxu0 0.0
        %7732 = vmatpush1.msra.mxu0 %v7676
        %7733 = vmatprep.subr.mxu0 0.0
        %7734 = vmatpush1.msra.mxu0 %v7677
        %7735 = vmatprep.subr.mxu0 0.0
        %7736 = vmatpush1.msra.mxu0 %v7678
        %7737 = vmatprep.subr.mxu0 0.0
        %7738 = vmatpush1.msra.mxu0 %v7679
        %7739 = vmatprep.subr.mxu0 0.0
        %7740 = vmatpush1.msra.mxu0 %v7680
        %7741 = vmatprep.subr.mxu0 0.0
        %7742 = vmatpush1.msra.mxu0 %v7681
        %7743 = vmatprep.subr.mxu0 0.0
        %7744 = vmatpush1.msra.mxu0 %v7682
        %7745 = vmatprep.subr.mxu0 0.0
        %7746 = vmatpush1.msra.mxu0 %v7683
        %7747 = vmatprep.subr.mxu0 0.0
        %7748 = vmatpush1.msra.mxu0 %v7684
        %7749 = vmatprep.subr.mxu0 0.0
        %7750 = vmatpush1.msra.mxu0 %v7685
        %7751 = vmatprep.subr.mxu0 0.0
        %7752 = vmatpush1.msra.mxu0 %v7686
        %7753 = vmatprep.subr.mxu0 0.0
        %7754 = vmatpush1.msra.mxu0 %v7687
        %7755 = vmatprep.subr.mxu0 0.0
        %7756 = vmatpush1.msra.mxu0 %v7688
        %7757 = vmatprep.subr.mxu0 0.0
        %7758 = vmatpush1.msra.mxu0 %v7689
        %7759 = vmatprep.subr.mxu0 0.0
        %7760 = vmatpush1.msra.mxu0 %v7690
        %7761 = vmatprep.subr.mxu0 0.0
        %7762 = vmatpush1.msra.mxu0 %v7691
        %7763 = vmatprep.subr.mxu0 0.0
        %7764 = vmatpush1.msra.mxu0 %v7692
        %7765 = vmatprep.subr.mxu0 0.0
        %7766 = vmatpush1.msra.mxu0 %v7693
        %7767 = vmatprep.subr.mxu0 0.0
        %7768 = vmatpush1.msra.mxu0 %v7694
        %7769 = vmatprep.subr.mxu0 0.0
        %7770 = vmatpush1.msra.mxu0 %v7695
        %7771 = vmatprep.subr.mxu0 0.0
        %7772 = vmatpush1.msra.mxu0 %v7696
        %7773 = vmatprep.subr.mxu0 0.0
        %7774 = vmatpush1.msra.mxu0 %v7697
        %7775 = vmatprep.subr.mxu0 0.0
        %7776 = vmatpush1.msra.mxu0 %v7698
        %7777 = vmatprep.subr.mxu0 0.0
        %7778 = vmatpush1.msra.mxu0 %v7699
        %7779 = vmatprep.subr.mxu0 0.0
        %7780 = vmatpush1.msra.mxu0 %v7700
        %7781 = vmatprep.mubr.f32.mxu0 %v6101
        %7782 = vmatmul.mubr.f32.gmra.mrb[0].mxu0 %v6100
        %v7783 = vpop.f32.mrb[0].mxu0
        %v7784 = vadd.f32 0.0, %v7783
        %v7785 = vpop.f32.mrb[0].mxu0
        %7786 = vdwg.mxu0
        %7787 = vmatprep.subr.mxu0 0.0
        %7788 = vmatpush1.msra.mxu0 %v7701
        %7789 = vmatprep.subr.mxu0 0.0
        %7790 = vmatpush1.msra.mxu0 %v7702
        %7791 = vmatprep.subr.mxu0 0.0
        %7792 = vmatpush1.msra.mxu0 %v7703
        %7793 = vmatprep.subr.mxu0 0.0
        %7794 = vmatpush1.msra.mxu0 %v7704
        %7795 = vmatprep.subr.mxu0 0.0
        %7796 = vmatpush1.msra.mxu0 %v7705
        %7797 = vmatprep.subr.mxu0 0.0
        %7798 = vmatpush1.msra.mxu0 %v7706
        %7799 = vmatprep.subr.mxu0 0.0
        %7800 = vmatpush1.msra.mxu0 %v7707
        %7801 = vmatprep.subr.mxu0 0.0
        %7802 = vmatpush1.msra.mxu0 %v7708
        %7803 = vmatprep.subr.mxu0 0.0
        %7804 = vmatpush1.msra.mxu0 %v7709
        %7805 = vmatprep.subr.mxu0 0.0
        %7806 = vmatpush1.msra.mxu0 %v7710
        %7807 = vmatprep.subr.mxu0 0.0
        %7808 = vmatpush1.msra.mxu0 %v7711
        %7809 = vmatprep.subr.mxu0 0.0
        %7810 = vmatpush1.msra.mxu0 %v7712
        %7811 = vmatprep.subr.mxu0 0.0
        %7812 = vmatpush1.msra.mxu0 %v7713
        %7813 = vmatprep.subr.mxu0 0.0
        %7814 = vmatpush1.msra.mxu0 %v7714
        %7815 = vmatprep.subr.mxu0 0.0
        %7816 = vmatpush1.msra.mxu0 %v7715
        %7817 = vmatprep.subr.mxu0 0.0
        %7818 = vmatpush1.msra.mxu0 %v7716
        %7819 = vmatprep.subr.mxu0 0.0
        %7820 = vmatpush1.msra.mxu0 0.0
        %7821 = vmatprep.subr.mxu0 0.0
        %7822 = vmatpush1.msra.mxu0 0.0
        %7823 = vmatprep.subr.mxu0 0.0
        %7824 = vmatpush1.msra.mxu0 0.0
        %7825 = vmatprep.subr.mxu0 0.0
        %7826 = vmatpush1.msra.mxu0 0.0
        %7827 = vmatprep.subr.mxu0 0.0
        %7828 = vmatpush1.msra.mxu0 0.0
        %7829 = vmatprep.subr.mxu0 0.0
        %7830 = vmatpush1.msra.mxu0 0.0
        %7831 = vmatprep.subr.mxu0 0.0
        %7832 = vmatpush1.msra.mxu0 0.0
        %7833 = vmatprep.subr.mxu0 0.0
        %7834 = vmatpush1.msra.mxu0 0.0
        %7835 = vmatprep.subr.mxu0 0.0
        %7836 = vmatpush1.msra.mxu0 0.0
        %7837 = vmatprep.subr.mxu0 0.0
        %7838 = vmatpush1.msra.mxu0 0.0
        %7839 = vmatprep.subr.mxu0 0.0
        %7840 = vmatpush1.msra.mxu0 0.0
        %7841 = vmatprep.subr.mxu0 0.0
        %7842 = vmatpush1.msra.mxu0 0.0
        %7843 = vmatprep.subr.mxu0 0.0
        %7844 = vmatpush1.msra.mxu0 0.0
        %7845 = vmatprep.subr.mxu0 0.0
        %7846 = vmatpush1.msra.mxu0 0.0
        %7847 = vmatprep.subr.mxu0 0.0
        %7848 = vmatpush1.msra.mxu0 0.0
        %7849 = vmatprep.subr.mxu0 0.0
        %7850 = vmatpush1.msra.mxu0 0.0
        %7851 = vmatprep.mubr.f32.mxu0 0.0
        %7852 = vmatmul.mubr.f32.gmra.mrb[0].mxu0 %v6102
        %v7853 = vpop.f32.mrb[0].mxu0
        %v7854 = vadd.f32 %v7784, %v7853
        %v7855 = vpop.f32.mrb[0].mxu0
        %7856 = vdwg.mxu0
        %v7857 = vadd.f32 %v7667, %v7854
        %s7858 = scalar_lea.vmem %s11, 3456
        %v7859 = vld [vmem:[%s7858] sm:$0xff]
        %v7860 = vld [vmem:[%s7858 + $0x8] sm:$0xff]
        %v7861 = vld [vmem:[%s7858 + $0x10] sm:$0xff]
        %v7862 = vld [vmem:[%s7858 + $0x18] sm:$0xff]
        %v7863 = vld [vmem:[%s7858 + $0x20] sm:$0xff]
        %v7864 = vld [vmem:[%s7858 + $0x28] sm:$0xff]
        %v7865 = vld [vmem:[%s7858 + $0x30] sm:$0xff]
        %v7866 = vld [vmem:[%s7858 + $0x38] sm:$0xff]
        %v7867 = vld [vmem:[%s7858 + $0x40] sm:$0xff]
        %v7868 = vld [vmem:[%s7858 + $0x48] sm:$0xff]
        %v7869 = vld [vmem:[%s7858 + $0x50] sm:$0xff]
        %v7870 = vld [vmem:[%s7858 + $0x58] sm:$0xff]
        %v7871 = vld [vmem:[%s7858 + $0x60] sm:$0xff]
        %v7872 = vld [vmem:[%s7858 + $0x68] sm:$0xff]
        %v7873 = vld [vmem:[%s7858 + $0x70] sm:$0xff]
        %v7874 = vld [vmem:[%s7858 + $0x78] sm:$0xff]
        %v7875 = vld [vmem:[%s7858 + $0x80] sm:$0xff]
        %v7876 = vld [vmem:[%s7858 + $0x88] sm:$0xff]
        %v7877 = vld [vmem:[%s7858 + $0x90] sm:$0xff]
        %v7878 = vld [vmem:[%s7858 + $0x98] sm:$0xff]
        %v7879 = vld [vmem:[%s7858 + $0xa0] sm:$0xff]
        %v7880 = vld [vmem:[%s7858 + $0xa8] sm:$0xff]
        %v7881 = vld [vmem:[%s7858 + $0xb0] sm:$0xff]
        %v7882 = vld [vmem:[%s7858 + $0xb8] sm:$0xff]
        %v7883 = vld [vmem:[%s7858 + $0xc0] sm:$0xff]
        %v7884 = vld [vmem:[%s7858 + $0xc8] sm:$0xff]
        %v7885 = vld [vmem:[%s7858 + $0xd0] sm:$0xff]
        %v7886 = vld [vmem:[%s7858 + $0xd8] sm:$0xff]
        %v7887 = vld [vmem:[%s7858 + $0xe0] sm:$0xff]
        %v7888 = vld [vmem:[%s7858 + $0xe8] sm:$0xff]
        %v7889 = vld [vmem:[%s7858 + $0xf0] sm:$0xff]
        %v7890 = vld [vmem:[%s7858 + $0xf8] sm:$0xff]
        %v7891 = vld [vmem:[%s7858 + $0x100] sm:$0xff]
        %v7892 = vld [vmem:[%s7858 + $0x108] sm:$0xff]
        %v7893 = vld [vmem:[%s7858 + $0x110] sm:$0xff]
        %v7894 = vld [vmem:[%s7858 + $0x118] sm:$0xff]
        %v7895 = vld [vmem:[%s7858 + $0x120] sm:$0xff]
        %v7896 = vld [vmem:[%s7858 + $0x128] sm:$0xff]
        %v7897 = vld [vmem:[%s7858 + $0x130] sm:$0xff]
        %v7898 = vld [vmem:[%s7858 + $0x138] sm:$0xff]
        %v7899 = vld [vmem:[%s7858 + $0x140] sm:$0xff]
        %v7900 = vld [vmem:[%s7858 + $0x148] sm:$0xff]
        %v7901 = vld [vmem:[%s7858 + $0x150] sm:$0xff]
        %v7902 = vld [vmem:[%s7858 + $0x158] sm:$0xff]
        %v7903 = vld [vmem:[%s7858 + $0x160] sm:$0xff]
        %v7904 = vld [vmem:[%s7858 + $0x168] sm:$0xff]
        %v7905 = vld [vmem:[%s7858 + $0x170] sm:$0xff]
        %v7906 = vld [vmem:[%s7858 + $0x178] sm:$0xff]
        %v7910 = vrot.slane %v6100, 1
        %v7911 = vrot.slane %v6101, 1
        %v7912 = vrot.slane %v6102, 1
        %7916 = vmatprep.subr.mxu0 0.0
        %7917 = vmatpush1.msra.mxu0 %v7859
        %7918 = vmatprep.subr.mxu0 0.0
        %7919 = vmatpush1.msra.mxu0 %v7860
        %7920 = vmatprep.subr.mxu0 0.0
        %7921 = vmatpush1.msra.mxu0 %v7861
        %7922 = vmatprep.subr.mxu0 0.0
        %7923 = vmatpush1.msra.mxu0 %v7862
        %7924 = vmatprep.subr.mxu0 0.0
        %7925 = vmatpush1.msra.mxu0 %v7863
        %7926 = vmatprep.subr.mxu0 0.0
        %7927 = vmatpush1.msra.mxu0 %v7864
        %7928 = vmatprep.subr.mxu0 0.0
        %7929 = vmatpush1.msra.mxu0 %v7865
        %7930 = vmatprep.subr.mxu0 0.0
        %7931 = vmatpush1.msra.mxu0 %v7866
        %7932 = vmatprep.subr.mxu0 0.0
        %7933 = vmatpush1.msra.mxu0 %v7867
        %7934 = vmatprep.subr.mxu0 0.0
        %7935 = vmatpush1.msra.mxu0 %v7868
        %7936 = vmatprep.subr.mxu0 0.0
        %7937 = vmatpush1.msra.mxu0 %v7869
        %7938 = vmatprep.subr.mxu0 0.0
        %7939 = vmatpush1.msra.mxu0 %v7870
        %7940 = vmatprep.subr.mxu0 0.0
        %7941 = vmatpush1.msra.mxu0 %v7871
        %7942 = vmatprep.subr.mxu0 0.0
        %7943 = vmatpush1.msra.mxu0 %v7872
        %7944 = vmatprep.subr.mxu0 0.0
        %7945 = vmatpush1.msra.mxu0 %v7873
        %7946 = vmatprep.subr.mxu0 0.0
        %7947 = vmatpush1.msra.mxu0 %v7874
        %7948 = vmatprep.subr.mxu0 0.0
        %7949 = vmatpush1.msra.mxu0 %v7875
        %7950 = vmatprep.subr.mxu0 0.0
        %7951 = vmatpush1.msra.mxu0 %v7876
        %7952 = vmatprep.subr.mxu0 0.0
        %7953 = vmatpush1.msra.mxu0 %v7877
        %7954 = vmatprep.subr.mxu0 0.0
        %7955 = vmatpush1.msra.mxu0 %v7878
        %7956 = vmatprep.subr.mxu0 0.0
        %7957 = vmatpush1.msra.mxu0 %v7879
        %7958 = vmatprep.subr.mxu0 0.0
        %7959 = vmatpush1.msra.mxu0 %v7880
        %7960 = vmatprep.subr.mxu0 0.0
        %7961 = vmatpush1.msra.mxu0 %v7881
        %7962 = vmatprep.subr.mxu0 0.0
        %7963 = vmatpush1.msra.mxu0 %v7882
        %7964 = vmatprep.subr.mxu0 0.0
        %7965 = vmatpush1.msra.mxu0 %v7883
        %7966 = vmatprep.subr.mxu0 0.0
        %7967 = vmatpush1.msra.mxu0 %v7884
        %7968 = vmatprep.subr.mxu0 0.0
        %7969 = vmatpush1.msra.mxu0 %v7885
        %7970 = vmatprep.subr.mxu0 0.0
        %7971 = vmatpush1.msra.mxu0 %v7886
        %7972 = vmatprep.subr.mxu0 0.0
        %7973 = vmatpush1.msra.mxu0 %v7887
        %7974 = vmatprep.subr.mxu0 0.0
        %7975 = vmatpush1.msra.mxu0 %v7888
        %7976 = vmatprep.subr.mxu0 0.0
        %7977 = vmatpush1.msra.mxu0 %v7889
        %7978 = vmatprep.subr.mxu0 0.0
        %7979 = vmatpush1.msra.mxu0 %v7890
        %7980 = vmatprep.mubr.f32.mxu0 %v7911
        %7981 = vmatmul.mubr.f32.gmra.mrb[0].mxu0 %v7910
        %v7982 = vpop.f32.mrb[0].mxu0
        %v7983 = vadd.f32 0.0, %v7982
        %v7984 = vpop.f32.mrb[0].mxu0
        %7985 = vdwg.mxu0
        %7986 = vmatprep.subr.mxu0 0.0
        %7987 = vmatpush1.msra.mxu0 %v7891
        %7988 = vmatprep.subr.mxu0 0.0
        %7989 = vmatpush1.msra.mxu0 %v7892
        %7990 = vmatprep.subr.mxu0 0.0
        %7991 = vmatpush1.msra.mxu0 %v7893
        %7992 = vmatprep.subr.mxu0 0.0
        %7993 = vmatpush1.msra.mxu0 %v7894
        %7994 = vmatprep.subr.mxu0 0.0
        %7995 = vmatpush1.msra.mxu0 %v7895
        %7996 = vmatprep.subr.mxu0 0.0
        %7997 = vmatpush1.msra.mxu0 %v7896
        %7998 = vmatprep.subr.mxu0 0.0
        %7999 = vmatpush1.msra.mxu0 %v7897
        %8000 = vmatprep.subr.mxu0 0.0
        %8001 = vmatpush1.msra.mxu0 %v7898
        %8002 = vmatprep.subr.mxu0 0.0
        %8003 = vmatpush1.msra.mxu0 %v7899
        %8004 = vmatprep.subr.mxu0 0.0
        %8005 = vmatpush1.msra.mxu0 %v7900
        %8006 = vmatprep.subr.mxu0 0.0
        %8007 = vmatpush1.msra.mxu0 %v7901
        %8008 = vmatprep.subr.mxu0 0.0
        %8009 = vmatpush1.msra.mxu0 %v7902
        %8010 = vmatprep.subr.mxu0 0.0
        %8011 = vmatpush1.msra.mxu0 %v7903
        %8012 = vmatprep.subr.mxu0 0.0
        %8013 = vmatpush1.msra.mxu0 %v7904
        %8014 = vmatprep.subr.mxu0 0.0
        %8015 = vmatpush1.msra.mxu0 %v7905
        %8016 = vmatprep.subr.mxu0 0.0
        %8017 = vmatpush1.msra.mxu0 %v7906
        %8018 = vmatprep.subr.mxu0 0.0
        %8019 = vmatpush1.msra.mxu0 0.0
        %8020 = vmatprep.subr.mxu0 0.0
        %8021 = vmatpush1.msra.mxu0 0.0
        %8022 = vmatprep.subr.mxu0 0.0
        %8023 = vmatpush1.msra.mxu0 0.0
        %8024 = vmatprep.subr.mxu0 0.0
        %8025 = vmatpush1.msra.mxu0 0.0
        %8026 = vmatprep.subr.mxu0 0.0
        %8027 = vmatpush1.msra.mxu0 0.0
        %8028 = vmatprep.subr.mxu0 0.0
        %8029 = vmatpush1.msra.mxu0 0.0
        %8030 = vmatprep.subr.mxu0 0.0
        %8031 = vmatpush1.msra.mxu0 0.0
        %8032 = vmatprep.subr.mxu0 0.0
        %8033 = vmatpush1.msra.mxu0 0.0
        %8034 = vmatprep.subr.mxu0 0.0
        %8035 = vmatpush1.msra.mxu0 0.0
        %8036 = vmatprep.subr.mxu0 0.0
        %8037 = vmatpush1.msra.mxu0 0.0
        %8038 = vmatprep.subr.mxu0 0.0
        %8039 = vmatpush1.msra.mxu0 0.0
        %8040 = vmatprep.subr.mxu0 0.0
        %8041 = vmatpush1.msra.mxu0 0.0
        %8042 = vmatprep.subr.mxu0 0.0
        %8043 = vmatpush1.msra.mxu0 0.0
        %8044 = vmatprep.subr.mxu0 0.0
        %8045 = vmatpush1.msra.mxu0 0.0
        %8046 = vmatprep.subr.mxu0 0.0
        %8047 = vmatpush1.msra.mxu0 0.0
        %8048 = vmatprep.subr.mxu0 0.0
        %8049 = vmatpush1.msra.mxu0 0.0
        %8050 = vmatprep.mubr.f32.mxu0 0.0
        %8051 = vmatmul.mubr.f32.gmra.mrb[0].mxu0 %v7912
        %v8052 = vpop.f32.mrb[0].mxu0
        %v8053 = vadd.f32 %v7983, %v8052
        %v8054 = vpop.f32.mrb[0].mxu0
        %8055 = vdwg.mxu0
        %v8056 = vadd.f32 %v7857, %v8053
        %s8057 = scalar_lea.vmem %s11, 3840
        %v8058 = vld [vmem:[%s8057] sm:$0xff]
        %v8059 = vld [vmem:[%s8057 + $0x8] sm:$0xff]
        %v8060 = vld [vmem:[%s8057 + $0x10] sm:$0xff]
        %v8061 = vld [vmem:[%s8057 + $0x18] sm:$0xff]
        %v8062 = vld [vmem:[%s8057 + $0x20] sm:$0xff]
        %v8063 = vld [vmem:[%s8057 + $0x28] sm:$0xff]
        %v8064 = vld [vmem:[%s8057 + $0x30] sm:$0xff]
        %v8065 = vld [vmem:[%s8057 + $0x38] sm:$0xff]
        %v8066 = vld [vmem:[%s8057 + $0x40] sm:$0xff]
        %v8067 = vld [vmem:[%s8057 + $0x48] sm:$0xff]
        %v8068 = vld [vmem:[%s8057 + $0x50] sm:$0xff]
        %v8069 = vld [vmem:[%s8057 + $0x58] sm:$0xff]
        %v8070 = vld [vmem:[%s8057 + $0x60] sm:$0xff]
        %v8071 = vld [vmem:[%s8057 + $0x68] sm:$0xff]
        %v8072 = vld [vmem:[%s8057 + $0x70] sm:$0xff]
        %v8073 = vld [vmem:[%s8057 + $0x78] sm:$0xff]
        %v8074 = vld [vmem:[%s8057 + $0x80] sm:$0xff]
        %v8075 = vld [vmem:[%s8057 + $0x88] sm:$0xff]
        %v8076 = vld [vmem:[%s8057 + $0x90] sm:$0xff]
        %v8077 = vld [vmem:[%s8057 + $0x98] sm:$0xff]
        %v8078 = vld [vmem:[%s8057 + $0xa0] sm:$0xff]
        %v8079 = vld [vmem:[%s8057 + $0xa8] sm:$0xff]
        %v8080 = vld [vmem:[%s8057 + $0xb0] sm:$0xff]
        %v8081 = vld [vmem:[%s8057 + $0xb8] sm:$0xff]
        %v8082 = vld [vmem:[%s8057 + $0xc0] sm:$0xff]
        %v8083 = vld [vmem:[%s8057 + $0xc8] sm:$0xff]
        %v8084 = vld [vmem:[%s8057 + $0xd0] sm:$0xff]
        %v8085 = vld [vmem:[%s8057 + $0xd8] sm:$0xff]
        %v8086 = vld [vmem:[%s8057 + $0xe0] sm:$0xff]
        %v8087 = vld [vmem:[%s8057 + $0xe8] sm:$0xff]
        %v8088 = vld [vmem:[%s8057 + $0xf0] sm:$0xff]
        %v8089 = vld [vmem:[%s8057 + $0xf8] sm:$0xff]
        %v8090 = vld [vmem:[%s8057 + $0x100] sm:$0xff]
        %v8091 = vld [vmem:[%s8057 + $0x108] sm:$0xff]
        %v8092 = vld [vmem:[%s8057 + $0x110] sm:$0xff]
        %v8093 = vld [vmem:[%s8057 + $0x118] sm:$0xff]
        %v8094 = vld [vmem:[%s8057 + $0x120] sm:$0xff]
        %v8095 = vld [vmem:[%s8057 + $0x128] sm:$0xff]
        %v8096 = vld [vmem:[%s8057 + $0x130] sm:$0xff]
        %v8097 = vld [vmem:[%s8057 + $0x138] sm:$0xff]
        %v8098 = vld [vmem:[%s8057 + $0x140] sm:$0xff]
        %v8099 = vld [vmem:[%s8057 + $0x148] sm:$0xff]
        %v8100 = vld [vmem:[%s8057 + $0x150] sm:$0xff]
        %v8101 = vld [vmem:[%s8057 + $0x158] sm:$0xff]
        %v8102 = vld [vmem:[%s8057 + $0x160] sm:$0xff]
        %v8103 = vld [vmem:[%s8057 + $0x168] sm:$0xff]
        %v8104 = vld [vmem:[%s8057 + $0x170] sm:$0xff]
        %v8105 = vld [vmem:[%s8057 + $0x178] sm:$0xff]
        %v8106 = vrot.slane %v6100, 2
        %v8107 = vrot.slane %v6101, 2
        %v8108 = vrot.slane %v6102, 2
        %8112 = vmatprep.subr.mxu0 0.0
        %8113 = vmatpush1.msra.mxu0 %v8058
        %8114 = vmatprep.subr.mxu0 0.0
        %8115 = vmatpush1.msra.mxu0 %v8059
        %8116 = vmatprep.subr.mxu0 0.0
        %8117 = vmatpush1.msra.mxu0 %v8060
        %8118 = vmatprep.subr.mxu0 0.0
        %8119 = vmatpush1.msra.mxu0 %v8061
        %8120 = vmatprep.subr.mxu0 0.0
        %8121 = vmatpush1.msra.mxu0 %v8062
        %8122 = vmatprep.subr.mxu0 0.0
        %8123 = vmatpush1.msra.mxu0 %v8063
        %8124 = vmatprep.subr.mxu0 0.0
        %8125 = vmatpush1.msra.mxu0 %v8064
        %8126 = vmatprep.subr.mxu0 0.0
        %8127 = vmatpush1.msra.mxu0 %v8065
        %8128 = vmatprep.subr.mxu0 0.0
        %8129 = vmatpush1.msra.mxu0 %v8066
        %8130 = vmatprep.subr.mxu0 0.0
        %8131 = vmatpush1.msra.mxu0 %v8067
        %8132 = vmatprep.subr.mxu0 0.0
        %8133 = vmatpush1.msra.mxu0 %v8068
        %8134 = vmatprep.subr.mxu0 0.0
        %8135 = vmatpush1.msra.mxu0 %v8069
        %8136 = vmatprep.subr.mxu0 0.0
        %8137 = vmatpush1.msra.mxu0 %v8070
        %8138 = vmatprep.subr.mxu0 0.0
        %8139 = vmatpush1.msra.mxu0 %v8071
        %8140 = vmatprep.subr.mxu0 0.0
        %8141 = vmatpush1.msra.mxu0 %v8072
        %8142 = vmatprep.subr.mxu0 0.0
        %8143 = vmatpush1.msra.mxu0 %v8073
        %8144 = vmatprep.subr.mxu0 0.0
        %8145 = vmatpush1.msra.mxu0 %v8074
        %8146 = vmatprep.subr.mxu0 0.0
        %8147 = vmatpush1.msra.mxu0 %v8075
        %8148 = vmatprep.subr.mxu0 0.0
        %8149 = vmatpush1.msra.mxu0 %v8076
        %8150 = vmatprep.subr.mxu0 0.0
        %8151 = vmatpush1.msra.mxu0 %v8077
        %8152 = vmatprep.subr.mxu0 0.0
        %8153 = vmatpush1.msra.mxu0 %v8078
        %8154 = vmatprep.subr.mxu0 0.0
        %8155 = vmatpush1.msra.mxu0 %v8079
        %8156 = vmatprep.subr.mxu0 0.0
        %8157 = vmatpush1.msra.mxu0 %v8080
        %8158 = vmatprep.subr.mxu0 0.0
        %8159 = vmatpush1.msra.mxu0 %v8081
        %8160 = vmatprep.subr.mxu0 0.0
        %8161 = vmatpush1.msra.mxu0 %v8082
        %8162 = vmatprep.subr.mxu0 0.0
        %8163 = vmatpush1.msra.mxu0 %v8083
        %8164 = vmatprep.subr.mxu0 0.0
        %8165 = vmatpush1.msra.mxu0 %v8084
        %8166 = vmatprep.subr.mxu0 0.0
        %8167 = vmatpush1.msra.mxu0 %v8085
        %8168 = vmatprep.subr.mxu0 0.0
        %8169 = vmatpush1.msra.mxu0 %v8086
        %8170 = vmatprep.subr.mxu0 0.0
        %8171 = vmatpush1.msra.mxu0 %v8087
        %8172 = vmatprep.subr.mxu0 0.0
        %8173 = vmatpush1.msra.mxu0 %v8088
        %8174 = vmatprep.subr.mxu0 0.0
        %8175 = vmatpush1.msra.mxu0 %v8089
        %8176 = vmatprep.mubr.f32.mxu0 %v8107
        %8177 = vmatmul.mubr.f32.gmra.mrb[0].mxu0 %v8106
        %v8178 = vpop.f32.mrb[0].mxu0
        %v8179 = vadd.f32 0.0, %v8178
        %v8180 = vpop.f32.mrb[0].mxu0
        %8181 = vdwg.mxu0
        %8182 = vmatprep.subr.mxu0 0.0
        %8183 = vmatpush1.msra.mxu0 %v8090
        %8184 = vmatprep.subr.mxu0 0.0
        %8185 = vmatpush1.msra.mxu0 %v8091
        %8186 = vmatprep.subr.mxu0 0.0
        %8187 = vmatpush1.msra.mxu0 %v8092
        %8188 = vmatprep.subr.mxu0 0.0
        %8189 = vmatpush1.msra.mxu0 %v8093
        %8190 = vmatprep.subr.mxu0 0.0
        %8191 = vmatpush1.msra.mxu0 %v8094
        %8192 = vmatprep.subr.mxu0 0.0
        %8193 = vmatpush1.msra.mxu0 %v8095
        %8194 = vmatprep.subr.mxu0 0.0
        %8195 = vmatpush1.msra.mxu0 %v8096
        %8196 = vmatprep.subr.mxu0 0.0
        %8197 = vmatpush1.msra.mxu0 %v8097
        %8198 = vmatprep.subr.mxu0 0.0
        %8199 = vmatpush1.msra.mxu0 %v8098
        %8200 = vmatprep.subr.mxu0 0.0
        %8201 = vmatpush1.msra.mxu0 %v8099
        %8202 = vmatprep.subr.mxu0 0.0
        %8203 = vmatpush1.msra.mxu0 %v8100
        %8204 = vmatprep.subr.mxu0 0.0
        %8205 = vmatpush1.msra.mxu0 %v8101
        %8206 = vmatprep.subr.mxu0 0.0
        %8207 = vmatpush1.msra.mxu0 %v8102
        %8208 = vmatprep.subr.mxu0 0.0
        %8209 = vmatpush1.msra.mxu0 %v8103
        %8210 = vmatprep.subr.mxu0 0.0
        %8211 = vmatpush1.msra.mxu0 %v8104
        %8212 = vmatprep.subr.mxu0 0.0
        %8213 = vmatpush1.msra.mxu0 %v8105
        %8214 = vmatprep.subr.mxu0 0.0
        %8215 = vmatpush1.msra.mxu0 0.0
        %8216 = vmatprep.subr.mxu0 0.0
        %8217 = vmatpush1.msra.mxu0 0.0
        %8218 = vmatprep.subr.mxu0 0.0
        %8219 = vmatpush1.msra.mxu0 0.0
        %8220 = vmatprep.subr.mxu0 0.0
        %8221 = vmatpush1.msra.mxu0 0.0
        %8222 = vmatprep.subr.mxu0 0.0
        %8223 = vmatpush1.msra.mxu0 0.0
        %8224 = vmatprep.subr.mxu0 0.0
        %8225 = vmatpush1.msra.mxu0 0.0
        %8226 = vmatprep.subr.mxu0 0.0
        %8227 = vmatpush1.msra.mxu0 0.0
        %8228 = vmatprep.subr.mxu0 0.0
        %8229 = vmatpush1.msra.mxu0 0.0
        %8230 = vmatprep.subr.mxu0 0.0
        %8231 = vmatpush1.msra.mxu0 0.0
        %8232 = vmatprep.subr.mxu0 0.0
        %8233 = vmatpush1.msra.mxu0 0.0
        %8234 = vmatprep.subr.mxu0 0.0
        %8235 = vmatpush1.msra.mxu0 0.0
        %8236 = vmatprep.subr.mxu0 0.0
        %8237 = vmatpush1.msra.mxu0 0.0
        %8238 = vmatprep.subr.mxu0 0.0
        %8239 = vmatpush1.msra.mxu0 0.0
        %8240 = vmatprep.subr.mxu0 0.0
        %8241 = vmatpush1.msra.mxu0 0.0
        %8242 = vmatprep.subr.mxu0 0.0
        %8243 = vmatpush1.msra.mxu0 0.0
        %8244 = vmatprep.subr.mxu0 0.0
        %8245 = vmatpush1.msra.mxu0 0.0
        %8246 = vmatprep.mubr.f32.mxu0 0.0
        %8247 = vmatmul.mubr.f32.gmra.mrb[0].mxu0 %v8108
        %v8248 = vpop.f32.mrb[0].mxu0
        %v8249 = vadd.f32 %v8179, %v8248
        %v8250 = vpop.f32.mrb[0].mxu0
        %8251 = vdwg.mxu0
        %v8252 = vadd.f32 %v8056, %v8249
        %s8253 = scalar_lea.vmem %s11, 4224
        %v8254 = vld [vmem:[%s8253] sm:$0xff]
        %v8255 = vld [vmem:[%s8253 + $0x8] sm:$0xff]
        %v8256 = vld [vmem:[%s8253 + $0x10] sm:$0xff]
        %v8257 = vld [vmem:[%s8253 + $0x18] sm:$0xff]
        %v8258 = vld [vmem:[%s8253 + $0x20] sm:$0xff]
        %v8259 = vld [vmem:[%s8253 + $0x28] sm:$0xff]
        %v8260 = vld [vmem:[%s8253 + $0x30] sm:$0xff]
        %v8261 = vld [vmem:[%s8253 + $0x38] sm:$0xff]
        %v8262 = vld [vmem:[%s8253 + $0x40] sm:$0xff]
        %v8263 = vld [vmem:[%s8253 + $0x48] sm:$0xff]
        %v8264 = vld [vmem:[%s8253 + $0x50] sm:$0xff]
        %v8265 = vld [vmem:[%s8253 + $0x58] sm:$0xff]
        %v8266 = vld [vmem:[%s8253 + $0x60] sm:$0xff]
        %v8267 = vld [vmem:[%s8253 + $0x68] sm:$0xff]
        %v8268 = vld [vmem:[%s8253 + $0x70] sm:$0xff]
        %v8269 = vld [vmem:[%s8253 + $0x78] sm:$0xff]
        %v8270 = vld [vmem:[%s8253 + $0x80] sm:$0xff]
        %v8271 = vld [vmem:[%s8253 + $0x88] sm:$0xff]
        %v8272 = vld [vmem:[%s8253 + $0x90] sm:$0xff]
        %v8273 = vld [vmem:[%s8253 + $0x98] sm:$0xff]
        %v8274 = vld [vmem:[%s8253 + $0xa0] sm:$0xff]
        %v8275 = vld [vmem:[%s8253 + $0xa8] sm:$0xff]
        %v8276 = vld [vmem:[%s8253 + $0xb0] sm:$0xff]
        %v8277 = vld [vmem:[%s8253 + $0xb8] sm:$0xff]
        %v8278 = vld [vmem:[%s8253 + $0xc0] sm:$0xff]
        %v8279 = vld [vmem:[%s8253 + $0xc8] sm:$0xff]
        %v8280 = vld [vmem:[%s8253 + $0xd0] sm:$0xff]
        %v8281 = vld [vmem:[%s8253 + $0xd8] sm:$0xff]
        %v8282 = vld [vmem:[%s8253 + $0xe0] sm:$0xff]
        %v8283 = vld [vmem:[%s8253 + $0xe8] sm:$0xff]
        %v8284 = vld [vmem:[%s8253 + $0xf0] sm:$0xff]
        %v8285 = vld [vmem:[%s8253 + $0xf8] sm:$0xff]
        %v8286 = vld [vmem:[%s8253 + $0x100] sm:$0xff]
        %v8287 = vld [vmem:[%s8253 + $0x108] sm:$0xff]
        %v8288 = vld [vmem:[%s8253 + $0x110] sm:$0xff]
        %v8289 = vld [vmem:[%s8253 + $0x118] sm:$0xff]
        %v8290 = vld [vmem:[%s8253 + $0x120] sm:$0xff]
        %v8291 = vld [vmem:[%s8253 + $0x128] sm:$0xff]
        %v8292 = vld [vmem:[%s8253 + $0x130] sm:$0xff]
        %v8293 = vld [vmem:[%s8253 + $0x138] sm:$0xff]
        %v8294 = vld [vmem:[%s8253 + $0x140] sm:$0xff]
        %v8295 = vld [vmem:[%s8253 + $0x148] sm:$0xff]
        %v8296 = vld [vmem:[%s8253 + $0x150] sm:$0xff]
        %v8297 = vld [vmem:[%s8253 + $0x158] sm:$0xff]
        %v8298 = vld [vmem:[%s8253 + $0x160] sm:$0xff]
        %v8299 = vld [vmem:[%s8253 + $0x168] sm:$0xff]
        %v8300 = vld [vmem:[%s8253 + $0x170] sm:$0xff]
        %v8301 = vld [vmem:[%s8253 + $0x178] sm:$0xff]
        %v8302 = vrot.slane %v6100, 3
        %v8303 = vrot.slane %v6101, 3
        %v8304 = vrot.slane %v6102, 3
        %8308 = vmatprep.subr.mxu0 0.0
        %8309 = vmatpush1.msra.mxu0 %v8254
        %8310 = vmatprep.subr.mxu0 0.0
        %8311 = vmatpush1.msra.mxu0 %v8255
        %8312 = vmatprep.subr.mxu0 0.0
        %8313 = vmatpush1.msra.mxu0 %v8256
        %8314 = vmatprep.subr.mxu0 0.0
        %8315 = vmatpush1.msra.mxu0 %v8257
        %8316 = vmatprep.subr.mxu0 0.0
        %8317 = vmatpush1.msra.mxu0 %v8258
        %8318 = vmatprep.subr.mxu0 0.0
        %8319 = vmatpush1.msra.mxu0 %v8259
        %8320 = vmatprep.subr.mxu0 0.0
        %8321 = vmatpush1.msra.mxu0 %v8260
        %8322 = vmatprep.subr.mxu0 0.0
        %8323 = vmatpush1.msra.mxu0 %v8261
        %8324 = vmatprep.subr.mxu0 0.0
        %8325 = vmatpush1.msra.mxu0 %v8262
        %8326 = vmatprep.subr.mxu0 0.0
        %8327 = vmatpush1.msra.mxu0 %v8263
        %8328 = vmatprep.subr.mxu0 0.0
        %8329 = vmatpush1.msra.mxu0 %v8264
        %8330 = vmatprep.subr.mxu0 0.0
        %8331 = vmatpush1.msra.mxu0 %v8265
        %8332 = vmatprep.subr.mxu0 0.0
        %8333 = vmatpush1.msra.mxu0 %v8266
        %8334 = vmatprep.subr.mxu0 0.0
        %8335 = vmatpush1.msra.mxu0 %v8267
        %8336 = vmatprep.subr.mxu0 0.0
        %8337 = vmatpush1.msra.mxu0 %v8268
        %8338 = vmatprep.subr.mxu0 0.0
        %8339 = vmatpush1.msra.mxu0 %v8269
        %8340 = vmatprep.subr.mxu0 0.0
        %8341 = vmatpush1.msra.mxu0 %v8270
        %8342 = vmatprep.subr.mxu0 0.0
        %8343 = vmatpush1.msra.mxu0 %v8271
        %8344 = vmatprep.subr.mxu0 0.0
        %8345 = vmatpush1.msra.mxu0 %v8272
        %8346 = vmatprep.subr.mxu0 0.0
        %8347 = vmatpush1.msra.mxu0 %v8273
        %8348 = vmatprep.subr.mxu0 0.0
        %8349 = vmatpush1.msra.mxu0 %v8274
        %8350 = vmatprep.subr.mxu0 0.0
        %8351 = vmatpush1.msra.mxu0 %v8275
        %8352 = vmatprep.subr.mxu0 0.0
        %8353 = vmatpush1.msra.mxu0 %v8276
        %8354 = vmatprep.subr.mxu0 0.0
        %8355 = vmatpush1.msra.mxu0 %v8277
        %8356 = vmatprep.subr.mxu0 0.0
        %8357 = vmatpush1.msra.mxu0 %v8278
        %8358 = vmatprep.subr.mxu0 0.0
        %8359 = vmatpush1.msra.mxu0 %v8279
        %8360 = vmatprep.subr.mxu0 0.0
        %8361 = vmatpush1.msra.mxu0 %v8280
        %8362 = vmatprep.subr.mxu0 0.0
        %8363 = vmatpush1.msra.mxu0 %v8281
        %8364 = vmatprep.subr.mxu0 0.0
        %8365 = vmatpush1.msra.mxu0 %v8282
        %8366 = vmatprep.subr.mxu0 0.0
        %8367 = vmatpush1.msra.mxu0 %v8283
        %8368 = vmatprep.subr.mxu0 0.0
        %8369 = vmatpush1.msra.mxu0 %v8284
        %8370 = vmatprep.subr.mxu0 0.0
        %8371 = vmatpush1.msra.mxu0 %v8285
        %8372 = vmatprep.mubr.f32.mxu0 %v8303
        %8373 = vmatmul.mubr.f32.gmra.mrb[0].mxu0 %v8302
        %v8374 = vpop.f32.mrb[0].mxu0
        %v8375 = vadd.f32 0.0, %v8374
        %v8376 = vpop.f32.mrb[0].mxu0
        %8377 = vdwg.mxu0
        %8378 = vmatprep.subr.mxu0 0.0
        %8379 = vmatpush1.msra.mxu0 %v8286
        %8380 = vmatprep.subr.mxu0 0.0
        %8381 = vmatpush1.msra.mxu0 %v8287
        %8382 = vmatprep.subr.mxu0 0.0
        %8383 = vmatpush1.msra.mxu0 %v8288
        %8384 = vmatprep.subr.mxu0 0.0
        %8385 = vmatpush1.msra.mxu0 %v8289
        %8386 = vmatprep.subr.mxu0 0.0
        %8387 = vmatpush1.msra.mxu0 %v8290
        %8388 = vmatprep.subr.mxu0 0.0
        %8389 = vmatpush1.msra.mxu0 %v8291
        %8390 = vmatprep.subr.mxu0 0.0
        %8391 = vmatpush1.msra.mxu0 %v8292
        %8392 = vmatprep.subr.mxu0 0.0
        %8393 = vmatpush1.msra.mxu0 %v8293
        %8394 = vmatprep.subr.mxu0 0.0
        %8395 = vmatpush1.msra.mxu0 %v8294
        %8396 = vmatprep.subr.mxu0 0.0
        %8397 = vmatpush1.msra.mxu0 %v8295
        %8398 = vmatprep.subr.mxu0 0.0
        %8399 = vmatpush1.msra.mxu0 %v8296
        %8400 = vmatprep.subr.mxu0 0.0
        %8401 = vmatpush1.msra.mxu0 %v8297
        %8402 = vmatprep.subr.mxu0 0.0
        %8403 = vmatpush1.msra.mxu0 %v8298
        %8404 = vmatprep.subr.mxu0 0.0
        %8405 = vmatpush1.msra.mxu0 %v8299
        %8406 = vmatprep.subr.mxu0 0.0
        %8407 = vmatpush1.msra.mxu0 %v8300
        %8408 = vmatprep.subr.mxu0 0.0
        %8409 = vmatpush1.msra.mxu0 %v8301
        %8410 = vmatprep.subr.mxu0 0.0
        %8411 = vmatpush1.msra.mxu0 0.0
        %8412 = vmatprep.subr.mxu0 0.0
        %8413 = vmatpush1.msra.mxu0 0.0
        %8414 = vmatprep.subr.mxu0 0.0
        %8415 = vmatpush1.msra.mxu0 0.0
        %8416 = vmatprep.subr.mxu0 0.0
        %8417 = vmatpush1.msra.mxu0 0.0
        %8418 = vmatprep.subr.mxu0 0.0
        %8419 = vmatpush1.msra.mxu0 0.0
        %8420 = vmatprep.subr.mxu0 0.0
        %8421 = vmatpush1.msra.mxu0 0.0
        %8422 = vmatprep.subr.mxu0 0.0
        %8423 = vmatpush1.msra.mxu0 0.0
        %8424 = vmatprep.subr.mxu0 0.0
        %8425 = vmatpush1.msra.mxu0 0.0
        %8426 = vmatprep.subr.mxu0 0.0
        %8427 = vmatpush1.msra.mxu0 0.0
        %8428 = vmatprep.subr.mxu0 0.0
        %8429 = vmatpush1.msra.mxu0 0.0
        %8430 = vmatprep.subr.mxu0 0.0
        %8431 = vmatpush1.msra.mxu0 0.0
        %8432 = vmatprep.subr.mxu0 0.0
        %8433 = vmatpush1.msra.mxu0 0.0
        %8434 = vmatprep.subr.mxu0 0.0
        %8435 = vmatpush1.msra.mxu0 0.0
        %8436 = vmatprep.subr.mxu0 0.0
        %8437 = vmatpush1.msra.mxu0 0.0
        %8438 = vmatprep.subr.mxu0 0.0
        %8439 = vmatpush1.msra.mxu0 0.0
        %8440 = vmatprep.subr.mxu0 0.0
        %8441 = vmatpush1.msra.mxu0 0.0
        %8442 = vmatprep.mubr.f32.mxu0 0.0
        %8443 = vmatmul.mubr.f32.gmra.mrb[0].mxu0 %v8304
        %v8444 = vpop.f32.mrb[0].mxu0
        %v8445 = vadd.f32 %v8375, %v8444
        %v8446 = vpop.f32.mrb[0].mxu0
        %8447 = vdwg.mxu0
        %v8448 = vadd.f32 %v8252, %v8445
        %s8449 = scalar_lea.vmem %s11, 4608
        %v8450 = vld [vmem:[%s8449] sm:$0xff]
        %v8451 = vld [vmem:[%s8449 + $0x8] sm:$0xff]
        %v8452 = vld [vmem:[%s8449 + $0x10] sm:$0xff]
        %v8453 = vld [vmem:[%s8449 + $0x18] sm:$0xff]
        %v8454 = vld [vmem:[%s8449 + $0x20] sm:$0xff]
        %v8455 = vld [vmem:[%s8449 + $0x28] sm:$0xff]
        %v8456 = vld [vmem:[%s8449 + $0x30] sm:$0xff]
        %v8457 = vld [vmem:[%s8449 + $0x38] sm:$0xff]
        %v8458 = vld [vmem:[%s8449 + $0x40] sm:$0xff]
        %v8459 = vld [vmem:[%s8449 + $0x48] sm:$0xff]
        %v8460 = vld [vmem:[%s8449 + $0x50] sm:$0xff]
        %v8461 = vld [vmem:[%s8449 + $0x58] sm:$0xff]
        %v8462 = vld [vmem:[%s8449 + $0x60] sm:$0xff]
        %v8463 = vld [vmem:[%s8449 + $0x68] sm:$0xff]
        %v8464 = vld [vmem:[%s8449 + $0x70] sm:$0xff]
        %v8465 = vld [vmem:[%s8449 + $0x78] sm:$0xff]
        %v8466 = vld [vmem:[%s8449 + $0x80] sm:$0xff]
        %v8467 = vld [vmem:[%s8449 + $0x88] sm:$0xff]
        %v8468 = vld [vmem:[%s8449 + $0x90] sm:$0xff]
        %v8469 = vld [vmem:[%s8449 + $0x98] sm:$0xff]
        %v8470 = vld [vmem:[%s8449 + $0xa0] sm:$0xff]
        %v8471 = vld [vmem:[%s8449 + $0xa8] sm:$0xff]
        %v8472 = vld [vmem:[%s8449 + $0xb0] sm:$0xff]
        %v8473 = vld [vmem:[%s8449 + $0xb8] sm:$0xff]
        %v8474 = vld [vmem:[%s8449 + $0xc0] sm:$0xff]
        %v8475 = vld [vmem:[%s8449 + $0xc8] sm:$0xff]
        %v8476 = vld [vmem:[%s8449 + $0xd0] sm:$0xff]
        %v8477 = vld [vmem:[%s8449 + $0xd8] sm:$0xff]
        %v8478 = vld [vmem:[%s8449 + $0xe0] sm:$0xff]
        %v8479 = vld [vmem:[%s8449 + $0xe8] sm:$0xff]
        %v8480 = vld [vmem:[%s8449 + $0xf0] sm:$0xff]
        %v8481 = vld [vmem:[%s8449 + $0xf8] sm:$0xff]
        %v8482 = vld [vmem:[%s8449 + $0x100] sm:$0xff]
        %v8483 = vld [vmem:[%s8449 + $0x108] sm:$0xff]
        %v8484 = vld [vmem:[%s8449 + $0x110] sm:$0xff]
        %v8485 = vld [vmem:[%s8449 + $0x118] sm:$0xff]
        %v8486 = vld [vmem:[%s8449 + $0x120] sm:$0xff]
        %v8487 = vld [vmem:[%s8449 + $0x128] sm:$0xff]
        %v8488 = vld [vmem:[%s8449 + $0x130] sm:$0xff]
        %v8489 = vld [vmem:[%s8449 + $0x138] sm:$0xff]
        %v8490 = vld [vmem:[%s8449 + $0x140] sm:$0xff]
        %v8491 = vld [vmem:[%s8449 + $0x148] sm:$0xff]
        %v8492 = vld [vmem:[%s8449 + $0x150] sm:$0xff]
        %v8493 = vld [vmem:[%s8449 + $0x158] sm:$0xff]
        %v8494 = vld [vmem:[%s8449 + $0x160] sm:$0xff]
        %v8495 = vld [vmem:[%s8449 + $0x168] sm:$0xff]
        %v8496 = vld [vmem:[%s8449 + $0x170] sm:$0xff]
        %v8497 = vld [vmem:[%s8449 + $0x178] sm:$0xff]
        %v8498 = vrot.slane %v6100, 4
        %v8499 = vrot.slane %v6101, 4
        %v8500 = vrot.slane %v6102, 4
        %8504 = vmatprep.subr.mxu0 0.0
        %8505 = vmatpush1.msra.mxu0 %v8450
        %8506 = vmatprep.subr.mxu0 0.0
        %8507 = vmatpush1.msra.mxu0 %v8451
        %8508 = vmatprep.subr.mxu0 0.0
        %8509 = vmatpush1.msra.mxu0 %v8452
        %8510 = vmatprep.subr.mxu0 0.0
        %8511 = vmatpush1.msra.mxu0 %v8453
        %8512 = vmatprep.subr.mxu0 0.0
        %8513 = vmatpush1.msra.mxu0 %v8454
        %8514 = vmatprep.subr.mxu0 0.0
        %8515 = vmatpush1.msra.mxu0 %v8455
        %8516 = vmatprep.subr.mxu0 0.0
        %8517 = vmatpush1.msra.mxu0 %v8456
        %8518 = vmatprep.subr.mxu0 0.0
        %8519 = vmatpush1.msra.mxu0 %v8457
        %8520 = vmatprep.subr.mxu0 0.0
        %8521 = vmatpush1.msra.mxu0 %v8458
        %8522 = vmatprep.subr.mxu0 0.0
        %8523 = vmatpush1.msra.mxu0 %v8459
        %8524 = vmatprep.subr.mxu0 0.0
        %8525 = vmatpush1.msra.mxu0 %v8460
        %8526 = vmatprep.subr.mxu0 0.0
        %8527 = vmatpush1.msra.mxu0 %v8461
        %8528 = vmatprep.subr.mxu0 0.0
        %8529 = vmatpush1.msra.mxu0 %v8462
        %8530 = vmatprep.subr.mxu0 0.0
        %8531 = vmatpush1.msra.mxu0 %v8463
        %8532 = vmatprep.subr.mxu0 0.0
        %8533 = vmatpush1.msra.mxu0 %v8464
        %8534 = vmatprep.subr.mxu0 0.0
        %8535 = vmatpush1.msra.mxu0 %v8465
        %8536 = vmatprep.subr.mxu0 0.0
        %8537 = vmatpush1.msra.mxu0 %v8466
        %8538 = vmatprep.subr.mxu0 0.0
        %8539 = vmatpush1.msra.mxu0 %v8467
        %8540 = vmatprep.subr.mxu0 0.0
        %8541 = vmatpush1.msra.mxu0 %v8468
        %8542 = vmatprep.subr.mxu0 0.0
        %8543 = vmatpush1.msra.mxu0 %v8469
        %8544 = vmatprep.subr.mxu0 0.0
        %8545 = vmatpush1.msra.mxu0 %v8470
        %8546 = vmatprep.subr.mxu0 0.0
        %8547 = vmatpush1.msra.mxu0 %v8471
        %8548 = vmatprep.subr.mxu0 0.0
        %8549 = vmatpush1.msra.mxu0 %v8472
        %8550 = vmatprep.subr.mxu0 0.0
        %8551 = vmatpush1.msra.mxu0 %v8473
        %8552 = vmatprep.subr.mxu0 0.0
        %8553 = vmatpush1.msra.mxu0 %v8474
        %8554 = vmatprep.subr.mxu0 0.0
        %8555 = vmatpush1.msra.mxu0 %v8475
        %8556 = vmatprep.subr.mxu0 0.0
        %8557 = vmatpush1.msra.mxu0 %v8476
        %8558 = vmatprep.subr.mxu0 0.0
        %8559 = vmatpush1.msra.mxu0 %v8477
        %8560 = vmatprep.subr.mxu0 0.0
        %8561 = vmatpush1.msra.mxu0 %v8478
        %8562 = vmatprep.subr.mxu0 0.0
        %8563 = vmatpush1.msra.mxu0 %v8479
        %8564 = vmatprep.subr.mxu0 0.0
        %8565 = vmatpush1.msra.mxu0 %v8480
        %8566 = vmatprep.subr.mxu0 0.0
        %8567 = vmatpush1.msra.mxu0 %v8481
        %8568 = vmatprep.mubr.f32.mxu0 %v8499
        %8569 = vmatmul.mubr.f32.gmra.mrb[0].mxu0 %v8498
        %v8570 = vpop.f32.mrb[0].mxu0
        %v8571 = vadd.f32 0.0, %v8570
        %v8572 = vpop.f32.mrb[0].mxu0
        %8573 = vdwg.mxu0
        %8574 = vmatprep.subr.mxu0 0.0
        %8575 = vmatpush1.msra.mxu0 %v8482
        %8576 = vmatprep.subr.mxu0 0.0
        %8577 = vmatpush1.msra.mxu0 %v8483
        %8578 = vmatprep.subr.mxu0 0.0
        %8579 = vmatpush1.msra.mxu0 %v8484
        %8580 = vmatprep.subr.mxu0 0.0
        %8581 = vmatpush1.msra.mxu0 %v8485
        %8582 = vmatprep.subr.mxu0 0.0
        %8583 = vmatpush1.msra.mxu0 %v8486
        %8584 = vmatprep.subr.mxu0 0.0
        %8585 = vmatpush1.msra.mxu0 %v8487
        %8586 = vmatprep.subr.mxu0 0.0
        %8587 = vmatpush1.msra.mxu0 %v8488
        %8588 = vmatprep.subr.mxu0 0.0
        %8589 = vmatpush1.msra.mxu0 %v8489
        %8590 = vmatprep.subr.mxu0 0.0
        %8591 = vmatpush1.msra.mxu0 %v8490
        %8592 = vmatprep.subr.mxu0 0.0
        %8593 = vmatpush1.msra.mxu0 %v8491
        %8594 = vmatprep.subr.mxu0 0.0
        %8595 = vmatpush1.msra.mxu0 %v8492
        %8596 = vmatprep.subr.mxu0 0.0
        %8597 = vmatpush1.msra.mxu0 %v8493
        %8598 = vmatprep.subr.mxu0 0.0
        %8599 = vmatpush1.msra.mxu0 %v8494
        %8600 = vmatprep.subr.mxu0 0.0
        %8601 = vmatpush1.msra.mxu0 %v8495
        %8602 = vmatprep.subr.mxu0 0.0
        %8603 = vmatpush1.msra.mxu0 %v8496
        %8604 = vmatprep.subr.mxu0 0.0
        %8605 = vmatpush1.msra.mxu0 %v8497
        %8606 = vmatprep.subr.mxu0 0.0
        %8607 = vmatpush1.msra.mxu0 0.0
        %8608 = vmatprep.subr.mxu0 0.0
        %8609 = vmatpush1.msra.mxu0 0.0
        %8610 = vmatprep.subr.mxu0 0.0
        %8611 = vmatpush1.msra.mxu0 0.0
        %8612 = vmatprep.subr.mxu0 0.0
        %8613 = vmatpush1.msra.mxu0 0.0
        %8614 = vmatprep.subr.mxu0 0.0
        %8615 = vmatpush1.msra.mxu0 0.0
        %8616 = vmatprep.subr.mxu0 0.0
        %8617 = vmatpush1.msra.mxu0 0.0
        %8618 = vmatprep.subr.mxu0 0.0
        %8619 = vmatpush1.msra.mxu0 0.0
        %8620 = vmatprep.subr.mxu0 0.0
        %8621 = vmatpush1.msra.mxu0 0.0
        %8622 = vmatprep.subr.mxu0 0.0
        %8623 = vmatpush1.msra.mxu0 0.0
        %8624 = vmatprep.subr.mxu0 0.0
        %8625 = vmatpush1.msra.mxu0 0.0
        %8626 = vmatprep.subr.mxu0 0.0
        %8627 = vmatpush1.msra.mxu0 0.0
        %8628 = vmatprep.subr.mxu0 0.0
        %8629 = vmatpush1.msra.mxu0 0.0
        %8630 = vmatprep.subr.mxu0 0.0
        %8631 = vmatpush1.msra.mxu0 0.0
        %8632 = vmatprep.subr.mxu0 0.0
        %8633 = vmatpush1.msra.mxu0 0.0
        %8634 = vmatprep.subr.mxu0 0.0
        %8635 = vmatpush1.msra.mxu0 0.0
        %8636 = vmatprep.subr.mxu0 0.0
        %8637 = vmatpush1.msra.mxu0 0.0
        %8638 = vmatprep.mubr.f32.mxu0 0.0
        %8639 = vmatmul.mubr.f32.gmra.mrb[0].mxu0 %v8500
        %v8640 = vpop.f32.mrb[0].mxu0
        %v8641 = vadd.f32 %v8571, %v8640
        %v8642 = vpop.f32.mrb[0].mxu0
        %8643 = vdwg.mxu0
        %v8644 = vadd.f32 %v8448, %v8641
        %s8645 = scalar_lea.vmem %s11, 4992
        %v8646 = vld [vmem:[%s8645] sm:$0xff]
        %v8647 = vld [vmem:[%s8645 + $0x8] sm:$0xff]
        %v8648 = vld [vmem:[%s8645 + $0x10] sm:$0xff]
        %v8649 = vld [vmem:[%s8645 + $0x18] sm:$0xff]
        %v8650 = vld [vmem:[%s8645 + $0x20] sm:$0xff]
        %v8651 = vld [vmem:[%s8645 + $0x28] sm:$0xff]
        %v8652 = vld [vmem:[%s8645 + $0x30] sm:$0xff]
        %v8653 = vld [vmem:[%s8645 + $0x38] sm:$0xff]
        %v8654 = vld [vmem:[%s8645 + $0x40] sm:$0xff]
        %v8655 = vld [vmem:[%s8645 + $0x48] sm:$0xff]
        %v8656 = vld [vmem:[%s8645 + $0x50] sm:$0xff]
        %v8657 = vld [vmem:[%s8645 + $0x58] sm:$0xff]
        %v8658 = vld [vmem:[%s8645 + $0x60] sm:$0xff]
        %v8659 = vld [vmem:[%s8645 + $0x68] sm:$0xff]
        %v8660 = vld [vmem:[%s8645 + $0x70] sm:$0xff]
        %v8661 = vld [vmem:[%s8645 + $0x78] sm:$0xff]
        %v8662 = vld [vmem:[%s8645 + $0x80] sm:$0xff]
        %v8663 = vld [vmem:[%s8645 + $0x88] sm:$0xff]
        %v8664 = vld [vmem:[%s8645 + $0x90] sm:$0xff]
        %v8665 = vld [vmem:[%s8645 + $0x98] sm:$0xff]
        %v8666 = vld [vmem:[%s8645 + $0xa0] sm:$0xff]
        %v8667 = vld [vmem:[%s8645 + $0xa8] sm:$0xff]
        %v8668 = vld [vmem:[%s8645 + $0xb0] sm:$0xff]
        %v8669 = vld [vmem:[%s8645 + $0xb8] sm:$0xff]
        %v8670 = vld [vmem:[%s8645 + $0xc0] sm:$0xff]
        %v8671 = vld [vmem:[%s8645 + $0xc8] sm:$0xff]
        %v8672 = vld [vmem:[%s8645 + $0xd0] sm:$0xff]
        %v8673 = vld [vmem:[%s8645 + $0xd8] sm:$0xff]
        %v8674 = vld [vmem:[%s8645 + $0xe0] sm:$0xff]
        %v8675 = vld [vmem:[%s8645 + $0xe8] sm:$0xff]
        %v8676 = vld [vmem:[%s8645 + $0xf0] sm:$0xff]
        %v8677 = vld [vmem:[%s8645 + $0xf8] sm:$0xff]
        %v8678 = vld [vmem:[%s8645 + $0x100] sm:$0xff]
        %v8679 = vld [vmem:[%s8645 + $0x108] sm:$0xff]
        %v8680 = vld [vmem:[%s8645 + $0x110] sm:$0xff]
        %v8681 = vld [vmem:[%s8645 + $0x118] sm:$0xff]
        %v8682 = vld [vmem:[%s8645 + $0x120] sm:$0xff]
        %v8683 = vld [vmem:[%s8645 + $0x128] sm:$0xff]
        %v8684 = vld [vmem:[%s8645 + $0x130] sm:$0xff]
        %v8685 = vld [vmem:[%s8645 + $0x138] sm:$0xff]
        %v8686 = vld [vmem:[%s8645 + $0x140] sm:$0xff]
        %v8687 = vld [vmem:[%s8645 + $0x148] sm:$0xff]
        %v8688 = vld [vmem:[%s8645 + $0x150] sm:$0xff]
        %v8689 = vld [vmem:[%s8645 + $0x158] sm:$0xff]
        %v8690 = vld [vmem:[%s8645 + $0x160] sm:$0xff]
        %v8691 = vld [vmem:[%s8645 + $0x168] sm:$0xff]
        %v8692 = vld [vmem:[%s8645 + $0x170] sm:$0xff]
        %v8693 = vld [vmem:[%s8645 + $0x178] sm:$0xff]
        %v8694 = vrot.slane %v6100, 5
        %v8695 = vrot.slane %v6101, 5
        %v8696 = vrot.slane %v6102, 5
        %8700 = vmatprep.subr.mxu0 0.0
        %8701 = vmatpush1.msra.mxu0 %v8646
        %8702 = vmatprep.subr.mxu0 0.0
        %8703 = vmatpush1.msra.mxu0 %v8647
        %8704 = vmatprep.subr.mxu0 0.0
        %8705 = vmatpush1.msra.mxu0 %v8648
        %8706 = vmatprep.subr.mxu0 0.0
        %8707 = vmatpush1.msra.mxu0 %v8649
        %8708 = vmatprep.subr.mxu0 0.0
        %8709 = vmatpush1.msra.mxu0 %v8650
        %8710 = vmatprep.subr.mxu0 0.0
        %8711 = vmatpush1.msra.mxu0 %v8651
        %8712 = vmatprep.subr.mxu0 0.0
        %8713 = vmatpush1.msra.mxu0 %v8652
        %8714 = vmatprep.subr.mxu0 0.0
        %8715 = vmatpush1.msra.mxu0 %v8653
        %8716 = vmatprep.subr.mxu0 0.0
        %8717 = vmatpush1.msra.mxu0 %v8654
        %8718 = vmatprep.subr.mxu0 0.0
        %8719 = vmatpush1.msra.mxu0 %v8655
        %8720 = vmatprep.subr.mxu0 0.0
        %8721 = vmatpush1.msra.mxu0 %v8656
        %8722 = vmatprep.subr.mxu0 0.0
        %8723 = vmatpush1.msra.mxu0 %v8657
        %8724 = vmatprep.subr.mxu0 0.0
        %8725 = vmatpush1.msra.mxu0 %v8658
        %8726 = vmatprep.subr.mxu0 0.0
        %8727 = vmatpush1.msra.mxu0 %v8659
        %8728 = vmatprep.subr.mxu0 0.0
        %8729 = vmatpush1.msra.mxu0 %v8660
        %8730 = vmatprep.subr.mxu0 0.0
        %8731 = vmatpush1.msra.mxu0 %v8661
        %8732 = vmatprep.subr.mxu0 0.0
        %8733 = vmatpush1.msra.mxu0 %v8662
        %8734 = vmatprep.subr.mxu0 0.0
        %8735 = vmatpush1.msra.mxu0 %v8663
        %8736 = vmatprep.subr.mxu0 0.0
        %8737 = vmatpush1.msra.mxu0 %v8664
        %8738 = vmatprep.subr.mxu0 0.0
        %8739 = vmatpush1.msra.mxu0 %v8665
        %8740 = vmatprep.subr.mxu0 0.0
        %8741 = vmatpush1.msra.mxu0 %v8666
        %8742 = vmatprep.subr.mxu0 0.0
        %8743 = vmatpush1.msra.mxu0 %v8667
        %8744 = vmatprep.subr.mxu0 0.0
        %8745 = vmatpush1.msra.mxu0 %v8668
        %8746 = vmatprep.subr.mxu0 0.0
        %8747 = vmatpush1.msra.mxu0 %v8669
        %8748 = vmatprep.subr.mxu0 0.0
        %8749 = vmatpush1.msra.mxu0 %v8670
        %8750 = vmatprep.subr.mxu0 0.0
        %8751 = vmatpush1.msra.mxu0 %v8671
        %8752 = vmatprep.subr.mxu0 0.0
        %8753 = vmatpush1.msra.mxu0 %v8672
        %8754 = vmatprep.subr.mxu0 0.0
        %8755 = vmatpush1.msra.mxu0 %v8673
        %8756 = vmatprep.subr.mxu0 0.0
        %8757 = vmatpush1.msra.mxu0 %v8674
        %8758 = vmatprep.subr.mxu0 0.0
        %8759 = vmatpush1.msra.mxu0 %v8675
        %8760 = vmatprep.subr.mxu0 0.0
        %8761 = vmatpush1.msra.mxu0 %v8676
        %8762 = vmatprep.subr.mxu0 0.0
        %8763 = vmatpush1.msra.mxu0 %v8677
        %8764 = vmatprep.mubr.f32.mxu0 %v8695
        %8765 = vmatmul.mubr.f32.gmra.mrb[0].mxu0 %v8694
        %v8766 = vpop.f32.mrb[0].mxu0
        %v8767 = vadd.f32 0.0, %v8766
        %v8768 = vpop.f32.mrb[0].mxu0
        %8769 = vdwg.mxu0
        %8770 = vmatprep.subr.mxu0 0.0
        %8771 = vmatpush1.msra.mxu0 %v8678
        %8772 = vmatprep.subr.mxu0 0.0
        %8773 = vmatpush1.msra.mxu0 %v8679
        %8774 = vmatprep.subr.mxu0 0.0
        %8775 = vmatpush1.msra.mxu0 %v8680
        %8776 = vmatprep.subr.mxu0 0.0
        %8777 = vmatpush1.msra.mxu0 %v8681
        %8778 = vmatprep.subr.mxu0 0.0
        %8779 = vmatpush1.msra.mxu0 %v8682
        %8780 = vmatprep.subr.mxu0 0.0
        %8781 = vmatpush1.msra.mxu0 %v8683
        %8782 = vmatprep.subr.mxu0 0.0
        %8783 = vmatpush1.msra.mxu0 %v8684
        %8784 = vmatprep.subr.mxu0 0.0
        %8785 = vmatpush1.msra.mxu0 %v8685
        %8786 = vmatprep.subr.mxu0 0.0
        %8787 = vmatpush1.msra.mxu0 %v8686
        %8788 = vmatprep.subr.mxu0 0.0
        %8789 = vmatpush1.msra.mxu0 %v8687
        %8790 = vmatprep.subr.mxu0 0.0
        %8791 = vmatpush1.msra.mxu0 %v8688
        %8792 = vmatprep.subr.mxu0 0.0
        %8793 = vmatpush1.msra.mxu0 %v8689
        %8794 = vmatprep.subr.mxu0 0.0
        %8795 = vmatpush1.msra.mxu0 %v8690
        %8796 = vmatprep.subr.mxu0 0.0
        %8797 = vmatpush1.msra.mxu0 %v8691
        %8798 = vmatprep.subr.mxu0 0.0
        %8799 = vmatpush1.msra.mxu0 %v8692
        %8800 = vmatprep.subr.mxu0 0.0
        %8801 = vmatpush1.msra.mxu0 %v8693
        %8802 = vmatprep.subr.mxu0 0.0
        %8803 = vmatpush1.msra.mxu0 0.0
        %8804 = vmatprep.subr.mxu0 0.0
        %8805 = vmatpush1.msra.mxu0 0.0
        %8806 = vmatprep.subr.mxu0 0.0
        %8807 = vmatpush1.msra.mxu0 0.0
        %8808 = vmatprep.subr.mxu0 0.0
        %8809 = vmatpush1.msra.mxu0 0.0
        %8810 = vmatprep.subr.mxu0 0.0
        %8811 = vmatpush1.msra.mxu0 0.0
        %8812 = vmatprep.subr.mxu0 0.0
        %8813 = vmatpush1.msra.mxu0 0.0
        %8814 = vmatprep.subr.mxu0 0.0
        %8815 = vmatpush1.msra.mxu0 0.0
        %8816 = vmatprep.subr.mxu0 0.0
        %8817 = vmatpush1.msra.mxu0 0.0
        %8818 = vmatprep.subr.mxu0 0.0
        %8819 = vmatpush1.msra.mxu0 0.0
        %8820 = vmatprep.subr.mxu0 0.0
        %8821 = vmatpush1.msra.mxu0 0.0
        %8822 = vmatprep.subr.mxu0 0.0
        %8823 = vmatpush1.msra.mxu0 0.0
        %8824 = vmatprep.subr.mxu0 0.0
        %8825 = vmatpush1.msra.mxu0 0.0
        %8826 = vmatprep.subr.mxu0 0.0
        %8827 = vmatpush1.msra.mxu0 0.0
        %8828 = vmatprep.subr.mxu0 0.0
        %8829 = vmatpush1.msra.mxu0 0.0
        %8830 = vmatprep.subr.mxu0 0.0
        %8831 = vmatpush1.msra.mxu0 0.0
        %8832 = vmatprep.subr.mxu0 0.0
        %8833 = vmatpush1.msra.mxu0 0.0
        %8834 = vmatprep.mubr.f32.mxu0 0.0
        %8835 = vmatmul.mubr.f32.gmra.mrb[0].mxu0 %v8696
        %v8836 = vpop.f32.mrb[0].mxu0
        %v8837 = vadd.f32 %v8767, %v8836
        %v8838 = vpop.f32.mrb[0].mxu0
        %8839 = vdwg.mxu0
        %v8840 = vadd.f32 %v8644, %v8837
        %s8841 = scalar_lea.vmem %s11, 5376
        %v8842 = vld [vmem:[%s8841] sm:$0xff]
        %v8843 = vld [vmem:[%s8841 + $0x8] sm:$0xff]
        %v8844 = vld [vmem:[%s8841 + $0x10] sm:$0xff]
        %v8845 = vld [vmem:[%s8841 + $0x18] sm:$0xff]
        %v8846 = vld [vmem:[%s8841 + $0x20] sm:$0xff]
        %v8847 = vld [vmem:[%s8841 + $0x28] sm:$0xff]
        %v8848 = vld [vmem:[%s8841 + $0x30] sm:$0xff]
        %v8849 = vld [vmem:[%s8841 + $0x38] sm:$0xff]
        %v8850 = vld [vmem:[%s8841 + $0x40] sm:$0xff]
        %v8851 = vld [vmem:[%s8841 + $0x48] sm:$0xff]
        %v8852 = vld [vmem:[%s8841 + $0x50] sm:$0xff]
        %v8853 = vld [vmem:[%s8841 + $0x58] sm:$0xff]
        %v8854 = vld [vmem:[%s8841 + $0x60] sm:$0xff]
        %v8855 = vld [vmem:[%s8841 + $0x68] sm:$0xff]
        %v8856 = vld [vmem:[%s8841 + $0x70] sm:$0xff]
        %v8857 = vld [vmem:[%s8841 + $0x78] sm:$0xff]
        %v8858 = vld [vmem:[%s8841 + $0x80] sm:$0xff]
        %v8859 = vld [vmem:[%s8841 + $0x88] sm:$0xff]
        %v8860 = vld [vmem:[%s8841 + $0x90] sm:$0xff]
        %v8861 = vld [vmem:[%s8841 + $0x98] sm:$0xff]
        %v8862 = vld [vmem:[%s8841 + $0xa0] sm:$0xff]
        %v8863 = vld [vmem:[%s8841 + $0xa8] sm:$0xff]
        %v8864 = vld [vmem:[%s8841 + $0xb0] sm:$0xff]
        %v8865 = vld [vmem:[%s8841 + $0xb8] sm:$0xff]
        %v8866 = vld [vmem:[%s8841 + $0xc0] sm:$0xff]
        %v8867 = vld [vmem:[%s8841 + $0xc8] sm:$0xff]
        %v8868 = vld [vmem:[%s8841 + $0xd0] sm:$0xff]
        %v8869 = vld [vmem:[%s8841 + $0xd8] sm:$0xff]
        %v8870 = vld [vmem:[%s8841 + $0xe0] sm:$0xff]
        %v8871 = vld [vmem:[%s8841 + $0xe8] sm:$0xff]
        %v8872 = vld [vmem:[%s8841 + $0xf0] sm:$0xff]
        %v8873 = vld [vmem:[%s8841 + $0xf8] sm:$0xff]
        %v8874 = vld [vmem:[%s8841 + $0x100] sm:$0xff]
        %v8875 = vld [vmem:[%s8841 + $0x108] sm:$0xff]
        %v8876 = vld [vmem:[%s8841 + $0x110] sm:$0xff]
        %v8877 = vld [vmem:[%s8841 + $0x118] sm:$0xff]
        %v8878 = vld [vmem:[%s8841 + $0x120] sm:$0xff]
        %v8879 = vld [vmem:[%s8841 + $0x128] sm:$0xff]
        %v8880 = vld [vmem:[%s8841 + $0x130] sm:$0xff]
        %v8881 = vld [vmem:[%s8841 + $0x138] sm:$0xff]
        %v8882 = vld [vmem:[%s8841 + $0x140] sm:$0xff]
        %v8883 = vld [vmem:[%s8841 + $0x148] sm:$0xff]
        %v8884 = vld [vmem:[%s8841 + $0x150] sm:$0xff]
        %v8885 = vld [vmem:[%s8841 + $0x158] sm:$0xff]
        %v8886 = vld [vmem:[%s8841 + $0x160] sm:$0xff]
        %v8887 = vld [vmem:[%s8841 + $0x168] sm:$0xff]
        %v8888 = vld [vmem:[%s8841 + $0x170] sm:$0xff]
        %v8889 = vld [vmem:[%s8841 + $0x178] sm:$0xff]
        %v8890 = vrot.slane %v6100, 6
        %v8891 = vrot.slane %v6101, 6
        %v8892 = vrot.slane %v6102, 6
        %8896 = vmatprep.subr.mxu0 0.0
        %8897 = vmatpush1.msra.mxu0 %v8842
        %8898 = vmatprep.subr.mxu0 0.0
        %8899 = vmatpush1.msra.mxu0 %v8843
        %8900 = vmatprep.subr.mxu0 0.0
        %8901 = vmatpush1.msra.mxu0 %v8844
        %8902 = vmatprep.subr.mxu0 0.0
        %8903 = vmatpush1.msra.mxu0 %v8845
        %8904 = vmatprep.subr.mxu0 0.0
        %8905 = vmatpush1.msra.mxu0 %v8846
        %8906 = vmatprep.subr.mxu0 0.0
        %8907 = vmatpush1.msra.mxu0 %v8847
        %8908 = vmatprep.subr.mxu0 0.0
        %8909 = vmatpush1.msra.mxu0 %v8848
        %8910 = vmatprep.subr.mxu0 0.0
        %8911 = vmatpush1.msra.mxu0 %v8849
        %8912 = vmatprep.subr.mxu0 0.0
        %8913 = vmatpush1.msra.mxu0 %v8850
        %8914 = vmatprep.subr.mxu0 0.0
        %8915 = vmatpush1.msra.mxu0 %v8851
        %8916 = vmatprep.subr.mxu0 0.0
        %8917 = vmatpush1.msra.mxu0 %v8852
        %8918 = vmatprep.subr.mxu0 0.0
        %8919 = vmatpush1.msra.mxu0 %v8853
        %8920 = vmatprep.subr.mxu0 0.0
        %8921 = vmatpush1.msra.mxu0 %v8854
        %8922 = vmatprep.subr.mxu0 0.0
        %8923 = vmatpush1.msra.mxu0 %v8855
        %8924 = vmatprep.subr.mxu0 0.0
        %8925 = vmatpush1.msra.mxu0 %v8856
        %8926 = vmatprep.subr.mxu0 0.0
        %8927 = vmatpush1.msra.mxu0 %v8857
        %8928 = vmatprep.subr.mxu0 0.0
        %8929 = vmatpush1.msra.mxu0 %v8858
        %8930 = vmatprep.subr.mxu0 0.0
        %8931 = vmatpush1.msra.mxu0 %v8859
        %8932 = vmatprep.subr.mxu0 0.0
        %8933 = vmatpush1.msra.mxu0 %v8860
        %8934 = vmatprep.subr.mxu0 0.0
        %8935 = vmatpush1.msra.mxu0 %v8861
        %8936 = vmatprep.subr.mxu0 0.0
        %8937 = vmatpush1.msra.mxu0 %v8862
        %8938 = vmatprep.subr.mxu0 0.0
        %8939 = vmatpush1.msra.mxu0 %v8863
        %8940 = vmatprep.subr.mxu0 0.0
        %8941 = vmatpush1.msra.mxu0 %v8864
        %8942 = vmatprep.subr.mxu0 0.0
        %8943 = vmatpush1.msra.mxu0 %v8865
        %8944 = vmatprep.subr.mxu0 0.0
        %8945 = vmatpush1.msra.mxu0 %v8866
        %8946 = vmatprep.subr.mxu0 0.0
        %8947 = vmatpush1.msra.mxu0 %v8867
        %8948 = vmatprep.subr.mxu0 0.0
        %8949 = vmatpush1.msra.mxu0 %v8868
        %8950 = vmatprep.subr.mxu0 0.0
        %8951 = vmatpush1.msra.mxu0 %v8869
        %8952 = vmatprep.subr.mxu0 0.0
        %8953 = vmatpush1.msra.mxu0 %v8870
        %8954 = vmatprep.subr.mxu0 0.0
        %8955 = vmatpush1.msra.mxu0 %v8871
        %8956 = vmatprep.subr.mxu0 0.0
        %8957 = vmatpush1.msra.mxu0 %v8872
        %8958 = vmatprep.subr.mxu0 0.0
        %8959 = vmatpush1.msra.mxu0 %v8873
        %8960 = vmatprep.mubr.f32.mxu0 %v8891
        %8961 = vmatmul.mubr.f32.gmra.mrb[0].mxu0 %v8890
        %v8962 = vpop.f32.mrb[0].mxu0
        %v8963 = vadd.f32 0.0, %v8962
        %v8964 = vpop.f32.mrb[0].mxu0
        %8965 = vdwg.mxu0
        %8966 = vmatprep.subr.mxu0 0.0
        %8967 = vmatpush1.msra.mxu0 %v8874
        %8968 = vmatprep.subr.mxu0 0.0
        %8969 = vmatpush1.msra.mxu0 %v8875
        %8970 = vmatprep.subr.mxu0 0.0
        %8971 = vmatpush1.msra.mxu0 %v8876
        %8972 = vmatprep.subr.mxu0 0.0
        %8973 = vmatpush1.msra.mxu0 %v8877
        %8974 = vmatprep.subr.mxu0 0.0
        %8975 = vmatpush1.msra.mxu0 %v8878
        %8976 = vmatprep.subr.mxu0 0.0
        %8977 = vmatpush1.msra.mxu0 %v8879
        %8978 = vmatprep.subr.mxu0 0.0
        %8979 = vmatpush1.msra.mxu0 %v8880
        %8980 = vmatprep.subr.mxu0 0.0
        %8981 = vmatpush1.msra.mxu0 %v8881
        %8982 = vmatprep.subr.mxu0 0.0
        %8983 = vmatpush1.msra.mxu0 %v8882
        %8984 = vmatprep.subr.mxu0 0.0
        %8985 = vmatpush1.msra.mxu0 %v8883
        %8986 = vmatprep.subr.mxu0 0.0
        %8987 = vmatpush1.msra.mxu0 %v8884
        %8988 = vmatprep.subr.mxu0 0.0
        %8989 = vmatpush1.msra.mxu0 %v8885
        %8990 = vmatprep.subr.mxu0 0.0
        %8991 = vmatpush1.msra.mxu0 %v8886
        %8992 = vmatprep.subr.mxu0 0.0
        %8993 = vmatpush1.msra.mxu0 %v8887
        %8994 = vmatprep.subr.mxu0 0.0
        %8995 = vmatpush1.msra.mxu0 %v8888
        %8996 = vmatprep.subr.mxu0 0.0
        %8997 = vmatpush1.msra.mxu0 %v8889
        %8998 = vmatprep.subr.mxu0 0.0
        %8999 = vmatpush1.msra.mxu0 0.0
        %9000 = vmatprep.subr.mxu0 0.0
        %9001 = vmatpush1.msra.mxu0 0.0
        %9002 = vmatprep.subr.mxu0 0.0
        %9003 = vmatpush1.msra.mxu0 0.0
        %9004 = vmatprep.subr.mxu0 0.0
        %9005 = vmatpush1.msra.mxu0 0.0
        %9006 = vmatprep.subr.mxu0 0.0
        %9007 = vmatpush1.msra.mxu0 0.0
        %9008 = vmatprep.subr.mxu0 0.0
        %9009 = vmatpush1.msra.mxu0 0.0
        %9010 = vmatprep.subr.mxu0 0.0
        %9011 = vmatpush1.msra.mxu0 0.0
        %9012 = vmatprep.subr.mxu0 0.0
        %9013 = vmatpush1.msra.mxu0 0.0
        %9014 = vmatprep.subr.mxu0 0.0
        %9015 = vmatpush1.msra.mxu0 0.0
        %9016 = vmatprep.subr.mxu0 0.0
        %9017 = vmatpush1.msra.mxu0 0.0
        %9018 = vmatprep.subr.mxu0 0.0
        %9019 = vmatpush1.msra.mxu0 0.0
        %9020 = vmatprep.subr.mxu0 0.0
        %9021 = vmatpush1.msra.mxu0 0.0
        %9022 = vmatprep.subr.mxu0 0.0
        %9023 = vmatpush1.msra.mxu0 0.0
        %9024 = vmatprep.subr.mxu0 0.0
        %9025 = vmatpush1.msra.mxu0 0.0
        %9026 = vmatprep.subr.mxu0 0.0
        %9027 = vmatpush1.msra.mxu0 0.0
        %9028 = vmatprep.subr.mxu0 0.0
        %9029 = vmatpush1.msra.mxu0 0.0
        %9030 = vmatprep.mubr.f32.mxu0 0.0
        %9031 = vmatmul.mubr.f32.gmra.mrb[0].mxu0 %v8892
        %v9032 = vpop.f32.mrb[0].mxu0
        %v9033 = vadd.f32 %v8963, %v9032
        %v9034 = vpop.f32.mrb[0].mxu0
        %9035 = vdwg.mxu0
        %v9036 = vadd.f32 %v8840, %v9033
        %s9037 = scalar_lea.vmem %s11, 5760
        %v9038 = vld [vmem:[%s9037] sm:$0xff]
        %v9039 = vld [vmem:[%s9037 + $0x8] sm:$0xff]
        %v9040 = vld [vmem:[%s9037 + $0x10] sm:$0xff]
        %v9041 = vld [vmem:[%s9037 + $0x18] sm:$0xff]
        %v9042 = vld [vmem:[%s9037 + $0x20] sm:$0xff]
        %v9043 = vld [vmem:[%s9037 + $0x28] sm:$0xff]
        %v9044 = vld [vmem:[%s9037 + $0x30] sm:$0xff]
        %v9045 = vld [vmem:[%s9037 + $0x38] sm:$0xff]
        %v9046 = vld [vmem:[%s9037 + $0x40] sm:$0xff]
        %v9047 = vld [vmem:[%s9037 + $0x48] sm:$0xff]
        %v9048 = vld [vmem:[%s9037 + $0x50] sm:$0xff]
        %v9049 = vld [vmem:[%s9037 + $0x58] sm:$0xff]
        %v9050 = vld [vmem:[%s9037 + $0x60] sm:$0xff]
        %v9051 = vld [vmem:[%s9037 + $0x68] sm:$0xff]
        %v9052 = vld [vmem:[%s9037 + $0x70] sm:$0xff]
        %v9053 = vld [vmem:[%s9037 + $0x78] sm:$0xff]
        %v9054 = vld [vmem:[%s9037 + $0x80] sm:$0xff]
        %v9055 = vld [vmem:[%s9037 + $0x88] sm:$0xff]
        %v9056 = vld [vmem:[%s9037 + $0x90] sm:$0xff]
        %v9057 = vld [vmem:[%s9037 + $0x98] sm:$0xff]
        %v9058 = vld [vmem:[%s9037 + $0xa0] sm:$0xff]
        %v9059 = vld [vmem:[%s9037 + $0xa8] sm:$0xff]
        %v9060 = vld [vmem:[%s9037 + $0xb0] sm:$0xff]
        %v9061 = vld [vmem:[%s9037 + $0xb8] sm:$0xff]
        %v9062 = vld [vmem:[%s9037 + $0xc0] sm:$0xff]
        %v9063 = vld [vmem:[%s9037 + $0xc8] sm:$0xff]
        %v9064 = vld [vmem:[%s9037 + $0xd0] sm:$0xff]
        %v9065 = vld [vmem:[%s9037 + $0xd8] sm:$0xff]
        %v9066 = vld [vmem:[%s9037 + $0xe0] sm:$0xff]
        %v9067 = vld [vmem:[%s9037 + $0xe8] sm:$0xff]
        %v9068 = vld [vmem:[%s9037 + $0xf0] sm:$0xff]
        %v9069 = vld [vmem:[%s9037 + $0xf8] sm:$0xff]
        %v9070 = vld [vmem:[%s9037 + $0x100] sm:$0xff]
        %v9071 = vld [vmem:[%s9037 + $0x108] sm:$0xff]
        %v9072 = vld [vmem:[%s9037 + $0x110] sm:$0xff]
        %v9073 = vld [vmem:[%s9037 + $0x118] sm:$0xff]
        %v9074 = vld [vmem:[%s9037 + $0x120] sm:$0xff]
        %v9075 = vld [vmem:[%s9037 + $0x128] sm:$0xff]
        %v9076 = vld [vmem:[%s9037 + $0x130] sm:$0xff]
        %v9077 = vld [vmem:[%s9037 + $0x138] sm:$0xff]
        %v9078 = vld [vmem:[%s9037 + $0x140] sm:$0xff]
        %v9079 = vld [vmem:[%s9037 + $0x148] sm:$0xff]
        %v9080 = vld [vmem:[%s9037 + $0x150] sm:$0xff]
        %v9081 = vld [vmem:[%s9037 + $0x158] sm:$0xff]
        %v9082 = vld [vmem:[%s9037 + $0x160] sm:$0xff]
        %v9083 = vld [vmem:[%s9037 + $0x168] sm:$0xff]
        %v9084 = vld [vmem:[%s9037 + $0x170] sm:$0xff]
        %v9085 = vld [vmem:[%s9037 + $0x178] sm:$0xff]
        %v9086 = vrot.slane %v6100, 7
        %v9087 = vrot.slane %v6101, 7
        %v9088 = vrot.slane %v6102, 7
        %9092 = vmatprep.subr.mxu0 0.0
        %9093 = vmatpush1.msra.mxu0 %v9038
        %9094 = vmatprep.subr.mxu0 0.0
        %9095 = vmatpush1.msra.mxu0 %v9039
        %9096 = vmatprep.subr.mxu0 0.0
        %9097 = vmatpush1.msra.mxu0 %v9040
        %9098 = vmatprep.subr.mxu0 0.0
        %9099 = vmatpush1.msra.mxu0 %v9041
        %9100 = vmatprep.subr.mxu0 0.0
        %9101 = vmatpush1.msra.mxu0 %v9042
        %9102 = vmatprep.subr.mxu0 0.0
        %9103 = vmatpush1.msra.mxu0 %v9043
        %9104 = vmatprep.subr.mxu0 0.0
        %9105 = vmatpush1.msra.mxu0 %v9044
        %9106 = vmatprep.subr.mxu0 0.0
        %9107 = vmatpush1.msra.mxu0 %v9045
        %9108 = vmatprep.subr.mxu0 0.0
        %9109 = vmatpush1.msra.mxu0 %v9046
        %9110 = vmatprep.subr.mxu0 0.0
        %9111 = vmatpush1.msra.mxu0 %v9047
        %9112 = vmatprep.subr.mxu0 0.0
        %9113 = vmatpush1.msra.mxu0 %v9048
        %9114 = vmatprep.subr.mxu0 0.0
        %9115 = vmatpush1.msra.mxu0 %v9049
        %9116 = vmatprep.subr.mxu0 0.0
        %9117 = vmatpush1.msra.mxu0 %v9050
        %9118 = vmatprep.subr.mxu0 0.0
        %9119 = vmatpush1.msra.mxu0 %v9051
        %9120 = vmatprep.subr.mxu0 0.0
        %9121 = vmatpush1.msra.mxu0 %v9052
        %9122 = vmatprep.subr.mxu0 0.0
        %9123 = vmatpush1.msra.mxu0 %v9053
        %9124 = vmatprep.subr.mxu0 0.0
        %9125 = vmatpush1.msra.mxu0 %v9054
        %9126 = vmatprep.subr.mxu0 0.0
        %9127 = vmatpush1.msra.mxu0 %v9055
        %9128 = vmatprep.subr.mxu0 0.0
        %9129 = vmatpush1.msra.mxu0 %v9056
        %9130 = vmatprep.subr.mxu0 0.0
        %9131 = vmatpush1.msra.mxu0 %v9057
        %9132 = vmatprep.subr.mxu0 0.0
        %9133 = vmatpush1.msra.mxu0 %v9058
        %9134 = vmatprep.subr.mxu0 0.0
        %9135 = vmatpush1.msra.mxu0 %v9059
        %9136 = vmatprep.subr.mxu0 0.0
        %9137 = vmatpush1.msra.mxu0 %v9060
        %9138 = vmatprep.subr.mxu0 0.0
        %9139 = vmatpush1.msra.mxu0 %v9061
        %9140 = vmatprep.subr.mxu0 0.0
        %9141 = vmatpush1.msra.mxu0 %v9062
        %9142 = vmatprep.subr.mxu0 0.0
        %9143 = vmatpush1.msra.mxu0 %v9063
        %9144 = vmatprep.subr.mxu0 0.0
        %9145 = vmatpush1.msra.mxu0 %v9064
        %9146 = vmatprep.subr.mxu0 0.0
        %9147 = vmatpush1.msra.mxu0 %v9065
        %9148 = vmatprep.subr.mxu0 0.0
        %9149 = vmatpush1.msra.mxu0 %v9066
        %9150 = vmatprep.subr.mxu0 0.0
        %9151 = vmatpush1.msra.mxu0 %v9067
        %9152 = vmatprep.subr.mxu0 0.0
        %9153 = vmatpush1.msra.mxu0 %v9068
        %9154 = vmatprep.subr.mxu0 0.0
        %9155 = vmatpush1.msra.mxu0 %v9069
        %9156 = vmatprep.mubr.f32.mxu0 %v9087
        %9157 = vmatmul.mubr.f32.gmra.mrb[0].mxu0 %v9086
        %v9158 = vpop.f32.mrb[0].mxu0
        %v9159 = vadd.f32 0.0, %v9158
        %v9160 = vpop.f32.mrb[0].mxu0
        %9161 = vdwg.mxu0
        %9162 = vmatprep.subr.mxu0 0.0
        %9163 = vmatpush1.msra.mxu0 %v9070
        %9164 = vmatprep.subr.mxu0 0.0
        %9165 = vmatpush1.msra.mxu0 %v9071
        %9166 = vmatprep.subr.mxu0 0.0
        %9167 = vmatpush1.msra.mxu0 %v9072
        %9168 = vmatprep.subr.mxu0 0.0
        %9169 = vmatpush1.msra.mxu0 %v9073
        %9170 = vmatprep.subr.mxu0 0.0
        %9171 = vmatpush1.msra.mxu0 %v9074
        %9172 = vmatprep.subr.mxu0 0.0
        %9173 = vmatpush1.msra.mxu0 %v9075
        %9174 = vmatprep.subr.mxu0 0.0
        %9175 = vmatpush1.msra.mxu0 %v9076
        %9176 = vmatprep.subr.mxu0 0.0
        %9177 = vmatpush1.msra.mxu0 %v9077
        %9178 = vmatprep.subr.mxu0 0.0
        %9179 = vmatpush1.msra.mxu0 %v9078
        %9180 = vmatprep.subr.mxu0 0.0
        %9181 = vmatpush1.msra.mxu0 %v9079
        %9182 = vmatprep.subr.mxu0 0.0
        %9183 = vmatpush1.msra.mxu0 %v9080
        %9184 = vmatprep.subr.mxu0 0.0
        %9185 = vmatpush1.msra.mxu0 %v9081
        %9186 = vmatprep.subr.mxu0 0.0
        %9187 = vmatpush1.msra.mxu0 %v9082
        %9188 = vmatprep.subr.mxu0 0.0
        %9189 = vmatpush1.msra.mxu0 %v9083
        %9190 = vmatprep.subr.mxu0 0.0
        %9191 = vmatpush1.msra.mxu0 %v9084
        %9192 = vmatprep.subr.mxu0 0.0
        %9193 = vmatpush1.msra.mxu0 %v9085
        %9194 = vmatprep.subr.mxu0 0.0
        %9195 = vmatpush1.msra.mxu0 0.0
        %9196 = vmatprep.subr.mxu0 0.0
        %9197 = vmatpush1.msra.mxu0 0.0
        %9198 = vmatprep.subr.mxu0 0.0
        %9199 = vmatpush1.msra.mxu0 0.0
        %9200 = vmatprep.subr.mxu0 0.0
        %9201 = vmatpush1.msra.mxu0 0.0
        %9202 = vmatprep.subr.mxu0 0.0
        %9203 = vmatpush1.msra.mxu0 0.0
        %9204 = vmatprep.subr.mxu0 0.0
        %9205 = vmatpush1.msra.mxu0 0.0
        %9206 = vmatprep.subr.mxu0 0.0
        %9207 = vmatpush1.msra.mxu0 0.0
        %9208 = vmatprep.subr.mxu0 0.0
        %9209 = vmatpush1.msra.mxu0 0.0
        %9210 = vmatprep.subr.mxu0 0.0
        %9211 = vmatpush1.msra.mxu0 0.0
        %9212 = vmatprep.subr.mxu0 0.0
        %9213 = vmatpush1.msra.mxu0 0.0
        %9214 = vmatprep.subr.mxu0 0.0
        %9215 = vmatpush1.msra.mxu0 0.0
        %9216 = vmatprep.subr.mxu0 0.0
        %9217 = vmatpush1.msra.mxu0 0.0
        %9218 = vmatprep.subr.mxu0 0.0
        %9219 = vmatpush1.msra.mxu0 0.0
        %9220 = vmatprep.subr.mxu0 0.0
        %9221 = vmatpush1.msra.mxu0 0.0
        %9222 = vmatprep.subr.mxu0 0.0
        %9223 = vmatpush1.msra.mxu0 0.0
        %9224 = vmatprep.subr.mxu0 0.0
        %9225 = vmatpush1.msra.mxu0 0.0
        %9226 = vmatprep.mubr.f32.mxu0 0.0
        %9227 = vmatmul.mubr.f32.gmra.mrb[0].mxu0 %v9088
        %v9228 = vpop.f32.mrb[0].mxu0
        %v9229 = vadd.f32 %v9159, %v9228
        %v9230 = vpop.f32.mrb[0].mxu0
        %9231 = vdwg.mxu0
        %v9232 = vadd.f32 %v9036, %v9229
        %vm9233 = vcmask 73728
        %9234 = vst.msk [vmem:[%s462] sm:$0x1] %vm9233, %v9232
        %s9235 = sand.u32 %s315, 1
        %s9236 = scalar_lea.sflag [#allocation4], %s9235
        %s9237 = sand.u32 %s315, 1
        %s9238 = scalar_lea.vmem [#allocation7], %s9237
        // Predicated region
        $region81: #{pallas_forward.1} parent=71 // pred_check
          %p9239 = pneg %p325
        $region82: #{pallas_forward.1} parent=71 // pred_check_branch
          %9241 = sbr.rel (%p9239) target = $region84
        $region83: #{pallas_forward.1} parent=71 // pred_region
          %s9243 = ssub.s32 16, 16
          %9244 = vsyncadd %s9236, %s9243
          %s9245 = smul.addr %s29, 16
          %s9246 = scalar_lea.hbm %s13, %s9245
          %s9248 = sshll.u32 %s9238, 4
          %s9249 = int_to_ptr.vmem [resolvable:$true] %s9248
          %9251 = dma.vmem_to_hbm [thread:$0]  %s9249, 16, %s9246, %s9236
        $region84: #{pallas_forward.1} parent=71 // pred_fallthru
          _
      $region72: #{pallas_forward.1} parent=5 // pred_fallthru
        _
      %p9252 = scmp.le.s32.totalorder 2, %s24
      // Predicated region
      $region85: #{pallas_forward.1} parent=5 // pred_check
        %p9253 = pneg %p9252
      $region86: #{pallas_forward.1} parent=5 // pred_check_branch
        %9255 = sbr.rel (%p9253) target = $region88
      $region87: #{pallas_forward.1} parent=5 // pred_region
        %s9256 = ssub.s32 %s24, 2
        // Predicated region
        $region89: #{pallas_forward.1} parent=87 // pred_check
          %p9257 = pneg %p331
        $region90: #{pallas_forward.1} parent=87 // pred_check_branch
          %9259 = sbr.rel (%p9257) target = $region92
        $region91: #{pallas_forward.1} parent=87 // pred_region
          %s9260 = sand.u32 %s316, 1
          %s9261 = scalar_lea.sflag [#allocation4], %s9260
          %s9262 = sand.u32 %s316, 1
          %s9263 = scalar_lea.vmem [#allocation7], %s9262
          %9264 = dma.done %s9261, 16
        $region92: #{pallas_forward.1} parent=87 // pred_fallthru
          _
      $region88: #{pallas_forward.1} parent=5 // pred_fallthru
        _
    $region6: #{pallas_forward.1} parent=1 // loop_footer
      %s28 = sadd.s32 1, %s24
    $region7: #{pallas_forward.1} parent=1 // loop_footer_branch
      %23 = sbr.rel target = $region3
    $region8: #{pallas_forward.1} parent=1 // loop_exit
      _
    %9265 = vsyncpa [#allocation3], 1
    %s9266 = scalar_lea.sflag [#allocation3], 1
    %9267 = vsyncpa %s9266, 1
    %9268 = vsyncpa [#allocation6], 1
    %9269 = vsyncpa [#allocation4], 1
    %s9270 = scalar_lea.sflag [#allocation4], 1
    %9271 = vsyncpa %s9270, 1

</llo_original>
